<compile_context>
chip_gen: v7x
topology: tpu7x:2x2x1
jax: 0.10.0
libtpu: 0.0.40
codegen_flags: <defaults>
</compile_context>

<pallas_src>
import functools

import jax
import jax.numpy as jnp
from jax.experimental import pallas as pl
from jax.experimental.pallas import tpu as pltpu


def _round_up(x, m):
    return ((x + m - 1) // m) * m


def _pick_row_block(h, target=8):
    # Largest divisor of h that is <= target (keeps the (TH+4)/TH halo overhead
    # bounded while guaranteeing an exact grid).
    for th in range(min(h, target), 0, -1):
        if h % th == 0:
            return th
    return h


def _basic_block_kernel(xs_ref, w1_ref, s1_ref, t1_ref, w2_ref, s2_ref, t2_ref,
                        o_ref, x3_ref, h1p_ref, h3_ref, acc_ref,
                        *, TH, W, CP, H):
    # xs_ref : (TH+4, W+2, CP) f32  input row-block slab (2-row / 1-col zero halo)
    # w*_ref : (3, 3*CP, CP)  bf16  conv weights; per ky, rows ordered (kx, cin)
    # s*/t*  : (1, CP)        f32   folded BN scale / shift
    # o_ref  : (TH, W, CP)    f32   output row block
    # x3_ref : (TH+4, W, 3*CP) bf16 scratch: kx-shifted input, lane-concatenated
    # h1p_ref: (TH+2, W+2, CP) f32  scratch: conv1 output + 1-col zero halo
    # h3_ref : (TH+2, W, 3*CP) bf16 scratch: kx-shifted conv1 output
    # acc_ref: ((TH+2)*W, CP) f32   scratch: conv1 accumulator
    r = pl.program_id(1)

    # ---- stage the three kx (width) shifts of the input slab once (bf16) ----
    for kx in range(3):
        x3_ref[:, :, kx * CP:(kx + 1) * CP] = (
            xs_ref[:, kx:kx + W, :].astype(jnp.bfloat16))

    # ---- conv1: 3 row-band matmuls, K = 3*CP, f32 accumulation in VMEM ------
    for ky in range(3):
        lhs = x3_ref[ky:ky + TH + 2].reshape((TH + 2) * W, 3 * CP)
        contrib = jnp.dot(lhs, w1_ref[ky], preferred_element_type=jnp.float32)
        if ky == 0:
            acc_ref[...] = contrib          # first tap overwrites: no memset
        else:
            acc_ref[...] += contrib

    # BN1 (folded) + ReLU in f32.  Rows of the halo that lie outside the real
    # image must become exact zeros (conv2's zero padding), not relu(bn-shift).
    h1 = jnp.maximum(acc_ref[...] * s1_ref[...] + t1_ref[...], 0.0)
    h1 = h1.reshape(TH + 2, W, CP)
    row = jax.lax.broadcasted_iota(jnp.int32, (TH + 2, 1, 1), 0) + (r * TH - 1)
    h1 = jnp.where((row >= 0) & (row < H), h1, 0.0)

    # ---- stage conv1 output with a 1-column zero halo, then its 3 kx shifts --
    h1p_ref[:, 0:1, :] = jnp.zeros((TH + 2, 1, CP), jnp.float32)
    h1p_ref[:, W + 1:W + 2, :] = jnp.zeros((TH + 2, 1, CP), jnp.float32)
    h1p_ref[:, 1:W + 1, :] = h1
    for kx in range(3):
        h3_ref[:, :, kx * CP:(kx + 1) * CP] = (
            h1p_ref[:, kx:kx + W, :].astype(jnp.bfloat16))

    # ---- conv2: 3 row-band matmuls accumulated directly into the f32 output --
    for ky in range(3):
        lhs = h3_ref[ky:ky + TH].reshape(TH * W, 3 * CP)
        contrib = jnp.dot(lhs, w2_ref[ky],
                          preferred_element_type=jnp.float32).reshape(TH, W, CP)
        if ky == 0:
            o_ref[...] = contrib
        else:
            o_ref[...] += contrib

    # ---- BN2 (folded) + identity residual + ReLU ----------------------------
    identity = xs_ref[2:TH + 2, 1:W + 1, :]           # original (f32) input rows
    o_ref[...] = jnp.maximum(
        o_ref[...] * s2_ref[...] + t2_ref[...] + identity, 0.0)


def basic_block_forward(x, conv1_w, bn1_gamma, bn1_beta, bn1_mean, bn1_var,
                        conv2_w, bn2_gamma, bn2_beta, bn2_mean, bn2_var,
                        eps=1e-5, row_block=8):
    """Fused BasicBlock forward (stride=1, downsample=None), eval-mode BN.

    x:        (N, C, H, W) float32 (PyTorch NCHW layout)
    conv*_w:  (C, C, 3, 3) float32 (PyTorch OIHW layout)
    bn*_*:    (C,) float32
    returns:  (N, C, H, W) float32
    """
    N, C, H, W = x.shape
    Cout = conv1_w.shape[0]
    assert conv1_w.shape == (Cout, C, 3, 3) and conv2_w.shape == (Cout, Cout, 3, 3)
    assert Cout == C, "identity residual path requires in_channels == out_channels"

    CP = _round_up(max(C, 128), 128)          # lane-dense channel padding
    TH = _pick_row_block(H, row_block)        # spatial (row) tile
    R = H // TH

    # NCHW -> NHWC, channel pad to CP, 2-row / 1-col zero halo, and split into
    # per-row-block slabs (each carries its own halo -> independent grid steps).
    x_nhwc = jnp.transpose(x.astype(jnp.float32), (0, 2, 3, 1))
    x_pad = jnp.pad(x_nhwc, ((0, 0), (2, 2), (1, 1), (0, CP - C)))
    slabs = jnp.stack([x_pad[:, r * TH:r * TH + TH + 4] for r in range(R)],
                      axis=1)                 # (N, R, TH+4, W+2, CP) f32

    def prep_conv(w):
        # (Cout, Cin, 3, 3) -> (3, 3*CP, CP) bf16; per ky, rows ordered (kx, cin)
        w_t = jnp.transpose(w.astype(jnp.float32), (2, 3, 1, 0))  # (ky,kx,cin,cout)
        w_t = jnp.pad(w_t, ((0, 0), (0, 0), (0, CP - C), (0, CP - Cout)))
        return w_t.reshape(3, 3 * CP, CP).astype(jnp.bfloat16)

    def fold_bn(gamma, beta, mean, var):
        scale = gamma / jnp.sqrt(var + eps)
        shift = beta - mean * scale
        scale = jnp.pad(scale, (0, CP - Cout)).reshape(1, CP).astype(jnp.float32)
        shift = jnp.pad(shift, (0, CP - Cout)).reshape(1, CP).astype(jnp.float32)
        return scale, shift

    w1p = prep_conv(conv1_w)
    w2p = prep_conv(conv2_w)
    s1, t1 = fold_bn(bn1_gamma, bn1_beta, bn1_mean, bn1_var)
    s2, t2 = fold_bn(bn2_gamma, bn2_beta, bn2_mean, bn2_var)

    kernel = functools.partial(_basic_block_kernel, TH=TH, W=W, CP=CP, H=H)

    cost = pl.CostEstimate(
        flops=int(2 * 2 * 9 * CP * CP * H * W * N),
        transcendentals=0,
        bytes_accessed=int(slabs.size * 4 + N * H * W * CP * 4
                           + (w1p.size + w2p.size) * 2
                           + (s1.size + t1.size + s2.size + t2.size) * 4),
    )

    def build(single_buffer_consts):
        const_kw = ({"pipeline_mode": pl.Buffered(1)}
                    if single_buffer_consts else {})
        w_spec = lambda: pl.BlockSpec((3, 3 * CP, CP), lambda n, r: (0, 0, 0),
                                      **const_kw)
        v_spec = lambda: pl.BlockSpec((1, CP), lambda n, r: (0, 0), **const_kw)
        return pl.pallas_call(
            kernel,
            out_shape=jax.ShapeDtypeStruct((N, R, TH, W, CP), jnp.float32),
            grid=(N, R),
            in_specs=[
                pl.BlockSpec((None, None, TH + 4, W + 2, CP),
                             lambda n, r: (n, r, 0, 0, 0)),
                w_spec(), v_spec(), v_spec(),
                w_spec(), v_spec(), v_spec(),
            ],
            out_specs=pl.BlockSpec((None, None, TH, W, CP),
                                   lambda n, r: (n, r, 0, 0, 0)),
            scratch_shapes=[
                pltpu.VMEM((TH + 4, W, 3 * CP), jnp.bfloat16),   # kx-shifted input
                pltpu.VMEM((TH + 2, W + 2, CP), jnp.float32),    # conv1 out + halo
                pltpu.VMEM((TH + 2, W, 3 * CP), jnp.bfloat16),   # kx-shifted conv1
                pltpu.VMEM(((TH + 2) * W, CP), jnp.float32),     # conv1 accumulator
            ],
            compiler_params=pltpu.CompilerParams(
                dimension_semantics=("parallel", "parallel"),
                vmem_limit_bytes=48 * 1024 * 1024,
            ),
            cost_estimate=cost,
        )

    try:
        out5 = build(True)(slabs, w1p, s1, t1, w2p, s2, t2)
        jax.block_until_ready(out5)
    except Exception:
        # pipeline_mode=pl.Buffered(1) (single-buffered constant operands) is not
        # available on every jax version; fall back to default double-buffering.
        out5 = build(False)(slabs, w1p, s1, t1, w2p, s2, t2)

    out = out5.reshape(N, H, W, CP)[..., :Cout]
    return jnp.transpose(out, (0, 3, 1, 2))


def _reference(x, w1, g1, b1, m1, v1, w2, g2, b2, m2, v2, eps=1e-5):
    def conv(z, w):
        return jax.lax.conv_general_dilated(
            z, w, window_strides=(1, 1), padding=((1, 1), (1, 1)),
            dimension_numbers=("NCHW", "OIHW", "NCHW"),
            precision=jax.lax.Precision.HIGHEST)

    def bn(z, g, b, m, v):
        return ((z - m[None, :, None, None])
                / jnp.sqrt(v[None, :, None, None] + eps)
                * g[None, :, None, None] + b[None, :, None, None])

    out = jax.nn.relu(bn(conv(x, w1), g1, b1, m1, v1))
    out = bn(conv(out, w2), g2, b2, m2, v2)
    return jax.nn.relu(out + x)


if __name__ == "__main__":
    key = jax.random.PRNGKey(0)
    ks = jax.random.split(key, 11)

    N, C, H, W = 2, 4, 16, 16
    x = jax.random.normal(ks[0], (N, C, H, W), dtype=jnp.float32)

    bound = 1.0 / (C * 9) ** 0.5  # PyTorch Conv2d default init bound
    w1 = jax.random.uniform(ks[1], (C, C, 3, 3), minval=-bound, maxval=bound,
                            dtype=jnp.float32)
    w2 = jax.random.uniform(ks[2], (C, C, 3, 3), minval=-bound, maxval=bound,
                            dtype=jnp.float32)

    g1 = jax.random.uniform(ks[3], (C,), minval=0.5, maxval=1.5, dtype=jnp.float32)
    b1 = 0.1 * jax.random.normal(ks[4], (C,), dtype=jnp.float32)
    m1 = 0.1 * jax.random.normal(ks[5], (C,), dtype=jnp.float32)
    v1 = jax.random.uniform(ks[6], (C,), minval=0.5, maxval=1.5, dtype=jnp.float32)

    g2 = jax.random.uniform(ks[7], (C,), minval=0.5, maxval=1.5, dtype=jnp.float32)
    b2 = 0.1 * jax.random.normal(ks[8], (C,), dtype=jnp.float32)
    m2 = 0.1 * jax.random.normal(ks[9], (C,), dtype=jnp.float32)
    v2 = jax.random.uniform(ks[10], (C,), minval=0.5, maxval=1.5, dtype=jnp.float32)

    y = basic_block_forward(x, w1, g1, b1, m1, v1, w2, g2, b2, m2, v2)
    jax.block_until_ready(y)

    y_ref = _reference(x, w1, g1, b1, m1, v1, w2, g2, b2, m2, v2)
    assert y.shape == (N, C, H, W)
    # bf16 MXU operands vs. an f32 HIGHEST-precision reference: tolerance is
    # intentionally looser than the previous all-f32 version (inference-grade).
    assert jnp.allclose(y, y_ref, atol=8e-2, rtol=2e-2), float(
        jnp.max(jnp.abs(y - y_ref)))

    print("KERNEL_OK")
</pallas_src>

<mosaic_0001>
module attributes {stable_mosaic.version = 11 : i64} {
  func.func @_basic_block_kernel(%arg0: i32, %arg1: i32, %arg2: memref<1x1x12x18x128xf32, #tpu.memory_space<vmem>>, %arg3: memref<3x384x128xbf16, #tpu.memory_space<vmem>>, %arg4: memref<1x128xf32, #tpu.memory_space<vmem>>, %arg5: memref<1x128xf32, #tpu.memory_space<vmem>>, %arg6: memref<3x384x128xbf16, #tpu.memory_space<vmem>>, %arg7: memref<1x128xf32, #tpu.memory_space<vmem>>, %arg8: memref<1x128xf32, #tpu.memory_space<vmem>>, %arg9: memref<1x1x8x16x128xf32, #tpu.memory_space<vmem>>, %arg10: memref<12x16x384xbf16, #tpu.memory_space<vmem>>, %arg11: memref<10x18x128xf32, #tpu.memory_space<vmem>>, %arg12: memref<10x16x384xbf16, #tpu.memory_space<vmem>>, %arg13: memref<160x128xf32, #tpu.memory_space<vmem>>) attributes {dimension_semantics = [#tpu.dimension_semantics<parallel>, #tpu.dimension_semantics<parallel>], iteration_bounds = array<i64: 2, 2>, scalar_prefetch = 0 : i64, scratch_operands = 4 : i64, tpu.core_type = #tpu.core_type<tc>, window_params = [{transform_indices = @transform_0, window_bounds = array<i64: 1, 1, 12, 18, 128>}, {pipeline_mode = #tpu.pipeline_mode<synchronous>, transform_indices = @transform_1, window_bounds = array<i64: 3, 384, 128>}, {pipeline_mode = #tpu.pipeline_mode<synchronous>, transform_indices = @transform_2, window_bounds = array<i64: 1, 128>}, {pipeline_mode = #tpu.pipeline_mode<synchronous>, transform_indices = @transform_3, window_bounds = array<i64: 1, 128>}, {pipeline_mode = #tpu.pipeline_mode<synchronous>, transform_indices = @transform_4, window_bounds = array<i64: 3, 384, 128>}, {pipeline_mode = #tpu.pipeline_mode<synchronous>, transform_indices = @transform_5, window_bounds = array<i64: 1, 128>}, {pipeline_mode = #tpu.pipeline_mode<synchronous>, transform_indices = @transform_6, window_bounds = array<i64: 1, 128>}, {transform_indices = @transform_7, window_bounds = array<i64: 1, 1, 8, 16, 128>}]} {
    %c0 = arith.constant 0 : index
    %c0_0 = arith.constant 0 : index
    %c0_1 = arith.constant 0 : index
    %c0_2 = arith.constant 0 : index
    %c0_3 = arith.constant 0 : index
    %0 = vector.load %arg2[%c0, %c0_0, %c0_1, %c0_2, %c0_3] : memref<1x1x12x18x128xf32, #tpu.memory_space<vmem>>, vector<1x1x12x16x128xf32>
    %1 = vector.shape_cast %0 : vector<1x1x12x16x128xf32> to vector<12x16x128xf32>
    %2 = arith.truncf %1 : vector<12x16x128xf32> to vector<12x16x128xbf16>
    %c0_4 = arith.constant 0 : index
    %c0_5 = arith.constant 0 : index
    %c0_6 = arith.constant 0 : index
    %3 = vector.load %arg10[%c0_4, %c0_5, %c0_6] : memref<12x16x384xbf16, #tpu.memory_space<vmem>>, vector<12x16x128xbf16>
    tpu.vector_store %arg10[%c0_4, %c0_5, %c0_6], %2 {strides = array<i32>} : memref<12x16x384xbf16, #tpu.memory_space<vmem>>, vector<12x16x128xbf16>,
    %c0_7 = arith.constant 0 : index
    %c0_8 = arith.constant 0 : index
    %c0_9 = arith.constant 0 : index
    %c1 = arith.constant 1 : index
    %c0_10 = arith.constant 0 : index
    %4 = vector.load %arg2[%c0_7, %c0_8, %c0_9, %c1, %c0_10] : memref<1x1x12x18x128xf32, #tpu.memory_space<vmem>>, vector<1x1x12x16x128xf32>
    %5 = vector.shape_cast %4 : vector<1x1x12x16x128xf32> to vector<12x16x128xf32>
    %6 = arith.truncf %5 : vector<12x16x128xf32> to vector<12x16x128xbf16>
    %c0_11 = arith.constant 0 : index
    %c0_12 = arith.constant 0 : index
    %c128 = arith.constant 128 : index
    %7 = vector.load %arg10[%c0_11, %c0_12, %c128] : memref<12x16x384xbf16, #tpu.memory_space<vmem>>, vector<12x16x128xbf16>
    tpu.vector_store %arg10[%c0_11, %c0_12, %c128], %6 {strides = array<i32>} : memref<12x16x384xbf16, #tpu.memory_space<vmem>>, vector<12x16x128xbf16>,
    %c0_13 = arith.constant 0 : index
    %c0_14 = arith.constant 0 : index
    %c0_15 = arith.constant 0 : index
    %c2 = arith.constant 2 : index
    %c0_16 = arith.constant 0 : index
    %8 = vector.load %arg2[%c0_13, %c0_14, %c0_15, %c2, %c0_16] : memref<1x1x12x18x128xf32, #tpu.memory_space<vmem>>, vector<1x1x12x16x128xf32>
    %9 = vector.shape_cast %8 : vector<1x1x12x16x128xf32> to vector<12x16x128xf32>
    %10 = arith.truncf %9 : vector<12x16x128xf32> to vector<12x16x128xbf16>
    %c0_17 = arith.constant 0 : index
    %c0_18 = arith.constant 0 : index
    %c256 = arith.constant 256 : index
    %11 = vector.load %arg10[%c0_17, %c0_18, %c256] : memref<12x16x384xbf16, #tpu.memory_space<vmem>>, vector<12x16x128xbf16>
    tpu.vector_store %arg10[%c0_17, %c0_18, %c256], %10 {strides = array<i32>} : memref<12x16x384xbf16, #tpu.memory_space<vmem>>, vector<12x16x128xbf16>,
    %c0_19 = arith.constant 0 : index
    %c0_20 = arith.constant 0 : index
    %c0_21 = arith.constant 0 : index
    %12 = vector.load %arg10[%c0_19, %c0_20, %c0_21] : memref<12x16x384xbf16, #tpu.memory_space<vmem>>, vector<10x16x384xbf16>
    %13 = vector.shape_cast %12 : vector<10x16x384xbf16> to vector<160x384xbf16>
    %c0_22 = arith.constant 0 : index
    %c0_23 = arith.constant 0 : index
    %c0_24 = arith.constant 0 : index
    %14 = vector.load %arg3[%c0_22, %c0_23, %c0_24] : memref<3x384x128xbf16, #tpu.memory_space<vmem>>, vector<1x384x128xbf16>
    %15 = vector.shape_cast %14 : vector<1x384x128xbf16> to vector<384x128xbf16>
    %cst = arith.constant dense<0.000000e+00> : vector<160x128xf32>
    %16 = tpu.matmul %13, %15, %cst {dimension_numbers = #tpu.dot_dimension_numbers<[1], [0], [0], [1], [0, 0, 1, 1], [], []>} : vector<160x384xbf16>, vector<384x128xbf16>, vector<160x128xf32> -> vector<160x128xf32>
    %c0_25 = arith.constant 0 : index
    %c0_26 = arith.constant 0 : index
    %17 = vector.load %arg13[%c0_25, %c0_26] : memref<160x128xf32, #tpu.memory_space<vmem>>, vector<160x128xf32>
    tpu.vector_store %arg13[%c0_25, %c0_26], %16 {strides = array<i32>} : memref<160x128xf32, #tpu.memory_space<vmem>>, vector<160x128xf32>,
    %c1_27 = arith.constant 1 : index
    %c0_28 = arith.constant 0 : index
    %c0_29 = arith.constant 0 : index
    %18 = vector.load %arg10[%c1_27, %c0_28, %c0_29] : memref<12x16x384xbf16, #tpu.memory_space<vmem>>, vector<10x16x384xbf16>
    %19 = vector.shape_cast %18 : vector<10x16x384xbf16> to vector<160x384xbf16>
    %c1_30 = arith.constant 1 : index
    %c0_31 = arith.constant 0 : index
    %c0_32 = arith.constant 0 : index
    %20 = vector.load %arg3[%c1_30, %c0_31, %c0_32] : memref<3x384x128xbf16, #tpu.memory_space<vmem>>, vector<1x384x128xbf16>
    %21 = vector.shape_cast %20 : vector<1x384x128xbf16> to vector<384x128xbf16>
    %cst_33 = arith.constant dense<0.000000e+00> : vector<160x128xf32>
    %22 = tpu.matmul %19, %21, %cst_33 {dimension_numbers = #tpu.dot_dimension_numbers<[1], [0], [0], [1], [0, 0, 1, 1], [], []>} : vector<160x384xbf16>, vector<384x128xbf16>, vector<160x128xf32> -> vector<160x128xf32>
    %c0_34 = arith.constant 0 : index
    %c0_35 = arith.constant 0 : index
    %23 = vector.load %arg13[%c0_34, %c0_35] : memref<160x128xf32, #tpu.memory_space<vmem>>, vector<160x128xf32>
    %24 = arith.addf %23, %22 : vector<160x128xf32>
    %c0_36 = arith.constant 0 : index
    %c0_37 = arith.constant 0 : index
    %25 = vector.load %arg13[%c0_36, %c0_37] : memref<160x128xf32, #tpu.memory_space<vmem>>, vector<160x128xf32>
    tpu.vector_store %arg13[%c0_36, %c0_37], %24 {strides = array<i32>} : memref<160x128xf32, #tpu.memory_space<vmem>>, vector<160x128xf32>,
    %c2_38 = arith.constant 2 : index
    %c0_39 = arith.constant 0 : index
    %c0_40 = arith.constant 0 : index
    %26 = vector.load %arg10[%c2_38, %c0_39, %c0_40] : memref<12x16x384xbf16, #tpu.memory_space<vmem>>, vector<10x16x384xbf16>
    %27 = vector.shape_cast %26 : vector<10x16x384xbf16> to vector<160x384xbf16>
    %c2_41 = arith.constant 2 : index
    %c0_42 = arith.constant 0 : index
    %c0_43 = arith.constant 0 : index
    %28 = vector.load %arg3[%c2_41, %c0_42, %c0_43] : memref<3x384x128xbf16, #tpu.memory_space<vmem>>, vector<1x384x128xbf16>
    %29 = vector.shape_cast %28 : vector<1x384x128xbf16> to vector<384x128xbf16>
    %cst_44 = arith.constant dense<0.000000e+00> : vector<160x128xf32>
    %30 = tpu.matmul %27, %29, %cst_44 {dimension_numbers = #tpu.dot_dimension_numbers<[1], [0], [0], [1], [0, 0, 1, 1], [], []>} : vector<160x384xbf16>, vector<384x128xbf16>, vector<160x128xf32> -> vector<160x128xf32>
    %c0_45 = arith.constant 0 : index
    %c0_46 = arith.constant 0 : index
    %31 = vector.load %arg13[%c0_45, %c0_46] : memref<160x128xf32, #tpu.memory_space<vmem>>, vector<160x128xf32>
    %32 = arith.addf %31, %30 : vector<160x128xf32>
    %c0_47 = arith.constant 0 : index
    %c0_48 = arith.constant 0 : index
    %33 = vector.load %arg13[%c0_47, %c0_48] : memref<160x128xf32, #tpu.memory_space<vmem>>, vector<160x128xf32>
    tpu.vector_store %arg13[%c0_47, %c0_48], %32 {strides = array<i32>} : memref<160x128xf32, #tpu.memory_space<vmem>>, vector<160x128xf32>,
    %c0_49 = arith.constant 0 : index
    %c0_50 = arith.constant 0 : index
    %34 = vector.load %arg13[%c0_49, %c0_50] : memref<160x128xf32, #tpu.memory_space<vmem>>, vector<160x128xf32>
    %c0_51 = arith.constant 0 : index
    %c0_52 = arith.constant 0 : index
    %35 = vector.load %arg4[%c0_51, %c0_52] : memref<1x128xf32, #tpu.memory_space<vmem>>, vector<1x128xf32>
    %36 = vector.broadcast %35 : vector<1x128xf32> to vector<160x128xf32>
    %37 = arith.mulf %34, %36 : vector<160x128xf32>
    %c0_53 = arith.constant 0 : index
    %c0_54 = arith.constant 0 : index
    %38 = vector.load %arg5[%c0_53, %c0_54] : memref<1x128xf32, #tpu.memory_space<vmem>>, vector<1x128xf32>
    %39 = vector.broadcast %38 : vector<1x128xf32> to vector<160x128xf32>
    %40 = arith.addf %37, %39 : vector<160x128xf32>
    %cst_55 = arith.constant 0.000000e+00 : f32
    %41 = vector.broadcast %cst_55 : f32 to vector<160x128xf32>
    %42 = arith.maximumf %40, %41 : vector<160x128xf32>
    %43 = vector.shape_cast %42 : vector<160x128xf32> to vector<10x16x128xf32>
    %44 = tpu.iota {dimensions = array<i32: 0>} : vector<10x1x1xi32>
    %c8_i32 = arith.constant 8 : i32
    %45 = arith.muli %arg1, %c8_i32 : i32
    %c1_i32 = arith.constant 1 : i32
    %46 = arith.subi %45, %c1_i32 : i32
    %47 = vector.broadcast %46 : i32 to vector<10x1x1xi32>
    %48 = arith.addi %44, %47 : vector<10x1x1xi32>
    %c0_i32 = arith.constant 0 : i32
    %49 = vector.broadcast %c0_i32 : i32 to vector<10x1x1xi32>
    %50 = arith.cmpi sge, %48, %49 : vector<10x1x1xi32>
    %c16_i32 = arith.constant 16 : i32
    %51 = vector.broadcast %c16_i32 : i32 to vector<10x1x1xi32>
    %52 = arith.cmpi slt, %48, %51 : vector<10x1x1xi32>
    %53 = arith.andi %50, %52 : vector<10x1x1xi1>
    %cst_56 = arith.constant 0.000000e+00 : f32
    %54 = vector.shape_cast %53 : vector<10x1x1xi1> to vector<10x1x1xi1>
    %55 = vector.broadcast %54 : vector<10x1x1xi1> to vector<10x16x128xi1>
    %56 = vector.broadcast %cst_56 : f32 to vector<10x16x128xf32>
    %57 = arith.select %55, %43, %56 : vector<10x16x128xi1>, vector<10x16x128xf32>
    %cst_57 = arith.constant 0.000000e+00 : f32
    %58 = vector.broadcast %cst_57 : f32 to vector<10x1x128xf32>
    %c0_58 = arith.constant 0 : index
    %c0_59 = arith.constant 0 : index
    %c0_60 = arith.constant 0 : index
    %59 = vector.load %arg11[%c0_58, %c0_59, %c0_60] : memref<10x18x128xf32, #tpu.memory_space<vmem>>, vector<10x1x128xf32>
    tpu.vector_store %arg11[%c0_58, %c0_59, %c0_60], %58 {strides = array<i32>} : memref<10x18x128xf32, #tpu.memory_space<vmem>>, vector<10x1x128xf32>,
    %cst_61 = arith.constant 0.000000e+00 : f32
    %60 = vector.broadcast %cst_61 : f32 to vector<10x1x128xf32>
    %c0_62 = arith.constant 0 : index
    %c17 = arith.constant 17 : index
    %c0_63 = arith.constant 0 : index
    %61 = vector.load %arg11[%c0_62, %c17, %c0_63] : memref<10x18x128xf32, #tpu.memory_space<vmem>>, vector<10x1x128xf32>
    tpu.vector_store %arg11[%c0_62, %c17, %c0_63], %60 {strides = array<i32>} : memref<10x18x128xf32, #tpu.memory_space<vmem>>, vector<10x1x128xf32>,
    %c0_64 = arith.constant 0 : index
    %c1_65 = arith.constant 1 : index
    %c0_66 = arith.constant 0 : index
    %62 = vector.load %arg11[%c0_64, %c1_65, %c0_66] : memref<10x18x128xf32, #tpu.memory_space<vmem>>, vector<10x16x128xf32>
    tpu.vector_store %arg11[%c0_64, %c1_65, %c0_66], %57 {strides = array<i32>} : memref<10x18x128xf32, #tpu.memory_space<vmem>>, vector<10x16x128xf32>,
    %c0_67 = arith.constant 0 : index
    %c0_68 = arith.constant 0 : index
    %c0_69 = arith.constant 0 : index
    %63 = vector.load %arg11[%c0_67, %c0_68, %c0_69] : memref<10x18x128xf32, #tpu.memory_space<vmem>>, vector<10x16x128xf32>
    %64 = arith.truncf %63 : vector<10x16x128xf32> to vector<10x16x128xbf16>
    %c0_70 = arith.constant 0 : index
    %c0_71 = arith.constant 0 : index
    %c0_72 = arith.constant 0 : index
    %65 = vector.load %arg12[%c0_70, %c0_71, %c0_72] : memref<10x16x384xbf16, #tpu.memory_space<vmem>>, vector<10x16x128xbf16>
    tpu.vector_store %arg12[%c0_70, %c0_71, %c0_72], %64 {strides = array<i32>} : memref<10x16x384xbf16, #tpu.memory_space<vmem>>, vector<10x16x128xbf16>,
    %c0_73 = arith.constant 0 : index
    %c1_74 = arith.constant 1 : index
    %c0_75 = arith.constant 0 : index
    %66 = vector.load %arg11[%c0_73, %c1_74, %c0_75] : memref<10x18x128xf32, #tpu.memory_space<vmem>>, vector<10x16x128xf32>
    %67 = arith.truncf %66 : vector<10x16x128xf32> to vector<10x16x128xbf16>
    %c0_76 = arith.constant 0 : index
    %c0_77 = arith.constant 0 : index
    %c128_78 = arith.constant 128 : index
    %68 = vector.load %arg12[%c0_76, %c0_77, %c128_78] : memref<10x16x384xbf16, #tpu.memory_space<vmem>>, vector<10x16x128xbf16>
    tpu.vector_store %arg12[%c0_76, %c0_77, %c128_78], %67 {strides = array<i32>} : memref<10x16x384xbf16, #tpu.memory_space<vmem>>, vector<10x16x128xbf16>,
    %c0_79 = arith.constant 0 : index
    %c2_80 = arith.constant 2 : index
    %c0_81 = arith.constant 0 : index
    %69 = vector.load %arg11[%c0_79, %c2_80, %c0_81] : memref<10x18x128xf32, #tpu.memory_space<vmem>>, vector<10x16x128xf32>
    %70 = arith.truncf %69 : vector<10x16x128xf32> to vector<10x16x128xbf16>
    %c0_82 = arith.constant 0 : index
    %c0_83 = arith.constant 0 : index
    %c256_84 = arith.constant 256 : index
    %71 = vector.load %arg12[%c0_82, %c0_83, %c256_84] : memref<10x16x384xbf16, #tpu.memory_space<vmem>>, vector<10x16x128xbf16>
    tpu.vector_store %arg12[%c0_82, %c0_83, %c256_84], %70 {strides = array<i32>} : memref<10x16x384xbf16, #tpu.memory_space<vmem>>, vector<10x16x128xbf16>,
    %c0_85 = arith.constant 0 : index
    %c0_86 = arith.constant 0 : index
    %c0_87 = arith.constant 0 : index
    %72 = vector.load %arg12[%c0_85, %c0_86, %c0_87] : memref<10x16x384xbf16, #tpu.memory_space<vmem>>, vector<8x16x384xbf16>
    %73 = vector.shape_cast %72 : vector<8x16x384xbf16> to vector<128x384xbf16>
    %c0_88 = arith.constant 0 : index
    %c0_89 = arith.constant 0 : index
    %c0_90 = arith.constant 0 : index
    %74 = vector.load %arg6[%c0_88, %c0_89, %c0_90] : memref<3x384x128xbf16, #tpu.memory_space<vmem>>, vector<1x384x128xbf16>
    %75 = vector.shape_cast %74 : vector<1x384x128xbf16> to vector<384x128xbf16>
    %cst_91 = arith.constant dense<0.000000e+00> : vector<128x128xf32>
    %76 = tpu.matmul %73, %75, %cst_91 {dimension_numbers = #tpu.dot_dimension_numbers<[1], [0], [0], [1], [0, 0, 1, 1], [], []>} : vector<128x384xbf16>, vector<384x128xbf16>, vector<128x128xf32> -> vector<128x128xf32>
    %77 = vector.shape_cast %76 : vector<128x128xf32> to vector<8x16x128xf32>
    %c0_92 = arith.constant 0 : index
    %c0_93 = arith.constant 0 : index
    %c0_94 = arith.constant 0 : index
    %c0_95 = arith.constant 0 : index
    %c0_96 = arith.constant 0 : index
    %78 = vector.load %arg9[%c0_92, %c0_93, %c0_94, %c0_95, %c0_96] : memref<1x1x8x16x128xf32, #tpu.memory_space<vmem>>, vector<1x1x8x16x128xf32>
    %79 = vector.shape_cast %78 : vector<1x1x8x16x128xf32> to vector<8x16x128xf32>
    %80 = vector.shape_cast %77 : vector<8x16x128xf32> to vector<1x1x8x16x128xf32>
    tpu.vector_store %arg9[%c0_92, %c0_93, %c0_94, %c0_95, %c0_96], %80 {strides = array<i32>} : memref<1x1x8x16x128xf32, #tpu.memory_space<vmem>>, vector<1x1x8x16x128xf32>,
    %c1_97 = arith.constant 1 : index
    %c0_98 = arith.constant 0 : index
    %c0_99 = arith.constant 0 : index
    %81 = vector.load %arg12[%c1_97, %c0_98, %c0_99] : memref<10x16x384xbf16, #tpu.memory_space<vmem>>, vector<8x16x384xbf16>
    %82 = vector.shape_cast %81 : vector<8x16x384xbf16> to vector<128x384xbf16>
    %c1_100 = arith.constant 1 : index
    %c0_101 = arith.constant 0 : index
    %c0_102 = arith.constant 0 : index
    %83 = vector.load %arg6[%c1_100, %c0_101, %c0_102] : memref<3x384x128xbf16, #tpu.memory_space<vmem>>, vector<1x384x128xbf16>
    %84 = vector.shape_cast %83 : vector<1x384x128xbf16> to vector<384x128xbf16>
    %cst_103 = arith.constant dense<0.000000e+00> : vector<128x128xf32>
    %85 = tpu.matmul %82, %84, %cst_103 {dimension_numbers = #tpu.dot_dimension_numbers<[1], [0], [0], [1], [0, 0, 1, 1], [], []>} : vector<128x384xbf16>, vector<384x128xbf16>, vector<128x128xf32> -> vector<128x128xf32>
    %86 = vector.shape_cast %85 : vector<128x128xf32> to vector<8x16x128xf32>
    %c0_104 = arith.constant 0 : index
    %c0_105 = arith.constant 0 : index
    %c0_106 = arith.constant 0 : index
    %c0_107 = arith.constant 0 : index
    %c0_108 = arith.constant 0 : index
    %87 = vector.load %arg9[%c0_104, %c0_105, %c0_106, %c0_107, %c0_108] : memref<1x1x8x16x128xf32, #tpu.memory_space<vmem>>, vector<1x1x8x16x128xf32>
    %88 = vector.shape_cast %87 : vector<1x1x8x16x128xf32> to vector<8x16x128xf32>
    %89 = arith.addf %88, %86 : vector<8x16x128xf32>
    %c0_109 = arith.constant 0 : index
    %c0_110 = arith.constant 0 : index
    %c0_111 = arith.constant 0 : index
    %c0_112 = arith.constant 0 : index
    %c0_113 = arith.constant 0 : index
    %90 = vector.load %arg9[%c0_109, %c0_110, %c0_111, %c0_112, %c0_113] : memref<1x1x8x16x128xf32, #tpu.memory_space<vmem>>, vector<1x1x8x16x128xf32>
    %91 = vector.shape_cast %90 : vector<1x1x8x16x128xf32> to vector<8x16x128xf32>
    %92 = vector.shape_cast %89 : vector<8x16x128xf32> to vector<1x1x8x16x128xf32>
    tpu.vector_store %arg9[%c0_109, %c0_110, %c0_111, %c0_112, %c0_113], %92 {strides = array<i32>} : memref<1x1x8x16x128xf32, #tpu.memory_space<vmem>>, vector<1x1x8x16x128xf32>,
    %c2_114 = arith.constant 2 : index
    %c0_115 = arith.constant 0 : index
    %c0_116 = arith.constant 0 : index
    %93 = vector.load %arg12[%c2_114, %c0_115, %c0_116] : memref<10x16x384xbf16, #tpu.memory_space<vmem>>, vector<8x16x384xbf16>
    %94 = vector.shape_cast %93 : vector<8x16x384xbf16> to vector<128x384xbf16>
    %c2_117 = arith.constant 2 : index
    %c0_118 = arith.constant 0 : index
    %c0_119 = arith.constant 0 : index
    %95 = vector.load %arg6[%c2_117, %c0_118, %c0_119] : memref<3x384x128xbf16, #tpu.memory_space<vmem>>, vector<1x384x128xbf16>
    %96 = vector.shape_cast %95 : vector<1x384x128xbf16> to vector<384x128xbf16>
    %cst_120 = arith.constant dense<0.000000e+00> : vector<128x128xf32>
    %97 = tpu.matmul %94, %96, %cst_120 {dimension_numbers = #tpu.dot_dimension_numbers<[1], [0], [0], [1], [0, 0, 1, 1], [], []>} : vector<128x384xbf16>, vector<384x128xbf16>, vector<128x128xf32> -> vector<128x128xf32>
    %98 = vector.shape_cast %97 : vector<128x128xf32> to vector<8x16x128xf32>
    %c0_121 = arith.constant 0 : index
    %c0_122 = arith.constant 0 : index
    %c0_123 = arith.constant 0 : index
    %c0_124 = arith.constant 0 : index
    %c0_125 = arith.constant 0 : index
    %99 = vector.load %arg9[%c0_121, %c0_122, %c0_123, %c0_124, %c0_125] : memref<1x1x8x16x128xf32, #tpu.memory_space<vmem>>, vector<1x1x8x16x128xf32>
    %100 = vector.shape_cast %99 : vector<1x1x8x16x128xf32> to vector<8x16x128xf32>
    %101 = arith.addf %100, %98 : vector<8x16x128xf32>
    %c0_126 = arith.constant 0 : index
    %c0_127 = arith.constant 0 : index
    %c0_128 = arith.constant 0 : index
    %c0_129 = arith.constant 0 : index
    %c0_130 = arith.constant 0 : index
    %102 = vector.load %arg9[%c0_126, %c0_127, %c0_128, %c0_129, %c0_130] : memref<1x1x8x16x128xf32, #tpu.memory_space<vmem>>, vector<1x1x8x16x128xf32>
    %103 = vector.shape_cast %102 : vector<1x1x8x16x128xf32> to vector<8x16x128xf32>
    %104 = vector.shape_cast %101 : vector<8x16x128xf32> to vector<1x1x8x16x128xf32>
    tpu.vector_store %arg9[%c0_126, %c0_127, %c0_128, %c0_129, %c0_130], %104 {strides = array<i32>} : memref<1x1x8x16x128xf32, #tpu.memory_space<vmem>>, vector<1x1x8x16x128xf32>,
    %c0_131 = arith.constant 0 : index
    %c0_132 = arith.constant 0 : index
    %c2_133 = arith.constant 2 : index
    %c1_134 = arith.constant 1 : index
    %c0_135 = arith.constant 0 : index
    %105 = vector.load %arg2[%c0_131, %c0_132, %c2_133, %c1_134, %c0_135] : memref<1x1x12x18x128xf32, #tpu.memory_space<vmem>>, vector<1x1x8x16x128xf32>
    %106 = vector.shape_cast %105 : vector<1x1x8x16x128xf32> to vector<8x16x128xf32>
    %c0_136 = arith.constant 0 : index
    %c0_137 = arith.constant 0 : index
    %c0_138 = arith.constant 0 : index
    %c0_139 = arith.constant 0 : index
    %c0_140 = arith.constant 0 : index
    %107 = vector.load %arg9[%c0_136, %c0_137, %c0_138, %c0_139, %c0_140] : memref<1x1x8x16x128xf32, #tpu.memory_space<vmem>>, vector<1x1x8x16x128xf32>
    %108 = vector.shape_cast %107 : vector<1x1x8x16x128xf32> to vector<8x16x128xf32>
    %c0_141 = arith.constant 0 : index
    %c0_142 = arith.constant 0 : index
    %109 = vector.load %arg7[%c0_141, %c0_142] : memref<1x128xf32, #tpu.memory_space<vmem>>, vector<1x128xf32>
    %110 = vector.shape_cast %109 : vector<1x128xf32> to vector<1x1x128xf32>
    %111 = vector.broadcast %110 : vector<1x1x128xf32> to vector<8x16x128xf32>
    %112 = arith.mulf %108, %111 : vector<8x16x128xf32>
    %c0_143 = arith.constant 0 : index
    %c0_144 = arith.constant 0 : index
    %113 = vector.load %arg8[%c0_143, %c0_144] : memref<1x128xf32, #tpu.memory_space<vmem>>, vector<1x128xf32>
    %114 = vector.shape_cast %113 : vector<1x128xf32> to vector<1x1x128xf32>
    %115 = vector.broadcast %114 : vector<1x1x128xf32> to vector<8x16x128xf32>
    %116 = arith.addf %112, %115 : vector<8x16x128xf32>
    %117 = arith.addf %116, %106 : vector<8x16x128xf32>
    %cst_145 = arith.constant 0.000000e+00 : f32
    %118 = vector.broadcast %cst_145 : f32 to vector<8x16x128xf32>
    %119 = arith.maximumf %117, %118 : vector<8x16x128xf32>
    %c0_146 = arith.constant 0 : index
    %c0_147 = arith.constant 0 : index
    %c0_148 = arith.constant 0 : index
    %c0_149 = arith.constant 0 : index
    %c0_150 = arith.constant 0 : index
    %120 = vector.load %arg9[%c0_146, %c0_147, %c0_148, %c0_149, %c0_150] : memref<1x1x8x16x128xf32, #tpu.memory_space<vmem>>, vector<1x1x8x16x128xf32>
    %121 = vector.shape_cast %120 : vector<1x1x8x16x128xf32> to vector<8x16x128xf32>
    %122 = vector.shape_cast %119 : vector<8x16x128xf32> to vector<1x1x8x16x128xf32>
    tpu.vector_store %arg9[%c0_146, %c0_147, %c0_148, %c0_149, %c0_150], %122 {strides = array<i32>} : memref<1x1x8x16x128xf32, #tpu.memory_space<vmem>>, vector<1x1x8x16x128xf32>,
    return
  }
  func.func @transform_0(%arg0: i32, %arg1: i32) -> (i32, i32, i32, i32, i32) {
    %c0_i32 = arith.constant 0 : i32
    %c0_i32_0 = arith.constant 0 : i32
    %c0_i32_1 = arith.constant 0 : i32
    %c0_i32_2 = arith.constant 0 : i32
    return %arg0, %arg1, %c0_i32, %c0_i32_0, %c0_i32_1 : i32, i32, i32, i32, i32
  }
  func.func @transform_1(%arg0: i32, %arg1: i32) -> (i32, i32, i32) {
    %c0_i32 = arith.constant 0 : i32
    %c0_i32_0 = arith.constant 0 : i32
    %c0_i32_1 = arith.constant 0 : i32
    %c0_i32_2 = arith.constant 0 : i32
    return %c0_i32, %c0_i32_0, %c0_i32_1 : i32, i32, i32
  }
  func.func @transform_2(%arg0: i32, %arg1: i32) -> (i32, i32) {
    %c0_i32 = arith.constant 0 : i32
    %c0_i32_0 = arith.constant 0 : i32
    %c0_i32_1 = arith.constant 0 : i32
    return %c0_i32, %c0_i32_0 : i32, i32
  }
  func.func @transform_3(%arg0: i32, %arg1: i32) -> (i32, i32) {
    %c0_i32 = arith.constant 0 : i32
    %c0_i32_0 = arith.constant 0 : i32
    %c0_i32_1 = arith.constant 0 : i32
    return %c0_i32, %c0_i32_0 : i32, i32
  }
  func.func @transform_4(%arg0: i32, %arg1: i32) -> (i32, i32, i32) {
    %c0_i32 = arith.constant 0 : i32
    %c0_i32_0 = arith.constant 0 : i32
    %c0_i32_1 = arith.constant 0 : i32
    %c0_i32_2 = arith.constant 0 : i32
    return %c0_i32, %c0_i32_0, %c0_i32_1 : i32, i32, i32
  }
  func.func @transform_5(%arg0: i32, %arg1: i32) -> (i32, i32) {
    %c0_i32 = arith.constant 0 : i32
    %c0_i32_0 = arith.constant 0 : i32
    %c0_i32_1 = arith.constant 0 : i32
    return %c0_i32, %c0_i32_0 : i32, i32
  }
  func.func @transform_6(%arg0: i32, %arg1: i32) -> (i32, i32) {
    %c0_i32 = arith.constant 0 : i32
    %c0_i32_0 = arith.constant 0 : i32
    %c0_i32_1 = arith.constant 0 : i32
    return %c0_i32, %c0_i32_0 : i32, i32
  }
  func.func @transform_7(%arg0: i32, %arg1: i32) -> (i32, i32, i32, i32, i32) {
    %c0_i32 = arith.constant 0 : i32
    %c0_i32_0 = arith.constant 0 : i32
    %c0_i32_1 = arith.constant 0 : i32
    %c0_i32_2 = arith.constant 0 : i32
    return %arg0, %arg1, %c0_i32, %c0_i32_0, %c0_i32_1 : i32, i32, i32, i32, i32
  }
}

module attributes {stable_mosaic.version = 11 : i64} {
  func.func @_basic_block_kernel(%arg0: i32, %arg1: i32, %arg2: memref<1x1x12x18x128xf32, #tpu.memory_space<vmem>>, %arg3: memref<3x384x128xbf16, #tpu.memory_space<vmem>>, %arg4: memref<1x128xf32, #tpu.memory_space<vmem>>, %arg5: memref<1x128xf32, #tpu.memory_space<vmem>>, %arg6: memref<3x384x128xbf16, #tpu.memory_space<vmem>>, %arg7: memref<1x128xf32, #tpu.memory_space<vmem>>, %arg8: memref<1x128xf32, #tpu.memory_space<vmem>>, %arg9: memref<1x1x8x16x128xf32, #tpu.memory_space<vmem>>, %arg10: memref<12x16x384xbf16, #tpu.memory_space<vmem>>, %arg11: memref<10x18x128xf32, #tpu.memory_space<vmem>>, %arg12: memref<10x16x384xbf16, #tpu.memory_space<vmem>>, %arg13: memref<160x128xf32, #tpu.memory_space<vmem>>) attributes {dimension_semantics = [#tpu.dimension_semantics<parallel>, #tpu.dimension_semantics<parallel>], iteration_bounds = array<i64: 2, 2>, scalar_prefetch = 0 : i64, scratch_operands = 4 : i64, tpu.core_type = #tpu.core_type<tc>, window_params = [{transform_indices = @transform_0, window_bounds = array<i64: 1, 1, 12, 18, 128>}, {pipeline_mode = #tpu.pipeline_mode<synchronous>, transform_indices = @transform_1, window_bounds = array<i64: 3, 384, 128>}, {pipeline_mode = #tpu.pipeline_mode<synchronous>, transform_indices = @transform_2, window_bounds = array<i64: 1, 128>}, {pipeline_mode = #tpu.pipeline_mode<synchronous>, transform_indices = @transform_3, window_bounds = array<i64: 1, 128>}, {pipeline_mode = #tpu.pipeline_mode<synchronous>, transform_indices = @transform_4, window_bounds = array<i64: 3, 384, 128>}, {pipeline_mode = #tpu.pipeline_mode<synchronous>, transform_indices = @transform_5, window_bounds = array<i64: 1, 128>}, {pipeline_mode = #tpu.pipeline_mode<synchronous>, transform_indices = @transform_6, window_bounds = array<i64: 1, 128>}, {transform_indices = @transform_7, window_bounds = array<i64: 1, 1, 8, 16, 128>}]} {
    %c0 = arith.constant 0 : index
    %c0_0 = arith.constant 0 : index
    %c0_1 = arith.constant 0 : index
    %c0_2 = arith.constant 0 : index
    %c0_3 = arith.constant 0 : index
    %0 = vector.load %arg2[%c0, %c0_0, %c0_1, %c0_2, %c0_3] : memref<1x1x12x18x128xf32, #tpu.memory_space<vmem>>, vector<1x1x12x16x128xf32>
    %1 = vector.shape_cast %0 : vector<1x1x12x16x128xf32> to vector<12x16x128xf32>
    %2 = arith.truncf %1 : vector<12x16x128xf32> to vector<12x16x128xbf16>
    %c0_4 = arith.constant 0 : index
    %c0_5 = arith.constant 0 : index
    %c0_6 = arith.constant 0 : index
    %3 = vector.load %arg10[%c0_4, %c0_5, %c0_6] : memref<12x16x384xbf16, #tpu.memory_space<vmem>>, vector<12x16x128xbf16>
    tpu.vector_store %arg10[%c0_4, %c0_5, %c0_6], %2 {strides = array<i32>} : memref<12x16x384xbf16, #tpu.memory_space<vmem>>, vector<12x16x128xbf16>,
    %c0_7 = arith.constant 0 : index
    %c0_8 = arith.constant 0 : index
    %c0_9 = arith.constant 0 : index
    %c1 = arith.constant 1 : index
    %c0_10 = arith.constant 0 : index
    %4 = vector.load %arg2[%c0_7, %c0_8, %c0_9, %c1, %c0_10] : memref<1x1x12x18x128xf32, #tpu.memory_space<vmem>>, vector<1x1x12x16x128xf32>
    %5 = vector.shape_cast %4 : vector<1x1x12x16x128xf32> to vector<12x16x128xf32>
    %6 = arith.truncf %5 : vector<12x16x128xf32> to vector<12x16x128xbf16>
    %c0_11 = arith.constant 0 : index
    %c0_12 = arith.constant 0 : index
    %c128 = arith.constant 128 : index
    %7 = vector.load %arg10[%c0_11, %c0_12, %c128] : memref<12x16x384xbf16, #tpu.memory_space<vmem>>, vector<12x16x128xbf16>
    tpu.vector_store %arg10[%c0_11, %c0_12, %c128], %6 {strides = array<i32>} : memref<12x16x384xbf16, #tpu.memory_space<vmem>>, vector<12x16x128xbf16>,
    %c0_13 = arith.constant 0 : index
    %c0_14 = arith.constant 0 : index
    %c0_15 = arith.constant 0 : index
    %c2 = arith.constant 2 : index
    %c0_16 = arith.constant 0 : index
    %8 = vector.load %arg2[%c0_13, %c0_14, %c0_15, %c2, %c0_16] : memref<1x1x12x18x128xf32, #tpu.memory_space<vmem>>, vector<1x1x12x16x128xf32>
    %9 = vector.shape_cast %8 : vector<1x1x12x16x128xf32> to vector<12x16x128xf32>
    %10 = arith.truncf %9 : vector<12x16x128xf32> to vector<12x16x128xbf16>
    %c0_17 = arith.constant 0 : index
    %c0_18 = arith.constant 0 : index
    %c256 = arith.constant 256 : index
    %11 = vector.load %arg10[%c0_17, %c0_18, %c256] : memref<12x16x384xbf16, #tpu.memory_space<vmem>>, vector<12x16x128xbf16>
    tpu.vector_store %arg10[%c0_17, %c0_18, %c256], %10 {strides = array<i32>} : memref<12x16x384xbf16, #tpu.memory_space<vmem>>, vector<12x16x128xbf16>,
    %c0_19 = arith.constant 0 : index
    %c0_20 = arith.constant 0 : index
    %c0_21 = arith.constant 0 : index
    %12 = vector.load %arg10[%c0_19, %c0_20, %c0_21] : memref<12x16x384xbf16, #tpu.memory_space<vmem>>, vector<10x16x384xbf16>
    %13 = vector.shape_cast %12 : vector<10x16x384xbf16> to vector<160x384xbf16>
    %c0_22 = arith.constant 0 : index
    %c0_23 = arith.constant 0 : index
    %c0_24 = arith.constant 0 : index
    %14 = vector.load %arg3[%c0_22, %c0_23, %c0_24] : memref<3x384x128xbf16, #tpu.memory_space<vmem>>, vector<1x384x128xbf16>
    %15 = vector.shape_cast %14 : vector<1x384x128xbf16> to vector<384x128xbf16>
    %cst = arith.constant dense<0.000000e+00> : vector<160x128xf32>
    %16 = tpu.matmul %13, %15, %cst {dimension_numbers = #tpu.dot_dimension_numbers<[1], [0], [0], [1], [0, 0, 1, 1], [], []>} : vector<160x384xbf16>, vector<384x128xbf16>, vector<160x128xf32> -> vector<160x128xf32>
    %c0_25 = arith.constant 0 : index
    %c0_26 = arith.constant 0 : index
    %17 = vector.load %arg13[%c0_25, %c0_26] : memref<160x128xf32, #tpu.memory_space<vmem>>, vector<160x128xf32>
    tpu.vector_store %arg13[%c0_25, %c0_26], %16 {strides = array<i32>} : memref<160x128xf32, #tpu.memory_space<vmem>>, vector<160x128xf32>,
    %c1_27 = arith.constant 1 : index
    %c0_28 = arith.constant 0 : index
    %c0_29 = arith.constant 0 : index
    %18 = vector.load %arg10[%c1_27, %c0_28, %c0_29] : memref<12x16x384xbf16, #tpu.memory_space<vmem>>, vector<10x16x384xbf16>
    %19 = vector.shape_cast %18 : vector<10x16x384xbf16> to vector<160x384xbf16>
    %c1_30 = arith.constant 1 : index
    %c0_31 = arith.constant 0 : index
    %c0_32 = arith.constant 0 : index
    %20 = vector.load %arg3[%c1_30, %c0_31, %c0_32] : memref<3x384x128xbf16, #tpu.memory_space<vmem>>, vector<1x384x128xbf16>
    %21 = vector.shape_cast %20 : vector<1x384x128xbf16> to vector<384x128xbf16>
    %cst_33 = arith.constant dense<0.000000e+00> : vector<160x128xf32>
    %22 = tpu.matmul %19, %21, %cst_33 {dimension_numbers = #tpu.dot_dimension_numbers<[1], [0], [0], [1], [0, 0, 1, 1], [], []>} : vector<160x384xbf16>, vector<384x128xbf16>, vector<160x128xf32> -> vector<160x128xf32>
    %c0_34 = arith.constant 0 : index
    %c0_35 = arith.constant 0 : index
    %23 = vector.load %arg13[%c0_34, %c0_35] : memref<160x128xf32, #tpu.memory_space<vmem>>, vector<160x128xf32>
    %24 = arith.addf %23, %22 : vector<160x128xf32>
    %c0_36 = arith.constant 0 : index
    %c0_37 = arith.constant 0 : index
    %25 = vector.load %arg13[%c0_36, %c0_37] : memref<160x128xf32, #tpu.memory_space<vmem>>, vector<160x128xf32>
    tpu.vector_store %arg13[%c0_36, %c0_37], %24 {strides = array<i32>} : memref<160x128xf32, #tpu.memory_space<vmem>>, vector<160x128xf32>,
    %c2_38 = arith.constant 2 : index
    %c0_39 = arith.constant 0 : index
    %c0_40 = arith.constant 0 : index
    %26 = vector.load %arg10[%c2_38, %c0_39, %c0_40] : memref<12x16x384xbf16, #tpu.memory_space<vmem>>, vector<10x16x384xbf16>
    %27 = vector.shape_cast %26 : vector<10x16x384xbf16> to vector<160x384xbf16>
    %c2_41 = arith.constant 2 : index
    %c0_42 = arith.constant 0 : index
    %c0_43 = arith.constant 0 : index
    %28 = vector.load %arg3[%c2_41, %c0_42, %c0_43] : memref<3x384x128xbf16, #tpu.memory_space<vmem>>, vector<1x384x128xbf16>
    %29 = vector.shape_cast %28 : vector<1x384x128xbf16> to vector<384x128xbf16>
    %cst_44 = arith.constant dense<0.000000e+00> : vector<160x128xf32>
    %30 = tpu.matmul %27, %29, %cst_44 {dimension_numbers = #tpu.dot_dimension_numbers<[1], [0], [0], [1], [0, 0, 1, 1], [], []>} : vector<160x384xbf16>, vector<384x128xbf16>, vector<160x128xf32> -> vector<160x128xf32>
    %c0_45 = arith.constant 0 : index
    %c0_46 = arith.constant 0 : index
    %31 = vector.load %arg13[%c0_45, %c0_46] : memref<160x128xf32, #tpu.memory_space<vmem>>, vector<160x128xf32>
    %32 = arith.addf %31, %30 : vector<160x128xf32>
    %c0_47 = arith.constant 0 : index
    %c0_48 = arith.constant 0 : index
    %33 = vector.load %arg13[%c0_47, %c0_48] : memref<160x128xf32, #tpu.memory_space<vmem>>, vector<160x128xf32>
    tpu.vector_store %arg13[%c0_47, %c0_48], %32 {strides = array<i32>} : memref<160x128xf32, #tpu.memory_space<vmem>>, vector<160x128xf32>,
    %c0_49 = arith.constant 0 : index
    %c0_50 = arith.constant 0 : index
    %34 = vector.load %arg13[%c0_49, %c0_50] : memref<160x128xf32, #tpu.memory_space<vmem>>, vector<160x128xf32>
    %c0_51 = arith.constant 0 : index
    %c0_52 = arith.constant 0 : index
    %35 = vector.load %arg4[%c0_51, %c0_52] : memref<1x128xf32, #tpu.memory_space<vmem>>, vector<1x128xf32>
    %36 = vector.broadcast %35 : vector<1x128xf32> to vector<160x128xf32>
    %37 = arith.mulf %34, %36 : vector<160x128xf32>
    %c0_53 = arith.constant 0 : index
    %c0_54 = arith.constant 0 : index
    %38 = vector.load %arg5[%c0_53, %c0_54] : memref<1x128xf32, #tpu.memory_space<vmem>>, vector<1x128xf32>
    %39 = vector.broadcast %38 : vector<1x128xf32> to vector<160x128xf32>
    %40 = arith.addf %37, %39 : vector<160x128xf32>
    %cst_55 = arith.constant 0.000000e+00 : f32
    %41 = vector.broadcast %cst_55 : f32 to vector<160x128xf32>
    %42 = arith.maximumf %40, %41 : vector<160x128xf32>
    %43 = vector.shape_cast %42 : vector<160x128xf32> to vector<10x16x128xf32>
    %44 = tpu.iota {dimensions = array<i32: 0>} : vector<10x1x1xi32>
    %c8_i32 = arith.constant 8 : i32
    %45 = arith.muli %arg1, %c8_i32 : i32
    %c1_i32 = arith.constant 1 : i32
    %46 = arith.subi %45, %c1_i32 : i32
    %47 = vector.broadcast %46 : i32 to vector<10x1x1xi32>
    %48 = arith.addi %44, %47 : vector<10x1x1xi32>
    %c0_i32 = arith.constant 0 : i32
    %49 = vector.broadcast %c0_i32 : i32 to vector<10x1x1xi32>
    %50 = arith.cmpi sge, %48, %49 : vector<10x1x1xi32>
    %c16_i32 = arith.constant 16 : i32
    %51 = vector.broadcast %c16_i32 : i32 to vector<10x1x1xi32>
    %52 = arith.cmpi slt, %48, %51 : vector<10x1x1xi32>
    %53 = arith.andi %50, %52 : vector<10x1x1xi1>
    %cst_56 = arith.constant 0.000000e+00 : f32
    %54 = vector.shape_cast %53 : vector<10x1x1xi1> to vector<10x1x1xi1>
    %55 = vector.broadcast %54 : vector<10x1x1xi1> to vector<10x16x128xi1>
    %56 = vector.broadcast %cst_56 : f32 to vector<10x16x128xf32>
    %57 = arith.select %55, %43, %56 : vector<10x16x128xi1>, vector<10x16x128xf32>
    %cst_57 = arith.constant 0.000000e+00 : f32
    %58 = vector.broadcast %cst_57 : f32 to vector<10x1x128xf32>
    %c0_58 = arith.constant 0 : index
    %c0_59 = arith.constant 0 : index
    %c0_60 = arith.constant 0 : index
    %59 = vector.load %arg11[%c0_58, %c0_59, %c0_60] : memref<10x18x128xf32, #tpu.memory_space<vmem>>, vector<10x1x128xf32>
    tpu.vector_store %arg11[%c0_58, %c0_59, %c0_60], %58 {strides = array<i32>} : memref<10x18x128xf32, #tpu.memory_space<vmem>>, vector<10x1x128xf32>,
    %cst_61 = arith.constant 0.000000e+00 : f32
    %60 = vector.broadcast %cst_61 : f32 to vector<10x1x128xf32>
    %c0_62 = arith.constant 0 : index
    %c17 = arith.constant 17 : index
    %c0_63 = arith.constant 0 : index
    %61 = vector.load %arg11[%c0_62, %c17, %c0_63] : memref<10x18x128xf32, #tpu.memory_space<vmem>>, vector<10x1x128xf32>
    tpu.vector_store %arg11[%c0_62, %c17, %c0_63], %60 {strides = array<i32>} : memref<10x18x128xf32, #tpu.memory_space<vmem>>, vector<10x1x128xf32>,
    %c0_64 = arith.constant 0 : index
    %c1_65 = arith.constant 1 : index
    %c0_66 = arith.constant 0 : index
    %62 = vector.load %arg11[%c0_64, %c1_65, %c0_66] : memref<10x18x128xf32, #tpu.memory_space<vmem>>, vector<10x16x128xf32>
    tpu.vector_store %arg11[%c0_64, %c1_65, %c0_66], %57 {strides = array<i32>} : memref<10x18x128xf32, #tpu.memory_space<vmem>>, vector<10x16x128xf32>,
    %c0_67 = arith.constant 0 : index
    %c0_68 = arith.constant 0 : index
    %c0_69 = arith.constant 0 : index
    %63 = vector.load %arg11[%c0_67, %c0_68, %c0_69] : memref<10x18x128xf32, #tpu.memory_space<vmem>>, vector<10x16x128xf32>
    %64 = arith.truncf %63 : vector<10x16x128xf32> to vector<10x16x128xbf16>
    %c0_70 = arith.constant 0 : index
    %c0_71 = arith.constant 0 : index
    %c0_72 = arith.constant 0 : index
    %65 = vector.load %arg12[%c0_70, %c0_71, %c0_72] : memref<10x16x384xbf16, #tpu.memory_space<vmem>>, vector<10x16x128xbf16>
    tpu.vector_store %arg12[%c0_70, %c0_71, %c0_72], %64 {strides = array<i32>} : memref<10x16x384xbf16, #tpu.memory_space<vmem>>, vector<10x16x128xbf16>,
    %c0_73 = arith.constant 0 : index
    %c1_74 = arith.constant 1 : index
    %c0_75 = arith.constant 0 : index
    %66 = vector.load %arg11[%c0_73, %c1_74, %c0_75] : memref<10x18x128xf32, #tpu.memory_space<vmem>>, vector<10x16x128xf32>
    %67 = arith.truncf %66 : vector<10x16x128xf32> to vector<10x16x128xbf16>
    %c0_76 = arith.constant 0 : index
    %c0_77 = arith.constant 0 : index
    %c128_78 = arith.constant 128 : index
    %68 = vector.load %arg12[%c0_76, %c0_77, %c128_78] : memref<10x16x384xbf16, #tpu.memory_space<vmem>>, vector<10x16x128xbf16>
    tpu.vector_store %arg12[%c0_76, %c0_77, %c128_78], %67 {strides = array<i32>} : memref<10x16x384xbf16, #tpu.memory_space<vmem>>, vector<10x16x128xbf16>,
    %c0_79 = arith.constant 0 : index
    %c2_80 = arith.constant 2 : index
    %c0_81 = arith.constant 0 : index
    %69 = vector.load %arg11[%c0_79, %c2_80, %c0_81] : memref<10x18x128xf32, #tpu.memory_space<vmem>>, vector<10x16x128xf32>
    %70 = arith.truncf %69 : vector<10x16x128xf32> to vector<10x16x128xbf16>
    %c0_82 = arith.constant 0 : index
    %c0_83 = arith.constant 0 : index
    %c256_84 = arith.constant 256 : index
    %71 = vector.load %arg12[%c0_82, %c0_83, %c256_84] : memref<10x16x384xbf16, #tpu.memory_space<vmem>>, vector<10x16x128xbf16>
    tpu.vector_store %arg12[%c0_82, %c0_83, %c256_84], %70 {strides = array<i32>} : memref<10x16x384xbf16, #tpu.memory_space<vmem>>, vector<10x16x128xbf16>,
    %c0_85 = arith.constant 0 : index
    %c0_86 = arith.constant 0 : index
    %c0_87 = arith.constant 0 : index
    %72 = vector.load %arg12[%c0_85, %c0_86, %c0_87] : memref<10x16x384xbf16, #tpu.memory_space<vmem>>, vector<8x16x384xbf16>
    %73 = vector.shape_cast %72 : vector<8x16x384xbf16> to vector<128x384xbf16>
    %c0_88 = arith.constant 0 : index
    %c0_89 = arith.constant 0 : index
    %c0_90 = arith.constant 0 : index
    %74 = vector.load %arg6[%c0_88, %c0_89, %c0_90] : memref<3x384x128xbf16, #tpu.memory_space<vmem>>, vector<1x384x128xbf16>
    %75 = vector.shape_cast %74 : vector<1x384x128xbf16> to vector<384x128xbf16>
    %cst_91 = arith.constant dense<0.000000e+00> : vector<128x128xf32>
    %76 = tpu.matmul %73, %75, %cst_91 {dimension_numbers = #tpu.dot_dimension_numbers<[1], [0], [0], [1], [0, 0, 1, 1], [], []>} : vector<128x384xbf16>, vector<384x128xbf16>, vector<128x128xf32> -> vector<128x128xf32>
    %77 = vector.shape_cast %76 : vector<128x128xf32> to vector<8x16x128xf32>
    %c0_92 = arith.constant 0 : index
    %c0_93 = arith.constant 0 : index
    %c0_94 = arith.constant 0 : index
    %c0_95 = arith.constant 0 : index
    %c0_96 = arith.constant 0 : index
    %78 = vector.load %arg9[%c0_92, %c0_93, %c0_94, %c0_95, %c0_96] : memref<1x1x8x16x128xf32, #tpu.memory_space<vmem>>, vector<1x1x8x16x128xf32>
    %79 = vector.shape_cast %78 : vector<1x1x8x16x128xf32> to vector<8x16x128xf32>
    %80 = vector.shape_cast %77 : vector<8x16x128xf32> to vector<1x1x8x16x128xf32>
    tpu.vector_store %arg9[%c0_92, %c0_93, %c0_94, %c0_95, %c0_96], %80 {strides = array<i32>} : memref<1x1x8x16x128xf32, #tpu.memory_space<vmem>>, vector<1x1x8x16x128xf32>,
    %c1_97 = arith.constant 1 : index
    %c0_98 = arith.constant 0 : index
    %c0_99 = arith.constant 0 : index
    %81 = vector.load %arg12[%c1_97, %c0_98, %c0_99] : memref<10x16x384xbf16, #tpu.memory_space<vmem>>, vector<8x16x384xbf16>
    %82 = vector.shape_cast %81 : vector<8x16x384xbf16> to vector<128x384xbf16>
    %c1_100 = arith.constant 1 : index
    %c0_101 = arith.constant 0 : index
    %c0_102 = arith.constant 0 : index
    %83 = vector.load %arg6[%c1_100, %c0_101, %c0_102] : memref<3x384x128xbf16, #tpu.memory_space<vmem>>, vector<1x384x128xbf16>
    %84 = vector.shape_cast %83 : vector<1x384x128xbf16> to vector<384x128xbf16>
    %cst_103 = arith.constant dense<0.000000e+00> : vector<128x128xf32>
    %85 = tpu.matmul %82, %84, %cst_103 {dimension_numbers = #tpu.dot_dimension_numbers<[1], [0], [0], [1], [0, 0, 1, 1], [], []>} : vector<128x384xbf16>, vector<384x128xbf16>, vector<128x128xf32> -> vector<128x128xf32>
    %86 = vector.shape_cast %85 : vector<128x128xf32> to vector<8x16x128xf32>
    %c0_104 = arith.constant 0 : index
    %c0_105 = arith.constant 0 : index
    %c0_106 = arith.constant 0 : index
    %c0_107 = arith.constant 0 : index
    %c0_108 = arith.constant 0 : index
    %87 = vector.load %arg9[%c0_104, %c0_105, %c0_106, %c0_107, %c0_108] : memref<1x1x8x16x128xf32, #tpu.memory_space<vmem>>, vector<1x1x8x16x128xf32>
    %88 = vector.shape_cast %87 : vector<1x1x8x16x128xf32> to vector<8x16x128xf32>
    %89 = arith.addf %88, %86 : vector<8x16x128xf32>
    %c0_109 = arith.constant 0 : index
    %c0_110 = arith.constant 0 : index
    %c0_111 = arith.constant 0 : index
    %c0_112 = arith.constant 0 : index
    %c0_113 = arith.constant 0 : index
    %90 = vector.load %arg9[%c0_109, %c0_110, %c0_111, %c0_112, %c0_113] : memref<1x1x8x16x128xf32, #tpu.memory_space<vmem>>, vector<1x1x8x16x128xf32>
    %91 = vector.shape_cast %90 : vector<1x1x8x16x128xf32> to vector<8x16x128xf32>
    %92 = vector.shape_cast %89 : vector<8x16x128xf32> to vector<1x1x8x16x128xf32>
    tpu.vector_store %arg9[%c0_109, %c0_110, %c0_111, %c0_112, %c0_113], %92 {strides = array<i32>} : memref<1x1x8x16x128xf32, #tpu.memory_space<vmem>>, vector<1x1x8x16x128xf32>,
    %c2_114 = arith.constant 2 : index
    %c0_115 = arith.constant 0 : index
    %c0_116 = arith.constant 0 : index
    %93 = vector.load %arg12[%c2_114, %c0_115, %c0_116] : memref<10x16x384xbf16, #tpu.memory_space<vmem>>, vector<8x16x384xbf16>
    %94 = vector.shape_cast %93 : vector<8x16x384xbf16> to vector<128x384xbf16>
    %c2_117 = arith.constant 2 : index
    %c0_118 = arith.constant 0 : index
    %c0_119 = arith.constant 0 : index
    %95 = vector.load %arg6[%c2_117, %c0_118, %c0_119] : memref<3x384x128xbf16, #tpu.memory_space<vmem>>, vector<1x384x128xbf16>
    %96 = vector.shape_cast %95 : vector<1x384x128xbf16> to vector<384x128xbf16>
    %cst_120 = arith.constant dense<0.000000e+00> : vector<128x128xf32>
    %97 = tpu.matmul %94, %96, %cst_120 {dimension_numbers = #tpu.dot_dimension_numbers<[1], [0], [0], [1], [0, 0, 1, 1], [], []>} : vector<128x384xbf16>, vector<384x128xbf16>, vector<128x128xf32> -> vector<128x128xf32>
    %98 = vector.shape_cast %97 : vector<128x128xf32> to vector<8x16x128xf32>
    %c0_121 = arith.constant 0 : index
    %c0_122 = arith.constant 0 : index
    %c0_123 = arith.constant 0 : index
    %c0_124 = arith.constant 0 : index
    %c0_125 = arith.constant 0 : index
    %99 = vector.load %arg9[%c0_121, %c0_122, %c0_123, %c0_124, %c0_125] : memref<1x1x8x16x128xf32, #tpu.memory_space<vmem>>, vector<1x1x8x16x128xf32>
    %100 = vector.shape_cast %99 : vector<1x1x8x16x128xf32> to vector<8x16x128xf32>
    %101 = arith.addf %100, %98 : vector<8x16x128xf32>
    %c0_126 = arith.constant 0 : index
    %c0_127 = arith.constant 0 : index
    %c0_128 = arith.constant 0 : index
    %c0_129 = arith.constant 0 : index
    %c0_130 = arith.constant 0 : index
    %102 = vector.load %arg9[%c0_126, %c0_127, %c0_128, %c0_129, %c0_130] : memref<1x1x8x16x128xf32, #tpu.memory_space<vmem>>, vector<1x1x8x16x128xf32>
    %103 = vector.shape_cast %102 : vector<1x1x8x16x128xf32> to vector<8x16x128xf32>
    %104 = vector.shape_cast %101 : vector<8x16x128xf32> to vector<1x1x8x16x128xf32>
    tpu.vector_store %arg9[%c0_126, %c0_127, %c0_128, %c0_129, %c0_130], %104 {strides = array<i32>} : memref<1x1x8x16x128xf32, #tpu.memory_space<vmem>>, vector<1x1x8x16x128xf32>,
    %c0_131 = arith.constant 0 : index
    %c0_132 = arith.constant 0 : index
    %c2_133 = arith.constant 2 : index
    %c1_134 = arith.constant 1 : index
    %c0_135 = arith.constant 0 : index
    %105 = vector.load %arg2[%c0_131, %c0_132, %c2_133, %c1_134, %c0_135] : memref<1x1x12x18x128xf32, #tpu.memory_space<vmem>>, vector<1x1x8x16x128xf32>
    %106 = vector.shape_cast %105 : vector<1x1x8x16x128xf32> to vector<8x16x128xf32>
    %c0_136 = arith.constant 0 : index
    %c0_137 = arith.constant 0 : index
    %c0_138 = arith.constant 0 : index
    %c0_139 = arith.constant 0 : index
    %c0_140 = arith.constant 0 : index
    %107 = vector.load %arg9[%c0_136, %c0_137, %c0_138, %c0_139, %c0_140] : memref<1x1x8x16x128xf32, #tpu.memory_space<vmem>>, vector<1x1x8x16x128xf32>
    %108 = vector.shape_cast %107 : vector<1x1x8x16x128xf32> to vector<8x16x128xf32>
    %c0_141 = arith.constant 0 : index
    %c0_142 = arith.constant 0 : index
    %109 = vector.load %arg7[%c0_141, %c0_142] : memref<1x128xf32, #tpu.memory_space<vmem>>, vector<1x128xf32>
    %110 = vector.shape_cast %109 : vector<1x128xf32> to vector<1x1x128xf32>
    %111 = vector.broadcast %110 : vector<1x1x128xf32> to vector<8x16x128xf32>
    %112 = arith.mulf %108, %111 : vector<8x16x128xf32>
    %c0_143 = arith.constant 0 : index
    %c0_144 = arith.constant 0 : index
    %113 = vector.load %arg8[%c0_143, %c0_144] : memref<1x128xf32, #tpu.memory_space<vmem>>, vector<1x128xf32>
    %114 = vector.shape_cast %113 : vector<1x128xf32> to vector<1x1x128xf32>
    %115 = vector.broadcast %114 : vector<1x1x128xf32> to vector<8x16x128xf32>
    %116 = arith.addf %112, %115 : vector<8x16x128xf32>
    %117 = arith.addf %116, %106 : vector<8x16x128xf32>
    %cst_145 = arith.constant 0.000000e+00 : f32
    %118 = vector.broadcast %cst_145 : f32 to vector<8x16x128xf32>
    %119 = arith.maximumf %117, %118 : vector<8x16x128xf32>
    %c0_146 = arith.constant 0 : index
    %c0_147 = arith.constant 0 : index
    %c0_148 = arith.constant 0 : index
    %c0_149 = arith.constant 0 : index
    %c0_150 = arith.constant 0 : index
    %120 = vector.load %arg9[%c0_146, %c0_147, %c0_148, %c0_149, %c0_150] : memref<1x1x8x16x128xf32, #tpu.memory_space<vmem>>, vector<1x1x8x16x128xf32>
    %121 = vector.shape_cast %120 : vector<1x1x8x16x128xf32> to vector<8x16x128xf32>
    %122 = vector.shape_cast %119 : vector<8x16x128xf32> to vector<1x1x8x16x128xf32>
    tpu.vector_store %arg9[%c0_146, %c0_147, %c0_148, %c0_149, %c0_150], %122 {strides = array<i32>} : memref<1x1x8x16x128xf32, #tpu.memory_space<vmem>>, vector<1x1x8x16x128xf32>,
    return
  }
  func.func @transform_0(%arg0: i32, %arg1: i32) -> (i32, i32, i32, i32, i32) {
    %c0_i32 = arith.constant 0 : i32
    %c0_i32_0 = arith.constant 0 : i32
    %c0_i32_1 = arith.constant 0 : i32
    %c0_i32_2 = arith.constant 0 : i32
    return %arg0, %arg1, %c0_i32, %c0_i32_0, %c0_i32_1 : i32, i32, i32, i32, i32
  }
  func.func @transform_1(%arg0: i32, %arg1: i32) -> (i32, i32, i32) {
    %c0_i32 = arith.constant 0 : i32
    %c0_i32_0 = arith.constant 0 : i32
    %c0_i32_1 = arith.constant 0 : i32
    %c0_i32_2 = arith.constant 0 : i32
    return %c0_i32, %c0_i32_0, %c0_i32_1 : i32, i32, i32
  }
  func.func @transform_2(%arg0: i32, %arg1: i32) -> (i32, i32) {
    %c0_i32 = arith.constant 0 : i32
    %c0_i32_0 = arith.constant 0 : i32
    %c0_i32_1 = arith.constant 0 : i32
    return %c0_i32, %c0_i32_0 : i32, i32
  }
  func.func @transform_3(%arg0: i32, %arg1: i32) -> (i32, i32) {
    %c0_i32 = arith.constant 0 : i32
    %c0_i32_0 = arith.constant 0 : i32
    %c0_i32_1 = arith.constant 0 : i32
    return %c0_i32, %c0_i32_0 : i32, i32
  }
  func.func @transform_4(%arg0: i32, %arg1: i32) -> (i32, i32, i32) {
    %c0_i32 = arith.constant 0 : i32
    %c0_i32_0 = arith.constant 0 : i32
    %c0_i32_1 = arith.constant 0 : i32
    %c0_i32_2 = arith.constant 0 : i32
    return %c0_i32, %c0_i32_0, %c0_i32_1 : i32, i32, i32
  }
  func.func @transform_5(%arg0: i32, %arg1: i32) -> (i32, i32) {
    %c0_i32 = arith.constant 0 : i32
    %c0_i32_0 = arith.constant 0 : i32
    %c0_i32_1 = arith.constant 0 : i32
    return %c0_i32, %c0_i32_0 : i32, i32
  }
  func.func @transform_6(%arg0: i32, %arg1: i32) -> (i32, i32) {
    %c0_i32 = arith.constant 0 : i32
    %c0_i32_0 = arith.constant 0 : i32
    %c0_i32_1 = arith.constant 0 : i32
    return %c0_i32, %c0_i32_0 : i32, i32
  }
  func.func @transform_7(%arg0: i32, %arg1: i32) -> (i32, i32, i32, i32, i32) {
    %c0_i32 = arith.constant 0 : i32
    %c0_i32_0 = arith.constant 0 : i32
    %c0_i32_1 = arith.constant 0 : i32
    %c0_i32_2 = arith.constant 0 : i32
    return %arg0, %arg1, %c0_i32, %c0_i32_0, %c0_i32_1 : i32, i32, i32, i32, i32
  }
}

</mosaic_0001>

<llo_original>
// kernel: tpu_custom_call.1
$region0: #{tpu_custom_call.1}
  #allocation0 [shape = 'u32[]', space=smem, size = 0x4, offset = 0x4, fixed_abs, tag = 'smem constant byte address 0x4 - core index']
  #allocation1 [shape = 'u32[144,128]{1,0:T(1,128)}', space=vmem, size = 0x12000, scoped, tag = 'internal scratch']
  #allocation2 [shape = 'bf16[12,16,384]{2,1,0:T(16,128)(2,1)}', space=vmem, size = 0x24000, scoped, tag = 'scratch operand']
  #allocation3 [shape = 'f32[10,18,128]{2,1,0:T(8,128)}', space=vmem, size = 0x1e000, scoped, tag = 'scratch operand']
  #allocation4 [shape = 'bf16[10,16,384]{2,1,0:T(16,128)(2,1)}', space=vmem, size = 0x1e000, scoped, tag = 'scratch operand']
  #allocation5 [shape = 'f32[160,128]{1,0:T(8,128)}', space=vmem, size = 0x14000, scoped, tag = 'scratch operand']
  %s0 = inlined_call_operand.vmem [shape: f32[2,2,12,18,128], index: 0, kind: input, shape index: {}]
  %s1 = inlined_call_operand.vmem [shape: bf16[3,384,128], index: 1, kind: input, shape index: {}]
  %s2 = inlined_call_operand.vmem [shape: f32[1,128], index: 2, kind: input, shape index: {}]
  %s3 = inlined_call_operand.vmem [shape: f32[1,128], index: 3, kind: input, shape index: {}]
  %s4 = inlined_call_operand.vmem [shape: bf16[3,384,128], index: 4, kind: input, shape index: {}]
  %s5 = inlined_call_operand.vmem [shape: f32[1,128], index: 5, kind: input, shape index: {}]
  %s6 = inlined_call_operand.vmem [shape: f32[1,128], index: 6, kind: input, shape index: {}]
  %s7 = inlined_call_operand.hbm [shape: f32[2,2,8,16,128], index: 7, kind: output, shape index: {}]
  %s8 = sld [smem:[#allocation0]]
  $region61: #{tpu_custom_call.1} parent=0
    _
  %s10 = ssub.s32 1, %s8
  %s11 = scalar_select 0, %s10, %s8
  $region1: #{tpu_custom_call.1} parent=0
    #allocation6 [shape = 'u8[131072]{0}', space=vmem, size = 0x20000, scoped, tag = 'output window, operand 0']
    #allocation7 [shape = 's32[2]{0}', space=sflag, size = 0x8, scoped, tag = 'scoped memory for tpu_custom_call.1']
    %12 = vsyncpa [#allocation7], 0
    %s13 = scalar_lea.sflag [#allocation7], 1
    %14 = vsyncpa %s13, 0
    loop: start=0, step=1, limit=6
    $region2: #{tpu_custom_call.1} parent=1 // loop_pre_header
      _
    $region3: #{tpu_custom_call.1} parent=1 // loop_header
      %s16 = sphi 0, %s20
      %p17 = scmp.ge.s32.totalorder %s16, 6
      %s23 = sphi 0, %s35
      %s24 = sphi 0, %s31
      %s25 = sphi 0, %s23
      %s26 = sphi 0, %s24
      %s27 = sphi 0, %s25
      %s28 = sphi 0, %s26
      %s40 = sphi 0, %s42
      %s43 = sphi 0, %s40
      %s44 = sphi 0, %s43
      %s60 = sphi 0, %s44
      %s64 = sphi 0, %s64
      %s66 = sphi 0, %s64
      %s67 = sphi 0, %s66
      %s81 = sphi 0, %s67
      %s85 = sphi 0, %s85
      %s87 = sphi 0, %s85
      %s88 = sphi 0, %s87
      %s102 = sphi 0, %s88
      %s106 = sphi 0, %s106
      %s108 = sphi 0, %s106
      %s109 = sphi 0, %s108
      %s123 = sphi 0, %s109
      %s127 = sphi 0, %s127
      %s129 = sphi 0, %s127
      %s130 = sphi 0, %s129
      %s144 = sphi 0, %s130
      %s148 = sphi 0, %s148
      %s150 = sphi 0, %s148
      %s151 = sphi 0, %s150
      %s165 = sphi 0, %s151
      %s169 = sphi 0, %s169
      %s171 = sphi 0, %s169
      %s172 = sphi 0, %s171
      %s186 = sphi 0, %s172
      %s194 = sphi 0, %s196
      %s197 = sphi 0, %s194
      %s198 = sphi 0, %s197
      %s214 = sphi 0, %s198
    $region4: #{tpu_custom_call.1} parent=1 // loop_header_branch
      %19 = sbr.rel (%p17) target = $region8
    $region5: #{tpu_custom_call.1} parent=1 // loop_body
      %s21 = ssub.s32 %s16, 1
      %s22 = ssub.s32 %s16, 2
      %s29 = sadd.s32 1, %s24
      %p30 = scmp.ge.s32.totalorder %s29, 2
      %s31 = scalar_select %p30, 0, %s29
      %s32 = sadd.s32 1, %s23
      %s33 = scalar_select %p30, %s32, %s23
      %p34 = scmp.ge.s32.totalorder %s33, 2
      %s35 = scalar_select %p34, 0, %s33
      %s36 = ssub.s32 %s23, %s35
      %s37 = ssub.s32 %s24, %s31
      %s38 = sor.u32 %s36, %s37
      %p39 = scmp.eq.s32.totalorder %s38, 0
      %s41 = sadd.s32 %s40, 1
      %s42 = scalar_select %p39, %s40, %s41
      %p45 = pneg %p39
      %p46 = scmp.eq.s32.totalorder %s16, 3
      %p47 = por %p45, %p46
      %p48 = scmp.ne.s32.totalorder %s40, %s43
      %p49 = scmp.eq.s32.totalorder %s16, 0
      %p50 = por %p48, %p49
      %p51 = scmp.ne.s32.totalorder %s40, %s43
      %p52 = scmp.eq.s32.totalorder %s21, 3
      %p53 = por %p51, %p52
      %p54 = scmp.ne.s32.totalorder %s43, %s44
      %p55 = scmp.eq.s32.totalorder %s21, 0
      %p56 = por %p54, %p55
      %p57 = scmp.ne.s32.totalorder %s43, %s44
      %p58 = scmp.eq.s32.totalorder %s22, 3
      %p59 = por %p57, %p58
      %p61 = scmp.ne.s32.totalorder %s44, %s60
      %p62 = scmp.eq.s32.totalorder %s22, 0
      %p63 = por %p61, %p62
      %s65 = sadd.s32 %s64, 1
      %p68 = scmp.eq.s32.totalorder %s16, 3
      %p69 = scmp.ne.s32.totalorder %s64, %s66
      %p70 = scmp.eq.s32.totalorder %s16, 0
      %p71 = por %p69, %p70
      %p72 = scmp.ne.s32.totalorder %s64, %s66
      %p73 = scmp.eq.s32.totalorder %s21, 3
      %p74 = por %p72, %p73
      %p75 = scmp.ne.s32.totalorder %s66, %s67
      %p76 = scmp.eq.s32.totalorder %s21, 0
      %p77 = por %p75, %p76
      %p78 = scmp.ne.s32.totalorder %s66, %s67
      %p79 = scmp.eq.s32.totalorder %s22, 3
      %p80 = por %p78, %p79
      %p82 = scmp.ne.s32.totalorder %s67, %s81
      %p83 = scmp.eq.s32.totalorder %s22, 0
      %p84 = por %p82, %p83
      %s86 = sadd.s32 %s85, 1
      %p89 = scmp.eq.s32.totalorder %s16, 3
      %p90 = scmp.ne.s32.totalorder %s85, %s87
      %p91 = scmp.eq.s32.totalorder %s16, 0
      %p92 = por %p90, %p91
      %p93 = scmp.ne.s32.totalorder %s85, %s87
      %p94 = scmp.eq.s32.totalorder %s21, 3
      %p95 = por %p93, %p94
      %p96 = scmp.ne.s32.totalorder %s87, %s88
      %p97 = scmp.eq.s32.totalorder %s21, 0
      %p98 = por %p96, %p97
      %p99 = scmp.ne.s32.totalorder %s87, %s88
      %p100 = scmp.eq.s32.totalorder %s22, 3
      %p101 = por %p99, %p100
      %p103 = scmp.ne.s32.totalorder %s88, %s102
      %p104 = scmp.eq.s32.totalorder %s22, 0
      %p105 = por %p103, %p104
      %s107 = sadd.s32 %s106, 1
      %p110 = scmp.eq.s32.totalorder %s16, 3
      %p111 = scmp.ne.s32.totalorder %s106, %s108
      %p112 = scmp.eq.s32.totalorder %s16, 0
      %p113 = por %p111, %p112
      %p114 = scmp.ne.s32.totalorder %s106, %s108
      %p115 = scmp.eq.s32.totalorder %s21, 3
      %p116 = por %p114, %p115
      %p117 = scmp.ne.s32.totalorder %s108, %s109
      %p118 = scmp.eq.s32.totalorder %s21, 0
      %p119 = por %p117, %p118
      %p120 = scmp.ne.s32.totalorder %s108, %s109
      %p121 = scmp.eq.s32.totalorder %s22, 3
      %p122 = por %p120, %p121
      %p124 = scmp.ne.s32.totalorder %s109, %s123
      %p125 = scmp.eq.s32.totalorder %s22, 0
      %p126 = por %p124, %p125
      %s128 = sadd.s32 %s127, 1
      %p131 = scmp.eq.s32.totalorder %s16, 3
      %p132 = scmp.ne.s32.totalorder %s127, %s129
      %p133 = scmp.eq.s32.totalorder %s16, 0
      %p134 = por %p132, %p133
      %p135 = scmp.ne.s32.totalorder %s127, %s129
      %p136 = scmp.eq.s32.totalorder %s21, 3
      %p137 = por %p135, %p136
      %p138 = scmp.ne.s32.totalorder %s129, %s130
      %p139 = scmp.eq.s32.totalorder %s21, 0
      %p140 = por %p138, %p139
      %p141 = scmp.ne.s32.totalorder %s129, %s130
      %p142 = scmp.eq.s32.totalorder %s22, 3
      %p143 = por %p141, %p142
      %p145 = scmp.ne.s32.totalorder %s130, %s144
      %p146 = scmp.eq.s32.totalorder %s22, 0
      %p147 = por %p145, %p146
      %s149 = sadd.s32 %s148, 1
      %p152 = scmp.eq.s32.totalorder %s16, 3
      %p153 = scmp.ne.s32.totalorder %s148, %s150
      %p154 = scmp.eq.s32.totalorder %s16, 0
      %p155 = por %p153, %p154
      %p156 = scmp.ne.s32.totalorder %s148, %s150
      %p157 = scmp.eq.s32.totalorder %s21, 3
      %p158 = por %p156, %p157
      %p159 = scmp.ne.s32.totalorder %s150, %s151
      %p160 = scmp.eq.s32.totalorder %s21, 0
      %p161 = por %p159, %p160
      %p162 = scmp.ne.s32.totalorder %s150, %s151
      %p163 = scmp.eq.s32.totalorder %s22, 3
      %p164 = por %p162, %p163
      %p166 = scmp.ne.s32.totalorder %s151, %s165
      %p167 = scmp.eq.s32.totalorder %s22, 0
      %p168 = por %p166, %p167
      %s170 = sadd.s32 %s169, 1
      %p173 = scmp.eq.s32.totalorder %s16, 3
      %p174 = scmp.ne.s32.totalorder %s169, %s171
      %p175 = scmp.eq.s32.totalorder %s16, 0
      %p176 = por %p174, %p175
      %p177 = scmp.ne.s32.totalorder %s169, %s171
      %p178 = scmp.eq.s32.totalorder %s21, 3
      %p179 = por %p177, %p178
      %p180 = scmp.ne.s32.totalorder %s171, %s172
      %p181 = scmp.eq.s32.totalorder %s21, 0
      %p182 = por %p180, %p181
      %p183 = scmp.ne.s32.totalorder %s171, %s172
      %p184 = scmp.eq.s32.totalorder %s22, 3
      %p185 = por %p183, %p184
      %p187 = scmp.ne.s32.totalorder %s172, %s186
      %p188 = scmp.eq.s32.totalorder %s22, 0
      %p189 = por %p187, %p188
      %s190 = ssub.s32 %s23, %s35
      %s191 = ssub.s32 %s24, %s31
      %s192 = sor.u32 %s190, %s191
      %p193 = scmp.eq.s32.totalorder %s192, 0
      %s195 = sadd.s32 %s194, 1
      %s196 = scalar_select %p193, %s194, %s195
      %p199 = pneg %p193
      %p200 = scmp.eq.s32.totalorder %s16, 3
      %p201 = por %p199, %p200
      %p202 = scmp.ne.s32.totalorder %s194, %s197
      %p203 = scmp.eq.s32.totalorder %s16, 0
      %p204 = por %p202, %p203
      %p205 = scmp.ne.s32.totalorder %s194, %s197
      %p206 = scmp.eq.s32.totalorder %s21, 3
      %p207 = por %p205, %p206
      %p208 = scmp.ne.s32.totalorder %s197, %s198
      %p209 = scmp.eq.s32.totalorder %s21, 0
      %p210 = por %p208, %p209
      %p211 = scmp.ne.s32.totalorder %s197, %s198
      %p212 = scmp.eq.s32.totalorder %s22, 3
      %p213 = por %p211, %p212
      %p215 = scmp.ne.s32.totalorder %s198, %s214
      %p216 = scmp.eq.s32.totalorder %s22, 0
      %p217 = por %p215, %p216
      %p218 = scmp.le.s32.totalorder 1, %s16
      %p219 = scmp.lt.s32.totalorder %s16, 5
      %p220 = pnand %p218, %p219
      %p221 = pneg %p220
      // Predicated region
      $region9: #{tpu_custom_call.1} parent=5 // pred_check
        _
      $region10: #{tpu_custom_call.1} parent=5 // pred_check_branch
        %223 = sbr.rel (%p220) target = $region12
      $region11: #{tpu_custom_call.1} parent=5 // pred_region
        %s224 = ssub.s32 %s16, 1
        // Predicated region
        $region13: #{tpu_custom_call.1} parent=11 // pred_check
          %p225 = pneg %p77
        $region14: #{tpu_custom_call.1} parent=11 // pred_check_branch
          %227 = sbr.rel (%p225) target = $region16
        $region15: #{tpu_custom_call.1} parent=11 // pred_region
          _
        $region16: #{tpu_custom_call.1} parent=11 // pred_fallthru
          _
        // Predicated region
        $region17: #{tpu_custom_call.1} parent=11 // pred_check
          %p228 = pneg %p98
        $region18: #{tpu_custom_call.1} parent=11 // pred_check_branch
          %230 = sbr.rel (%p228) target = $region20
        $region19: #{tpu_custom_call.1} parent=11 // pred_region
          _
        $region20: #{tpu_custom_call.1} parent=11 // pred_fallthru
          _
        // Predicated region
        $region21: #{tpu_custom_call.1} parent=11 // pred_check
          %p231 = pneg %p119
        $region22: #{tpu_custom_call.1} parent=11 // pred_check_branch
          %233 = sbr.rel (%p231) target = $region24
        $region23: #{tpu_custom_call.1} parent=11 // pred_region
          _
        $region24: #{tpu_custom_call.1} parent=11 // pred_fallthru
          _
        // Predicated region
        $region25: #{tpu_custom_call.1} parent=11 // pred_check
          %p234 = pneg %p140
        $region26: #{tpu_custom_call.1} parent=11 // pred_check_branch
          %236 = sbr.rel (%p234) target = $region28
        $region27: #{tpu_custom_call.1} parent=11 // pred_region
          _
        $region28: #{tpu_custom_call.1} parent=11 // pred_fallthru
          _
        // Predicated region
        $region29: #{tpu_custom_call.1} parent=11 // pred_check
          %p237 = pneg %p161
        $region30: #{tpu_custom_call.1} parent=11 // pred_check_branch
          %239 = sbr.rel (%p237) target = $region32
        $region31: #{tpu_custom_call.1} parent=11 // pred_region
          _
        $region32: #{tpu_custom_call.1} parent=11 // pred_fallthru
          _
        // Predicated region
        $region33: #{tpu_custom_call.1} parent=11 // pred_check
          %p240 = pneg %p182
        $region34: #{tpu_custom_call.1} parent=11 // pred_check_branch
          %242 = sbr.rel (%p240) target = $region36
        $region35: #{tpu_custom_call.1} parent=11 // pred_region
          _
        $region36: #{tpu_custom_call.1} parent=11 // pred_fallthru
          _
      $region12: #{tpu_custom_call.1} parent=5 // pred_fallthru
        _
      %p243 = scmp.lt.s32.totalorder %s16, 4
      // Predicated region
      $region37: #{tpu_custom_call.1} parent=5 // pred_check
        %p244 = pneg %p243
      $region38: #{tpu_custom_call.1} parent=5 // pred_check_branch
        %246 = sbr.rel (%p244) target = $region40
      $region39: #{tpu_custom_call.1} parent=5 // pred_region
        // Predicated region
        $region41: #{tpu_custom_call.1} parent=39 // pred_check
          %p247 = pneg %p50
        $region42: #{tpu_custom_call.1} parent=39 // pred_check_branch
          %249 = sbr.rel (%p247) target = $region44
        $region43: #{tpu_custom_call.1} parent=39 // pred_region
          %p250 = scmp.lt.s32.totalorder %s23, 1
          %s251 = scalar_select %p250, %s23, 1
          %p252 = scmp.lt.s32.totalorder %s24, 1
          %s253 = scalar_select %p252, %s24, 1
          %s254 = smul.addr %s253, 36
          %s255 = smul.addr %s251, 72
          %s256 = sadd.s32 %s254, %s255
          %s257 = smul.addr %s256, 8
          %s258 = scalar_lea.vmem %s0, %s257
        $region44: #{tpu_custom_call.1} parent=39 // pred_fallthru
          _
      $region40: #{tpu_custom_call.1} parent=5 // pred_fallthru
        _
      %p259 = scmp.le.s32.totalorder 1, %s16
      %p260 = scmp.lt.s32.totalorder %s16, 5
      %p261 = pnand %p259, %p260
      %p262 = pneg %p261
      // Predicated region
      $region45: #{tpu_custom_call.1} parent=5 // pred_check
        _
      $region46: #{tpu_custom_call.1} parent=5 // pred_check_branch
        %264 = sbr.rel (%p261) target = $region48
      $region47: #{tpu_custom_call.1} parent=5 // pred_region
        %s265 = ssub.s32 %s16, 1
        %p266 = scmp.lt.s32.totalorder %s25, 1
        %s267 = scalar_select %p266, %s25, 1
        %p268 = scmp.lt.s32.totalorder %s26, 1
        %s269 = scalar_select %p268, %s26, 1
        %s270 = smul.addr %s269, 36
        %s271 = smul.addr %s267, 72
        %s272 = sadd.s32 %s270, %s271
        %s273 = smul.addr %s272, 8
        %s274 = scalar_lea.vmem %s0, %s273
        %p275 = pneg %p56
        %p276 = pneg %p53
        %p277 = pneg %p77
        %p278 = pneg %p74
        %p279 = pneg %p98
        %p280 = pneg %p95
        %p281 = pneg %p119
        %p282 = pneg %p116
        %p283 = pneg %p140
        %p284 = pneg %p137
        %p285 = pneg %p161
        %p286 = pneg %p158
        %p287 = pneg %p182
        %p288 = pneg %p179
        %p289 = pneg %p210
        %p290 = pneg %p207
        %s291 = sand.u32 %s197, 1
        %s292 = scalar_lea.sflag [#allocation7], %s291
        %s293 = sand.u32 %s197, 1
        %s294 = smul.addr %s293, 128
        %s295 = scalar_lea.vmem [#allocation6], %s294
        %p296 = scmp.lt.s32.totalorder %s25, 1
        %s297 = scalar_select %p296, %s25, 1
        %p298 = scmp.lt.s32.totalorder %s26, 1
        %s299 = scalar_select %p298, %s26, 1
        %s300 = smul.addr %s299, 36
        %s301 = smul.addr %s297, 72
        %s302 = sadd.s32 %s300, %s301
        %s303 = smul.addr %s302, 8
        %s304 = scalar_lea.vmem %s0, %s303
        %v306 = vld [vmem:[%s304] sm:$0xff]
        %v307 = vld [vmem:[%s304 + $0x8] sm:$0xff]
        %v308 = vld [vmem:[%s304 + $0x18] sm:$0xff]
        %v309 = vld [vmem:[%s304 + $0x20] sm:$0xff]
        %v310 = vld [vmem:[%s304 + $0x30] sm:$0xff]
        %v311 = vld [vmem:[%s304 + $0x38] sm:$0xff]
        %v312 = vld [vmem:[%s304 + $0x48] sm:$0xff]
        %v313 = vld [vmem:[%s304 + $0x50] sm:$0xff]
        %v314 = vld [vmem:[%s304 + $0x60] sm:$0xff]
        %v315 = vld [vmem:[%s304 + $0x68] sm:$0xff]
        %v316 = vld [vmem:[%s304 + $0x78] sm:$0xff]
        %v317 = vld [vmem:[%s304 + $0x80] sm:$0xff]
        %v318 = vld [vmem:[%s304 + $0x90] sm:$0xff]
        %v319 = vld [vmem:[%s304 + $0x98] sm:$0xff]
        %v320 = vld [vmem:[%s304 + $0xa8] sm:$0xff]
        %v321 = vld [vmem:[%s304 + $0xb0] sm:$0xff]
        %v322 = vld [vmem:[%s304 + $0xc0] sm:$0xff]
        %v323 = vld [vmem:[%s304 + $0xc8] sm:$0xff]
        %v324 = vld [vmem:[%s304 + $0xd8] sm:$0xff]
        %v325 = vld [vmem:[%s304 + $0xe0] sm:$0xff]
        %v326 = vld [vmem:[%s304 + $0xf0] sm:$0xff]
        %v327 = vld [vmem:[%s304 + $0xf8] sm:$0xff]
        %v328 = vld [vmem:[%s304 + $0x108] sm:$0xff]
        %v329 = vld [vmem:[%s304 + $0x110] sm:$0xff]
        %v330 = vpack.c.bf16 %v307, %v306
        %v331 = vpack.c.bf16 %v309, %v308
        %v332 = vpack.c.bf16 %v311, %v310
        %v333 = vpack.c.bf16 %v313, %v312
        %v334 = vpack.c.bf16 %v315, %v314
        %v335 = vpack.c.bf16 %v317, %v316
        %v336 = vpack.c.bf16 %v319, %v318
        %v337 = vpack.c.bf16 %v321, %v320
        %v338 = vpack.c.bf16 %v323, %v322
        %v339 = vpack.c.bf16 %v325, %v324
        %v340 = vpack.c.bf16 %v327, %v326
        %v341 = vpack.c.bf16 %v329, %v328
        %342 = vst [vmem:[#allocation2] sm:$0xff] %v330
        %343 = vst [vmem:[#allocation2 + $0x18] sm:$0xff] %v331
        %344 = vst [vmem:[#allocation2 + $0x30] sm:$0xff] %v332
        %345 = vst [vmem:[#allocation2 + $0x48] sm:$0xff] %v333
        %346 = vst [vmem:[#allocation2 + $0x60] sm:$0xff] %v334
        %347 = vst [vmem:[#allocation2 + $0x78] sm:$0xff] %v335
        %348 = vst [vmem:[#allocation2 + $0x90] sm:$0xff] %v336
        %349 = vst [vmem:[#allocation2 + $0xa8] sm:$0xff] %v337
        %350 = vst [vmem:[#allocation2 + $0xc0] sm:$0xff] %v338
        %351 = vst [vmem:[#allocation2 + $0xd8] sm:$0xff] %v339
        %352 = vst [vmem:[#allocation2 + $0xf0] sm:$0xff] %v340
        %353 = vst [vmem:[#allocation2 + $0x108] sm:$0xff] %v341
        %v354 = vld [vmem:[%s304 + $0x1] sm:$0xff]
        %v355 = vld [vmem:[%s304 + $0x9] sm:$0xff]
        %v356 = vld [vmem:[%s304 + $0x19] sm:$0xff]
        %v357 = vld [vmem:[%s304 + $0x21] sm:$0xff]
        %v358 = vld [vmem:[%s304 + $0x31] sm:$0xff]
        %v359 = vld [vmem:[%s304 + $0x39] sm:$0xff]
        %v360 = vld [vmem:[%s304 + $0x49] sm:$0xff]
        %v361 = vld [vmem:[%s304 + $0x51] sm:$0xff]
        %v362 = vld [vmem:[%s304 + $0x61] sm:$0xff]
        %v363 = vld [vmem:[%s304 + $0x69] sm:$0xff]
        %v364 = vld [vmem:[%s304 + $0x79] sm:$0xff]
        %v365 = vld [vmem:[%s304 + $0x81] sm:$0xff]
        %v366 = vld [vmem:[%s304 + $0x91] sm:$0xff]
        %v367 = vld [vmem:[%s304 + $0x99] sm:$0xff]
        %v368 = vld [vmem:[%s304 + $0xa9] sm:$0xff]
        %v369 = vld [vmem:[%s304 + $0xb1] sm:$0xff]
        %v370 = vld [vmem:[%s304 + $0xc1] sm:$0xff]
        %v371 = vld [vmem:[%s304 + $0xc9] sm:$0xff]
        %v372 = vld [vmem:[%s304 + $0xd9] sm:$0xff]
        %v373 = vld [vmem:[%s304 + $0xe1] sm:$0xff]
        %v374 = vld [vmem:[%s304 + $0xf1] sm:$0xff]
        %v375 = vld [vmem:[%s304 + $0xf9] sm:$0xff]
        %v376 = vld [vmem:[%s304 + $0x109] sm:$0xff]
        %v377 = vld [vmem:[%s304 + $0x111] sm:$0xff]
        %v378 = vpack.c.bf16 %v355, %v354
        %v379 = vpack.c.bf16 %v357, %v356
        %v380 = vpack.c.bf16 %v359, %v358
        %v381 = vpack.c.bf16 %v361, %v360
        %v382 = vpack.c.bf16 %v363, %v362
        %v383 = vpack.c.bf16 %v365, %v364
        %v384 = vpack.c.bf16 %v367, %v366
        %v385 = vpack.c.bf16 %v369, %v368
        %v386 = vpack.c.bf16 %v371, %v370
        %v387 = vpack.c.bf16 %v373, %v372
        %v388 = vpack.c.bf16 %v375, %v374
        %v389 = vpack.c.bf16 %v377, %v376
        %390 = vst [vmem:[#allocation2 + $0x8] sm:$0xff] %v378
        %391 = vst [vmem:[#allocation2 + $0x20] sm:$0xff] %v379
        %392 = vst [vmem:[#allocation2 + $0x38] sm:$0xff] %v380
        %393 = vst [vmem:[#allocation2 + $0x50] sm:$0xff] %v381
        %394 = vst [vmem:[#allocation2 + $0x68] sm:$0xff] %v382
        %395 = vst [vmem:[#allocation2 + $0x80] sm:$0xff] %v383
        %396 = vst [vmem:[#allocation2 + $0x98] sm:$0xff] %v384
        %397 = vst [vmem:[#allocation2 + $0xb0] sm:$0xff] %v385
        %398 = vst [vmem:[#allocation2 + $0xc8] sm:$0xff] %v386
        %399 = vst [vmem:[#allocation2 + $0xe0] sm:$0xff] %v387
        %400 = vst [vmem:[#allocation2 + $0xf8] sm:$0xff] %v388
        %401 = vst [vmem:[#allocation2 + $0x110] sm:$0xff] %v389
        %v402 = vld [vmem:[%s304 + $0x2] sm:$0xff]
        %v403 = vld [vmem:[%s304 + $0xa] sm:$0xff]
        %v404 = vld [vmem:[%s304 + $0x1a] sm:$0xff]
        %v405 = vld [vmem:[%s304 + $0x22] sm:$0xff]
        %v406 = vld [vmem:[%s304 + $0x32] sm:$0xff]
        %v407 = vld [vmem:[%s304 + $0x3a] sm:$0xff]
        %v408 = vld [vmem:[%s304 + $0x4a] sm:$0xff]
        %v409 = vld [vmem:[%s304 + $0x52] sm:$0xff]
        %v410 = vld [vmem:[%s304 + $0x62] sm:$0xff]
        %v411 = vld [vmem:[%s304 + $0x6a] sm:$0xff]
        %v412 = vld [vmem:[%s304 + $0x7a] sm:$0xff]
        %v413 = vld [vmem:[%s304 + $0x82] sm:$0xff]
        %v414 = vld [vmem:[%s304 + $0x92] sm:$0xff]
        %v415 = vld [vmem:[%s304 + $0x9a] sm:$0xff]
        %v416 = vld [vmem:[%s304 + $0xaa] sm:$0xff]
        %v417 = vld [vmem:[%s304 + $0xb2] sm:$0xff]
        %v418 = vld [vmem:[%s304 + $0xc2] sm:$0xff]
        %v419 = vld [vmem:[%s304 + $0xca] sm:$0xff]
        %v420 = vld [vmem:[%s304 + $0xda] sm:$0xff]
        %v421 = vld [vmem:[%s304 + $0xe2] sm:$0xff]
        %v422 = vld [vmem:[%s304 + $0xf2] sm:$0xff]
        %v423 = vld [vmem:[%s304 + $0xfa] sm:$0xff]
        %v424 = vld [vmem:[%s304 + $0x10a] sm:$0xff]
        %v425 = vld [vmem:[%s304 + $0x112] sm:$0xff]
        %v426 = vpack.c.bf16 %v403, %v402
        %v427 = vpack.c.bf16 %v405, %v404
        %v428 = vpack.c.bf16 %v407, %v406
        %v429 = vpack.c.bf16 %v409, %v408
        %v430 = vpack.c.bf16 %v411, %v410
        %v431 = vpack.c.bf16 %v413, %v412
        %v432 = vpack.c.bf16 %v415, %v414
        %v433 = vpack.c.bf16 %v417, %v416
        %v434 = vpack.c.bf16 %v419, %v418
        %v435 = vpack.c.bf16 %v421, %v420
        %v436 = vpack.c.bf16 %v423, %v422
        %v437 = vpack.c.bf16 %v425, %v424
        %438 = vst [vmem:[#allocation2 + $0x10] sm:$0xff] %v426
        %439 = vst [vmem:[#allocation2 + $0x28] sm:$0xff] %v427
        %440 = vst [vmem:[#allocation2 + $0x40] sm:$0xff] %v428
        %441 = vst [vmem:[#allocation2 + $0x58] sm:$0xff] %v429
        %442 = vst [vmem:[#allocation2 + $0x70] sm:$0xff] %v430
        %443 = vst [vmem:[#allocation2 + $0x88] sm:$0xff] %v431
        %444 = vst [vmem:[#allocation2 + $0xa0] sm:$0xff] %v432
        %445 = vst [vmem:[#allocation2 + $0xb8] sm:$0xff] %v433
        %446 = vst [vmem:[#allocation2 + $0xd0] sm:$0xff] %v434
        %447 = vst [vmem:[#allocation2 + $0xe8] sm:$0xff] %v435
        %448 = vst [vmem:[#allocation2 + $0x100] sm:$0xff] %v436
        %449 = vst [vmem:[#allocation2 + $0x118] sm:$0xff] %v437
        %v450 = vld [vmem:[#allocation2] sm:$0xff]
        %v451 = vld [vmem:[#allocation2 + $0x8] sm:$0xff]
        %v452 = vld [vmem:[#allocation2 + $0x10] sm:$0xff]
        %v453 = vld [vmem:[#allocation2 + $0x18] sm:$0xff]
        %v454 = vld [vmem:[#allocation2 + $0x20] sm:$0xff]
        %v455 = vld [vmem:[#allocation2 + $0x28] sm:$0xff]
        %v456 = vld [vmem:[#allocation2 + $0x30] sm:$0xff]
        %v457 = vld [vmem:[#allocation2 + $0x38] sm:$0xff]
        %v458 = vld [vmem:[#allocation2 + $0x40] sm:$0xff]
        %v459 = vld [vmem:[#allocation2 + $0x48] sm:$0xff]
        %v460 = vld [vmem:[#allocation2 + $0x50] sm:$0xff]
        %v461 = vld [vmem:[#allocation2 + $0x58] sm:$0xff]
        %v462 = vld [vmem:[#allocation2 + $0x60] sm:$0xff]
        %v463 = vld [vmem:[#allocation2 + $0x68] sm:$0xff]
        %v464 = vld [vmem:[#allocation2 + $0x70] sm:$0xff]
        %v465 = vld [vmem:[#allocation2 + $0x78] sm:$0xff]
        %v466 = vld [vmem:[#allocation2 + $0x80] sm:$0xff]
        %v467 = vld [vmem:[#allocation2 + $0x88] sm:$0xff]
        %v468 = vld [vmem:[#allocation2 + $0x90] sm:$0xff]
        %v469 = vld [vmem:[#allocation2 + $0x98] sm:$0xff]
        %v470 = vld [vmem:[#allocation2 + $0xa0] sm:$0xff]
        %v471 = vld [vmem:[#allocation2 + $0xa8] sm:$0xff]
        %v472 = vld [vmem:[#allocation2 + $0xb0] sm:$0xff]
        %v473 = vld [vmem:[#allocation2 + $0xb8] sm:$0xff]
        %v474 = vld [vmem:[#allocation2 + $0xc0] sm:$0xff]
        %v475 = vld [vmem:[#allocation2 + $0xc8] sm:$0xff]
        %v476 = vld [vmem:[#allocation2 + $0xd0] sm:$0xff]
        %v477 = vld [vmem:[#allocation2 + $0xd8] sm:$0xff]
        %v478 = vld [vmem:[#allocation2 + $0xe0] sm:$0xff]
        %v479 = vld [vmem:[#allocation2 + $0xe8] sm:$0xff]
        %v480 = vld [vmem:[%s1] sm:$0xf]
        %v481 = vld [vmem:[%s1 + $0x4] sm:$0xf]
        %v482 = vld [vmem:[%s1 + $0x8] sm:$0xf]
        %v483 = vld [vmem:[%s1 + $0xc] sm:$0xf]
        %v484 = vld [vmem:[%s1 + $0x10] sm:$0xf]
        %v485 = vld [vmem:[%s1 + $0x14] sm:$0xf]
        %v486 = vld [vmem:[%s1 + $0x18] sm:$0xf]
        %v487 = vld [vmem:[%s1 + $0x1c] sm:$0xf]
        %v488 = vld [vmem:[%s1 + $0x20] sm:$0xf]
        %v489 = vld [vmem:[%s1 + $0x24] sm:$0xf]
        %v490 = vld [vmem:[%s1 + $0x28] sm:$0xf]
        %v491 = vld [vmem:[%s1 + $0x2c] sm:$0xf]
        %v492 = vld [vmem:[%s1 + $0x30] sm:$0xf]
        %v493 = vld [vmem:[%s1 + $0x34] sm:$0xf]
        %v494 = vld [vmem:[%s1 + $0x38] sm:$0xf]
        %v495 = vld [vmem:[%s1 + $0x3c] sm:$0xf]
        %v496 = vld [vmem:[%s1 + $0x40] sm:$0xf]
        %v497 = vld [vmem:[%s1 + $0x44] sm:$0xf]
        %v498 = vld [vmem:[%s1 + $0x48] sm:$0xf]
        %v499 = vld [vmem:[%s1 + $0x4c] sm:$0xf]
        %v500 = vld [vmem:[%s1 + $0x50] sm:$0xf]
        %v501 = vld [vmem:[%s1 + $0x54] sm:$0xf]
        %v502 = vld [vmem:[%s1 + $0x58] sm:$0xf]
        %v503 = vld [vmem:[%s1 + $0x5c] sm:$0xf]
        %v504 = vld [vmem:[%s1 + $0x60] sm:$0xf]
        %v505 = vld [vmem:[%s1 + $0x64] sm:$0xf]
        %v506 = vld [vmem:[%s1 + $0x68] sm:$0xf]
        %v507 = vld [vmem:[%s1 + $0x6c] sm:$0xf]
        %v508 = vld [vmem:[%s1 + $0x70] sm:$0xf]
        %v509 = vld [vmem:[%s1 + $0x74] sm:$0xf]
        %v510 = vld [vmem:[%s1 + $0x78] sm:$0xf]
        %v511 = vld [vmem:[%s1 + $0x7c] sm:$0xf]
        %v512 = vld [vmem:[%s1 + $0x80] sm:$0xf]
        %v513 = vld [vmem:[%s1 + $0x84] sm:$0xf]
        %v514 = vld [vmem:[%s1 + $0x88] sm:$0xf]
        %v515 = vld [vmem:[%s1 + $0x8c] sm:$0xf]
        %v516 = vld [vmem:[%s1 + $0x90] sm:$0xf]
        %v517 = vld [vmem:[%s1 + $0x94] sm:$0xf]
        %v518 = vld [vmem:[%s1 + $0x98] sm:$0xf]
        %v519 = vld [vmem:[%s1 + $0x9c] sm:$0xf]
        %v520 = vld [vmem:[%s1 + $0xa0] sm:$0xf]
        %v521 = vld [vmem:[%s1 + $0xa4] sm:$0xf]
        %v522 = vld [vmem:[%s1 + $0xa8] sm:$0xf]
        %v523 = vld [vmem:[%s1 + $0xac] sm:$0xf]
        %v524 = vld [vmem:[%s1 + $0xb0] sm:$0xf]
        %v525 = vld [vmem:[%s1 + $0xb4] sm:$0xf]
        %v526 = vld [vmem:[%s1 + $0xb8] sm:$0xf]
        %v527 = vld [vmem:[%s1 + $0xbc] sm:$0xf]
        %v576 = vunpack.c.l.b16 %v480
        %v577 = vunpack.c.l.b16 %v481
        %v578 = vunpack.c.l.b16 %v482
        %v579 = vunpack.c.l.b16 %v483
        %v580 = vunpack.c.l.b16 %v484
        %v581 = vunpack.c.l.b16 %v485
        %v582 = vunpack.c.l.b16 %v486
        %v583 = vunpack.c.l.b16 %v487
        %v584 = vunpack.c.l.b16 %v488
        %v585 = vunpack.c.l.b16 %v489
        %v586 = vunpack.c.l.b16 %v490
        %v587 = vunpack.c.l.b16 %v491
        %v588 = vunpack.c.l.b16 %v492
        %v589 = vunpack.c.l.b16 %v493
        %v590 = vunpack.c.l.b16 %v494
        %v591 = vunpack.c.l.b16 %v495
        %v592 = vunpack.c.l.b16 %v496
        %v593 = vunpack.c.l.b16 %v497
        %v594 = vunpack.c.l.b16 %v498
        %v595 = vunpack.c.l.b16 %v499
        %v596 = vunpack.c.l.b16 %v500
        %v597 = vunpack.c.l.b16 %v501
        %v598 = vunpack.c.l.b16 %v502
        %v599 = vunpack.c.l.b16 %v503
        %v600 = vunpack.c.l.b16 %v504
        %v601 = vunpack.c.l.b16 %v505
        %v602 = vunpack.c.l.b16 %v506
        %v603 = vunpack.c.l.b16 %v507
        %v604 = vunpack.c.l.b16 %v508
        %v605 = vunpack.c.l.b16 %v509
        %v606 = vunpack.c.l.b16 %v510
        %v607 = vunpack.c.l.b16 %v511
        %v608 = vunpack.c.l.b16 %v512
        %v609 = vunpack.c.l.b16 %v513
        %v610 = vunpack.c.l.b16 %v514
        %v611 = vunpack.c.l.b16 %v515
        %v612 = vunpack.c.l.b16 %v516
        %v613 = vunpack.c.l.b16 %v517
        %v614 = vunpack.c.l.b16 %v518
        %v615 = vunpack.c.l.b16 %v519
        %v616 = vunpack.c.l.b16 %v520
        %v617 = vunpack.c.l.b16 %v521
        %v618 = vunpack.c.l.b16 %v522
        %v619 = vunpack.c.l.b16 %v523
        %v620 = vunpack.c.l.b16 %v524
        %v621 = vunpack.c.l.b16 %v525
        %v622 = vunpack.c.l.b16 %v526
        %v623 = vunpack.c.l.b16 %v527
        %v624 = vpack.c.b16 %v577, %v576
        %v625 = vpack.c.b16 %v579, %v578
        %v626 = vpack.c.b16 %v581, %v580
        %v627 = vpack.c.b16 %v583, %v582
        %v628 = vpack.c.b16 %v585, %v584
        %v629 = vpack.c.b16 %v587, %v586
        %v630 = vpack.c.b16 %v589, %v588
        %v631 = vpack.c.b16 %v591, %v590
        %v632 = vpack.c.b16 %v593, %v592
        %v633 = vpack.c.b16 %v595, %v594
        %v634 = vpack.c.b16 %v597, %v596
        %v635 = vpack.c.b16 %v599, %v598
        %v636 = vpack.c.b16 %v601, %v600
        %v637 = vpack.c.b16 %v603, %v602
        %v638 = vpack.c.b16 %v605, %v604
        %v639 = vpack.c.b16 %v607, %v606
        %v640 = vpack.c.b16 %v609, %v608
        %v641 = vpack.c.b16 %v611, %v610
        %v642 = vpack.c.b16 %v613, %v612
        %v643 = vpack.c.b16 %v615, %v614
        %v644 = vpack.c.b16 %v617, %v616
        %v645 = vpack.c.b16 %v619, %v618
        %v646 = vpack.c.b16 %v621, %v620
        %v647 = vpack.c.b16 %v623, %v622
        %672 = vmatprep.subr.bf16.mxu0 0
        %673 = vmatpush1.bf16.msra.mxu0 %v624
        %674 = vmatprep.subr.bf16.mxu0 0
        %675 = vmatpush1.bf16.msra.mxu0 %v625
        %676 = vmatprep.subr.bf16.mxu0 0
        %677 = vmatpush1.bf16.msra.mxu0 %v626
        %678 = vmatprep.subr.bf16.mxu0 0
        %679 = vmatpush1.bf16.msra.mxu0 %v627
        %680 = vmatprep.subr.bf16.mxu0 0
        %681 = vmatpush1.bf16.msra.mxu0 %v628
        %682 = vmatprep.subr.bf16.mxu0 0
        %683 = vmatpush1.bf16.msra.mxu0 %v629
        %684 = vmatprep.subr.bf16.mxu0 0
        %685 = vmatpush1.bf16.msra.mxu0 %v630
        %686 = vmatprep.subr.bf16.mxu0 0
        %687 = vmatpush1.bf16.msra.mxu0 %v631
        %688 = vmatprep.subr.bf16.mxu0 0
        %689 = vmatpush1.bf16.msra.mxu0 %v632
        %690 = vmatprep.subr.bf16.mxu0 0
        %691 = vmatpush1.bf16.msra.mxu0 %v633
        %692 = vmatprep.subr.bf16.mxu0 0
        %693 = vmatpush1.bf16.msra.mxu0 %v634
        %694 = vmatprep.subr.bf16.mxu0 0
        %695 = vmatpush1.bf16.msra.mxu0 %v635
        %696 = vmatprep.subr.bf16.mxu0 0
        %697 = vmatpush1.bf16.msra.mxu0 %v636
        %698 = vmatprep.subr.bf16.mxu0 0
        %699 = vmatpush1.bf16.msra.mxu0 %v637
        %700 = vmatprep.subr.bf16.mxu0 0
        %701 = vmatpush1.bf16.msra.mxu0 %v638
        %702 = vmatprep.subr.bf16.mxu0 0
        %703 = vmatpush1.bf16.msra.mxu0 %v639
        %704 = vmatprep.mubr.bf16.mxu0 %v451
        %705 = vmatmul.mubr.bf16.gmra.mrb[0].mxu0 %v450
        %v706 = vpop.f32.mrb[0].mxu0
        %v707 = vadd.f32 0.0, %v706
        %v708 = vpop.f32.mrb[0].mxu0
        %v709 = vpop.f32.mrb[0].mxu0
        %v710 = vadd.f32 0.0, %v709
        %v711 = vpop.f32.mrb[0].mxu0
        %712 = vmatprep.mubr.bf16.mxu0 %v454
        %713 = vmatmul.mubr.bf16.gmra.mrb[0].mxu0 %v453
        %v714 = vpop.f32.mrb[0].mxu0
        %v715 = vadd.f32 0.0, %v714
        %v716 = vpop.f32.mrb[0].mxu0
        %v717 = vpop.f32.mrb[0].mxu0
        %v718 = vadd.f32 0.0, %v717
        %v719 = vpop.f32.mrb[0].mxu0
        %720 = vmatprep.mubr.bf16.mxu0 %v457
        %721 = vmatmul.mubr.bf16.gmra.mrb[0].mxu0 %v456
        %v722 = vpop.f32.mrb[0].mxu0
        %v723 = vadd.f32 0.0, %v722
        %v724 = vpop.f32.mrb[0].mxu0
        %v725 = vpop.f32.mrb[0].mxu0
        %v726 = vadd.f32 0.0, %v725
        %v727 = vpop.f32.mrb[0].mxu0
        %728 = vmatprep.mubr.bf16.mxu0 %v460
        %729 = vmatmul.mubr.bf16.gmra.mrb[0].mxu0 %v459
        %v730 = vpop.f32.mrb[0].mxu0
        %v731 = vadd.f32 0.0, %v730
        %v732 = vpop.f32.mrb[0].mxu0
        %v733 = vpop.f32.mrb[0].mxu0
        %v734 = vadd.f32 0.0, %v733
        %v735 = vpop.f32.mrb[0].mxu0
        %736 = vmatprep.mubr.bf16.mxu0 %v463
        %737 = vmatmul.mubr.bf16.gmra.mrb[0].mxu0 %v462
        %v738 = vpop.f32.mrb[0].mxu0
        %v739 = vadd.f32 0.0, %v738
        %v740 = vpop.f32.mrb[0].mxu0
        %v741 = vpop.f32.mrb[0].mxu0
        %v742 = vadd.f32 0.0, %v741
        %v743 = vpop.f32.mrb[0].mxu0
        %744 = vmatprep.mubr.bf16.mxu0 %v466
        %745 = vmatmul.mubr.bf16.gmra.mrb[0].mxu0 %v465
        %v746 = vpop.f32.mrb[0].mxu0
        %v747 = vadd.f32 0.0, %v746
        %v748 = vpop.f32.mrb[0].mxu0
        %v749 = vpop.f32.mrb[0].mxu0
        %v750 = vadd.f32 0.0, %v749
        %v751 = vpop.f32.mrb[0].mxu0
        %752 = vmatprep.mubr.bf16.mxu0 %v469
        %753 = vmatmul.mubr.bf16.gmra.mrb[0].mxu0 %v468
        %v754 = vpop.f32.mrb[0].mxu0
        %v755 = vadd.f32 0.0, %v754
        %v756 = vpop.f32.mrb[0].mxu0
        %v757 = vpop.f32.mrb[0].mxu0
        %v758 = vadd.f32 0.0, %v757
        %v759 = vpop.f32.mrb[0].mxu0
        %760 = vmatprep.mubr.bf16.mxu0 %v472
        %761 = vmatmul.mubr.bf16.gmra.mrb[0].mxu0 %v471
        %v762 = vpop.f32.mrb[0].mxu0
        %v763 = vadd.f32 0.0, %v762
        %v764 = vpop.f32.mrb[0].mxu0
        %v765 = vpop.f32.mrb[0].mxu0
        %v766 = vadd.f32 0.0, %v765
        %v767 = vpop.f32.mrb[0].mxu0
        %768 = vmatprep.mubr.bf16.mxu0 %v475
        %769 = vmatmul.mubr.bf16.gmra.mrb[0].mxu0 %v474
        %v770 = vpop.f32.mrb[0].mxu0
        %v771 = vadd.f32 0.0, %v770
        %v772 = vpop.f32.mrb[0].mxu0
        %v773 = vpop.f32.mrb[0].mxu0
        %v774 = vadd.f32 0.0, %v773
        %v775 = vpop.f32.mrb[0].mxu0
        %776 = vmatprep.mubr.bf16.mxu0 %v478
        %777 = vmatmul.mubr.bf16.gmra.mrb[0].mxu0 %v477
        %v778 = vpop.f32.mrb[0].mxu0
        %v779 = vadd.f32 0.0, %v778
        %v780 = vpop.f32.mrb[0].mxu0
        %v781 = vpop.f32.mrb[0].mxu0
        %v782 = vadd.f32 0.0, %v781
        %v783 = vpop.f32.mrb[0].mxu0
        %784 = vdwg.mxu0
        %785 = vmatprep.subr.bf16.mxu0 0
        %786 = vmatpush1.bf16.msra.mxu0 %v640
        %787 = vmatprep.subr.bf16.mxu0 0
        %788 = vmatpush1.bf16.msra.mxu0 %v641
        %789 = vmatprep.subr.bf16.mxu0 0
        %790 = vmatpush1.bf16.msra.mxu0 %v642
        %791 = vmatprep.subr.bf16.mxu0 0
        %792 = vmatpush1.bf16.msra.mxu0 %v643
        %793 = vmatprep.subr.bf16.mxu0 0
        %794 = vmatpush1.bf16.msra.mxu0 %v644
        %795 = vmatprep.subr.bf16.mxu0 0
        %796 = vmatpush1.bf16.msra.mxu0 %v645
        %797 = vmatprep.subr.bf16.mxu0 0
        %798 = vmatpush1.bf16.msra.mxu0 %v646
        %799 = vmatprep.subr.bf16.mxu0 0
        %800 = vmatpush1.bf16.msra.mxu0 %v647
        %801 = vmatprep.subr.bf16.mxu0 0
        %802 = vmatpush1.bf16.msra.mxu0 0
        %803 = vmatprep.subr.bf16.mxu0 0
        %804 = vmatpush1.bf16.msra.mxu0 0
        %805 = vmatprep.subr.bf16.mxu0 0
        %806 = vmatpush1.bf16.msra.mxu0 0
        %807 = vmatprep.subr.bf16.mxu0 0
        %808 = vmatpush1.bf16.msra.mxu0 0
        %809 = vmatprep.subr.bf16.mxu0 0
        %810 = vmatpush1.bf16.msra.mxu0 0
        %811 = vmatprep.subr.bf16.mxu0 0
        %812 = vmatpush1.bf16.msra.mxu0 0
        %813 = vmatprep.subr.bf16.mxu0 0
        %814 = vmatpush1.bf16.msra.mxu0 0
        %815 = vmatprep.subr.bf16.mxu0 0
        %816 = vmatpush1.bf16.msra.mxu0 0
        %817 = vmatprep.mubr.bf16.mxu0 0
        %818 = vmatmul.mubr.bf16.gmra.mrb[0].mxu0 %v452
        %v819 = vpop.f32.mrb[0].mxu0
        %v820 = vadd.f32 %v707, %v819
        %v821 = vpop.f32.mrb[0].mxu0
        %v822 = vpop.f32.mrb[0].mxu0
        %v823 = vadd.f32 %v710, %v822
        %v824 = vpop.f32.mrb[0].mxu0
        %825 = vmatprep.mubr.bf16.mxu0 0
        %826 = vmatmul.mubr.bf16.gmra.mrb[0].mxu0 %v455
        %v827 = vpop.f32.mrb[0].mxu0
        %v828 = vadd.f32 %v715, %v827
        %v829 = vpop.f32.mrb[0].mxu0
        %v830 = vpop.f32.mrb[0].mxu0
        %v831 = vadd.f32 %v718, %v830
        %v832 = vpop.f32.mrb[0].mxu0
        %833 = vmatprep.mubr.bf16.mxu0 0
        %834 = vmatmul.mubr.bf16.gmra.mrb[0].mxu0 %v458
        %v835 = vpop.f32.mrb[0].mxu0
        %v836 = vadd.f32 %v723, %v835
        %v837 = vpop.f32.mrb[0].mxu0
        %v838 = vpop.f32.mrb[0].mxu0
        %v839 = vadd.f32 %v726, %v838
        %v840 = vpop.f32.mrb[0].mxu0
        %841 = vmatprep.mubr.bf16.mxu0 0
        %842 = vmatmul.mubr.bf16.gmra.mrb[0].mxu0 %v461
        %v843 = vpop.f32.mrb[0].mxu0
        %v844 = vadd.f32 %v731, %v843
        %v845 = vpop.f32.mrb[0].mxu0
        %v846 = vpop.f32.mrb[0].mxu0
        %v847 = vadd.f32 %v734, %v846
        %v848 = vpop.f32.mrb[0].mxu0
        %849 = vmatprep.mubr.bf16.mxu0 0
        %850 = vmatmul.mubr.bf16.gmra.mrb[0].mxu0 %v464
        %v851 = vpop.f32.mrb[0].mxu0
        %v852 = vadd.f32 %v739, %v851
        %v853 = vpop.f32.mrb[0].mxu0
        %v854 = vpop.f32.mrb[0].mxu0
        %v855 = vadd.f32 %v742, %v854
        %v856 = vpop.f32.mrb[0].mxu0
        %857 = vmatprep.mubr.bf16.mxu0 0
        %858 = vmatmul.mubr.bf16.gmra.mrb[0].mxu0 %v467
        %v859 = vpop.f32.mrb[0].mxu0
        %v860 = vadd.f32 %v747, %v859
        %v861 = vpop.f32.mrb[0].mxu0
        %v862 = vpop.f32.mrb[0].mxu0
        %v863 = vadd.f32 %v750, %v862
        %v864 = vpop.f32.mrb[0].mxu0
        %865 = vmatprep.mubr.bf16.mxu0 0
        %866 = vmatmul.mubr.bf16.gmra.mrb[0].mxu0 %v470
        %v867 = vpop.f32.mrb[0].mxu0
        %v868 = vadd.f32 %v755, %v867
        %v869 = vpop.f32.mrb[0].mxu0
        %v870 = vpop.f32.mrb[0].mxu0
        %v871 = vadd.f32 %v758, %v870
        %v872 = vpop.f32.mrb[0].mxu0
        %873 = vmatprep.mubr.bf16.mxu0 0
        %874 = vmatmul.mubr.bf16.gmra.mrb[0].mxu0 %v473
        %v875 = vpop.f32.mrb[0].mxu0
        %v876 = vadd.f32 %v763, %v875
        %v877 = vpop.f32.mrb[0].mxu0
        %v878 = vpop.f32.mrb[0].mxu0
        %v879 = vadd.f32 %v766, %v878
        %v880 = vpop.f32.mrb[0].mxu0
        %881 = vmatprep.mubr.bf16.mxu0 0
        %882 = vmatmul.mubr.bf16.gmra.mrb[0].mxu0 %v476
        %v883 = vpop.f32.mrb[0].mxu0
        %v884 = vadd.f32 %v771, %v883
        %v885 = vpop.f32.mrb[0].mxu0
        %v886 = vpop.f32.mrb[0].mxu0
        %v887 = vadd.f32 %v774, %v886
        %v888 = vpop.f32.mrb[0].mxu0
        %889 = vmatprep.mubr.bf16.mxu0 0
        %890 = vmatmul.mubr.bf16.gmra.mrb[0].mxu0 %v479
        %v891 = vpop.f32.mrb[0].mxu0
        %v892 = vadd.f32 %v779, %v891
        %v893 = vpop.f32.mrb[0].mxu0
        %v894 = vpop.f32.mrb[0].mxu0
        %v895 = vadd.f32 %v782, %v894
        %v896 = vpop.f32.mrb[0].mxu0
        %897 = vdwg.mxu0
        %898 = vst [vmem:[#allocation5] sm:$0xff] %v820
        %899 = vst [vmem:[#allocation5 + $0x8] sm:$0xff] %v823
        %900 = vst [vmem:[#allocation5 + $0x10] sm:$0xff] %v828
        %901 = vst [vmem:[#allocation5 + $0x18] sm:$0xff] %v831
        %902 = vst [vmem:[#allocation5 + $0x20] sm:$0xff] %v836
        %903 = vst [vmem:[#allocation5 + $0x28] sm:$0xff] %v839
        %904 = vst [vmem:[#allocation5 + $0x30] sm:$0xff] %v844
        %905 = vst [vmem:[#allocation5 + $0x38] sm:$0xff] %v847
        %906 = vst [vmem:[#allocation5 + $0x40] sm:$0xff] %v852
        %907 = vst [vmem:[#allocation5 + $0x48] sm:$0xff] %v855
        %908 = vst [vmem:[#allocation5 + $0x50] sm:$0xff] %v860
        %909 = vst [vmem:[#allocation5 + $0x58] sm:$0xff] %v863
        %910 = vst [vmem:[#allocation5 + $0x60] sm:$0xff] %v868
        %911 = vst [vmem:[#allocation5 + $0x68] sm:$0xff] %v871
        %912 = vst [vmem:[#allocation5 + $0x70] sm:$0xff] %v876
        %913 = vst [vmem:[#allocation5 + $0x78] sm:$0xff] %v879
        %914 = vst [vmem:[#allocation5 + $0x80] sm:$0xff] %v884
        %915 = vst [vmem:[#allocation5 + $0x88] sm:$0xff] %v887
        %916 = vst [vmem:[#allocation5 + $0x90] sm:$0xff] %v892
        %917 = vst [vmem:[#allocation5 + $0x98] sm:$0xff] %v895
        %s918 = scalar_lea.vmem [#allocation2], 24
        %v919 = vld [vmem:[%s918] sm:$0xff]
        %v920 = vld [vmem:[%s918 + $0x8] sm:$0xff]
        %v921 = vld [vmem:[%s918 + $0x10] sm:$0xff]
        %v922 = vld [vmem:[%s918 + $0x18] sm:$0xff]
        %v923 = vld [vmem:[%s918 + $0x20] sm:$0xff]
        %v924 = vld [vmem:[%s918 + $0x28] sm:$0xff]
        %v925 = vld [vmem:[%s918 + $0x30] sm:$0xff]
        %v926 = vld [vmem:[%s918 + $0x38] sm:$0xff]
        %v927 = vld [vmem:[%s918 + $0x40] sm:$0xff]
        %v928 = vld [vmem:[%s918 + $0x48] sm:$0xff]
        %v929 = vld [vmem:[%s918 + $0x50] sm:$0xff]
        %v930 = vld [vmem:[%s918 + $0x58] sm:$0xff]
        %v931 = vld [vmem:[%s918 + $0x60] sm:$0xff]
        %v932 = vld [vmem:[%s918 + $0x68] sm:$0xff]
        %v933 = vld [vmem:[%s918 + $0x70] sm:$0xff]
        %v934 = vld [vmem:[%s918 + $0x78] sm:$0xff]
        %v935 = vld [vmem:[%s918 + $0x80] sm:$0xff]
        %v936 = vld [vmem:[%s918 + $0x88] sm:$0xff]
        %v937 = vld [vmem:[%s918 + $0x90] sm:$0xff]
        %v938 = vld [vmem:[%s918 + $0x98] sm:$0xff]
        %v939 = vld [vmem:[%s918 + $0xa0] sm:$0xff]
        %v940 = vld [vmem:[%s918 + $0xa8] sm:$0xff]
        %v941 = vld [vmem:[%s918 + $0xb0] sm:$0xff]
        %v942 = vld [vmem:[%s918 + $0xb8] sm:$0xff]
        %v943 = vld [vmem:[%s918 + $0xc0] sm:$0xff]
        %v944 = vld [vmem:[%s918 + $0xc8] sm:$0xff]
        %v945 = vld [vmem:[%s918 + $0xd0] sm:$0xff]
        %v946 = vld [vmem:[%s918 + $0xd8] sm:$0xff]
        %v947 = vld [vmem:[%s918 + $0xe0] sm:$0xff]
        %v948 = vld [vmem:[%s918 + $0xe8] sm:$0xff]
        %s949 = scalar_lea.vmem %s1, 192
        %v950 = vld [vmem:[%s949] sm:$0xf]
        %v951 = vld [vmem:[%s949 + $0x4] sm:$0xf]
        %v952 = vld [vmem:[%s949 + $0x8] sm:$0xf]
        %v953 = vld [vmem:[%s949 + $0xc] sm:$0xf]
        %v954 = vld [vmem:[%s949 + $0x10] sm:$0xf]
        %v955 = vld [vmem:[%s949 + $0x14] sm:$0xf]
        %v956 = vld [vmem:[%s949 + $0x18] sm:$0xf]
        %v957 = vld [vmem:[%s949 + $0x1c] sm:$0xf]
        %v958 = vld [vmem:[%s949 + $0x20] sm:$0xf]
        %v959 = vld [vmem:[%s949 + $0x24] sm:$0xf]
        %v960 = vld [vmem:[%s949 + $0x28] sm:$0xf]
        %v961 = vld [vmem:[%s949 + $0x2c] sm:$0xf]
        %v962 = vld [vmem:[%s949 + $0x30] sm:$0xf]
        %v963 = vld [vmem:[%s949 + $0x34] sm:$0xf]
        %v964 = vld [vmem:[%s949 + $0x38] sm:$0xf]
        %v965 = vld [vmem:[%s949 + $0x3c] sm:$0xf]
        %v966 = vld [vmem:[%s949 + $0x40] sm:$0xf]
        %v967 = vld [vmem:[%s949 + $0x44] sm:$0xf]
        %v968 = vld [vmem:[%s949 + $0x48] sm:$0xf]
        %v969 = vld [vmem:[%s949 + $0x4c] sm:$0xf]
        %v970 = vld [vmem:[%s949 + $0x50] sm:$0xf]
        %v971 = vld [vmem:[%s949 + $0x54] sm:$0xf]
        %v972 = vld [vmem:[%s949 + $0x58] sm:$0xf]
        %v973 = vld [vmem:[%s949 + $0x5c] sm:$0xf]
        %v974 = vld [vmem:[%s949 + $0x60] sm:$0xf]
        %v975 = vld [vmem:[%s949 + $0x64] sm:$0xf]
        %v976 = vld [vmem:[%s949 + $0x68] sm:$0xf]
        %v977 = vld [vmem:[%s949 + $0x6c] sm:$0xf]
        %v978 = vld [vmem:[%s949 + $0x70] sm:$0xf]
        %v979 = vld [vmem:[%s949 + $0x74] sm:$0xf]
        %v980 = vld [vmem:[%s949 + $0x78] sm:$0xf]
        %v981 = vld [vmem:[%s949 + $0x7c] sm:$0xf]
        %v982 = vld [vmem:[%s949 + $0x80] sm:$0xf]
        %v983 = vld [vmem:[%s949 + $0x84] sm:$0xf]
        %v984 = vld [vmem:[%s949 + $0x88] sm:$0xf]
        %v985 = vld [vmem:[%s949 + $0x8c] sm:$0xf]
        %v986 = vld [vmem:[%s949 + $0x90] sm:$0xf]
        %v987 = vld [vmem:[%s949 + $0x94] sm:$0xf]
        %v988 = vld [vmem:[%s949 + $0x98] sm:$0xf]
        %v989 = vld [vmem:[%s949 + $0x9c] sm:$0xf]
        %v990 = vld [vmem:[%s949 + $0xa0] sm:$0xf]
        %v991 = vld [vmem:[%s949 + $0xa4] sm:$0xf]
        %v992 = vld [vmem:[%s949 + $0xa8] sm:$0xf]
        %v993 = vld [vmem:[%s949 + $0xac] sm:$0xf]
        %v994 = vld [vmem:[%s949 + $0xb0] sm:$0xf]
        %v995 = vld [vmem:[%s949 + $0xb4] sm:$0xf]
        %v996 = vld [vmem:[%s949 + $0xb8] sm:$0xf]
        %v997 = vld [vmem:[%s949 + $0xbc] sm:$0xf]
        %v1046 = vunpack.c.l.b16 %v950
        %v1047 = vunpack.c.l.b16 %v951
        %v1048 = vunpack.c.l.b16 %v952
        %v1049 = vunpack.c.l.b16 %v953
        %v1050 = vunpack.c.l.b16 %v954
        %v1051 = vunpack.c.l.b16 %v955
        %v1052 = vunpack.c.l.b16 %v956
        %v1053 = vunpack.c.l.b16 %v957
        %v1054 = vunpack.c.l.b16 %v958
        %v1055 = vunpack.c.l.b16 %v959
        %v1056 = vunpack.c.l.b16 %v960
        %v1057 = vunpack.c.l.b16 %v961
        %v1058 = vunpack.c.l.b16 %v962
        %v1059 = vunpack.c.l.b16 %v963
        %v1060 = vunpack.c.l.b16 %v964
        %v1061 = vunpack.c.l.b16 %v965
        %v1062 = vunpack.c.l.b16 %v966
        %v1063 = vunpack.c.l.b16 %v967
        %v1064 = vunpack.c.l.b16 %v968
        %v1065 = vunpack.c.l.b16 %v969
        %v1066 = vunpack.c.l.b16 %v970
        %v1067 = vunpack.c.l.b16 %v971
        %v1068 = vunpack.c.l.b16 %v972
        %v1069 = vunpack.c.l.b16 %v973
        %v1070 = vunpack.c.l.b16 %v974
        %v1071 = vunpack.c.l.b16 %v975
        %v1072 = vunpack.c.l.b16 %v976
        %v1073 = vunpack.c.l.b16 %v977
        %v1074 = vunpack.c.l.b16 %v978
        %v1075 = vunpack.c.l.b16 %v979
        %v1076 = vunpack.c.l.b16 %v980
        %v1077 = vunpack.c.l.b16 %v981
        %v1078 = vunpack.c.l.b16 %v982
        %v1079 = vunpack.c.l.b16 %v983
        %v1080 = vunpack.c.l.b16 %v984
        %v1081 = vunpack.c.l.b16 %v985
        %v1082 = vunpack.c.l.b16 %v986
        %v1083 = vunpack.c.l.b16 %v987
        %v1084 = vunpack.c.l.b16 %v988
        %v1085 = vunpack.c.l.b16 %v989
        %v1086 = vunpack.c.l.b16 %v990
        %v1087 = vunpack.c.l.b16 %v991
        %v1088 = vunpack.c.l.b16 %v992
        %v1089 = vunpack.c.l.b16 %v993
        %v1090 = vunpack.c.l.b16 %v994
        %v1091 = vunpack.c.l.b16 %v995
        %v1092 = vunpack.c.l.b16 %v996
        %v1093 = vunpack.c.l.b16 %v997
        %v1094 = vpack.c.b16 %v1047, %v1046
        %v1095 = vpack.c.b16 %v1049, %v1048
        %v1096 = vpack.c.b16 %v1051, %v1050
        %v1097 = vpack.c.b16 %v1053, %v1052
        %v1098 = vpack.c.b16 %v1055, %v1054
        %v1099 = vpack.c.b16 %v1057, %v1056
        %v1100 = vpack.c.b16 %v1059, %v1058
        %v1101 = vpack.c.b16 %v1061, %v1060
        %v1102 = vpack.c.b16 %v1063, %v1062
        %v1103 = vpack.c.b16 %v1065, %v1064
        %v1104 = vpack.c.b16 %v1067, %v1066
        %v1105 = vpack.c.b16 %v1069, %v1068
        %v1106 = vpack.c.b16 %v1071, %v1070
        %v1107 = vpack.c.b16 %v1073, %v1072
        %v1108 = vpack.c.b16 %v1075, %v1074
        %v1109 = vpack.c.b16 %v1077, %v1076
        %v1110 = vpack.c.b16 %v1079, %v1078
        %v1111 = vpack.c.b16 %v1081, %v1080
        %v1112 = vpack.c.b16 %v1083, %v1082
        %v1113 = vpack.c.b16 %v1085, %v1084
        %v1114 = vpack.c.b16 %v1087, %v1086
        %v1115 = vpack.c.b16 %v1089, %v1088
        %v1116 = vpack.c.b16 %v1091, %v1090
        %v1117 = vpack.c.b16 %v1093, %v1092
        %1142 = vmatprep.subr.bf16.mxu0 0
        %1143 = vmatpush1.bf16.msra.mxu0 %v1094
        %1144 = vmatprep.subr.bf16.mxu0 0
        %1145 = vmatpush1.bf16.msra.mxu0 %v1095
        %1146 = vmatprep.subr.bf16.mxu0 0
        %1147 = vmatpush1.bf16.msra.mxu0 %v1096
        %1148 = vmatprep.subr.bf16.mxu0 0
        %1149 = vmatpush1.bf16.msra.mxu0 %v1097
        %1150 = vmatprep.subr.bf16.mxu0 0
        %1151 = vmatpush1.bf16.msra.mxu0 %v1098
        %1152 = vmatprep.subr.bf16.mxu0 0
        %1153 = vmatpush1.bf16.msra.mxu0 %v1099
        %1154 = vmatprep.subr.bf16.mxu0 0
        %1155 = vmatpush1.bf16.msra.mxu0 %v1100
        %1156 = vmatprep.subr.bf16.mxu0 0
        %1157 = vmatpush1.bf16.msra.mxu0 %v1101
        %1158 = vmatprep.subr.bf16.mxu0 0
        %1159 = vmatpush1.bf16.msra.mxu0 %v1102
        %1160 = vmatprep.subr.bf16.mxu0 0
        %1161 = vmatpush1.bf16.msra.mxu0 %v1103
        %1162 = vmatprep.subr.bf16.mxu0 0
        %1163 = vmatpush1.bf16.msra.mxu0 %v1104
        %1164 = vmatprep.subr.bf16.mxu0 0
        %1165 = vmatpush1.bf16.msra.mxu0 %v1105
        %1166 = vmatprep.subr.bf16.mxu0 0
        %1167 = vmatpush1.bf16.msra.mxu0 %v1106
        %1168 = vmatprep.subr.bf16.mxu0 0
        %1169 = vmatpush1.bf16.msra.mxu0 %v1107
        %1170 = vmatprep.subr.bf16.mxu0 0
        %1171 = vmatpush1.bf16.msra.mxu0 %v1108
        %1172 = vmatprep.subr.bf16.mxu0 0
        %1173 = vmatpush1.bf16.msra.mxu0 %v1109
        %1174 = vmatprep.mubr.bf16.mxu0 %v920
        %1175 = vmatmul.mubr.bf16.gmra.mrb[0].mxu0 %v919
        %v1176 = vpop.f32.mrb[0].mxu0
        %v1177 = vadd.f32 0.0, %v1176
        %v1178 = vpop.f32.mrb[0].mxu0
        %v1179 = vpop.f32.mrb[0].mxu0
        %v1180 = vadd.f32 0.0, %v1179
        %v1181 = vpop.f32.mrb[0].mxu0
        %1182 = vmatprep.mubr.bf16.mxu0 %v923
        %1183 = vmatmul.mubr.bf16.gmra.mrb[0].mxu0 %v922
        %v1184 = vpop.f32.mrb[0].mxu0
        %v1185 = vadd.f32 0.0, %v1184
        %v1186 = vpop.f32.mrb[0].mxu0
        %v1187 = vpop.f32.mrb[0].mxu0
        %v1188 = vadd.f32 0.0, %v1187
        %v1189 = vpop.f32.mrb[0].mxu0
        %1190 = vmatprep.mubr.bf16.mxu0 %v926
        %1191 = vmatmul.mubr.bf16.gmra.mrb[0].mxu0 %v925
        %v1192 = vpop.f32.mrb[0].mxu0
        %v1193 = vadd.f32 0.0, %v1192
        %v1194 = vpop.f32.mrb[0].mxu0
        %v1195 = vpop.f32.mrb[0].mxu0
        %v1196 = vadd.f32 0.0, %v1195
        %v1197 = vpop.f32.mrb[0].mxu0
        %1198 = vmatprep.mubr.bf16.mxu0 %v929
        %1199 = vmatmul.mubr.bf16.gmra.mrb[0].mxu0 %v928
        %v1200 = vpop.f32.mrb[0].mxu0
        %v1201 = vadd.f32 0.0, %v1200
        %v1202 = vpop.f32.mrb[0].mxu0
        %v1203 = vpop.f32.mrb[0].mxu0
        %v1204 = vadd.f32 0.0, %v1203
        %v1205 = vpop.f32.mrb[0].mxu0
        %1206 = vmatprep.mubr.bf16.mxu0 %v932
        %1207 = vmatmul.mubr.bf16.gmra.mrb[0].mxu0 %v931
        %v1208 = vpop.f32.mrb[0].mxu0
        %v1209 = vadd.f32 0.0, %v1208
        %v1210 = vpop.f32.mrb[0].mxu0
        %v1211 = vpop.f32.mrb[0].mxu0
        %v1212 = vadd.f32 0.0, %v1211
        %v1213 = vpop.f32.mrb[0].mxu0
        %1214 = vmatprep.mubr.bf16.mxu0 %v935
        %1215 = vmatmul.mubr.bf16.gmra.mrb[0].mxu0 %v934
        %v1216 = vpop.f32.mrb[0].mxu0
        %v1217 = vadd.f32 0.0, %v1216
        %v1218 = vpop.f32.mrb[0].mxu0
        %v1219 = vpop.f32.mrb[0].mxu0
        %v1220 = vadd.f32 0.0, %v1219
        %v1221 = vpop.f32.mrb[0].mxu0
        %1222 = vmatprep.mubr.bf16.mxu0 %v938
        %1223 = vmatmul.mubr.bf16.gmra.mrb[0].mxu0 %v937
        %v1224 = vpop.f32.mrb[0].mxu0
        %v1225 = vadd.f32 0.0, %v1224
        %v1226 = vpop.f32.mrb[0].mxu0
        %v1227 = vpop.f32.mrb[0].mxu0
        %v1228 = vadd.f32 0.0, %v1227
        %v1229 = vpop.f32.mrb[0].mxu0
        %1230 = vmatprep.mubr.bf16.mxu0 %v941
        %1231 = vmatmul.mubr.bf16.gmra.mrb[0].mxu0 %v940
        %v1232 = vpop.f32.mrb[0].mxu0
        %v1233 = vadd.f32 0.0, %v1232
        %v1234 = vpop.f32.mrb[0].mxu0
        %v1235 = vpop.f32.mrb[0].mxu0
        %v1236 = vadd.f32 0.0, %v1235
        %v1237 = vpop.f32.mrb[0].mxu0
        %1238 = vmatprep.mubr.bf16.mxu0 %v944
        %1239 = vmatmul.mubr.bf16.gmra.mrb[0].mxu0 %v943
        %v1240 = vpop.f32.mrb[0].mxu0
        %v1241 = vadd.f32 0.0, %v1240
        %v1242 = vpop.f32.mrb[0].mxu0
        %v1243 = vpop.f32.mrb[0].mxu0
        %v1244 = vadd.f32 0.0, %v1243
        %v1245 = vpop.f32.mrb[0].mxu0
        %1246 = vmatprep.mubr.bf16.mxu0 %v947
        %1247 = vmatmul.mubr.bf16.gmra.mrb[0].mxu0 %v946
        %v1248 = vpop.f32.mrb[0].mxu0
        %v1249 = vadd.f32 0.0, %v1248
        %v1250 = vpop.f32.mrb[0].mxu0
        %v1251 = vpop.f32.mrb[0].mxu0
        %v1252 = vadd.f32 0.0, %v1251
        %v1253 = vpop.f32.mrb[0].mxu0
        %1254 = vdwg.mxu0
        %1255 = vmatprep.subr.bf16.mxu0 0
        %1256 = vmatpush1.bf16.msra.mxu0 %v1110
        %1257 = vmatprep.subr.bf16.mxu0 0
        %1258 = vmatpush1.bf16.msra.mxu0 %v1111
        %1259 = vmatprep.subr.bf16.mxu0 0
        %1260 = vmatpush1.bf16.msra.mxu0 %v1112
        %1261 = vmatprep.subr.bf16.mxu0 0
        %1262 = vmatpush1.bf16.msra.mxu0 %v1113
        %1263 = vmatprep.subr.bf16.mxu0 0
        %1264 = vmatpush1.bf16.msra.mxu0 %v1114
        %1265 = vmatprep.subr.bf16.mxu0 0
        %1266 = vmatpush1.bf16.msra.mxu0 %v1115
        %1267 = vmatprep.subr.bf16.mxu0 0
        %1268 = vmatpush1.bf16.msra.mxu0 %v1116
        %1269 = vmatprep.subr.bf16.mxu0 0
        %1270 = vmatpush1.bf16.msra.mxu0 %v1117
        %1271 = vmatprep.subr.bf16.mxu0 0
        %1272 = vmatpush1.bf16.msra.mxu0 0
        %1273 = vmatprep.subr.bf16.mxu0 0
        %1274 = vmatpush1.bf16.msra.mxu0 0
        %1275 = vmatprep.subr.bf16.mxu0 0
        %1276 = vmatpush1.bf16.msra.mxu0 0
        %1277 = vmatprep.subr.bf16.mxu0 0
        %1278 = vmatpush1.bf16.msra.mxu0 0
        %1279 = vmatprep.subr.bf16.mxu0 0
        %1280 = vmatpush1.bf16.msra.mxu0 0
        %1281 = vmatprep.subr.bf16.mxu0 0
        %1282 = vmatpush1.bf16.msra.mxu0 0
        %1283 = vmatprep.subr.bf16.mxu0 0
        %1284 = vmatpush1.bf16.msra.mxu0 0
        %1285 = vmatprep.subr.bf16.mxu0 0
        %1286 = vmatpush1.bf16.msra.mxu0 0
        %1287 = vmatprep.mubr.bf16.mxu0 0
        %1288 = vmatmul.mubr.bf16.gmra.mrb[0].mxu0 %v921
        %v1289 = vpop.f32.mrb[0].mxu0
        %v1290 = vadd.f32 %v1177, %v1289
        %v1291 = vpop.f32.mrb[0].mxu0
        %v1292 = vpop.f32.mrb[0].mxu0
        %v1293 = vadd.f32 %v1180, %v1292
        %v1294 = vpop.f32.mrb[0].mxu0
        %1295 = vmatprep.mubr.bf16.mxu0 0
        %1296 = vmatmul.mubr.bf16.gmra.mrb[0].mxu0 %v924
        %v1297 = vpop.f32.mrb[0].mxu0
        %v1298 = vadd.f32 %v1185, %v1297
        %v1299 = vpop.f32.mrb[0].mxu0
        %v1300 = vpop.f32.mrb[0].mxu0
        %v1301 = vadd.f32 %v1188, %v1300
        %v1302 = vpop.f32.mrb[0].mxu0
        %1303 = vmatprep.mubr.bf16.mxu0 0
        %1304 = vmatmul.mubr.bf16.gmra.mrb[0].mxu0 %v927
        %v1305 = vpop.f32.mrb[0].mxu0
        %v1306 = vadd.f32 %v1193, %v1305
        %v1307 = vpop.f32.mrb[0].mxu0
        %v1308 = vpop.f32.mrb[0].mxu0
        %v1309 = vadd.f32 %v1196, %v1308
        %v1310 = vpop.f32.mrb[0].mxu0
        %1311 = vmatprep.mubr.bf16.mxu0 0
        %1312 = vmatmul.mubr.bf16.gmra.mrb[0].mxu0 %v930
        %v1313 = vpop.f32.mrb[0].mxu0
        %v1314 = vadd.f32 %v1201, %v1313
        %v1315 = vpop.f32.mrb[0].mxu0
        %v1316 = vpop.f32.mrb[0].mxu0
        %v1317 = vadd.f32 %v1204, %v1316
        %v1318 = vpop.f32.mrb[0].mxu0
        %1319 = vmatprep.mubr.bf16.mxu0 0
        %1320 = vmatmul.mubr.bf16.gmra.mrb[0].mxu0 %v933
        %v1321 = vpop.f32.mrb[0].mxu0
        %v1322 = vadd.f32 %v1209, %v1321
        %v1323 = vpop.f32.mrb[0].mxu0
        %v1324 = vpop.f32.mrb[0].mxu0
        %v1325 = vadd.f32 %v1212, %v1324
        %v1326 = vpop.f32.mrb[0].mxu0
        %1327 = vmatprep.mubr.bf16.mxu0 0
        %1328 = vmatmul.mubr.bf16.gmra.mrb[0].mxu0 %v936
        %v1329 = vpop.f32.mrb[0].mxu0
        %v1330 = vadd.f32 %v1217, %v1329
        %v1331 = vpop.f32.mrb[0].mxu0
        %v1332 = vpop.f32.mrb[0].mxu0
        %v1333 = vadd.f32 %v1220, %v1332
        %v1334 = vpop.f32.mrb[0].mxu0
        %1335 = vmatprep.mubr.bf16.mxu0 0
        %1336 = vmatmul.mubr.bf16.gmra.mrb[0].mxu0 %v939
        %v1337 = vpop.f32.mrb[0].mxu0
        %v1338 = vadd.f32 %v1225, %v1337
        %v1339 = vpop.f32.mrb[0].mxu0
        %v1340 = vpop.f32.mrb[0].mxu0
        %v1341 = vadd.f32 %v1228, %v1340
        %v1342 = vpop.f32.mrb[0].mxu0
        %1343 = vmatprep.mubr.bf16.mxu0 0
        %1344 = vmatmul.mubr.bf16.gmra.mrb[0].mxu0 %v942
        %v1345 = vpop.f32.mrb[0].mxu0
        %v1346 = vadd.f32 %v1233, %v1345
        %v1347 = vpop.f32.mrb[0].mxu0
        %v1348 = vpop.f32.mrb[0].mxu0
        %v1349 = vadd.f32 %v1236, %v1348
        %v1350 = vpop.f32.mrb[0].mxu0
        %1351 = vmatprep.mubr.bf16.mxu0 0
        %1352 = vmatmul.mubr.bf16.gmra.mrb[0].mxu0 %v945
        %v1353 = vpop.f32.mrb[0].mxu0
        %v1354 = vadd.f32 %v1241, %v1353
        %v1355 = vpop.f32.mrb[0].mxu0
        %v1356 = vpop.f32.mrb[0].mxu0
        %v1357 = vadd.f32 %v1244, %v1356
        %v1358 = vpop.f32.mrb[0].mxu0
        %1359 = vmatprep.mubr.bf16.mxu0 0
        %1360 = vmatmul.mubr.bf16.gmra.mrb[0].mxu0 %v948
        %v1361 = vpop.f32.mrb[0].mxu0
        %v1362 = vadd.f32 %v1249, %v1361
        %v1363 = vpop.f32.mrb[0].mxu0
        %v1364 = vpop.f32.mrb[0].mxu0
        %v1365 = vadd.f32 %v1252, %v1364
        %v1366 = vpop.f32.mrb[0].mxu0
        %1367 = vdwg.mxu0
        %v1368 = vld [vmem:[#allocation5] sm:$0xff]
        %v1369 = vld [vmem:[#allocation5 + $0x8] sm:$0xff]
        %v1370 = vld [vmem:[#allocation5 + $0x10] sm:$0xff]
        %v1371 = vld [vmem:[#allocation5 + $0x18] sm:$0xff]
        %v1372 = vld [vmem:[#allocation5 + $0x20] sm:$0xff]
        %v1373 = vld [vmem:[#allocation5 + $0x28] sm:$0xff]
        %v1374 = vld [vmem:[#allocation5 + $0x30] sm:$0xff]
        %v1375 = vld [vmem:[#allocation5 + $0x38] sm:$0xff]
        %v1376 = vld [vmem:[#allocation5 + $0x40] sm:$0xff]
        %v1377 = vld [vmem:[#allocation5 + $0x48] sm:$0xff]
        %v1378 = vld [vmem:[#allocation5 + $0x50] sm:$0xff]
        %v1379 = vld [vmem:[#allocation5 + $0x58] sm:$0xff]
        %v1380 = vld [vmem:[#allocation5 + $0x60] sm:$0xff]
        %v1381 = vld [vmem:[#allocation5 + $0x68] sm:$0xff]
        %v1382 = vld [vmem:[#allocation5 + $0x70] sm:$0xff]
        %v1383 = vld [vmem:[#allocation5 + $0x78] sm:$0xff]
        %v1384 = vld [vmem:[#allocation5 + $0x80] sm:$0xff]
        %v1385 = vld [vmem:[#allocation5 + $0x88] sm:$0xff]
        %v1386 = vld [vmem:[#allocation5 + $0x90] sm:$0xff]
        %v1387 = vld [vmem:[#allocation5 + $0x98] sm:$0xff]
        %v1388 = vadd.f32 %v1368, %v1290
        %v1389 = vadd.f32 %v1369, %v1293
        %v1390 = vadd.f32 %v1370, %v1298
        %v1391 = vadd.f32 %v1371, %v1301
        %v1392 = vadd.f32 %v1372, %v1306
        %v1393 = vadd.f32 %v1373, %v1309
        %v1394 = vadd.f32 %v1374, %v1314
        %v1395 = vadd.f32 %v1375, %v1317
        %v1396 = vadd.f32 %v1376, %v1322
        %v1397 = vadd.f32 %v1377, %v1325
        %v1398 = vadd.f32 %v1378, %v1330
        %v1399 = vadd.f32 %v1379, %v1333
        %v1400 = vadd.f32 %v1380, %v1338
        %v1401 = vadd.f32 %v1381, %v1341
        %v1402 = vadd.f32 %v1382, %v1346
        %v1403 = vadd.f32 %v1383, %v1349
        %v1404 = vadd.f32 %v1384, %v1354
        %v1405 = vadd.f32 %v1385, %v1357
        %v1406 = vadd.f32 %v1386, %v1362
        %v1407 = vadd.f32 %v1387, %v1365
        %1408 = vst [vmem:[#allocation5] sm:$0xff] %v1388
        %1409 = vst [vmem:[#allocation5 + $0x8] sm:$0xff] %v1389
        %1410 = vst [vmem:[#allocation5 + $0x10] sm:$0xff] %v1390
        %1411 = vst [vmem:[#allocation5 + $0x18] sm:$0xff] %v1391
        %1412 = vst [vmem:[#allocation5 + $0x20] sm:$0xff] %v1392
        %1413 = vst [vmem:[#allocation5 + $0x28] sm:$0xff] %v1393
        %1414 = vst [vmem:[#allocation5 + $0x30] sm:$0xff] %v1394
        %1415 = vst [vmem:[#allocation5 + $0x38] sm:$0xff] %v1395
        %1416 = vst [vmem:[#allocation5 + $0x40] sm:$0xff] %v1396
        %1417 = vst [vmem:[#allocation5 + $0x48] sm:$0xff] %v1397
        %1418 = vst [vmem:[#allocation5 + $0x50] sm:$0xff] %v1398
        %1419 = vst [vmem:[#allocation5 + $0x58] sm:$0xff] %v1399
        %1420 = vst [vmem:[#allocation5 + $0x60] sm:$0xff] %v1400
        %1421 = vst [vmem:[#allocation5 + $0x68] sm:$0xff] %v1401
        %1422 = vst [vmem:[#allocation5 + $0x70] sm:$0xff] %v1402
        %1423 = vst [vmem:[#allocation5 + $0x78] sm:$0xff] %v1403
        %1424 = vst [vmem:[#allocation5 + $0x80] sm:$0xff] %v1404
        %1425 = vst [vmem:[#allocation5 + $0x88] sm:$0xff] %v1405
        %1426 = vst [vmem:[#allocation5 + $0x90] sm:$0xff] %v1406
        %1427 = vst [vmem:[#allocation5 + $0x98] sm:$0xff] %v1407
        %s1428 = scalar_lea.vmem [#allocation2], 48
        %v1429 = vld [vmem:[%s1428] sm:$0xff]
        %v1430 = vld [vmem:[%s1428 + $0x8] sm:$0xff]
        %v1431 = vld [vmem:[%s1428 + $0x10] sm:$0xff]
        %v1432 = vld [vmem:[%s1428 + $0x18] sm:$0xff]
        %v1433 = vld [vmem:[%s1428 + $0x20] sm:$0xff]
        %v1434 = vld [vmem:[%s1428 + $0x28] sm:$0xff]
        %v1435 = vld [vmem:[%s1428 + $0x30] sm:$0xff]
        %v1436 = vld [vmem:[%s1428 + $0x38] sm:$0xff]
        %v1437 = vld [vmem:[%s1428 + $0x40] sm:$0xff]
        %v1438 = vld [vmem:[%s1428 + $0x48] sm:$0xff]
        %v1439 = vld [vmem:[%s1428 + $0x50] sm:$0xff]
        %v1440 = vld [vmem:[%s1428 + $0x58] sm:$0xff]
        %v1441 = vld [vmem:[%s1428 + $0x60] sm:$0xff]
        %v1442 = vld [vmem:[%s1428 + $0x68] sm:$0xff]
        %v1443 = vld [vmem:[%s1428 + $0x70] sm:$0xff]
        %v1444 = vld [vmem:[%s1428 + $0x78] sm:$0xff]
        %v1445 = vld [vmem:[%s1428 + $0x80] sm:$0xff]
        %v1446 = vld [vmem:[%s1428 + $0x88] sm:$0xff]
        %v1447 = vld [vmem:[%s1428 + $0x90] sm:$0xff]
        %v1448 = vld [vmem:[%s1428 + $0x98] sm:$0xff]
        %v1449 = vld [vmem:[%s1428 + $0xa0] sm:$0xff]
        %v1450 = vld [vmem:[%s1428 + $0xa8] sm:$0xff]
        %v1451 = vld [vmem:[%s1428 + $0xb0] sm:$0xff]
        %v1452 = vld [vmem:[%s1428 + $0xb8] sm:$0xff]
        %v1453 = vld [vmem:[%s1428 + $0xc0] sm:$0xff]
        %v1454 = vld [vmem:[%s1428 + $0xc8] sm:$0xff]
        %v1455 = vld [vmem:[%s1428 + $0xd0] sm:$0xff]
        %v1456 = vld [vmem:[%s1428 + $0xd8] sm:$0xff]
        %v1457 = vld [vmem:[%s1428 + $0xe0] sm:$0xff]
        %v1458 = vld [vmem:[%s1428 + $0xe8] sm:$0xff]
        %s1459 = scalar_lea.vmem %s1, 384
        %v1460 = vld [vmem:[%s1459] sm:$0xf]
        %v1461 = vld [vmem:[%s1459 + $0x4] sm:$0xf]
        %v1462 = vld [vmem:[%s1459 + $0x8] sm:$0xf]
        %v1463 = vld [vmem:[%s1459 + $0xc] sm:$0xf]
        %v1464 = vld [vmem:[%s1459 + $0x10] sm:$0xf]
        %v1465 = vld [vmem:[%s1459 + $0x14] sm:$0xf]
        %v1466 = vld [vmem:[%s1459 + $0x18] sm:$0xf]
        %v1467 = vld [vmem:[%s1459 + $0x1c] sm:$0xf]
        %v1468 = vld [vmem:[%s1459 + $0x20] sm:$0xf]
        %v1469 = vld [vmem:[%s1459 + $0x24] sm:$0xf]
        %v1470 = vld [vmem:[%s1459 + $0x28] sm:$0xf]
        %v1471 = vld [vmem:[%s1459 + $0x2c] sm:$0xf]
        %v1472 = vld [vmem:[%s1459 + $0x30] sm:$0xf]
        %v1473 = vld [vmem:[%s1459 + $0x34] sm:$0xf]
        %v1474 = vld [vmem:[%s1459 + $0x38] sm:$0xf]
        %v1475 = vld [vmem:[%s1459 + $0x3c] sm:$0xf]
        %v1476 = vld [vmem:[%s1459 + $0x40] sm:$0xf]
        %v1477 = vld [vmem:[%s1459 + $0x44] sm:$0xf]
        %v1478 = vld [vmem:[%s1459 + $0x48] sm:$0xf]
        %v1479 = vld [vmem:[%s1459 + $0x4c] sm:$0xf]
        %v1480 = vld [vmem:[%s1459 + $0x50] sm:$0xf]
        %v1481 = vld [vmem:[%s1459 + $0x54] sm:$0xf]
        %v1482 = vld [vmem:[%s1459 + $0x58] sm:$0xf]
        %v1483 = vld [vmem:[%s1459 + $0x5c] sm:$0xf]
        %v1484 = vld [vmem:[%s1459 + $0x60] sm:$0xf]
        %v1485 = vld [vmem:[%s1459 + $0x64] sm:$0xf]
        %v1486 = vld [vmem:[%s1459 + $0x68] sm:$0xf]
        %v1487 = vld [vmem:[%s1459 + $0x6c] sm:$0xf]
        %v1488 = vld [vmem:[%s1459 + $0x70] sm:$0xf]
        %v1489 = vld [vmem:[%s1459 + $0x74] sm:$0xf]
        %v1490 = vld [vmem:[%s1459 + $0x78] sm:$0xf]
        %v1491 = vld [vmem:[%s1459 + $0x7c] sm:$0xf]
        %v1492 = vld [vmem:[%s1459 + $0x80] sm:$0xf]
        %v1493 = vld [vmem:[%s1459 + $0x84] sm:$0xf]
        %v1494 = vld [vmem:[%s1459 + $0x88] sm:$0xf]
        %v1495 = vld [vmem:[%s1459 + $0x8c] sm:$0xf]
        %v1496 = vld [vmem:[%s1459 + $0x90] sm:$0xf]
        %v1497 = vld [vmem:[%s1459 + $0x94] sm:$0xf]
        %v1498 = vld [vmem:[%s1459 + $0x98] sm:$0xf]
        %v1499 = vld [vmem:[%s1459 + $0x9c] sm:$0xf]
        %v1500 = vld [vmem:[%s1459 + $0xa0] sm:$0xf]
        %v1501 = vld [vmem:[%s1459 + $0xa4] sm:$0xf]
        %v1502 = vld [vmem:[%s1459 + $0xa8] sm:$0xf]
        %v1503 = vld [vmem:[%s1459 + $0xac] sm:$0xf]
        %v1504 = vld [vmem:[%s1459 + $0xb0] sm:$0xf]
        %v1505 = vld [vmem:[%s1459 + $0xb4] sm:$0xf]
        %v1506 = vld [vmem:[%s1459 + $0xb8] sm:$0xf]
        %v1507 = vld [vmem:[%s1459 + $0xbc] sm:$0xf]
        %v1556 = vunpack.c.l.b16 %v1460
        %v1557 = vunpack.c.l.b16 %v1461
        %v1558 = vunpack.c.l.b16 %v1462
        %v1559 = vunpack.c.l.b16 %v1463
        %v1560 = vunpack.c.l.b16 %v1464
        %v1561 = vunpack.c.l.b16 %v1465
        %v1562 = vunpack.c.l.b16 %v1466
        %v1563 = vunpack.c.l.b16 %v1467
        %v1564 = vunpack.c.l.b16 %v1468
        %v1565 = vunpack.c.l.b16 %v1469
        %v1566 = vunpack.c.l.b16 %v1470
        %v1567 = vunpack.c.l.b16 %v1471
        %v1568 = vunpack.c.l.b16 %v1472
        %v1569 = vunpack.c.l.b16 %v1473
        %v1570 = vunpack.c.l.b16 %v1474
        %v1571 = vunpack.c.l.b16 %v1475
        %v1572 = vunpack.c.l.b16 %v1476
        %v1573 = vunpack.c.l.b16 %v1477
        %v1574 = vunpack.c.l.b16 %v1478
        %v1575 = vunpack.c.l.b16 %v1479
        %v1576 = vunpack.c.l.b16 %v1480
        %v1577 = vunpack.c.l.b16 %v1481
        %v1578 = vunpack.c.l.b16 %v1482
        %v1579 = vunpack.c.l.b16 %v1483
        %v1580 = vunpack.c.l.b16 %v1484
        %v1581 = vunpack.c.l.b16 %v1485
        %v1582 = vunpack.c.l.b16 %v1486
        %v1583 = vunpack.c.l.b16 %v1487
        %v1584 = vunpack.c.l.b16 %v1488
        %v1585 = vunpack.c.l.b16 %v1489
        %v1586 = vunpack.c.l.b16 %v1490
        %v1587 = vunpack.c.l.b16 %v1491
        %v1588 = vunpack.c.l.b16 %v1492
        %v1589 = vunpack.c.l.b16 %v1493
        %v1590 = vunpack.c.l.b16 %v1494
        %v1591 = vunpack.c.l.b16 %v1495
        %v1592 = vunpack.c.l.b16 %v1496
        %v1593 = vunpack.c.l.b16 %v1497
        %v1594 = vunpack.c.l.b16 %v1498
        %v1595 = vunpack.c.l.b16 %v1499
        %v1596 = vunpack.c.l.b16 %v1500
        %v1597 = vunpack.c.l.b16 %v1501
        %v1598 = vunpack.c.l.b16 %v1502
        %v1599 = vunpack.c.l.b16 %v1503
        %v1600 = vunpack.c.l.b16 %v1504
        %v1601 = vunpack.c.l.b16 %v1505
        %v1602 = vunpack.c.l.b16 %v1506
        %v1603 = vunpack.c.l.b16 %v1507
        %v1604 = vpack.c.b16 %v1557, %v1556
        %v1605 = vpack.c.b16 %v1559, %v1558
        %v1606 = vpack.c.b16 %v1561, %v1560
        %v1607 = vpack.c.b16 %v1563, %v1562
        %v1608 = vpack.c.b16 %v1565, %v1564
        %v1609 = vpack.c.b16 %v1567, %v1566
        %v1610 = vpack.c.b16 %v1569, %v1568
        %v1611 = vpack.c.b16 %v1571, %v1570
        %v1612 = vpack.c.b16 %v1573, %v1572
        %v1613 = vpack.c.b16 %v1575, %v1574
        %v1614 = vpack.c.b16 %v1577, %v1576
        %v1615 = vpack.c.b16 %v1579, %v1578
        %v1616 = vpack.c.b16 %v1581, %v1580
        %v1617 = vpack.c.b16 %v1583, %v1582
        %v1618 = vpack.c.b16 %v1585, %v1584
        %v1619 = vpack.c.b16 %v1587, %v1586
        %v1620 = vpack.c.b16 %v1589, %v1588
        %v1621 = vpack.c.b16 %v1591, %v1590
        %v1622 = vpack.c.b16 %v1593, %v1592
        %v1623 = vpack.c.b16 %v1595, %v1594
        %v1624 = vpack.c.b16 %v1597, %v1596
        %v1625 = vpack.c.b16 %v1599, %v1598
        %v1626 = vpack.c.b16 %v1601, %v1600
        %v1627 = vpack.c.b16 %v1603, %v1602
        %1652 = vmatprep.subr.bf16.mxu0 0
        %1653 = vmatpush1.bf16.msra.mxu0 %v1604
        %1654 = vmatprep.subr.bf16.mxu0 0
        %1655 = vmatpush1.bf16.msra.mxu0 %v1605
        %1656 = vmatprep.subr.bf16.mxu0 0
        %1657 = vmatpush1.bf16.msra.mxu0 %v1606
        %1658 = vmatprep.subr.bf16.mxu0 0
        %1659 = vmatpush1.bf16.msra.mxu0 %v1607
        %1660 = vmatprep.subr.bf16.mxu0 0
        %1661 = vmatpush1.bf16.msra.mxu0 %v1608
        %1662 = vmatprep.subr.bf16.mxu0 0
        %1663 = vmatpush1.bf16.msra.mxu0 %v1609
        %1664 = vmatprep.subr.bf16.mxu0 0
        %1665 = vmatpush1.bf16.msra.mxu0 %v1610
        %1666 = vmatprep.subr.bf16.mxu0 0
        %1667 = vmatpush1.bf16.msra.mxu0 %v1611
        %1668 = vmatprep.subr.bf16.mxu0 0
        %1669 = vmatpush1.bf16.msra.mxu0 %v1612
        %1670 = vmatprep.subr.bf16.mxu0 0
        %1671 = vmatpush1.bf16.msra.mxu0 %v1613
        %1672 = vmatprep.subr.bf16.mxu0 0
        %1673 = vmatpush1.bf16.msra.mxu0 %v1614
        %1674 = vmatprep.subr.bf16.mxu0 0
        %1675 = vmatpush1.bf16.msra.mxu0 %v1615
        %1676 = vmatprep.subr.bf16.mxu0 0
        %1677 = vmatpush1.bf16.msra.mxu0 %v1616
        %1678 = vmatprep.subr.bf16.mxu0 0
        %1679 = vmatpush1.bf16.msra.mxu0 %v1617
        %1680 = vmatprep.subr.bf16.mxu0 0
        %1681 = vmatpush1.bf16.msra.mxu0 %v1618
        %1682 = vmatprep.subr.bf16.mxu0 0
        %1683 = vmatpush1.bf16.msra.mxu0 %v1619
        %1684 = vmatprep.mubr.bf16.mxu0 %v1430
        %1685 = vmatmul.mubr.bf16.gmra.mrb[0].mxu0 %v1429
        %v1686 = vpop.f32.mrb[0].mxu0
        %v1687 = vadd.f32 0.0, %v1686
        %v1688 = vpop.f32.mrb[0].mxu0
        %v1689 = vpop.f32.mrb[0].mxu0
        %v1690 = vadd.f32 0.0, %v1689
        %v1691 = vpop.f32.mrb[0].mxu0
        %1692 = vmatprep.mubr.bf16.mxu0 %v1433
        %1693 = vmatmul.mubr.bf16.gmra.mrb[0].mxu0 %v1432
        %v1694 = vpop.f32.mrb[0].mxu0
        %v1695 = vadd.f32 0.0, %v1694
        %v1696 = vpop.f32.mrb[0].mxu0
        %v1697 = vpop.f32.mrb[0].mxu0
        %v1698 = vadd.f32 0.0, %v1697
        %v1699 = vpop.f32.mrb[0].mxu0
        %1700 = vmatprep.mubr.bf16.mxu0 %v1436
        %1701 = vmatmul.mubr.bf16.gmra.mrb[0].mxu0 %v1435
        %v1702 = vpop.f32.mrb[0].mxu0
        %v1703 = vadd.f32 0.0, %v1702
        %v1704 = vpop.f32.mrb[0].mxu0
        %v1705 = vpop.f32.mrb[0].mxu0
        %v1706 = vadd.f32 0.0, %v1705
        %v1707 = vpop.f32.mrb[0].mxu0
        %1708 = vmatprep.mubr.bf16.mxu0 %v1439
        %1709 = vmatmul.mubr.bf16.gmra.mrb[0].mxu0 %v1438
        %v1710 = vpop.f32.mrb[0].mxu0
        %v1711 = vadd.f32 0.0, %v1710
        %v1712 = vpop.f32.mrb[0].mxu0
        %v1713 = vpop.f32.mrb[0].mxu0
        %v1714 = vadd.f32 0.0, %v1713
        %v1715 = vpop.f32.mrb[0].mxu0
        %1716 = vmatprep.mubr.bf16.mxu0 %v1442
        %1717 = vmatmul.mubr.bf16.gmra.mrb[0].mxu0 %v1441
        %v1718 = vpop.f32.mrb[0].mxu0
        %v1719 = vadd.f32 0.0, %v1718
        %v1720 = vpop.f32.mrb[0].mxu0
        %v1721 = vpop.f32.mrb[0].mxu0
        %v1722 = vadd.f32 0.0, %v1721
        %v1723 = vpop.f32.mrb[0].mxu0
        %1724 = vmatprep.mubr.bf16.mxu0 %v1445
        %1725 = vmatmul.mubr.bf16.gmra.mrb[0].mxu0 %v1444
        %v1726 = vpop.f32.mrb[0].mxu0
        %v1727 = vadd.f32 0.0, %v1726
        %v1728 = vpop.f32.mrb[0].mxu0
        %v1729 = vpop.f32.mrb[0].mxu0
        %v1730 = vadd.f32 0.0, %v1729
        %v1731 = vpop.f32.mrb[0].mxu0
        %1732 = vmatprep.mubr.bf16.mxu0 %v1448
        %1733 = vmatmul.mubr.bf16.gmra.mrb[0].mxu0 %v1447
        %v1734 = vpop.f32.mrb[0].mxu0
        %v1735 = vadd.f32 0.0, %v1734
        %v1736 = vpop.f32.mrb[0].mxu0
        %v1737 = vpop.f32.mrb[0].mxu0
        %v1738 = vadd.f32 0.0, %v1737
        %v1739 = vpop.f32.mrb[0].mxu0
        %1740 = vmatprep.mubr.bf16.mxu0 %v1451
        %1741 = vmatmul.mubr.bf16.gmra.mrb[0].mxu0 %v1450
        %v1742 = vpop.f32.mrb[0].mxu0
        %v1743 = vadd.f32 0.0, %v1742
        %v1744 = vpop.f32.mrb[0].mxu0
        %v1745 = vpop.f32.mrb[0].mxu0
        %v1746 = vadd.f32 0.0, %v1745
        %v1747 = vpop.f32.mrb[0].mxu0
        %1748 = vmatprep.mubr.bf16.mxu0 %v1454
        %1749 = vmatmul.mubr.bf16.gmra.mrb[0].mxu0 %v1453
        %v1750 = vpop.f32.mrb[0].mxu0
        %v1751 = vadd.f32 0.0, %v1750
        %v1752 = vpop.f32.mrb[0].mxu0
        %v1753 = vpop.f32.mrb[0].mxu0
        %v1754 = vadd.f32 0.0, %v1753
        %v1755 = vpop.f32.mrb[0].mxu0
        %1756 = vmatprep.mubr.bf16.mxu0 %v1457
        %1757 = vmatmul.mubr.bf16.gmra.mrb[0].mxu0 %v1456
        %v1758 = vpop.f32.mrb[0].mxu0
        %v1759 = vadd.f32 0.0, %v1758
        %v1760 = vpop.f32.mrb[0].mxu0
        %v1761 = vpop.f32.mrb[0].mxu0
        %v1762 = vadd.f32 0.0, %v1761
        %v1763 = vpop.f32.mrb[0].mxu0
        %1764 = vdwg.mxu0
        %1765 = vmatprep.subr.bf16.mxu0 0
        %1766 = vmatpush1.bf16.msra.mxu0 %v1620
        %1767 = vmatprep.subr.bf16.mxu0 0
        %1768 = vmatpush1.bf16.msra.mxu0 %v1621
        %1769 = vmatprep.subr.bf16.mxu0 0
        %1770 = vmatpush1.bf16.msra.mxu0 %v1622
        %1771 = vmatprep.subr.bf16.mxu0 0
        %1772 = vmatpush1.bf16.msra.mxu0 %v1623
        %1773 = vmatprep.subr.bf16.mxu0 0
        %1774 = vmatpush1.bf16.msra.mxu0 %v1624
        %1775 = vmatprep.subr.bf16.mxu0 0
        %1776 = vmatpush1.bf16.msra.mxu0 %v1625
        %1777 = vmatprep.subr.bf16.mxu0 0
        %1778 = vmatpush1.bf16.msra.mxu0 %v1626
        %1779 = vmatprep.subr.bf16.mxu0 0
        %1780 = vmatpush1.bf16.msra.mxu0 %v1627
        %1781 = vmatprep.subr.bf16.mxu0 0
        %1782 = vmatpush1.bf16.msra.mxu0 0
        %1783 = vmatprep.subr.bf16.mxu0 0
        %1784 = vmatpush1.bf16.msra.mxu0 0
        %1785 = vmatprep.subr.bf16.mxu0 0
        %1786 = vmatpush1.bf16.msra.mxu0 0
        %1787 = vmatprep.subr.bf16.mxu0 0
        %1788 = vmatpush1.bf16.msra.mxu0 0
        %1789 = vmatprep.subr.bf16.mxu0 0
        %1790 = vmatpush1.bf16.msra.mxu0 0
        %1791 = vmatprep.subr.bf16.mxu0 0
        %1792 = vmatpush1.bf16.msra.mxu0 0
        %1793 = vmatprep.subr.bf16.mxu0 0
        %1794 = vmatpush1.bf16.msra.mxu0 0
        %1795 = vmatprep.subr.bf16.mxu0 0
        %1796 = vmatpush1.bf16.msra.mxu0 0
        %1797 = vmatprep.mubr.bf16.mxu0 0
        %1798 = vmatmul.mubr.bf16.gmra.mrb[0].mxu0 %v1431
        %v1799 = vpop.f32.mrb[0].mxu0
        %v1800 = vadd.f32 %v1687, %v1799
        %v1801 = vpop.f32.mrb[0].mxu0
        %v1802 = vpop.f32.mrb[0].mxu0
        %v1803 = vadd.f32 %v1690, %v1802
        %v1804 = vpop.f32.mrb[0].mxu0
        %1805 = vmatprep.mubr.bf16.mxu0 0
        %1806 = vmatmul.mubr.bf16.gmra.mrb[0].mxu0 %v1434
        %v1807 = vpop.f32.mrb[0].mxu0
        %v1808 = vadd.f32 %v1695, %v1807
        %v1809 = vpop.f32.mrb[0].mxu0
        %v1810 = vpop.f32.mrb[0].mxu0
        %v1811 = vadd.f32 %v1698, %v1810
        %v1812 = vpop.f32.mrb[0].mxu0
        %1813 = vmatprep.mubr.bf16.mxu0 0
        %1814 = vmatmul.mubr.bf16.gmra.mrb[0].mxu0 %v1437
        %v1815 = vpop.f32.mrb[0].mxu0
        %v1816 = vadd.f32 %v1703, %v1815
        %v1817 = vpop.f32.mrb[0].mxu0
        %v1818 = vpop.f32.mrb[0].mxu0
        %v1819 = vadd.f32 %v1706, %v1818
        %v1820 = vpop.f32.mrb[0].mxu0
        %1821 = vmatprep.mubr.bf16.mxu0 0
        %1822 = vmatmul.mubr.bf16.gmra.mrb[0].mxu0 %v1440
        %v1823 = vpop.f32.mrb[0].mxu0
        %v1824 = vadd.f32 %v1711, %v1823
        %v1825 = vpop.f32.mrb[0].mxu0
        %v1826 = vpop.f32.mrb[0].mxu0
        %v1827 = vadd.f32 %v1714, %v1826
        %v1828 = vpop.f32.mrb[0].mxu0
        %1829 = vmatprep.mubr.bf16.mxu0 0
        %1830 = vmatmul.mubr.bf16.gmra.mrb[0].mxu0 %v1443
        %v1831 = vpop.f32.mrb[0].mxu0
        %v1832 = vadd.f32 %v1719, %v1831
        %v1833 = vpop.f32.mrb[0].mxu0
        %v1834 = vpop.f32.mrb[0].mxu0
        %v1835 = vadd.f32 %v1722, %v1834
        %v1836 = vpop.f32.mrb[0].mxu0
        %1837 = vmatprep.mubr.bf16.mxu0 0
        %1838 = vmatmul.mubr.bf16.gmra.mrb[0].mxu0 %v1446
        %v1839 = vpop.f32.mrb[0].mxu0
        %v1840 = vadd.f32 %v1727, %v1839
        %v1841 = vpop.f32.mrb[0].mxu0
        %v1842 = vpop.f32.mrb[0].mxu0
        %v1843 = vadd.f32 %v1730, %v1842
        %v1844 = vpop.f32.mrb[0].mxu0
        %1845 = vmatprep.mubr.bf16.mxu0 0
        %1846 = vmatmul.mubr.bf16.gmra.mrb[0].mxu0 %v1449
        %v1847 = vpop.f32.mrb[0].mxu0
        %v1848 = vadd.f32 %v1735, %v1847
        %v1849 = vpop.f32.mrb[0].mxu0
        %v1850 = vpop.f32.mrb[0].mxu0
        %v1851 = vadd.f32 %v1738, %v1850
        %v1852 = vpop.f32.mrb[0].mxu0
        %1853 = vmatprep.mubr.bf16.mxu0 0
        %1854 = vmatmul.mubr.bf16.gmra.mrb[0].mxu0 %v1452
        %v1855 = vpop.f32.mrb[0].mxu0
        %v1856 = vadd.f32 %v1743, %v1855
        %v1857 = vpop.f32.mrb[0].mxu0
        %v1858 = vpop.f32.mrb[0].mxu0
        %v1859 = vadd.f32 %v1746, %v1858
        %v1860 = vpop.f32.mrb[0].mxu0
        %1861 = vmatprep.mubr.bf16.mxu0 0
        %1862 = vmatmul.mubr.bf16.gmra.mrb[0].mxu0 %v1455
        %v1863 = vpop.f32.mrb[0].mxu0
        %v1864 = vadd.f32 %v1751, %v1863
        %v1865 = vpop.f32.mrb[0].mxu0
        %v1866 = vpop.f32.mrb[0].mxu0
        %v1867 = vadd.f32 %v1754, %v1866
        %v1868 = vpop.f32.mrb[0].mxu0
        %1869 = vmatprep.mubr.bf16.mxu0 0
        %1870 = vmatmul.mubr.bf16.gmra.mrb[0].mxu0 %v1458
        %v1871 = vpop.f32.mrb[0].mxu0
        %v1872 = vadd.f32 %v1759, %v1871
        %v1873 = vpop.f32.mrb[0].mxu0
        %v1874 = vpop.f32.mrb[0].mxu0
        %v1875 = vadd.f32 %v1762, %v1874
        %v1876 = vpop.f32.mrb[0].mxu0
        %1877 = vdwg.mxu0
        %v1878 = vld [vmem:[#allocation5] sm:$0xff]
        %v1879 = vld [vmem:[#allocation5 + $0x8] sm:$0xff]
        %v1880 = vld [vmem:[#allocation5 + $0x10] sm:$0xff]
        %v1881 = vld [vmem:[#allocation5 + $0x18] sm:$0xff]
        %v1882 = vld [vmem:[#allocation5 + $0x20] sm:$0xff]
        %v1883 = vld [vmem:[#allocation5 + $0x28] sm:$0xff]
        %v1884 = vld [vmem:[#allocation5 + $0x30] sm:$0xff]
        %v1885 = vld [vmem:[#allocation5 + $0x38] sm:$0xff]
        %v1886 = vld [vmem:[#allocation5 + $0x40] sm:$0xff]
        %v1887 = vld [vmem:[#allocation5 + $0x48] sm:$0xff]
        %v1888 = vld [vmem:[#allocation5 + $0x50] sm:$0xff]
        %v1889 = vld [vmem:[#allocation5 + $0x58] sm:$0xff]
        %v1890 = vld [vmem:[#allocation5 + $0x60] sm:$0xff]
        %v1891 = vld [vmem:[#allocation5 + $0x68] sm:$0xff]
        %v1892 = vld [vmem:[#allocation5 + $0x70] sm:$0xff]
        %v1893 = vld [vmem:[#allocation5 + $0x78] sm:$0xff]
        %v1894 = vld [vmem:[#allocation5 + $0x80] sm:$0xff]
        %v1895 = vld [vmem:[#allocation5 + $0x88] sm:$0xff]
        %v1896 = vld [vmem:[#allocation5 + $0x90] sm:$0xff]
        %v1897 = vld [vmem:[#allocation5 + $0x98] sm:$0xff]
        %v1898 = vadd.f32 %v1878, %v1800
        %v1899 = vadd.f32 %v1879, %v1803
        %v1900 = vadd.f32 %v1880, %v1808
        %v1901 = vadd.f32 %v1881, %v1811
        %v1902 = vadd.f32 %v1882, %v1816
        %v1903 = vadd.f32 %v1883, %v1819
        %v1904 = vadd.f32 %v1884, %v1824
        %v1905 = vadd.f32 %v1885, %v1827
        %v1906 = vadd.f32 %v1886, %v1832
        %v1907 = vadd.f32 %v1887, %v1835
        %v1908 = vadd.f32 %v1888, %v1840
        %v1909 = vadd.f32 %v1889, %v1843
        %v1910 = vadd.f32 %v1890, %v1848
        %v1911 = vadd.f32 %v1891, %v1851
        %v1912 = vadd.f32 %v1892, %v1856
        %v1913 = vadd.f32 %v1893, %v1859
        %v1914 = vadd.f32 %v1894, %v1864
        %v1915 = vadd.f32 %v1895, %v1867
        %v1916 = vadd.f32 %v1896, %v1872
        %v1917 = vadd.f32 %v1897, %v1875
        %1918 = vst [vmem:[#allocation5] sm:$0xff] %v1898
        %1919 = vst [vmem:[#allocation5 + $0x8] sm:$0xff] %v1899
        %1920 = vst [vmem:[#allocation5 + $0x10] sm:$0xff] %v1900
        %1921 = vst [vmem:[#allocation5 + $0x18] sm:$0xff] %v1901
        %1922 = vst [vmem:[#allocation5 + $0x20] sm:$0xff] %v1902
        %1923 = vst [vmem:[#allocation5 + $0x28] sm:$0xff] %v1903
        %1924 = vst [vmem:[#allocation5 + $0x30] sm:$0xff] %v1904
        %1925 = vst [vmem:[#allocation5 + $0x38] sm:$0xff] %v1905
        %1926 = vst [vmem:[#allocation5 + $0x40] sm:$0xff] %v1906
        %1927 = vst [vmem:[#allocation5 + $0x48] sm:$0xff] %v1907
        %1928 = vst [vmem:[#allocation5 + $0x50] sm:$0xff] %v1908
        %1929 = vst [vmem:[#allocation5 + $0x58] sm:$0xff] %v1909
        %1930 = vst [vmem:[#allocation5 + $0x60] sm:$0xff] %v1910
        %1931 = vst [vmem:[#allocation5 + $0x68] sm:$0xff] %v1911
        %1932 = vst [vmem:[#allocation5 + $0x70] sm:$0xff] %v1912
        %1933 = vst [vmem:[#allocation5 + $0x78] sm:$0xff] %v1913
        %1934 = vst [vmem:[#allocation5 + $0x80] sm:$0xff] %v1914
        %1935 = vst [vmem:[#allocation5 + $0x88] sm:$0xff] %v1915
        %1936 = vst [vmem:[#allocation5 + $0x90] sm:$0xff] %v1916
        %1937 = vst [vmem:[#allocation5 + $0x98] sm:$0xff] %v1917
        %v1938 = vld [vmem:[#allocation5] sm:$0xff]
        %v1939 = vld [vmem:[#allocation5 + $0x8] sm:$0xff]
        %v1940 = vld [vmem:[#allocation5 + $0x10] sm:$0xff]
        %v1941 = vld [vmem:[#allocation5 + $0x18] sm:$0xff]
        %v1942 = vld [vmem:[#allocation5 + $0x20] sm:$0xff]
        %v1943 = vld [vmem:[#allocation5 + $0x28] sm:$0xff]
        %v1944 = vld [vmem:[#allocation5 + $0x30] sm:$0xff]
        %v1945 = vld [vmem:[#allocation5 + $0x38] sm:$0xff]
        %v1946 = vld [vmem:[#allocation5 + $0x40] sm:$0xff]
        %v1947 = vld [vmem:[#allocation5 + $0x48] sm:$0xff]
        %v1948 = vld [vmem:[#allocation5 + $0x50] sm:$0xff]
        %v1949 = vld [vmem:[#allocation5 + $0x58] sm:$0xff]
        %v1950 = vld [vmem:[#allocation5 + $0x60] sm:$0xff]
        %v1951 = vld [vmem:[#allocation5 + $0x68] sm:$0xff]
        %v1952 = vld [vmem:[#allocation5 + $0x70] sm:$0xff]
        %v1953 = vld [vmem:[#allocation5 + $0x78] sm:$0xff]
        %v1954 = vld [vmem:[#allocation5 + $0x80] sm:$0xff]
        %v1955 = vld [vmem:[#allocation5 + $0x88] sm:$0xff]
        %v1956 = vld [vmem:[#allocation5 + $0x90] sm:$0xff]
        %v1957 = vld [vmem:[#allocation5 + $0x98] sm:$0xff]
        %v1958 = vld [vmem:[%s2] sm:$0x1]
        %v1960 = vlaneseq
        %v1961 = vshrl.u32 %v1960, 7
        %v1962 = vsub.s32 0, %v1961
        %v1963 = vrot.slane %v1958, %v1962
        %v1965 = vmul.f32 %v1938, %v1963
        %v1966 = vmul.f32 %v1939, %v1963
        %v1967 = vmul.f32 %v1940, %v1963
        %v1968 = vmul.f32 %v1941, %v1963
        %v1969 = vmul.f32 %v1942, %v1963
        %v1970 = vmul.f32 %v1943, %v1963
        %v1971 = vmul.f32 %v1944, %v1963
        %v1972 = vmul.f32 %v1945, %v1963
        %v1973 = vmul.f32 %v1946, %v1963
        %v1974 = vmul.f32 %v1947, %v1963
        %v1975 = vmul.f32 %v1948, %v1963
        %v1976 = vmul.f32 %v1949, %v1963
        %v1977 = vmul.f32 %v1950, %v1963
        %v1978 = vmul.f32 %v1951, %v1963
        %v1979 = vmul.f32 %v1952, %v1963
        %v1980 = vmul.f32 %v1953, %v1963
        %v1981 = vmul.f32 %v1954, %v1963
        %v1982 = vmul.f32 %v1955, %v1963
        %v1983 = vmul.f32 %v1956, %v1963
        %v1984 = vmul.f32 %v1957, %v1963
        %v1985 = vld [vmem:[%s3] sm:$0x1]
        %v1987 = vlaneseq
        %v1988 = vshrl.u32 %v1987, 7
        %v1989 = vsub.s32 0, %v1988
        %v1990 = vrot.slane %v1985, %v1989
        %v1992 = vadd.f32 %v1965, %v1990
        %v1993 = vadd.f32 %v1966, %v1990
        %v1994 = vadd.f32 %v1967, %v1990
        %v1995 = vadd.f32 %v1968, %v1990
        %v1996 = vadd.f32 %v1969, %v1990
        %v1997 = vadd.f32 %v1970, %v1990
        %v1998 = vadd.f32 %v1971, %v1990
        %v1999 = vadd.f32 %v1972, %v1990
        %v2000 = vadd.f32 %v1973, %v1990
        %v2001 = vadd.f32 %v1974, %v1990
        %v2002 = vadd.f32 %v1975, %v1990
        %v2003 = vadd.f32 %v1976, %v1990
        %v2004 = vadd.f32 %v1977, %v1990
        %v2005 = vadd.f32 %v1978, %v1990
        %v2006 = vadd.f32 %v1979, %v1990
        %v2007 = vadd.f32 %v1980, %v1990
        %v2008 = vadd.f32 %v1981, %v1990
        %v2009 = vadd.f32 %v1982, %v1990
        %v2010 = vadd.f32 %v1983, %v1990
        %v2011 = vadd.f32 %v1984, %v1990
        %v2012 = vmax.f32 %v1992, 0.0
        %v2013 = vmax.f32 %v1993, 0.0
        %v2014 = vmax.f32 %v1994, 0.0
        %v2015 = vmax.f32 %v1995, 0.0
        %v2016 = vmax.f32 %v1996, 0.0
        %v2017 = vmax.f32 %v1997, 0.0
        %v2018 = vmax.f32 %v1998, 0.0
        %v2019 = vmax.f32 %v1999, 0.0
        %v2020 = vmax.f32 %v2000, 0.0
        %v2021 = vmax.f32 %v2001, 0.0
        %v2022 = vmax.f32 %v2002, 0.0
        %v2023 = vmax.f32 %v2003, 0.0
        %v2024 = vmax.f32 %v2004, 0.0
        %v2025 = vmax.f32 %v2005, 0.0
        %v2026 = vmax.f32 %v2006, 0.0
        %v2027 = vmax.f32 %v2007, 0.0
        %v2028 = vmax.f32 %v2008, 0.0
        %v2029 = vmax.f32 %v2009, 0.0
        %v2030 = vmax.f32 %v2010, 0.0
        %v2031 = vmax.f32 %v2011, 0.0
        %s2032 = smul.u32 %s26, 8
        %s2033 = ssub.s32 %s2032, 1
        %v2034 = vstv %s2033
        %v2035 = vadd.s32 %v2034, 1
        %v2036 = vadd.s32 %v2034, 2
        %v2037 = vadd.s32 %v2034, 3
        %v2038 = vadd.s32 %v2034, 4
        %v2039 = vadd.s32 %v2034, 5
        %v2040 = vadd.s32 %v2034, 6
        %v2041 = vadd.s32 %v2034, 7
        %v2042 = vadd.s32 %v2034, 8
        %v2043 = vadd.s32 %v2034, 9
        %vm2044 = vcmp.ge.s32.totalorder %v2034, 0
        %vm2045 = vcmp.ge.s32.totalorder %v2035, 0
        %vm2046 = vcmp.ge.s32.totalorder %v2036, 0
        %vm2047 = vcmp.ge.s32.totalorder %v2037, 0
        %vm2048 = vcmp.ge.s32.totalorder %v2038, 0
        %vm2049 = vcmp.ge.s32.totalorder %v2039, 0
        %vm2050 = vcmp.ge.s32.totalorder %v2040, 0
        %vm2051 = vcmp.ge.s32.totalorder %v2041, 0
        %vm2052 = vcmp.ge.s32.totalorder %v2042, 0
        %vm2053 = vcmp.ge.s32.totalorder %v2043, 0
        %vm2054 = vcmp.lt.s32.totalorder %v2034, 16
        %vm2055 = vcmp.lt.s32.totalorder %v2035, 16
        %vm2056 = vcmp.lt.s32.totalorder %v2036, 16
        %vm2057 = vcmp.lt.s32.totalorder %v2037, 16
        %vm2058 = vcmp.lt.s32.totalorder %v2038, 16
        %vm2059 = vcmp.lt.s32.totalorder %v2039, 16
        %vm2060 = vcmp.lt.s32.totalorder %v2040, 16
        %vm2061 = vcmp.lt.s32.totalorder %v2041, 16
        %vm2062 = vcmp.lt.s32.totalorder %v2042, 16
        %vm2063 = vcmp.lt.s32.totalorder %v2043, 16
        %vm2064 = vmand %vm2044, %vm2054
        %vm2065 = vmand %vm2045, %vm2055
        %vm2066 = vmand %vm2046, %vm2056
        %vm2067 = vmand %vm2047, %vm2057
        %vm2068 = vmand %vm2048, %vm2058
        %vm2069 = vmand %vm2049, %vm2059
        %vm2070 = vmand %vm2050, %vm2060
        %vm2071 = vmand %vm2051, %vm2061
        %vm2072 = vmand %vm2052, %vm2062
        %vm2073 = vmand %vm2053, %vm2063
        %v2074 = vsel %vm2064, 1, 0
        %v2075 = vsel %vm2065, 1, 0
        %v2076 = vsel %vm2066, 1, 0
        %v2077 = vsel %vm2067, 1, 0
        %v2078 = vsel %vm2068, 1, 0
        %v2079 = vsel %vm2069, 1, 0
        %v2080 = vsel %vm2070, 1, 0
        %v2081 = vsel %vm2071, 1, 0
        %v2082 = vsel %vm2072, 1, 0
        %v2083 = vsel %vm2073, 1, 0
        %vm2084 = vcmp.eq.s32.totalorder %v2074, 1
        %vm2085 = vcmp.eq.s32.totalorder %v2075, 1
        %vm2086 = vcmp.eq.s32.totalorder %v2076, 1
        %vm2087 = vcmp.eq.s32.totalorder %v2077, 1
        %vm2088 = vcmp.eq.s32.totalorder %v2078, 1
        %vm2089 = vcmp.eq.s32.totalorder %v2079, 1
        %vm2090 = vcmp.eq.s32.totalorder %v2080, 1
        %vm2091 = vcmp.eq.s32.totalorder %v2081, 1
        %vm2092 = vcmp.eq.s32.totalorder %v2082, 1
        %vm2093 = vcmp.eq.s32.totalorder %v2083, 1
        %v2094 = vsel %vm2084, %v2012, 0.0
        %v2095 = vsel %vm2084, %v2013, 0.0
        %v2096 = vsel %vm2085, %v2014, 0.0
        %v2097 = vsel %vm2085, %v2015, 0.0
        %v2098 = vsel %vm2086, %v2016, 0.0
        %v2099 = vsel %vm2086, %v2017, 0.0
        %v2100 = vsel %vm2087, %v2018, 0.0
        %v2101 = vsel %vm2087, %v2019, 0.0
        %v2102 = vsel %vm2088, %v2020, 0.0
        %v2103 = vsel %vm2088, %v2021, 0.0
        %v2104 = vsel %vm2089, %v2022, 0.0
        %v2105 = vsel %vm2089, %v2023, 0.0
        %v2106 = vsel %vm2090, %v2024, 0.0
        %v2107 = vsel %vm2090, %v2025, 0.0
        %v2108 = vsel %vm2091, %v2026, 0.0
        %v2109 = vsel %vm2091, %v2027, 0.0
        %v2110 = vsel %vm2092, %v2028, 0.0
        %v2111 = vsel %vm2092, %v2029, 0.0
        %v2112 = vsel %vm2093, %v2030, 0.0
        %v2113 = vsel %vm2093, %v2031, 0.0
        %2114 = vst [vmem:[#allocation3] sm:$0x1] 0.0
        %2115 = vst [vmem:[#allocation3 + $0x18] sm:$0x1] 0.0
        %2116 = vst [vmem:[#allocation3 + $0x30] sm:$0x1] 0.0
        %2117 = vst [vmem:[#allocation3 + $0x48] sm:$0x1] 0.0
        %2118 = vst [vmem:[#allocation3 + $0x60] sm:$0x1] 0.0
        %2119 = vst [vmem:[#allocation3 + $0x78] sm:$0x1] 0.0
        %2120 = vst [vmem:[#allocation3 + $0x90] sm:$0x1] 0.0
        %2121 = vst [vmem:[#allocation3 + $0xa8] sm:$0x1] 0.0
        %2122 = vst [vmem:[#allocation3 + $0xc0] sm:$0x1] 0.0
        %2123 = vst [vmem:[#allocation3 + $0xd8] sm:$0x1] 0.0
        %2124 = vst [vmem:[#allocation3 + $0x11] sm:$0x1] 0.0
        %2125 = vst [vmem:[#allocation3 + $0x29] sm:$0x1] 0.0
        %2126 = vst [vmem:[#allocation3 + $0x41] sm:$0x1] 0.0
        %2127 = vst [vmem:[#allocation3 + $0x59] sm:$0x1] 0.0
        %2128 = vst [vmem:[#allocation3 + $0x71] sm:$0x1] 0.0
        %2129 = vst [vmem:[#allocation3 + $0x89] sm:$0x1] 0.0
        %2130 = vst [vmem:[#allocation3 + $0xa1] sm:$0x1] 0.0
        %2131 = vst [vmem:[#allocation3 + $0xb9] sm:$0x1] 0.0
        %2132 = vst [vmem:[#allocation3 + $0xd1] sm:$0x1] 0.0
        %2133 = vst [vmem:[#allocation3 + $0xe9] sm:$0x1] 0.0
        %2134 = vst [vmem:[#allocation3 + $0x1] sm:$0xff] %v2094
        %2135 = vst [vmem:[#allocation3 + $0x9] sm:$0xff] %v2095
        %2136 = vst [vmem:[#allocation3 + $0x19] sm:$0xff] %v2096
        %2137 = vst [vmem:[#allocation3 + $0x21] sm:$0xff] %v2097
        %2138 = vst [vmem:[#allocation3 + $0x31] sm:$0xff] %v2098
        %2139 = vst [vmem:[#allocation3 + $0x39] sm:$0xff] %v2099
        %2140 = vst [vmem:[#allocation3 + $0x49] sm:$0xff] %v2100
        %2141 = vst [vmem:[#allocation3 + $0x51] sm:$0xff] %v2101
        %2142 = vst [vmem:[#allocation3 + $0x61] sm:$0xff] %v2102
        %2143 = vst [vmem:[#allocation3 + $0x69] sm:$0xff] %v2103
        %2144 = vst [vmem:[#allocation3 + $0x79] sm:$0xff] %v2104
        %2145 = vst [vmem:[#allocation3 + $0x81] sm:$0xff] %v2105
        %2146 = vst [vmem:[#allocation3 + $0x91] sm:$0xff] %v2106
        %2147 = vst [vmem:[#allocation3 + $0x99] sm:$0xff] %v2107
        %2148 = vst [vmem:[#allocation3 + $0xa9] sm:$0xff] %v2108
        %2149 = vst [vmem:[#allocation3 + $0xb1] sm:$0xff] %v2109
        %2150 = vst [vmem:[#allocation3 + $0xc1] sm:$0xff] %v2110
        %2151 = vst [vmem:[#allocation3 + $0xc9] sm:$0xff] %v2111
        %2152 = vst [vmem:[#allocation3 + $0xd9] sm:$0xff] %v2112
        %2153 = vst [vmem:[#allocation3 + $0xe1] sm:$0xff] %v2113
        %v2154 = vld [vmem:[#allocation3] sm:$0xff]
        %v2155 = vld [vmem:[#allocation3 + $0x8] sm:$0xff]
        %v2156 = vld [vmem:[#allocation3 + $0x18] sm:$0xff]
        %v2157 = vld [vmem:[#allocation3 + $0x20] sm:$0xff]
        %v2158 = vld [vmem:[#allocation3 + $0x30] sm:$0xff]
        %v2159 = vld [vmem:[#allocation3 + $0x38] sm:$0xff]
        %v2160 = vld [vmem:[#allocation3 + $0x48] sm:$0xff]
        %v2161 = vld [vmem:[#allocation3 + $0x50] sm:$0xff]
        %v2162 = vld [vmem:[#allocation3 + $0x60] sm:$0xff]
        %v2163 = vld [vmem:[#allocation3 + $0x68] sm:$0xff]
        %v2164 = vld [vmem:[#allocation3 + $0x78] sm:$0xff]
        %v2165 = vld [vmem:[#allocation3 + $0x80] sm:$0xff]
        %v2166 = vld [vmem:[#allocation3 + $0x90] sm:$0xff]
        %v2167 = vld [vmem:[#allocation3 + $0x98] sm:$0xff]
        %v2168 = vld [vmem:[#allocation3 + $0xa8] sm:$0xff]
        %v2169 = vld [vmem:[#allocation3 + $0xb0] sm:$0xff]
        %v2170 = vld [vmem:[#allocation3 + $0xc0] sm:$0xff]
        %v2171 = vld [vmem:[#allocation3 + $0xc8] sm:$0xff]
        %v2172 = vld [vmem:[#allocation3 + $0xd8] sm:$0xff]
        %v2173 = vld [vmem:[#allocation3 + $0xe0] sm:$0xff]
        %v2174 = vpack.c.bf16 %v2155, %v2154
        %v2175 = vpack.c.bf16 %v2157, %v2156
        %v2176 = vpack.c.bf16 %v2159, %v2158
        %v2177 = vpack.c.bf16 %v2161, %v2160
        %v2178 = vpack.c.bf16 %v2163, %v2162
        %v2179 = vpack.c.bf16 %v2165, %v2164
        %v2180 = vpack.c.bf16 %v2167, %v2166
        %v2181 = vpack.c.bf16 %v2169, %v2168
        %v2182 = vpack.c.bf16 %v2171, %v2170
        %v2183 = vpack.c.bf16 %v2173, %v2172
        %2184 = vst [vmem:[#allocation4] sm:$0xff] %v2174
        %2185 = vst [vmem:[#allocation4 + $0x18] sm:$0xff] %v2175
        %2186 = vst [vmem:[#allocation4 + $0x30] sm:$0xff] %v2176
        %2187 = vst [vmem:[#allocation4 + $0x48] sm:$0xff] %v2177
        %2188 = vst [vmem:[#allocation4 + $0x60] sm:$0xff] %v2178
        %2189 = vst [vmem:[#allocation4 + $0x78] sm:$0xff] %v2179
        %2190 = vst [vmem:[#allocation4 + $0x90] sm:$0xff] %v2180
        %2191 = vst [vmem:[#allocation4 + $0xa8] sm:$0xff] %v2181
        %2192 = vst [vmem:[#allocation4 + $0xc0] sm:$0xff] %v2182
        %2193 = vst [vmem:[#allocation4 + $0xd8] sm:$0xff] %v2183
        %v2194 = vld [vmem:[#allocation3 + $0x1] sm:$0xff]
        %v2195 = vld [vmem:[#allocation3 + $0x9] sm:$0xff]
        %v2196 = vld [vmem:[#allocation3 + $0x19] sm:$0xff]
        %v2197 = vld [vmem:[#allocation3 + $0x21] sm:$0xff]
        %v2198 = vld [vmem:[#allocation3 + $0x31] sm:$0xff]
        %v2199 = vld [vmem:[#allocation3 + $0x39] sm:$0xff]
        %v2200 = vld [vmem:[#allocation3 + $0x49] sm:$0xff]
        %v2201 = vld [vmem:[#allocation3 + $0x51] sm:$0xff]
        %v2202 = vld [vmem:[#allocation3 + $0x61] sm:$0xff]
        %v2203 = vld [vmem:[#allocation3 + $0x69] sm:$0xff]
        %v2204 = vld [vmem:[#allocation3 + $0x79] sm:$0xff]
        %v2205 = vld [vmem:[#allocation3 + $0x81] sm:$0xff]
        %v2206 = vld [vmem:[#allocation3 + $0x91] sm:$0xff]
        %v2207 = vld [vmem:[#allocation3 + $0x99] sm:$0xff]
        %v2208 = vld [vmem:[#allocation3 + $0xa9] sm:$0xff]
        %v2209 = vld [vmem:[#allocation3 + $0xb1] sm:$0xff]
        %v2210 = vld [vmem:[#allocation3 + $0xc1] sm:$0xff]
        %v2211 = vld [vmem:[#allocation3 + $0xc9] sm:$0xff]
        %v2212 = vld [vmem:[#allocation3 + $0xd9] sm:$0xff]
        %v2213 = vld [vmem:[#allocation3 + $0xe1] sm:$0xff]
        %v2214 = vpack.c.bf16 %v2195, %v2194
        %v2215 = vpack.c.bf16 %v2197, %v2196
        %v2216 = vpack.c.bf16 %v2199, %v2198
        %v2217 = vpack.c.bf16 %v2201, %v2200
        %v2218 = vpack.c.bf16 %v2203, %v2202
        %v2219 = vpack.c.bf16 %v2205, %v2204
        %v2220 = vpack.c.bf16 %v2207, %v2206
        %v2221 = vpack.c.bf16 %v2209, %v2208
        %v2222 = vpack.c.bf16 %v2211, %v2210
        %v2223 = vpack.c.bf16 %v2213, %v2212
        %2224 = vst [vmem:[#allocation4 + $0x8] sm:$0xff] %v2214
        %2225 = vst [vmem:[#allocation4 + $0x20] sm:$0xff] %v2215
        %2226 = vst [vmem:[#allocation4 + $0x38] sm:$0xff] %v2216
        %2227 = vst [vmem:[#allocation4 + $0x50] sm:$0xff] %v2217
        %2228 = vst [vmem:[#allocation4 + $0x68] sm:$0xff] %v2218
        %2229 = vst [vmem:[#allocation4 + $0x80] sm:$0xff] %v2219
        %2230 = vst [vmem:[#allocation4 + $0x98] sm:$0xff] %v2220
        %2231 = vst [vmem:[#allocation4 + $0xb0] sm:$0xff] %v2221
        %2232 = vst [vmem:[#allocation4 + $0xc8] sm:$0xff] %v2222
        %2233 = vst [vmem:[#allocation4 + $0xe0] sm:$0xff] %v2223
        %v2234 = vld [vmem:[#allocation3 + $0x2] sm:$0xff]
        %v2235 = vld [vmem:[#allocation3 + $0xa] sm:$0xff]
        %v2236 = vld [vmem:[#allocation3 + $0x1a] sm:$0xff]
        %v2237 = vld [vmem:[#allocation3 + $0x22] sm:$0xff]
        %v2238 = vld [vmem:[#allocation3 + $0x32] sm:$0xff]
        %v2239 = vld [vmem:[#allocation3 + $0x3a] sm:$0xff]
        %v2240 = vld [vmem:[#allocation3 + $0x4a] sm:$0xff]
        %v2241 = vld [vmem:[#allocation3 + $0x52] sm:$0xff]
        %v2242 = vld [vmem:[#allocation3 + $0x62] sm:$0xff]
        %v2243 = vld [vmem:[#allocation3 + $0x6a] sm:$0xff]
        %v2244 = vld [vmem:[#allocation3 + $0x7a] sm:$0xff]
        %v2245 = vld [vmem:[#allocation3 + $0x82] sm:$0xff]
        %v2246 = vld [vmem:[#allocation3 + $0x92] sm:$0xff]
        %v2247 = vld [vmem:[#allocation3 + $0x9a] sm:$0xff]
        %v2248 = vld [vmem:[#allocation3 + $0xaa] sm:$0xff]
        %v2249 = vld [vmem:[#allocation3 + $0xb2] sm:$0xff]
        %v2250 = vld [vmem:[#allocation3 + $0xc2] sm:$0xff]
        %v2251 = vld [vmem:[#allocation3 + $0xca] sm:$0xff]
        %v2252 = vld [vmem:[#allocation3 + $0xda] sm:$0xff]
        %v2253 = vld [vmem:[#allocation3 + $0xe2] sm:$0xff]
        %v2254 = vpack.c.bf16 %v2235, %v2234
        %v2255 = vpack.c.bf16 %v2237, %v2236
        %v2256 = vpack.c.bf16 %v2239, %v2238
        %v2257 = vpack.c.bf16 %v2241, %v2240
        %v2258 = vpack.c.bf16 %v2243, %v2242
        %v2259 = vpack.c.bf16 %v2245, %v2244
        %v2260 = vpack.c.bf16 %v2247, %v2246
        %v2261 = vpack.c.bf16 %v2249, %v2248
        %v2262 = vpack.c.bf16 %v2251, %v2250
        %v2263 = vpack.c.bf16 %v2253, %v2252
        %2264 = vst [vmem:[#allocation4 + $0x10] sm:$0xff] %v2254
        %2265 = vst [vmem:[#allocation4 + $0x28] sm:$0xff] %v2255
        %2266 = vst [vmem:[#allocation4 + $0x40] sm:$0xff] %v2256
        %2267 = vst [vmem:[#allocation4 + $0x58] sm:$0xff] %v2257
        %2268 = vst [vmem:[#allocation4 + $0x70] sm:$0xff] %v2258
        %2269 = vst [vmem:[#allocation4 + $0x88] sm:$0xff] %v2259
        %2270 = vst [vmem:[#allocation4 + $0xa0] sm:$0xff] %v2260
        %2271 = vst [vmem:[#allocation4 + $0xb8] sm:$0xff] %v2261
        %2272 = vst [vmem:[#allocation4 + $0xd0] sm:$0xff] %v2262
        %2273 = vst [vmem:[#allocation4 + $0xe8] sm:$0xff] %v2263
        %v2274 = vld [vmem:[#allocation4] sm:$0xff]
        %v2275 = vld [vmem:[#allocation4 + $0x8] sm:$0xff]
        %v2276 = vld [vmem:[#allocation4 + $0x10] sm:$0xff]
        %v2277 = vld [vmem:[#allocation4 + $0x18] sm:$0xff]
        %v2278 = vld [vmem:[#allocation4 + $0x20] sm:$0xff]
        %v2279 = vld [vmem:[#allocation4 + $0x28] sm:$0xff]
        %v2280 = vld [vmem:[#allocation4 + $0x30] sm:$0xff]
        %v2281 = vld [vmem:[#allocation4 + $0x38] sm:$0xff]
        %v2282 = vld [vmem:[#allocation4 + $0x40] sm:$0xff]
        %v2283 = vld [vmem:[#allocation4 + $0x48] sm:$0xff]
        %v2284 = vld [vmem:[#allocation4 + $0x50] sm:$0xff]
        %v2285 = vld [vmem:[#allocation4 + $0x58] sm:$0xff]
        %v2286 = vld [vmem:[#allocation4 + $0x60] sm:$0xff]
        %v2287 = vld [vmem:[#allocation4 + $0x68] sm:$0xff]
        %v2288 = vld [vmem:[#allocation4 + $0x70] sm:$0xff]
        %v2289 = vld [vmem:[#allocation4 + $0x78] sm:$0xff]
        %v2290 = vld [vmem:[#allocation4 + $0x80] sm:$0xff]
        %v2291 = vld [vmem:[#allocation4 + $0x88] sm:$0xff]
        %v2292 = vld [vmem:[#allocation4 + $0x90] sm:$0xff]
        %v2293 = vld [vmem:[#allocation4 + $0x98] sm:$0xff]
        %v2294 = vld [vmem:[#allocation4 + $0xa0] sm:$0xff]
        %v2295 = vld [vmem:[#allocation4 + $0xa8] sm:$0xff]
        %v2296 = vld [vmem:[#allocation4 + $0xb0] sm:$0xff]
        %v2297 = vld [vmem:[#allocation4 + $0xb8] sm:$0xff]
        %v2298 = vld [vmem:[%s4] sm:$0xf]
        %v2299 = vld [vmem:[%s4 + $0x4] sm:$0xf]
        %v2300 = vld [vmem:[%s4 + $0x8] sm:$0xf]
        %v2301 = vld [vmem:[%s4 + $0xc] sm:$0xf]
        %v2302 = vld [vmem:[%s4 + $0x10] sm:$0xf]
        %v2303 = vld [vmem:[%s4 + $0x14] sm:$0xf]
        %v2304 = vld [vmem:[%s4 + $0x18] sm:$0xf]
        %v2305 = vld [vmem:[%s4 + $0x1c] sm:$0xf]
        %v2306 = vld [vmem:[%s4 + $0x20] sm:$0xf]
        %v2307 = vld [vmem:[%s4 + $0x24] sm:$0xf]
        %v2308 = vld [vmem:[%s4 + $0x28] sm:$0xf]
        %v2309 = vld [vmem:[%s4 + $0x2c] sm:$0xf]
        %v2310 = vld [vmem:[%s4 + $0x30] sm:$0xf]
        %v2311 = vld [vmem:[%s4 + $0x34] sm:$0xf]
        %v2312 = vld [vmem:[%s4 + $0x38] sm:$0xf]
        %v2313 = vld [vmem:[%s4 + $0x3c] sm:$0xf]
        %v2314 = vld [vmem:[%s4 + $0x40] sm:$0xf]
        %v2315 = vld [vmem:[%s4 + $0x44] sm:$0xf]
        %v2316 = vld [vmem:[%s4 + $0x48] sm:$0xf]
        %v2317 = vld [vmem:[%s4 + $0x4c] sm:$0xf]
        %v2318 = vld [vmem:[%s4 + $0x50] sm:$0xf]
        %v2319 = vld [vmem:[%s4 + $0x54] sm:$0xf]
        %v2320 = vld [vmem:[%s4 + $0x58] sm:$0xf]
        %v2321 = vld [vmem:[%s4 + $0x5c] sm:$0xf]
        %v2322 = vld [vmem:[%s4 + $0x60] sm:$0xf]
        %v2323 = vld [vmem:[%s4 + $0x64] sm:$0xf]
        %v2324 = vld [vmem:[%s4 + $0x68] sm:$0xf]
        %v2325 = vld [vmem:[%s4 + $0x6c] sm:$0xf]
        %v2326 = vld [vmem:[%s4 + $0x70] sm:$0xf]
        %v2327 = vld [vmem:[%s4 + $0x74] sm:$0xf]
        %v2328 = vld [vmem:[%s4 + $0x78] sm:$0xf]
        %v2329 = vld [vmem:[%s4 + $0x7c] sm:$0xf]
        %v2330 = vld [vmem:[%s4 + $0x80] sm:$0xf]
        %v2331 = vld [vmem:[%s4 + $0x84] sm:$0xf]
        %v2332 = vld [vmem:[%s4 + $0x88] sm:$0xf]
        %v2333 = vld [vmem:[%s4 + $0x8c] sm:$0xf]
        %v2334 = vld [vmem:[%s4 + $0x90] sm:$0xf]
        %v2335 = vld [vmem:[%s4 + $0x94] sm:$0xf]
        %v2336 = vld [vmem:[%s4 + $0x98] sm:$0xf]
        %v2337 = vld [vmem:[%s4 + $0x9c] sm:$0xf]
        %v2338 = vld [vmem:[%s4 + $0xa0] sm:$0xf]
        %v2339 = vld [vmem:[%s4 + $0xa4] sm:$0xf]
        %v2340 = vld [vmem:[%s4 + $0xa8] sm:$0xf]
        %v2341 = vld [vmem:[%s4 + $0xac] sm:$0xf]
        %v2342 = vld [vmem:[%s4 + $0xb0] sm:$0xf]
        %v2343 = vld [vmem:[%s4 + $0xb4] sm:$0xf]
        %v2344 = vld [vmem:[%s4 + $0xb8] sm:$0xf]
        %v2345 = vld [vmem:[%s4 + $0xbc] sm:$0xf]
        %v2394 = vunpack.c.l.b16 %v2298
        %v2395 = vunpack.c.l.b16 %v2299
        %v2396 = vunpack.c.l.b16 %v2300
        %v2397 = vunpack.c.l.b16 %v2301
        %v2398 = vunpack.c.l.b16 %v2302
        %v2399 = vunpack.c.l.b16 %v2303
        %v2400 = vunpack.c.l.b16 %v2304
        %v2401 = vunpack.c.l.b16 %v2305
        %v2402 = vunpack.c.l.b16 %v2306
        %v2403 = vunpack.c.l.b16 %v2307
        %v2404 = vunpack.c.l.b16 %v2308
        %v2405 = vunpack.c.l.b16 %v2309
        %v2406 = vunpack.c.l.b16 %v2310
        %v2407 = vunpack.c.l.b16 %v2311
        %v2408 = vunpack.c.l.b16 %v2312
        %v2409 = vunpack.c.l.b16 %v2313
        %v2410 = vunpack.c.l.b16 %v2314
        %v2411 = vunpack.c.l.b16 %v2315
        %v2412 = vunpack.c.l.b16 %v2316
        %v2413 = vunpack.c.l.b16 %v2317
        %v2414 = vunpack.c.l.b16 %v2318
        %v2415 = vunpack.c.l.b16 %v2319
        %v2416 = vunpack.c.l.b16 %v2320
        %v2417 = vunpack.c.l.b16 %v2321
        %v2418 = vunpack.c.l.b16 %v2322
        %v2419 = vunpack.c.l.b16 %v2323
        %v2420 = vunpack.c.l.b16 %v2324
        %v2421 = vunpack.c.l.b16 %v2325
        %v2422 = vunpack.c.l.b16 %v2326
        %v2423 = vunpack.c.l.b16 %v2327
        %v2424 = vunpack.c.l.b16 %v2328
        %v2425 = vunpack.c.l.b16 %v2329
        %v2426 = vunpack.c.l.b16 %v2330
        %v2427 = vunpack.c.l.b16 %v2331
        %v2428 = vunpack.c.l.b16 %v2332
        %v2429 = vunpack.c.l.b16 %v2333
        %v2430 = vunpack.c.l.b16 %v2334
        %v2431 = vunpack.c.l.b16 %v2335
        %v2432 = vunpack.c.l.b16 %v2336
        %v2433 = vunpack.c.l.b16 %v2337
        %v2434 = vunpack.c.l.b16 %v2338
        %v2435 = vunpack.c.l.b16 %v2339
        %v2436 = vunpack.c.l.b16 %v2340
        %v2437 = vunpack.c.l.b16 %v2341
        %v2438 = vunpack.c.l.b16 %v2342
        %v2439 = vunpack.c.l.b16 %v2343
        %v2440 = vunpack.c.l.b16 %v2344
        %v2441 = vunpack.c.l.b16 %v2345
        %v2442 = vpack.c.b16 %v2395, %v2394
        %v2443 = vpack.c.b16 %v2397, %v2396
        %v2444 = vpack.c.b16 %v2399, %v2398
        %v2445 = vpack.c.b16 %v2401, %v2400
        %v2446 = vpack.c.b16 %v2403, %v2402
        %v2447 = vpack.c.b16 %v2405, %v2404
        %v2448 = vpack.c.b16 %v2407, %v2406
        %v2449 = vpack.c.b16 %v2409, %v2408
        %v2450 = vpack.c.b16 %v2411, %v2410
        %v2451 = vpack.c.b16 %v2413, %v2412
        %v2452 = vpack.c.b16 %v2415, %v2414
        %v2453 = vpack.c.b16 %v2417, %v2416
        %v2454 = vpack.c.b16 %v2419, %v2418
        %v2455 = vpack.c.b16 %v2421, %v2420
        %v2456 = vpack.c.b16 %v2423, %v2422
        %v2457 = vpack.c.b16 %v2425, %v2424
        %v2458 = vpack.c.b16 %v2427, %v2426
        %v2459 = vpack.c.b16 %v2429, %v2428
        %v2460 = vpack.c.b16 %v2431, %v2430
        %v2461 = vpack.c.b16 %v2433, %v2432
        %v2462 = vpack.c.b16 %v2435, %v2434
        %v2463 = vpack.c.b16 %v2437, %v2436
        %v2464 = vpack.c.b16 %v2439, %v2438
        %v2465 = vpack.c.b16 %v2441, %v2440
        %2490 = vmatprep.subr.bf16.mxu0 0
        %2491 = vmatpush1.bf16.msra.mxu0 %v2442
        %2492 = vmatprep.subr.bf16.mxu0 0
        %2493 = vmatpush1.bf16.msra.mxu0 %v2443
        %2494 = vmatprep.subr.bf16.mxu0 0
        %2495 = vmatpush1.bf16.msra.mxu0 %v2444
        %2496 = vmatprep.subr.bf16.mxu0 0
        %2497 = vmatpush1.bf16.msra.mxu0 %v2445
        %2498 = vmatprep.subr.bf16.mxu0 0
        %2499 = vmatpush1.bf16.msra.mxu0 %v2446
        %2500 = vmatprep.subr.bf16.mxu0 0
        %2501 = vmatpush1.bf16.msra.mxu0 %v2447
        %2502 = vmatprep.subr.bf16.mxu0 0
        %2503 = vmatpush1.bf16.msra.mxu0 %v2448
        %2504 = vmatprep.subr.bf16.mxu0 0
        %2505 = vmatpush1.bf16.msra.mxu0 %v2449
        %2506 = vmatprep.subr.bf16.mxu0 0
        %2507 = vmatpush1.bf16.msra.mxu0 %v2450
        %2508 = vmatprep.subr.bf16.mxu0 0
        %2509 = vmatpush1.bf16.msra.mxu0 %v2451
        %2510 = vmatprep.subr.bf16.mxu0 0
        %2511 = vmatpush1.bf16.msra.mxu0 %v2452
        %2512 = vmatprep.subr.bf16.mxu0 0
        %2513 = vmatpush1.bf16.msra.mxu0 %v2453
        %2514 = vmatprep.subr.bf16.mxu0 0
        %2515 = vmatpush1.bf16.msra.mxu0 %v2454
        %2516 = vmatprep.subr.bf16.mxu0 0
        %2517 = vmatpush1.bf16.msra.mxu0 %v2455
        %2518 = vmatprep.subr.bf16.mxu0 0
        %2519 = vmatpush1.bf16.msra.mxu0 %v2456
        %2520 = vmatprep.subr.bf16.mxu0 0
        %2521 = vmatpush1.bf16.msra.mxu0 %v2457
        %2522 = vmatprep.mubr.bf16.mxu0 %v2275
        %2523 = vmatmul.mubr.bf16.gmra.mrb[0].mxu0 %v2274
        %v2524 = vpop.f32.mrb[0].mxu0
        %v2525 = vadd.f32 0.0, %v2524
        %v2526 = vpop.f32.mrb[0].mxu0
        %v2527 = vpop.f32.mrb[0].mxu0
        %v2528 = vadd.f32 0.0, %v2527
        %v2529 = vpop.f32.mrb[0].mxu0
        %2530 = vmatprep.mubr.bf16.mxu0 %v2278
        %2531 = vmatmul.mubr.bf16.gmra.mrb[0].mxu0 %v2277
        %v2532 = vpop.f32.mrb[0].mxu0
        %v2533 = vadd.f32 0.0, %v2532
        %v2534 = vpop.f32.mrb[0].mxu0
        %v2535 = vpop.f32.mrb[0].mxu0
        %v2536 = vadd.f32 0.0, %v2535
        %v2537 = vpop.f32.mrb[0].mxu0
        %2538 = vmatprep.mubr.bf16.mxu0 %v2281
        %2539 = vmatmul.mubr.bf16.gmra.mrb[0].mxu0 %v2280
        %v2540 = vpop.f32.mrb[0].mxu0
        %v2541 = vadd.f32 0.0, %v2540
        %v2542 = vpop.f32.mrb[0].mxu0
        %v2543 = vpop.f32.mrb[0].mxu0
        %v2544 = vadd.f32 0.0, %v2543
        %v2545 = vpop.f32.mrb[0].mxu0
        %2546 = vmatprep.mubr.bf16.mxu0 %v2284
        %2547 = vmatmul.mubr.bf16.gmra.mrb[0].mxu0 %v2283
        %v2548 = vpop.f32.mrb[0].mxu0
        %v2549 = vadd.f32 0.0, %v2548
        %v2550 = vpop.f32.mrb[0].mxu0
        %v2551 = vpop.f32.mrb[0].mxu0
        %v2552 = vadd.f32 0.0, %v2551
        %v2553 = vpop.f32.mrb[0].mxu0
        %2554 = vmatprep.mubr.bf16.mxu0 %v2287
        %2555 = vmatmul.mubr.bf16.gmra.mrb[0].mxu0 %v2286
        %v2556 = vpop.f32.mrb[0].mxu0
        %v2557 = vadd.f32 0.0, %v2556
        %v2558 = vpop.f32.mrb[0].mxu0
        %v2559 = vpop.f32.mrb[0].mxu0
        %v2560 = vadd.f32 0.0, %v2559
        %v2561 = vpop.f32.mrb[0].mxu0
        %2562 = vmatprep.mubr.bf16.mxu0 %v2290
        %2563 = vmatmul.mubr.bf16.gmra.mrb[0].mxu0 %v2289
        %v2564 = vpop.f32.mrb[0].mxu0
        %v2565 = vadd.f32 0.0, %v2564
        %v2566 = vpop.f32.mrb[0].mxu0
        %v2567 = vpop.f32.mrb[0].mxu0
        %v2568 = vadd.f32 0.0, %v2567
        %v2569 = vpop.f32.mrb[0].mxu0
        %2570 = vmatprep.mubr.bf16.mxu0 %v2293
        %2571 = vmatmul.mubr.bf16.gmra.mrb[0].mxu0 %v2292
        %v2572 = vpop.f32.mrb[0].mxu0
        %v2573 = vadd.f32 0.0, %v2572
        %v2574 = vpop.f32.mrb[0].mxu0
        %v2575 = vpop.f32.mrb[0].mxu0
        %v2576 = vadd.f32 0.0, %v2575
        %v2577 = vpop.f32.mrb[0].mxu0
        %2578 = vmatprep.mubr.bf16.mxu0 %v2296
        %2579 = vmatmul.mubr.bf16.gmra.mrb[0].mxu0 %v2295
        %v2580 = vpop.f32.mrb[0].mxu0
        %v2581 = vadd.f32 0.0, %v2580
        %v2582 = vpop.f32.mrb[0].mxu0
        %v2583 = vpop.f32.mrb[0].mxu0
        %v2584 = vadd.f32 0.0, %v2583
        %v2585 = vpop.f32.mrb[0].mxu0
        %2586 = vdwg.mxu0
        %2587 = vmatprep.subr.bf16.mxu0 0
        %2588 = vmatpush1.bf16.msra.mxu0 %v2458
        %2589 = vmatprep.subr.bf16.mxu0 0
        %2590 = vmatpush1.bf16.msra.mxu0 %v2459
        %2591 = vmatprep.subr.bf16.mxu0 0
        %2592 = vmatpush1.bf16.msra.mxu0 %v2460
        %2593 = vmatprep.subr.bf16.mxu0 0
        %2594 = vmatpush1.bf16.msra.mxu0 %v2461
        %2595 = vmatprep.subr.bf16.mxu0 0
        %2596 = vmatpush1.bf16.msra.mxu0 %v2462
        %2597 = vmatprep.subr.bf16.mxu0 0
        %2598 = vmatpush1.bf16.msra.mxu0 %v2463
        %2599 = vmatprep.subr.bf16.mxu0 0
        %2600 = vmatpush1.bf16.msra.mxu0 %v2464
        %2601 = vmatprep.subr.bf16.mxu0 0
        %2602 = vmatpush1.bf16.msra.mxu0 %v2465
        %2603 = vmatprep.subr.bf16.mxu0 0
        %2604 = vmatpush1.bf16.msra.mxu0 0
        %2605 = vmatprep.subr.bf16.mxu0 0
        %2606 = vmatpush1.bf16.msra.mxu0 0
        %2607 = vmatprep.subr.bf16.mxu0 0
        %2608 = vmatpush1.bf16.msra.mxu0 0
        %2609 = vmatprep.subr.bf16.mxu0 0
        %2610 = vmatpush1.bf16.msra.mxu0 0
        %2611 = vmatprep.subr.bf16.mxu0 0
        %2612 = vmatpush1.bf16.msra.mxu0 0
        %2613 = vmatprep.subr.bf16.mxu0 0
        %2614 = vmatpush1.bf16.msra.mxu0 0
        %2615 = vmatprep.subr.bf16.mxu0 0
        %2616 = vmatpush1.bf16.msra.mxu0 0
        %2617 = vmatprep.subr.bf16.mxu0 0
        %2618 = vmatpush1.bf16.msra.mxu0 0
        %2619 = vmatprep.mubr.bf16.mxu0 0
        %2620 = vmatmul.mubr.bf16.gmra.mrb[0].mxu0 %v2276
        %v2621 = vpop.f32.mrb[0].mxu0
        %v2622 = vadd.f32 %v2525, %v2621
        %v2623 = vpop.f32.mrb[0].mxu0
        %v2624 = vpop.f32.mrb[0].mxu0
        %v2625 = vadd.f32 %v2528, %v2624
        %v2626 = vpop.f32.mrb[0].mxu0
        %2627 = vmatprep.mubr.bf16.mxu0 0
        %2628 = vmatmul.mubr.bf16.gmra.mrb[0].mxu0 %v2279
        %v2629 = vpop.f32.mrb[0].mxu0
        %v2630 = vadd.f32 %v2533, %v2629
        %v2631 = vpop.f32.mrb[0].mxu0
        %v2632 = vpop.f32.mrb[0].mxu0
        %v2633 = vadd.f32 %v2536, %v2632
        %v2634 = vpop.f32.mrb[0].mxu0
        %2635 = vmatprep.mubr.bf16.mxu0 0
        %2636 = vmatmul.mubr.bf16.gmra.mrb[0].mxu0 %v2282
        %v2637 = vpop.f32.mrb[0].mxu0
        %v2638 = vadd.f32 %v2541, %v2637
        %v2639 = vpop.f32.mrb[0].mxu0
        %v2640 = vpop.f32.mrb[0].mxu0
        %v2641 = vadd.f32 %v2544, %v2640
        %v2642 = vpop.f32.mrb[0].mxu0
        %2643 = vmatprep.mubr.bf16.mxu0 0
        %2644 = vmatmul.mubr.bf16.gmra.mrb[0].mxu0 %v2285
        %v2645 = vpop.f32.mrb[0].mxu0
        %v2646 = vadd.f32 %v2549, %v2645
        %v2647 = vpop.f32.mrb[0].mxu0
        %v2648 = vpop.f32.mrb[0].mxu0
        %v2649 = vadd.f32 %v2552, %v2648
        %v2650 = vpop.f32.mrb[0].mxu0
        %2651 = vmatprep.mubr.bf16.mxu0 0
        %2652 = vmatmul.mubr.bf16.gmra.mrb[0].mxu0 %v2288
        %v2653 = vpop.f32.mrb[0].mxu0
        %v2654 = vadd.f32 %v2557, %v2653
        %v2655 = vpop.f32.mrb[0].mxu0
        %v2656 = vpop.f32.mrb[0].mxu0
        %v2657 = vadd.f32 %v2560, %v2656
        %v2658 = vpop.f32.mrb[0].mxu0
        %2659 = vmatprep.mubr.bf16.mxu0 0
        %2660 = vmatmul.mubr.bf16.gmra.mrb[0].mxu0 %v2291
        %v2661 = vpop.f32.mrb[0].mxu0
        %v2662 = vadd.f32 %v2565, %v2661
        %v2663 = vpop.f32.mrb[0].mxu0
        %v2664 = vpop.f32.mrb[0].mxu0
        %v2665 = vadd.f32 %v2568, %v2664
        %v2666 = vpop.f32.mrb[0].mxu0
        %2667 = vmatprep.mubr.bf16.mxu0 0
        %2668 = vmatmul.mubr.bf16.gmra.mrb[0].mxu0 %v2294
        %v2669 = vpop.f32.mrb[0].mxu0
        %v2670 = vadd.f32 %v2573, %v2669
        %v2671 = vpop.f32.mrb[0].mxu0
        %v2672 = vpop.f32.mrb[0].mxu0
        %v2673 = vadd.f32 %v2576, %v2672
        %v2674 = vpop.f32.mrb[0].mxu0
        %2675 = vmatprep.mubr.bf16.mxu0 0
        %2676 = vmatmul.mubr.bf16.gmra.mrb[0].mxu0 %v2297
        %v2677 = vpop.f32.mrb[0].mxu0
        %v2678 = vadd.f32 %v2581, %v2677
        %v2679 = vpop.f32.mrb[0].mxu0
        %v2680 = vpop.f32.mrb[0].mxu0
        %v2681 = vadd.f32 %v2584, %v2680
        %v2682 = vpop.f32.mrb[0].mxu0
        %2683 = vdwg.mxu0
        %2684 = vst [vmem:[%s295] sm:$0xff] %v2622
        %2685 = vst [vmem:[%s295 + $0x8] sm:$0xff] %v2625
        %2686 = vst [vmem:[%s295 + $0x10] sm:$0xff] %v2630
        %2687 = vst [vmem:[%s295 + $0x18] sm:$0xff] %v2633
        %2688 = vst [vmem:[%s295 + $0x20] sm:$0xff] %v2638
        %2689 = vst [vmem:[%s295 + $0x28] sm:$0xff] %v2641
        %2690 = vst [vmem:[%s295 + $0x30] sm:$0xff] %v2646
        %2691 = vst [vmem:[%s295 + $0x38] sm:$0xff] %v2649
        %2692 = vst [vmem:[%s295 + $0x40] sm:$0xff] %v2654
        %2693 = vst [vmem:[%s295 + $0x48] sm:$0xff] %v2657
        %2694 = vst [vmem:[%s295 + $0x50] sm:$0xff] %v2662
        %2695 = vst [vmem:[%s295 + $0x58] sm:$0xff] %v2665
        %2696 = vst [vmem:[%s295 + $0x60] sm:$0xff] %v2670
        %2697 = vst [vmem:[%s295 + $0x68] sm:$0xff] %v2673
        %2698 = vst [vmem:[%s295 + $0x70] sm:$0xff] %v2678
        %2699 = vst [vmem:[%s295 + $0x78] sm:$0xff] %v2681
        %s2700 = scalar_lea.vmem [#allocation4], 24
        %v2701 = vld [vmem:[%s2700] sm:$0xff]
        %v2702 = vld [vmem:[%s2700 + $0x8] sm:$0xff]
        %v2703 = vld [vmem:[%s2700 + $0x10] sm:$0xff]
        %v2704 = vld [vmem:[%s2700 + $0x18] sm:$0xff]
        %v2705 = vld [vmem:[%s2700 + $0x20] sm:$0xff]
        %v2706 = vld [vmem:[%s2700 + $0x28] sm:$0xff]
        %v2707 = vld [vmem:[%s2700 + $0x30] sm:$0xff]
        %v2708 = vld [vmem:[%s2700 + $0x38] sm:$0xff]
        %v2709 = vld [vmem:[%s2700 + $0x40] sm:$0xff]
        %v2710 = vld [vmem:[%s2700 + $0x48] sm:$0xff]
        %v2711 = vld [vmem:[%s2700 + $0x50] sm:$0xff]
        %v2712 = vld [vmem:[%s2700 + $0x58] sm:$0xff]
        %v2713 = vld [vmem:[%s2700 + $0x60] sm:$0xff]
        %v2714 = vld [vmem:[%s2700 + $0x68] sm:$0xff]
        %v2715 = vld [vmem:[%s2700 + $0x70] sm:$0xff]
        %v2716 = vld [vmem:[%s2700 + $0x78] sm:$0xff]
        %v2717 = vld [vmem:[%s2700 + $0x80] sm:$0xff]
        %v2718 = vld [vmem:[%s2700 + $0x88] sm:$0xff]
        %v2719 = vld [vmem:[%s2700 + $0x90] sm:$0xff]
        %v2720 = vld [vmem:[%s2700 + $0x98] sm:$0xff]
        %v2721 = vld [vmem:[%s2700 + $0xa0] sm:$0xff]
        %v2722 = vld [vmem:[%s2700 + $0xa8] sm:$0xff]
        %v2723 = vld [vmem:[%s2700 + $0xb0] sm:$0xff]
        %v2724 = vld [vmem:[%s2700 + $0xb8] sm:$0xff]
        %s2725 = scalar_lea.vmem %s4, 192
        %v2726 = vld [vmem:[%s2725] sm:$0xf]
        %v2727 = vld [vmem:[%s2725 + $0x4] sm:$0xf]
        %v2728 = vld [vmem:[%s2725 + $0x8] sm:$0xf]
        %v2729 = vld [vmem:[%s2725 + $0xc] sm:$0xf]
        %v2730 = vld [vmem:[%s2725 + $0x10] sm:$0xf]
        %v2731 = vld [vmem:[%s2725 + $0x14] sm:$0xf]
        %v2732 = vld [vmem:[%s2725 + $0x18] sm:$0xf]
        %v2733 = vld [vmem:[%s2725 + $0x1c] sm:$0xf]
        %v2734 = vld [vmem:[%s2725 + $0x20] sm:$0xf]
        %v2735 = vld [vmem:[%s2725 + $0x24] sm:$0xf]
        %v2736 = vld [vmem:[%s2725 + $0x28] sm:$0xf]
        %v2737 = vld [vmem:[%s2725 + $0x2c] sm:$0xf]
        %v2738 = vld [vmem:[%s2725 + $0x30] sm:$0xf]
        %v2739 = vld [vmem:[%s2725 + $0x34] sm:$0xf]
        %v2740 = vld [vmem:[%s2725 + $0x38] sm:$0xf]
        %v2741 = vld [vmem:[%s2725 + $0x3c] sm:$0xf]
        %v2742 = vld [vmem:[%s2725 + $0x40] sm:$0xf]
        %v2743 = vld [vmem:[%s2725 + $0x44] sm:$0xf]
        %v2744 = vld [vmem:[%s2725 + $0x48] sm:$0xf]
        %v2745 = vld [vmem:[%s2725 + $0x4c] sm:$0xf]
        %v2746 = vld [vmem:[%s2725 + $0x50] sm:$0xf]
        %v2747 = vld [vmem:[%s2725 + $0x54] sm:$0xf]
        %v2748 = vld [vmem:[%s2725 + $0x58] sm:$0xf]
        %v2749 = vld [vmem:[%s2725 + $0x5c] sm:$0xf]
        %v2750 = vld [vmem:[%s2725 + $0x60] sm:$0xf]
        %v2751 = vld [vmem:[%s2725 + $0x64] sm:$0xf]
        %v2752 = vld [vmem:[%s2725 + $0x68] sm:$0xf]
        %v2753 = vld [vmem:[%s2725 + $0x6c] sm:$0xf]
        %v2754 = vld [vmem:[%s2725 + $0x70] sm:$0xf]
        %v2755 = vld [vmem:[%s2725 + $0x74] sm:$0xf]
        %v2756 = vld [vmem:[%s2725 + $0x78] sm:$0xf]
        %v2757 = vld [vmem:[%s2725 + $0x7c] sm:$0xf]
        %v2758 = vld [vmem:[%s2725 + $0x80] sm:$0xf]
        %v2759 = vld [vmem:[%s2725 + $0x84] sm:$0xf]
        %v2760 = vld [vmem:[%s2725 + $0x88] sm:$0xf]
        %v2761 = vld [vmem:[%s2725 + $0x8c] sm:$0xf]
        %v2762 = vld [vmem:[%s2725 + $0x90] sm:$0xf]
        %v2763 = vld [vmem:[%s2725 + $0x94] sm:$0xf]
        %v2764 = vld [vmem:[%s2725 + $0x98] sm:$0xf]
        %v2765 = vld [vmem:[%s2725 + $0x9c] sm:$0xf]
        %v2766 = vld [vmem:[%s2725 + $0xa0] sm:$0xf]
        %v2767 = vld [vmem:[%s2725 + $0xa4] sm:$0xf]
        %v2768 = vld [vmem:[%s2725 + $0xa8] sm:$0xf]
        %v2769 = vld [vmem:[%s2725 + $0xac] sm:$0xf]
        %v2770 = vld [vmem:[%s2725 + $0xb0] sm:$0xf]
        %v2771 = vld [vmem:[%s2725 + $0xb4] sm:$0xf]
        %v2772 = vld [vmem:[%s2725 + $0xb8] sm:$0xf]
        %v2773 = vld [vmem:[%s2725 + $0xbc] sm:$0xf]
        %v2822 = vunpack.c.l.b16 %v2726
        %v2823 = vunpack.c.l.b16 %v2727
        %v2824 = vunpack.c.l.b16 %v2728
        %v2825 = vunpack.c.l.b16 %v2729
        %v2826 = vunpack.c.l.b16 %v2730
        %v2827 = vunpack.c.l.b16 %v2731
        %v2828 = vunpack.c.l.b16 %v2732
        %v2829 = vunpack.c.l.b16 %v2733
        %v2830 = vunpack.c.l.b16 %v2734
        %v2831 = vunpack.c.l.b16 %v2735
        %v2832 = vunpack.c.l.b16 %v2736
        %v2833 = vunpack.c.l.b16 %v2737
        %v2834 = vunpack.c.l.b16 %v2738
        %v2835 = vunpack.c.l.b16 %v2739
        %v2836 = vunpack.c.l.b16 %v2740
        %v2837 = vunpack.c.l.b16 %v2741
        %v2838 = vunpack.c.l.b16 %v2742
        %v2839 = vunpack.c.l.b16 %v2743
        %v2840 = vunpack.c.l.b16 %v2744
        %v2841 = vunpack.c.l.b16 %v2745
        %v2842 = vunpack.c.l.b16 %v2746
        %v2843 = vunpack.c.l.b16 %v2747
        %v2844 = vunpack.c.l.b16 %v2748
        %v2845 = vunpack.c.l.b16 %v2749
        %v2846 = vunpack.c.l.b16 %v2750
        %v2847 = vunpack.c.l.b16 %v2751
        %v2848 = vunpack.c.l.b16 %v2752
        %v2849 = vunpack.c.l.b16 %v2753
        %v2850 = vunpack.c.l.b16 %v2754
        %v2851 = vunpack.c.l.b16 %v2755
        %v2852 = vunpack.c.l.b16 %v2756
        %v2853 = vunpack.c.l.b16 %v2757
        %v2854 = vunpack.c.l.b16 %v2758
        %v2855 = vunpack.c.l.b16 %v2759
        %v2856 = vunpack.c.l.b16 %v2760
        %v2857 = vunpack.c.l.b16 %v2761
        %v2858 = vunpack.c.l.b16 %v2762
        %v2859 = vunpack.c.l.b16 %v2763
        %v2860 = vunpack.c.l.b16 %v2764
        %v2861 = vunpack.c.l.b16 %v2765
        %v2862 = vunpack.c.l.b16 %v2766
        %v2863 = vunpack.c.l.b16 %v2767
        %v2864 = vunpack.c.l.b16 %v2768
        %v2865 = vunpack.c.l.b16 %v2769
        %v2866 = vunpack.c.l.b16 %v2770
        %v2867 = vunpack.c.l.b16 %v2771
        %v2868 = vunpack.c.l.b16 %v2772
        %v2869 = vunpack.c.l.b16 %v2773
        %v2870 = vpack.c.b16 %v2823, %v2822
        %v2871 = vpack.c.b16 %v2825, %v2824
        %v2872 = vpack.c.b16 %v2827, %v2826
        %v2873 = vpack.c.b16 %v2829, %v2828
        %v2874 = vpack.c.b16 %v2831, %v2830
        %v2875 = vpack.c.b16 %v2833, %v2832
        %v2876 = vpack.c.b16 %v2835, %v2834
        %v2877 = vpack.c.b16 %v2837, %v2836
        %v2878 = vpack.c.b16 %v2839, %v2838
        %v2879 = vpack.c.b16 %v2841, %v2840
        %v2880 = vpack.c.b16 %v2843, %v2842
        %v2881 = vpack.c.b16 %v2845, %v2844
        %v2882 = vpack.c.b16 %v2847, %v2846
        %v2883 = vpack.c.b16 %v2849, %v2848
        %v2884 = vpack.c.b16 %v2851, %v2850
        %v2885 = vpack.c.b16 %v2853, %v2852
        %v2886 = vpack.c.b16 %v2855, %v2854
        %v2887 = vpack.c.b16 %v2857, %v2856
        %v2888 = vpack.c.b16 %v2859, %v2858
        %v2889 = vpack.c.b16 %v2861, %v2860
        %v2890 = vpack.c.b16 %v2863, %v2862
        %v2891 = vpack.c.b16 %v2865, %v2864
        %v2892 = vpack.c.b16 %v2867, %v2866
        %v2893 = vpack.c.b16 %v2869, %v2868
        %2918 = vmatprep.subr.bf16.mxu0 0
        %2919 = vmatpush1.bf16.msra.mxu0 %v2870
        %2920 = vmatprep.subr.bf16.mxu0 0
        %2921 = vmatpush1.bf16.msra.mxu0 %v2871
        %2922 = vmatprep.subr.bf16.mxu0 0
        %2923 = vmatpush1.bf16.msra.mxu0 %v2872
        %2924 = vmatprep.subr.bf16.mxu0 0
        %2925 = vmatpush1.bf16.msra.mxu0 %v2873
        %2926 = vmatprep.subr.bf16.mxu0 0
        %2927 = vmatpush1.bf16.msra.mxu0 %v2874
        %2928 = vmatprep.subr.bf16.mxu0 0
        %2929 = vmatpush1.bf16.msra.mxu0 %v2875
        %2930 = vmatprep.subr.bf16.mxu0 0
        %2931 = vmatpush1.bf16.msra.mxu0 %v2876
        %2932 = vmatprep.subr.bf16.mxu0 0
        %2933 = vmatpush1.bf16.msra.mxu0 %v2877
        %2934 = vmatprep.subr.bf16.mxu0 0
        %2935 = vmatpush1.bf16.msra.mxu0 %v2878
        %2936 = vmatprep.subr.bf16.mxu0 0
        %2937 = vmatpush1.bf16.msra.mxu0 %v2879
        %2938 = vmatprep.subr.bf16.mxu0 0
        %2939 = vmatpush1.bf16.msra.mxu0 %v2880
        %2940 = vmatprep.subr.bf16.mxu0 0
        %2941 = vmatpush1.bf16.msra.mxu0 %v2881
        %2942 = vmatprep.subr.bf16.mxu0 0
        %2943 = vmatpush1.bf16.msra.mxu0 %v2882
        %2944 = vmatprep.subr.bf16.mxu0 0
        %2945 = vmatpush1.bf16.msra.mxu0 %v2883
        %2946 = vmatprep.subr.bf16.mxu0 0
        %2947 = vmatpush1.bf16.msra.mxu0 %v2884
        %2948 = vmatprep.subr.bf16.mxu0 0
        %2949 = vmatpush1.bf16.msra.mxu0 %v2885
        %2950 = vmatprep.mubr.bf16.mxu0 %v2702
        %2951 = vmatmul.mubr.bf16.gmra.mrb[0].mxu0 %v2701
        %v2952 = vpop.f32.mrb[0].mxu0
        %v2953 = vadd.f32 0.0, %v2952
        %v2954 = vpop.f32.mrb[0].mxu0
        %v2955 = vpop.f32.mrb[0].mxu0
        %v2956 = vadd.f32 0.0, %v2955
        %v2957 = vpop.f32.mrb[0].mxu0
        %2958 = vmatprep.mubr.bf16.mxu0 %v2705
        %2959 = vmatmul.mubr.bf16.gmra.mrb[0].mxu0 %v2704
        %v2960 = vpop.f32.mrb[0].mxu0
        %v2961 = vadd.f32 0.0, %v2960
        %v2962 = vpop.f32.mrb[0].mxu0
        %v2963 = vpop.f32.mrb[0].mxu0
        %v2964 = vadd.f32 0.0, %v2963
        %v2965 = vpop.f32.mrb[0].mxu0
        %2966 = vmatprep.mubr.bf16.mxu0 %v2708
        %2967 = vmatmul.mubr.bf16.gmra.mrb[0].mxu0 %v2707
        %v2968 = vpop.f32.mrb[0].mxu0
        %v2969 = vadd.f32 0.0, %v2968
        %v2970 = vpop.f32.mrb[0].mxu0
        %v2971 = vpop.f32.mrb[0].mxu0
        %v2972 = vadd.f32 0.0, %v2971
        %v2973 = vpop.f32.mrb[0].mxu0
        %2974 = vmatprep.mubr.bf16.mxu0 %v2711
        %2975 = vmatmul.mubr.bf16.gmra.mrb[0].mxu0 %v2710
        %v2976 = vpop.f32.mrb[0].mxu0
        %v2977 = vadd.f32 0.0, %v2976
        %v2978 = vpop.f32.mrb[0].mxu0
        %v2979 = vpop.f32.mrb[0].mxu0
        %v2980 = vadd.f32 0.0, %v2979
        %v2981 = vpop.f32.mrb[0].mxu0
        %2982 = vmatprep.mubr.bf16.mxu0 %v2714
        %2983 = vmatmul.mubr.bf16.gmra.mrb[0].mxu0 %v2713
        %v2984 = vpop.f32.mrb[0].mxu0
        %v2985 = vadd.f32 0.0, %v2984
        %v2986 = vpop.f32.mrb[0].mxu0
        %v2987 = vpop.f32.mrb[0].mxu0
        %v2988 = vadd.f32 0.0, %v2987
        %v2989 = vpop.f32.mrb[0].mxu0
        %2990 = vmatprep.mubr.bf16.mxu0 %v2717
        %2991 = vmatmul.mubr.bf16.gmra.mrb[0].mxu0 %v2716
        %v2992 = vpop.f32.mrb[0].mxu0
        %v2993 = vadd.f32 0.0, %v2992
        %v2994 = vpop.f32.mrb[0].mxu0
        %v2995 = vpop.f32.mrb[0].mxu0
        %v2996 = vadd.f32 0.0, %v2995
        %v2997 = vpop.f32.mrb[0].mxu0
        %2998 = vmatprep.mubr.bf16.mxu0 %v2720
        %2999 = vmatmul.mubr.bf16.gmra.mrb[0].mxu0 %v2719
        %v3000 = vpop.f32.mrb[0].mxu0
        %v3001 = vadd.f32 0.0, %v3000
        %v3002 = vpop.f32.mrb[0].mxu0
        %v3003 = vpop.f32.mrb[0].mxu0
        %v3004 = vadd.f32 0.0, %v3003
        %v3005 = vpop.f32.mrb[0].mxu0
        %3006 = vmatprep.mubr.bf16.mxu0 %v2723
        %3007 = vmatmul.mubr.bf16.gmra.mrb[0].mxu0 %v2722
        %v3008 = vpop.f32.mrb[0].mxu0
        %v3009 = vadd.f32 0.0, %v3008
        %v3010 = vpop.f32.mrb[0].mxu0
        %v3011 = vpop.f32.mrb[0].mxu0
        %v3012 = vadd.f32 0.0, %v3011
        %v3013 = vpop.f32.mrb[0].mxu0
        %3014 = vdwg.mxu0
        %3015 = vmatprep.subr.bf16.mxu0 0
        %3016 = vmatpush1.bf16.msra.mxu0 %v2886
        %3017 = vmatprep.subr.bf16.mxu0 0
        %3018 = vmatpush1.bf16.msra.mxu0 %v2887
        %3019 = vmatprep.subr.bf16.mxu0 0
        %3020 = vmatpush1.bf16.msra.mxu0 %v2888
        %3021 = vmatprep.subr.bf16.mxu0 0
        %3022 = vmatpush1.bf16.msra.mxu0 %v2889
        %3023 = vmatprep.subr.bf16.mxu0 0
        %3024 = vmatpush1.bf16.msra.mxu0 %v2890
        %3025 = vmatprep.subr.bf16.mxu0 0
        %3026 = vmatpush1.bf16.msra.mxu0 %v2891
        %3027 = vmatprep.subr.bf16.mxu0 0
        %3028 = vmatpush1.bf16.msra.mxu0 %v2892
        %3029 = vmatprep.subr.bf16.mxu0 0
        %3030 = vmatpush1.bf16.msra.mxu0 %v2893
        %3031 = vmatprep.subr.bf16.mxu0 0
        %3032 = vmatpush1.bf16.msra.mxu0 0
        %3033 = vmatprep.subr.bf16.mxu0 0
        %3034 = vmatpush1.bf16.msra.mxu0 0
        %3035 = vmatprep.subr.bf16.mxu0 0
        %3036 = vmatpush1.bf16.msra.mxu0 0
        %3037 = vmatprep.subr.bf16.mxu0 0
        %3038 = vmatpush1.bf16.msra.mxu0 0
        %3039 = vmatprep.subr.bf16.mxu0 0
        %3040 = vmatpush1.bf16.msra.mxu0 0
        %3041 = vmatprep.subr.bf16.mxu0 0
        %3042 = vmatpush1.bf16.msra.mxu0 0
        %3043 = vmatprep.subr.bf16.mxu0 0
        %3044 = vmatpush1.bf16.msra.mxu0 0
        %3045 = vmatprep.subr.bf16.mxu0 0
        %3046 = vmatpush1.bf16.msra.mxu0 0
        %3047 = vmatprep.mubr.bf16.mxu0 0
        %3048 = vmatmul.mubr.bf16.gmra.mrb[0].mxu0 %v2703
        %v3049 = vpop.f32.mrb[0].mxu0
        %v3050 = vadd.f32 %v2953, %v3049
        %v3051 = vpop.f32.mrb[0].mxu0
        %v3052 = vpop.f32.mrb[0].mxu0
        %v3053 = vadd.f32 %v2956, %v3052
        %v3054 = vpop.f32.mrb[0].mxu0
        %3055 = vmatprep.mubr.bf16.mxu0 0
        %3056 = vmatmul.mubr.bf16.gmra.mrb[0].mxu0 %v2706
        %v3057 = vpop.f32.mrb[0].mxu0
        %v3058 = vadd.f32 %v2961, %v3057
        %v3059 = vpop.f32.mrb[0].mxu0
        %v3060 = vpop.f32.mrb[0].mxu0
        %v3061 = vadd.f32 %v2964, %v3060
        %v3062 = vpop.f32.mrb[0].mxu0
        %3063 = vmatprep.mubr.bf16.mxu0 0
        %3064 = vmatmul.mubr.bf16.gmra.mrb[0].mxu0 %v2709
        %v3065 = vpop.f32.mrb[0].mxu0
        %v3066 = vadd.f32 %v2969, %v3065
        %v3067 = vpop.f32.mrb[0].mxu0
        %v3068 = vpop.f32.mrb[0].mxu0
        %v3069 = vadd.f32 %v2972, %v3068
        %v3070 = vpop.f32.mrb[0].mxu0
        %3071 = vmatprep.mubr.bf16.mxu0 0
        %3072 = vmatmul.mubr.bf16.gmra.mrb[0].mxu0 %v2712
        %v3073 = vpop.f32.mrb[0].mxu0
        %v3074 = vadd.f32 %v2977, %v3073
        %v3075 = vpop.f32.mrb[0].mxu0
        %v3076 = vpop.f32.mrb[0].mxu0
        %v3077 = vadd.f32 %v2980, %v3076
        %v3078 = vpop.f32.mrb[0].mxu0
        %3079 = vmatprep.mubr.bf16.mxu0 0
        %3080 = vmatmul.mubr.bf16.gmra.mrb[0].mxu0 %v2715
        %v3081 = vpop.f32.mrb[0].mxu0
        %v3082 = vadd.f32 %v2985, %v3081
        %v3083 = vpop.f32.mrb[0].mxu0
        %v3084 = vpop.f32.mrb[0].mxu0
        %v3085 = vadd.f32 %v2988, %v3084
        %v3086 = vpop.f32.mrb[0].mxu0
        %3087 = vmatprep.mubr.bf16.mxu0 0
        %3088 = vmatmul.mubr.bf16.gmra.mrb[0].mxu0 %v2718
        %v3089 = vpop.f32.mrb[0].mxu0
        %v3090 = vadd.f32 %v2993, %v3089
        %v3091 = vpop.f32.mrb[0].mxu0
        %v3092 = vpop.f32.mrb[0].mxu0
        %v3093 = vadd.f32 %v2996, %v3092
        %v3094 = vpop.f32.mrb[0].mxu0
        %3095 = vmatprep.mubr.bf16.mxu0 0
        %3096 = vmatmul.mubr.bf16.gmra.mrb[0].mxu0 %v2721
        %v3097 = vpop.f32.mrb[0].mxu0
        %v3098 = vadd.f32 %v3001, %v3097
        %v3099 = vpop.f32.mrb[0].mxu0
        %v3100 = vpop.f32.mrb[0].mxu0
        %v3101 = vadd.f32 %v3004, %v3100
        %v3102 = vpop.f32.mrb[0].mxu0
        %3103 = vmatprep.mubr.bf16.mxu0 0
        %3104 = vmatmul.mubr.bf16.gmra.mrb[0].mxu0 %v2724
        %v3105 = vpop.f32.mrb[0].mxu0
        %v3106 = vadd.f32 %v3009, %v3105
        %v3107 = vpop.f32.mrb[0].mxu0
        %v3108 = vpop.f32.mrb[0].mxu0
        %v3109 = vadd.f32 %v3012, %v3108
        %v3110 = vpop.f32.mrb[0].mxu0
        %3111 = vdwg.mxu0
        %v3112 = vld [vmem:[%s295] sm:$0xff]
        %v3113 = vld [vmem:[%s295 + $0x8] sm:$0xff]
        %v3114 = vld [vmem:[%s295 + $0x10] sm:$0xff]
        %v3115 = vld [vmem:[%s295 + $0x18] sm:$0xff]
        %v3116 = vld [vmem:[%s295 + $0x20] sm:$0xff]
        %v3117 = vld [vmem:[%s295 + $0x28] sm:$0xff]
        %v3118 = vld [vmem:[%s295 + $0x30] sm:$0xff]
        %v3119 = vld [vmem:[%s295 + $0x38] sm:$0xff]
        %v3120 = vld [vmem:[%s295 + $0x40] sm:$0xff]
        %v3121 = vld [vmem:[%s295 + $0x48] sm:$0xff]
        %v3122 = vld [vmem:[%s295 + $0x50] sm:$0xff]
        %v3123 = vld [vmem:[%s295 + $0x58] sm:$0xff]
        %v3124 = vld [vmem:[%s295 + $0x60] sm:$0xff]
        %v3125 = vld [vmem:[%s295 + $0x68] sm:$0xff]
        %v3126 = vld [vmem:[%s295 + $0x70] sm:$0xff]
        %v3127 = vld [vmem:[%s295 + $0x78] sm:$0xff]
        %v3128 = vadd.f32 %v3112, %v3050
        %v3129 = vadd.f32 %v3113, %v3053
        %v3130 = vadd.f32 %v3114, %v3058
        %v3131 = vadd.f32 %v3115, %v3061
        %v3132 = vadd.f32 %v3116, %v3066
        %v3133 = vadd.f32 %v3117, %v3069
        %v3134 = vadd.f32 %v3118, %v3074
        %v3135 = vadd.f32 %v3119, %v3077
        %v3136 = vadd.f32 %v3120, %v3082
        %v3137 = vadd.f32 %v3121, %v3085
        %v3138 = vadd.f32 %v3122, %v3090
        %v3139 = vadd.f32 %v3123, %v3093
        %v3140 = vadd.f32 %v3124, %v3098
        %v3141 = vadd.f32 %v3125, %v3101
        %v3142 = vadd.f32 %v3126, %v3106
        %v3143 = vadd.f32 %v3127, %v3109
        %3144 = vst [vmem:[%s295] sm:$0xff] %v3128
        %3145 = vst [vmem:[%s295 + $0x8] sm:$0xff] %v3129
        %3146 = vst [vmem:[%s295 + $0x10] sm:$0xff] %v3130
        %3147 = vst [vmem:[%s295 + $0x18] sm:$0xff] %v3131
        %3148 = vst [vmem:[%s295 + $0x20] sm:$0xff] %v3132
        %3149 = vst [vmem:[%s295 + $0x28] sm:$0xff] %v3133
        %3150 = vst [vmem:[%s295 + $0x30] sm:$0xff] %v3134
        %3151 = vst [vmem:[%s295 + $0x38] sm:$0xff] %v3135
        %3152 = vst [vmem:[%s295 + $0x40] sm:$0xff] %v3136
        %3153 = vst [vmem:[%s295 + $0x48] sm:$0xff] %v3137
        %3154 = vst [vmem:[%s295 + $0x50] sm:$0xff] %v3138
        %3155 = vst [vmem:[%s295 + $0x58] sm:$0xff] %v3139
        %3156 = vst [vmem:[%s295 + $0x60] sm:$0xff] %v3140
        %3157 = vst [vmem:[%s295 + $0x68] sm:$0xff] %v3141
        %3158 = vst [vmem:[%s295 + $0x70] sm:$0xff] %v3142
        %3159 = vst [vmem:[%s295 + $0x78] sm:$0xff] %v3143
        %s3160 = scalar_lea.vmem [#allocation4], 48
        %v3161 = vld [vmem:[%s3160] sm:$0xff]
        %v3162 = vld [vmem:[%s3160 + $0x8] sm:$0xff]
        %v3163 = vld [vmem:[%s3160 + $0x10] sm:$0xff]
        %v3164 = vld [vmem:[%s3160 + $0x18] sm:$0xff]
        %v3165 = vld [vmem:[%s3160 + $0x20] sm:$0xff]
        %v3166 = vld [vmem:[%s3160 + $0x28] sm:$0xff]
        %v3167 = vld [vmem:[%s3160 + $0x30] sm:$0xff]
        %v3168 = vld [vmem:[%s3160 + $0x38] sm:$0xff]
        %v3169 = vld [vmem:[%s3160 + $0x40] sm:$0xff]
        %v3170 = vld [vmem:[%s3160 + $0x48] sm:$0xff]
        %v3171 = vld [vmem:[%s3160 + $0x50] sm:$0xff]
        %v3172 = vld [vmem:[%s3160 + $0x58] sm:$0xff]
        %v3173 = vld [vmem:[%s3160 + $0x60] sm:$0xff]
        %v3174 = vld [vmem:[%s3160 + $0x68] sm:$0xff]
        %v3175 = vld [vmem:[%s3160 + $0x70] sm:$0xff]
        %v3176 = vld [vmem:[%s3160 + $0x78] sm:$0xff]
        %v3177 = vld [vmem:[%s3160 + $0x80] sm:$0xff]
        %v3178 = vld [vmem:[%s3160 + $0x88] sm:$0xff]
        %v3179 = vld [vmem:[%s3160 + $0x90] sm:$0xff]
        %v3180 = vld [vmem:[%s3160 + $0x98] sm:$0xff]
        %v3181 = vld [vmem:[%s3160 + $0xa0] sm:$0xff]
        %v3182 = vld [vmem:[%s3160 + $0xa8] sm:$0xff]
        %v3183 = vld [vmem:[%s3160 + $0xb0] sm:$0xff]
        %v3184 = vld [vmem:[%s3160 + $0xb8] sm:$0xff]
        %s3185 = scalar_lea.vmem %s4, 384
        %v3186 = vld [vmem:[%s3185] sm:$0xf]
        %v3187 = vld [vmem:[%s3185 + $0x4] sm:$0xf]
        %v3188 = vld [vmem:[%s3185 + $0x8] sm:$0xf]
        %v3189 = vld [vmem:[%s3185 + $0xc] sm:$0xf]
        %v3190 = vld [vmem:[%s3185 + $0x10] sm:$0xf]
        %v3191 = vld [vmem:[%s3185 + $0x14] sm:$0xf]
        %v3192 = vld [vmem:[%s3185 + $0x18] sm:$0xf]
        %v3193 = vld [vmem:[%s3185 + $0x1c] sm:$0xf]
        %v3194 = vld [vmem:[%s3185 + $0x20] sm:$0xf]
        %v3195 = vld [vmem:[%s3185 + $0x24] sm:$0xf]
        %v3196 = vld [vmem:[%s3185 + $0x28] sm:$0xf]
        %v3197 = vld [vmem:[%s3185 + $0x2c] sm:$0xf]
        %v3198 = vld [vmem:[%s3185 + $0x30] sm:$0xf]
        %v3199 = vld [vmem:[%s3185 + $0x34] sm:$0xf]
        %v3200 = vld [vmem:[%s3185 + $0x38] sm:$0xf]
        %v3201 = vld [vmem:[%s3185 + $0x3c] sm:$0xf]
        %v3202 = vld [vmem:[%s3185 + $0x40] sm:$0xf]
        %v3203 = vld [vmem:[%s3185 + $0x44] sm:$0xf]
        %v3204 = vld [vmem:[%s3185 + $0x48] sm:$0xf]
        %v3205 = vld [vmem:[%s3185 + $0x4c] sm:$0xf]
        %v3206 = vld [vmem:[%s3185 + $0x50] sm:$0xf]
        %v3207 = vld [vmem:[%s3185 + $0x54] sm:$0xf]
        %v3208 = vld [vmem:[%s3185 + $0x58] sm:$0xf]
        %v3209 = vld [vmem:[%s3185 + $0x5c] sm:$0xf]
        %v3210 = vld [vmem:[%s3185 + $0x60] sm:$0xf]
        %v3211 = vld [vmem:[%s3185 + $0x64] sm:$0xf]
        %v3212 = vld [vmem:[%s3185 + $0x68] sm:$0xf]
        %v3213 = vld [vmem:[%s3185 + $0x6c] sm:$0xf]
        %v3214 = vld [vmem:[%s3185 + $0x70] sm:$0xf]
        %v3215 = vld [vmem:[%s3185 + $0x74] sm:$0xf]
        %v3216 = vld [vmem:[%s3185 + $0x78] sm:$0xf]
        %v3217 = vld [vmem:[%s3185 + $0x7c] sm:$0xf]
        %v3218 = vld [vmem:[%s3185 + $0x80] sm:$0xf]
        %v3219 = vld [vmem:[%s3185 + $0x84] sm:$0xf]
        %v3220 = vld [vmem:[%s3185 + $0x88] sm:$0xf]
        %v3221 = vld [vmem:[%s3185 + $0x8c] sm:$0xf]
        %v3222 = vld [vmem:[%s3185 + $0x90] sm:$0xf]
        %v3223 = vld [vmem:[%s3185 + $0x94] sm:$0xf]
        %v3224 = vld [vmem:[%s3185 + $0x98] sm:$0xf]
        %v3225 = vld [vmem:[%s3185 + $0x9c] sm:$0xf]
        %v3226 = vld [vmem:[%s3185 + $0xa0] sm:$0xf]
        %v3227 = vld [vmem:[%s3185 + $0xa4] sm:$0xf]
        %v3228 = vld [vmem:[%s3185 + $0xa8] sm:$0xf]
        %v3229 = vld [vmem:[%s3185 + $0xac] sm:$0xf]
        %v3230 = vld [vmem:[%s3185 + $0xb0] sm:$0xf]
        %v3231 = vld [vmem:[%s3185 + $0xb4] sm:$0xf]
        %v3232 = vld [vmem:[%s3185 + $0xb8] sm:$0xf]
        %v3233 = vld [vmem:[%s3185 + $0xbc] sm:$0xf]
        %v3282 = vunpack.c.l.b16 %v3186
        %v3283 = vunpack.c.l.b16 %v3187
        %v3284 = vunpack.c.l.b16 %v3188
        %v3285 = vunpack.c.l.b16 %v3189
        %v3286 = vunpack.c.l.b16 %v3190
        %v3287 = vunpack.c.l.b16 %v3191
        %v3288 = vunpack.c.l.b16 %v3192
        %v3289 = vunpack.c.l.b16 %v3193
        %v3290 = vunpack.c.l.b16 %v3194
        %v3291 = vunpack.c.l.b16 %v3195
        %v3292 = vunpack.c.l.b16 %v3196
        %v3293 = vunpack.c.l.b16 %v3197
        %v3294 = vunpack.c.l.b16 %v3198
        %v3295 = vunpack.c.l.b16 %v3199
        %v3296 = vunpack.c.l.b16 %v3200
        %v3297 = vunpack.c.l.b16 %v3201
        %v3298 = vunpack.c.l.b16 %v3202
        %v3299 = vunpack.c.l.b16 %v3203
        %v3300 = vunpack.c.l.b16 %v3204
        %v3301 = vunpack.c.l.b16 %v3205
        %v3302 = vunpack.c.l.b16 %v3206
        %v3303 = vunpack.c.l.b16 %v3207
        %v3304 = vunpack.c.l.b16 %v3208
        %v3305 = vunpack.c.l.b16 %v3209
        %v3306 = vunpack.c.l.b16 %v3210
        %v3307 = vunpack.c.l.b16 %v3211
        %v3308 = vunpack.c.l.b16 %v3212
        %v3309 = vunpack.c.l.b16 %v3213
        %v3310 = vunpack.c.l.b16 %v3214
        %v3311 = vunpack.c.l.b16 %v3215
        %v3312 = vunpack.c.l.b16 %v3216
        %v3313 = vunpack.c.l.b16 %v3217
        %v3314 = vunpack.c.l.b16 %v3218
        %v3315 = vunpack.c.l.b16 %v3219
        %v3316 = vunpack.c.l.b16 %v3220
        %v3317 = vunpack.c.l.b16 %v3221
        %v3318 = vunpack.c.l.b16 %v3222
        %v3319 = vunpack.c.l.b16 %v3223
        %v3320 = vunpack.c.l.b16 %v3224
        %v3321 = vunpack.c.l.b16 %v3225
        %v3322 = vunpack.c.l.b16 %v3226
        %v3323 = vunpack.c.l.b16 %v3227
        %v3324 = vunpack.c.l.b16 %v3228
        %v3325 = vunpack.c.l.b16 %v3229
        %v3326 = vunpack.c.l.b16 %v3230
        %v3327 = vunpack.c.l.b16 %v3231
        %v3328 = vunpack.c.l.b16 %v3232
        %v3329 = vunpack.c.l.b16 %v3233
        %v3330 = vpack.c.b16 %v3283, %v3282
        %v3331 = vpack.c.b16 %v3285, %v3284
        %v3332 = vpack.c.b16 %v3287, %v3286
        %v3333 = vpack.c.b16 %v3289, %v3288
        %v3334 = vpack.c.b16 %v3291, %v3290
        %v3335 = vpack.c.b16 %v3293, %v3292
        %v3336 = vpack.c.b16 %v3295, %v3294
        %v3337 = vpack.c.b16 %v3297, %v3296
        %v3338 = vpack.c.b16 %v3299, %v3298
        %v3339 = vpack.c.b16 %v3301, %v3300
        %v3340 = vpack.c.b16 %v3303, %v3302
        %v3341 = vpack.c.b16 %v3305, %v3304
        %v3342 = vpack.c.b16 %v3307, %v3306
        %v3343 = vpack.c.b16 %v3309, %v3308
        %v3344 = vpack.c.b16 %v3311, %v3310
        %v3345 = vpack.c.b16 %v3313, %v3312
        %v3346 = vpack.c.b16 %v3315, %v3314
        %v3347 = vpack.c.b16 %v3317, %v3316
        %v3348 = vpack.c.b16 %v3319, %v3318
        %v3349 = vpack.c.b16 %v3321, %v3320
        %v3350 = vpack.c.b16 %v3323, %v3322
        %v3351 = vpack.c.b16 %v3325, %v3324
        %v3352 = vpack.c.b16 %v3327, %v3326
        %v3353 = vpack.c.b16 %v3329, %v3328
        %3378 = vmatprep.subr.bf16.mxu0 0
        %3379 = vmatpush1.bf16.msra.mxu0 %v3330
        %3380 = vmatprep.subr.bf16.mxu0 0
        %3381 = vmatpush1.bf16.msra.mxu0 %v3331
        %3382 = vmatprep.subr.bf16.mxu0 0
        %3383 = vmatpush1.bf16.msra.mxu0 %v3332
        %3384 = vmatprep.subr.bf16.mxu0 0
        %3385 = vmatpush1.bf16.msra.mxu0 %v3333
        %3386 = vmatprep.subr.bf16.mxu0 0
        %3387 = vmatpush1.bf16.msra.mxu0 %v3334
        %3388 = vmatprep.subr.bf16.mxu0 0
        %3389 = vmatpush1.bf16.msra.mxu0 %v3335
        %3390 = vmatprep.subr.bf16.mxu0 0
        %3391 = vmatpush1.bf16.msra.mxu0 %v3336
        %3392 = vmatprep.subr.bf16.mxu0 0
        %3393 = vmatpush1.bf16.msra.mxu0 %v3337
        %3394 = vmatprep.subr.bf16.mxu0 0
        %3395 = vmatpush1.bf16.msra.mxu0 %v3338
        %3396 = vmatprep.subr.bf16.mxu0 0
        %3397 = vmatpush1.bf16.msra.mxu0 %v3339
        %3398 = vmatprep.subr.bf16.mxu0 0
        %3399 = vmatpush1.bf16.msra.mxu0 %v3340
        %3400 = vmatprep.subr.bf16.mxu0 0
        %3401 = vmatpush1.bf16.msra.mxu0 %v3341
        %3402 = vmatprep.subr.bf16.mxu0 0
        %3403 = vmatpush1.bf16.msra.mxu0 %v3342
        %3404 = vmatprep.subr.bf16.mxu0 0
        %3405 = vmatpush1.bf16.msra.mxu0 %v3343
        %3406 = vmatprep.subr.bf16.mxu0 0
        %3407 = vmatpush1.bf16.msra.mxu0 %v3344
        %3408 = vmatprep.subr.bf16.mxu0 0
        %3409 = vmatpush1.bf16.msra.mxu0 %v3345
        %3410 = vmatprep.mubr.bf16.mxu0 %v3162
        %3411 = vmatmul.mubr.bf16.gmra.mrb[0].mxu0 %v3161
        %v3412 = vpop.f32.mrb[0].mxu0
        %v3413 = vadd.f32 0.0, %v3412
        %v3414 = vpop.f32.mrb[0].mxu0
        %v3415 = vpop.f32.mrb[0].mxu0
        %v3416 = vadd.f32 0.0, %v3415
        %v3417 = vpop.f32.mrb[0].mxu0
        %3418 = vmatprep.mubr.bf16.mxu0 %v3165
        %3419 = vmatmul.mubr.bf16.gmra.mrb[0].mxu0 %v3164
        %v3420 = vpop.f32.mrb[0].mxu0
        %v3421 = vadd.f32 0.0, %v3420
        %v3422 = vpop.f32.mrb[0].mxu0
        %v3423 = vpop.f32.mrb[0].mxu0
        %v3424 = vadd.f32 0.0, %v3423
        %v3425 = vpop.f32.mrb[0].mxu0
        %3426 = vmatprep.mubr.bf16.mxu0 %v3168
        %3427 = vmatmul.mubr.bf16.gmra.mrb[0].mxu0 %v3167
        %v3428 = vpop.f32.mrb[0].mxu0
        %v3429 = vadd.f32 0.0, %v3428
        %v3430 = vpop.f32.mrb[0].mxu0
        %v3431 = vpop.f32.mrb[0].mxu0
        %v3432 = vadd.f32 0.0, %v3431
        %v3433 = vpop.f32.mrb[0].mxu0
        %3434 = vmatprep.mubr.bf16.mxu0 %v3171
        %3435 = vmatmul.mubr.bf16.gmra.mrb[0].mxu0 %v3170
        %v3436 = vpop.f32.mrb[0].mxu0
        %v3437 = vadd.f32 0.0, %v3436
        %v3438 = vpop.f32.mrb[0].mxu0
        %v3439 = vpop.f32.mrb[0].mxu0
        %v3440 = vadd.f32 0.0, %v3439
        %v3441 = vpop.f32.mrb[0].mxu0
        %3442 = vmatprep.mubr.bf16.mxu0 %v3174
        %3443 = vmatmul.mubr.bf16.gmra.mrb[0].mxu0 %v3173
        %v3444 = vpop.f32.mrb[0].mxu0
        %v3445 = vadd.f32 0.0, %v3444
        %v3446 = vpop.f32.mrb[0].mxu0
        %v3447 = vpop.f32.mrb[0].mxu0
        %v3448 = vadd.f32 0.0, %v3447
        %v3449 = vpop.f32.mrb[0].mxu0
        %3450 = vmatprep.mubr.bf16.mxu0 %v3177
        %3451 = vmatmul.mubr.bf16.gmra.mrb[0].mxu0 %v3176
        %v3452 = vpop.f32.mrb[0].mxu0
        %v3453 = vadd.f32 0.0, %v3452
        %v3454 = vpop.f32.mrb[0].mxu0
        %v3455 = vpop.f32.mrb[0].mxu0
        %v3456 = vadd.f32 0.0, %v3455
        %v3457 = vpop.f32.mrb[0].mxu0
        %3458 = vmatprep.mubr.bf16.mxu0 %v3180
        %3459 = vmatmul.mubr.bf16.gmra.mrb[0].mxu0 %v3179
        %v3460 = vpop.f32.mrb[0].mxu0
        %v3461 = vadd.f32 0.0, %v3460
        %v3462 = vpop.f32.mrb[0].mxu0
        %v3463 = vpop.f32.mrb[0].mxu0
        %v3464 = vadd.f32 0.0, %v3463
        %v3465 = vpop.f32.mrb[0].mxu0
        %3466 = vmatprep.mubr.bf16.mxu0 %v3183
        %3467 = vmatmul.mubr.bf16.gmra.mrb[0].mxu0 %v3182
        %v3468 = vpop.f32.mrb[0].mxu0
        %v3469 = vadd.f32 0.0, %v3468
        %v3470 = vpop.f32.mrb[0].mxu0
        %v3471 = vpop.f32.mrb[0].mxu0
        %v3472 = vadd.f32 0.0, %v3471
        %v3473 = vpop.f32.mrb[0].mxu0
        %3474 = vdwg.mxu0
        %3475 = vmatprep.subr.bf16.mxu0 0
        %3476 = vmatpush1.bf16.msra.mxu0 %v3346
        %3477 = vmatprep.subr.bf16.mxu0 0
        %3478 = vmatpush1.bf16.msra.mxu0 %v3347
        %3479 = vmatprep.subr.bf16.mxu0 0
        %3480 = vmatpush1.bf16.msra.mxu0 %v3348
        %3481 = vmatprep.subr.bf16.mxu0 0
        %3482 = vmatpush1.bf16.msra.mxu0 %v3349
        %3483 = vmatprep.subr.bf16.mxu0 0
        %3484 = vmatpush1.bf16.msra.mxu0 %v3350
        %3485 = vmatprep.subr.bf16.mxu0 0
        %3486 = vmatpush1.bf16.msra.mxu0 %v3351
        %3487 = vmatprep.subr.bf16.mxu0 0
        %3488 = vmatpush1.bf16.msra.mxu0 %v3352
        %3489 = vmatprep.subr.bf16.mxu0 0
        %3490 = vmatpush1.bf16.msra.mxu0 %v3353
        %3491 = vmatprep.subr.bf16.mxu0 0
        %3492 = vmatpush1.bf16.msra.mxu0 0
        %3493 = vmatprep.subr.bf16.mxu0 0
        %3494 = vmatpush1.bf16.msra.mxu0 0
        %3495 = vmatprep.subr.bf16.mxu0 0
        %3496 = vmatpush1.bf16.msra.mxu0 0
        %3497 = vmatprep.subr.bf16.mxu0 0
        %3498 = vmatpush1.bf16.msra.mxu0 0
        %3499 = vmatprep.subr.bf16.mxu0 0
        %3500 = vmatpush1.bf16.msra.mxu0 0
        %3501 = vmatprep.subr.bf16.mxu0 0
        %3502 = vmatpush1.bf16.msra.mxu0 0
        %3503 = vmatprep.subr.bf16.mxu0 0
        %3504 = vmatpush1.bf16.msra.mxu0 0
        %3505 = vmatprep.subr.bf16.mxu0 0
        %3506 = vmatpush1.bf16.msra.mxu0 0
        %3507 = vmatprep.mubr.bf16.mxu0 0
        %3508 = vmatmul.mubr.bf16.gmra.mrb[0].mxu0 %v3163
        %v3509 = vpop.f32.mrb[0].mxu0
        %v3510 = vadd.f32 %v3413, %v3509
        %v3511 = vpop.f32.mrb[0].mxu0
        %v3512 = vpop.f32.mrb[0].mxu0
        %v3513 = vadd.f32 %v3416, %v3512
        %v3514 = vpop.f32.mrb[0].mxu0
        %3515 = vmatprep.mubr.bf16.mxu0 0
        %3516 = vmatmul.mubr.bf16.gmra.mrb[0].mxu0 %v3166
        %v3517 = vpop.f32.mrb[0].mxu0
        %v3518 = vadd.f32 %v3421, %v3517
        %v3519 = vpop.f32.mrb[0].mxu0
        %v3520 = vpop.f32.mrb[0].mxu0
        %v3521 = vadd.f32 %v3424, %v3520
        %v3522 = vpop.f32.mrb[0].mxu0
        %3523 = vmatprep.mubr.bf16.mxu0 0
        %3524 = vmatmul.mubr.bf16.gmra.mrb[0].mxu0 %v3169
        %v3525 = vpop.f32.mrb[0].mxu0
        %v3526 = vadd.f32 %v3429, %v3525
        %v3527 = vpop.f32.mrb[0].mxu0
        %v3528 = vpop.f32.mrb[0].mxu0
        %v3529 = vadd.f32 %v3432, %v3528
        %v3530 = vpop.f32.mrb[0].mxu0
        %3531 = vmatprep.mubr.bf16.mxu0 0
        %3532 = vmatmul.mubr.bf16.gmra.mrb[0].mxu0 %v3172
        %v3533 = vpop.f32.mrb[0].mxu0
        %v3534 = vadd.f32 %v3437, %v3533
        %v3535 = vpop.f32.mrb[0].mxu0
        %v3536 = vpop.f32.mrb[0].mxu0
        %v3537 = vadd.f32 %v3440, %v3536
        %v3538 = vpop.f32.mrb[0].mxu0
        %3539 = vmatprep.mubr.bf16.mxu0 0
        %3540 = vmatmul.mubr.bf16.gmra.mrb[0].mxu0 %v3175
        %v3541 = vpop.f32.mrb[0].mxu0
        %v3542 = vadd.f32 %v3445, %v3541
        %v3543 = vpop.f32.mrb[0].mxu0
        %v3544 = vpop.f32.mrb[0].mxu0
        %v3545 = vadd.f32 %v3448, %v3544
        %v3546 = vpop.f32.mrb[0].mxu0
        %3547 = vmatprep.mubr.bf16.mxu0 0
        %3548 = vmatmul.mubr.bf16.gmra.mrb[0].mxu0 %v3178
        %v3549 = vpop.f32.mrb[0].mxu0
        %v3550 = vadd.f32 %v3453, %v3549
        %v3551 = vpop.f32.mrb[0].mxu0
        %v3552 = vpop.f32.mrb[0].mxu0
        %v3553 = vadd.f32 %v3456, %v3552
        %v3554 = vpop.f32.mrb[0].mxu0
        %3555 = vmatprep.mubr.bf16.mxu0 0
        %3556 = vmatmul.mubr.bf16.gmra.mrb[0].mxu0 %v3181
        %v3557 = vpop.f32.mrb[0].mxu0
        %v3558 = vadd.f32 %v3461, %v3557
        %v3559 = vpop.f32.mrb[0].mxu0
        %v3560 = vpop.f32.mrb[0].mxu0
        %v3561 = vadd.f32 %v3464, %v3560
        %v3562 = vpop.f32.mrb[0].mxu0
        %3563 = vmatprep.mubr.bf16.mxu0 0
        %3564 = vmatmul.mubr.bf16.gmra.mrb[0].mxu0 %v3184
        %v3565 = vpop.f32.mrb[0].mxu0
        %v3566 = vadd.f32 %v3469, %v3565
        %v3567 = vpop.f32.mrb[0].mxu0
        %v3568 = vpop.f32.mrb[0].mxu0
        %v3569 = vadd.f32 %v3472, %v3568
        %v3570 = vpop.f32.mrb[0].mxu0
        %3571 = vdwg.mxu0
        %v3572 = vld [vmem:[%s295] sm:$0xff]
        %v3573 = vld [vmem:[%s295 + $0x8] sm:$0xff]
        %v3574 = vld [vmem:[%s295 + $0x10] sm:$0xff]
        %v3575 = vld [vmem:[%s295 + $0x18] sm:$0xff]
        %v3576 = vld [vmem:[%s295 + $0x20] sm:$0xff]
        %v3577 = vld [vmem:[%s295 + $0x28] sm:$0xff]
        %v3578 = vld [vmem:[%s295 + $0x30] sm:$0xff]
        %v3579 = vld [vmem:[%s295 + $0x38] sm:$0xff]
        %v3580 = vld [vmem:[%s295 + $0x40] sm:$0xff]
        %v3581 = vld [vmem:[%s295 + $0x48] sm:$0xff]
        %v3582 = vld [vmem:[%s295 + $0x50] sm:$0xff]
        %v3583 = vld [vmem:[%s295 + $0x58] sm:$0xff]
        %v3584 = vld [vmem:[%s295 + $0x60] sm:$0xff]
        %v3585 = vld [vmem:[%s295 + $0x68] sm:$0xff]
        %v3586 = vld [vmem:[%s295 + $0x70] sm:$0xff]
        %v3587 = vld [vmem:[%s295 + $0x78] sm:$0xff]
        %v3588 = vadd.f32 %v3572, %v3510
        %v3589 = vadd.f32 %v3573, %v3513
        %v3590 = vadd.f32 %v3574, %v3518
        %v3591 = vadd.f32 %v3575, %v3521
        %v3592 = vadd.f32 %v3576, %v3526
        %v3593 = vadd.f32 %v3577, %v3529
        %v3594 = vadd.f32 %v3578, %v3534
        %v3595 = vadd.f32 %v3579, %v3537
        %v3596 = vadd.f32 %v3580, %v3542
        %v3597 = vadd.f32 %v3581, %v3545
        %v3598 = vadd.f32 %v3582, %v3550
        %v3599 = vadd.f32 %v3583, %v3553
        %v3600 = vadd.f32 %v3584, %v3558
        %v3601 = vadd.f32 %v3585, %v3561
        %v3602 = vadd.f32 %v3586, %v3566
        %v3603 = vadd.f32 %v3587, %v3569
        %3604 = vst [vmem:[%s295] sm:$0xff] %v3588
        %3605 = vst [vmem:[%s295 + $0x8] sm:$0xff] %v3589
        %3606 = vst [vmem:[%s295 + $0x10] sm:$0xff] %v3590
        %3607 = vst [vmem:[%s295 + $0x18] sm:$0xff] %v3591
        %3608 = vst [vmem:[%s295 + $0x20] sm:$0xff] %v3592
        %3609 = vst [vmem:[%s295 + $0x28] sm:$0xff] %v3593
        %3610 = vst [vmem:[%s295 + $0x30] sm:$0xff] %v3594
        %3611 = vst [vmem:[%s295 + $0x38] sm:$0xff] %v3595
        %3612 = vst [vmem:[%s295 + $0x40] sm:$0xff] %v3596
        %3613 = vst [vmem:[%s295 + $0x48] sm:$0xff] %v3597
        %3614 = vst [vmem:[%s295 + $0x50] sm:$0xff] %v3598
        %3615 = vst [vmem:[%s295 + $0x58] sm:$0xff] %v3599
        %3616 = vst [vmem:[%s295 + $0x60] sm:$0xff] %v3600
        %3617 = vst [vmem:[%s295 + $0x68] sm:$0xff] %v3601
        %3618 = vst [vmem:[%s295 + $0x70] sm:$0xff] %v3602
        %3619 = vst [vmem:[%s295 + $0x78] sm:$0xff] %v3603
        %s3620 = scalar_lea.vmem %s304, 48
        %v3621 = vld [vmem:[%s3620 + $0x1] sm:$0xff]
        %v3622 = vld [vmem:[%s3620 + $0x9] sm:$0xff]
        %v3623 = vld [vmem:[%s3620 + $0x19] sm:$0xff]
        %v3624 = vld [vmem:[%s3620 + $0x21] sm:$0xff]
        %v3625 = vld [vmem:[%s3620 + $0x31] sm:$0xff]
        %v3626 = vld [vmem:[%s3620 + $0x39] sm:$0xff]
        %v3627 = vld [vmem:[%s3620 + $0x49] sm:$0xff]
        %v3628 = vld [vmem:[%s3620 + $0x51] sm:$0xff]
        %v3629 = vld [vmem:[%s3620 + $0x61] sm:$0xff]
        %v3630 = vld [vmem:[%s3620 + $0x69] sm:$0xff]
        %v3631 = vld [vmem:[%s3620 + $0x79] sm:$0xff]
        %v3632 = vld [vmem:[%s3620 + $0x81] sm:$0xff]
        %v3633 = vld [vmem:[%s3620 + $0x91] sm:$0xff]
        %v3634 = vld [vmem:[%s3620 + $0x99] sm:$0xff]
        %v3635 = vld [vmem:[%s3620 + $0xa9] sm:$0xff]
        %v3636 = vld [vmem:[%s3620 + $0xb1] sm:$0xff]
        %v3637 = vld [vmem:[%s295] sm:$0xff]
        %v3638 = vld [vmem:[%s295 + $0x8] sm:$0xff]
        %v3639 = vld [vmem:[%s295 + $0x10] sm:$0xff]
        %v3640 = vld [vmem:[%s295 + $0x18] sm:$0xff]
        %v3641 = vld [vmem:[%s295 + $0x20] sm:$0xff]
        %v3642 = vld [vmem:[%s295 + $0x28] sm:$0xff]
        %v3643 = vld [vmem:[%s295 + $0x30] sm:$0xff]
        %v3644 = vld [vmem:[%s295 + $0x38] sm:$0xff]
        %v3645 = vld [vmem:[%s295 + $0x40] sm:$0xff]
        %v3646 = vld [vmem:[%s295 + $0x48] sm:$0xff]
        %v3647 = vld [vmem:[%s295 + $0x50] sm:$0xff]
        %v3648 = vld [vmem:[%s295 + $0x58] sm:$0xff]
        %v3649 = vld [vmem:[%s295 + $0x60] sm:$0xff]
        %v3650 = vld [vmem:[%s295 + $0x68] sm:$0xff]
        %v3651 = vld [vmem:[%s295 + $0x70] sm:$0xff]
        %v3652 = vld [vmem:[%s295 + $0x78] sm:$0xff]
        %v3653 = vld [vmem:[%s5] sm:$0x1]
        %v3655 = vlaneseq
        %v3656 = vshrl.u32 %v3655, 7
        %v3657 = vsub.s32 0, %v3656
        %v3658 = vrot.slane %v3653, %v3657
        %v3660 = vmul.f32 %v3637, %v3658
        %v3661 = vmul.f32 %v3638, %v3658
        %v3662 = vmul.f32 %v3639, %v3658
        %v3663 = vmul.f32 %v3640, %v3658
        %v3664 = vmul.f32 %v3641, %v3658
        %v3665 = vmul.f32 %v3642, %v3658
        %v3666 = vmul.f32 %v3643, %v3658
        %v3667 = vmul.f32 %v3644, %v3658
        %v3668 = vmul.f32 %v3645, %v3658
        %v3669 = vmul.f32 %v3646, %v3658
        %v3670 = vmul.f32 %v3647, %v3658
        %v3671 = vmul.f32 %v3648, %v3658
        %v3672 = vmul.f32 %v3649, %v3658
        %v3673 = vmul.f32 %v3650, %v3658
        %v3674 = vmul.f32 %v3651, %v3658
        %v3675 = vmul.f32 %v3652, %v3658
        %v3676 = vld [vmem:[%s6] sm:$0x1]
        %v3678 = vlaneseq
        %v3679 = vshrl.u32 %v3678, 7
        %v3680 = vsub.s32 0, %v3679
        %v3681 = vrot.slane %v3676, %v3680
        %v3683 = vadd.f32 %v3660, %v3681
        %v3684 = vadd.f32 %v3661, %v3681
        %v3685 = vadd.f32 %v3662, %v3681
        %v3686 = vadd.f32 %v3663, %v3681
        %v3687 = vadd.f32 %v3664, %v3681
        %v3688 = vadd.f32 %v3665, %v3681
        %v3689 = vadd.f32 %v3666, %v3681
        %v3690 = vadd.f32 %v3667, %v3681
        %v3691 = vadd.f32 %v3668, %v3681
        %v3692 = vadd.f32 %v3669, %v3681
        %v3693 = vadd.f32 %v3670, %v3681
        %v3694 = vadd.f32 %v3671, %v3681
        %v3695 = vadd.f32 %v3672, %v3681
        %v3696 = vadd.f32 %v3673, %v3681
        %v3697 = vadd.f32 %v3674, %v3681
        %v3698 = vadd.f32 %v3675, %v3681
        %v3699 = vadd.f32 %v3683, %v3621
        %v3700 = vadd.f32 %v3684, %v3622
        %v3701 = vadd.f32 %v3685, %v3623
        %v3702 = vadd.f32 %v3686, %v3624
        %v3703 = vadd.f32 %v3687, %v3625
        %v3704 = vadd.f32 %v3688, %v3626
        %v3705 = vadd.f32 %v3689, %v3627
        %v3706 = vadd.f32 %v3690, %v3628
        %v3707 = vadd.f32 %v3691, %v3629
        %v3708 = vadd.f32 %v3692, %v3630
        %v3709 = vadd.f32 %v3693, %v3631
        %v3710 = vadd.f32 %v3694, %v3632
        %v3711 = vadd.f32 %v3695, %v3633
        %v3712 = vadd.f32 %v3696, %v3634
        %v3713 = vadd.f32 %v3697, %v3635
        %v3714 = vadd.f32 %v3698, %v3636
        %v3715 = vmax.f32 %v3699, 0.0
        %v3716 = vmax.f32 %v3700, 0.0
        %v3717 = vmax.f32 %v3701, 0.0
        %v3718 = vmax.f32 %v3702, 0.0
        %v3719 = vmax.f32 %v3703, 0.0
        %v3720 = vmax.f32 %v3704, 0.0
        %v3721 = vmax.f32 %v3705, 0.0
        %v3722 = vmax.f32 %v3706, 0.0
        %v3723 = vmax.f32 %v3707, 0.0
        %v3724 = vmax.f32 %v3708, 0.0
        %v3725 = vmax.f32 %v3709, 0.0
        %v3726 = vmax.f32 %v3710, 0.0
        %v3727 = vmax.f32 %v3711, 0.0
        %v3728 = vmax.f32 %v3712, 0.0
        %v3729 = vmax.f32 %v3713, 0.0
        %v3730 = vmax.f32 %v3714, 0.0
        %3731 = vst [vmem:[%s295] sm:$0xff] %v3715
        %3732 = vst [vmem:[%s295 + $0x8] sm:$0xff] %v3716
        %3733 = vst [vmem:[%s295 + $0x10] sm:$0xff] %v3717
        %3734 = vst [vmem:[%s295 + $0x18] sm:$0xff] %v3718
        %3735 = vst [vmem:[%s295 + $0x20] sm:$0xff] %v3719
        %3736 = vst [vmem:[%s295 + $0x28] sm:$0xff] %v3720
        %3737 = vst [vmem:[%s295 + $0x30] sm:$0xff] %v3721
        %3738 = vst [vmem:[%s295 + $0x38] sm:$0xff] %v3722
        %3739 = vst [vmem:[%s295 + $0x40] sm:$0xff] %v3723
        %3740 = vst [vmem:[%s295 + $0x48] sm:$0xff] %v3724
        %3741 = vst [vmem:[%s295 + $0x50] sm:$0xff] %v3725
        %3742 = vst [vmem:[%s295 + $0x58] sm:$0xff] %v3726
        %3743 = vst [vmem:[%s295 + $0x60] sm:$0xff] %v3727
        %3744 = vst [vmem:[%s295 + $0x68] sm:$0xff] %v3728
        %3745 = vst [vmem:[%s295 + $0x70] sm:$0xff] %v3729
        %3746 = vst [vmem:[%s295 + $0x78] sm:$0xff] %v3730
        %s3747 = sand.u32 %s197, 1
        %s3748 = scalar_lea.sflag [#allocation7], %s3747
        %s3749 = sand.u32 %s197, 1
        %s3750 = smul.addr %s3749, 128
        %s3751 = scalar_lea.vmem [#allocation6], %s3750
        // Predicated region
        $region49: #{tpu_custom_call.1} parent=47 // pred_check
          %p3752 = pneg %p207
        $region50: #{tpu_custom_call.1} parent=47 // pred_check_branch
          %3754 = sbr.rel (%p3752) target = $region52
        $region51: #{tpu_custom_call.1} parent=47 // pred_region
          %s3756 = ssub.s32 2048, 2048
          %3757 = vsyncadd %s3748, %s3756
          %s3758 = smul.addr %s26, 16
          %s3759 = smul.addr %s25, 32
          %s3760 = sadd.s32 %s3758, %s3759
          %s3761 = smul.addr %s3760, 128
          %s3762 = scalar_lea.hbm %s7, %s3761
          %s3763 = sshll.u32 %s3751, 4
          %s3764 = int_to_ptr.vmem [resolvable:$true] %s3763
          %3769 = dma.vmem_to_hbm [thread:$0]  %s3764, 2048, %s3762, %s3748, 128, 128, 8
        $region52: #{tpu_custom_call.1} parent=47 // pred_fallthru
          _
      $region48: #{tpu_custom_call.1} parent=5 // pred_fallthru
        _
      %p3770 = scmp.le.s32.totalorder 2, %s16
      // Predicated region
      $region53: #{tpu_custom_call.1} parent=5 // pred_check
        %p3771 = pneg %p3770
      $region54: #{tpu_custom_call.1} parent=5 // pred_check_branch
        %3773 = sbr.rel (%p3771) target = $region56
      $region55: #{tpu_custom_call.1} parent=5 // pred_region
        %s3774 = ssub.s32 %s16, 2
        // Predicated region
        $region57: #{tpu_custom_call.1} parent=55 // pred_check
          %p3775 = pneg %p213
        $region58: #{tpu_custom_call.1} parent=55 // pred_check_branch
          %3777 = sbr.rel (%p3775) target = $region60
        $region59: #{tpu_custom_call.1} parent=55 // pred_region
          %s3778 = sand.u32 %s198, 1
          %s3779 = scalar_lea.sflag [#allocation7], %s3778
          %s3780 = sand.u32 %s198, 1
          %s3781 = smul.addr %s3780, 128
          %s3782 = scalar_lea.vmem [#allocation6], %s3781
          %3783 = dma.done %s3779, 2048
        $region60: #{tpu_custom_call.1} parent=55 // pred_fallthru
          _
      $region56: #{tpu_custom_call.1} parent=5 // pred_fallthru
        _
    $region6: #{tpu_custom_call.1} parent=1 // loop_footer
      %s20 = sadd.s32 1, %s16
    $region7: #{tpu_custom_call.1} parent=1 // loop_footer_branch
      %15 = sbr.rel target = $region3
    $region8: #{tpu_custom_call.1} parent=1 // loop_exit
      _
    %3784 = vsyncpa [#allocation7], 1
    %s3785 = scalar_lea.sflag [#allocation7], 1
    %3786 = vsyncpa %s3785, 1

// kernel: tpu_custom_call.1
$region0: #{tpu_custom_call.1}
  #allocation0 [shape = 'u32[]', space=smem, size = 0x4, offset = 0x4, fixed_abs, tag = 'smem constant byte address 0x4 - core index']
  #allocation1 [shape = 'u32[144,128]{1,0:T(1,128)}', space=vmem, size = 0x12000, scoped, tag = 'internal scratch']
  #allocation2 [shape = 'bf16[12,16,384]{2,1,0:T(16,128)(2,1)}', space=vmem, size = 0x24000, scoped, tag = 'scratch operand']
  #allocation3 [shape = 'f32[10,18,128]{2,1,0:T(8,128)}', space=vmem, size = 0x1e000, scoped, tag = 'scratch operand']
  #allocation4 [shape = 'bf16[10,16,384]{2,1,0:T(16,128)(2,1)}', space=vmem, size = 0x1e000, scoped, tag = 'scratch operand']
  #allocation5 [shape = 'f32[160,128]{1,0:T(8,128)}', space=vmem, size = 0x14000, scoped, tag = 'scratch operand']
  %s0 = inlined_call_operand.vmem [shape: f32[2,2,12,18,128], index: 0, kind: input, shape index: {}]
  %s1 = inlined_call_operand.vmem [shape: bf16[3,384,128], index: 1, kind: input, shape index: {}]
  %s2 = inlined_call_operand.vmem [shape: f32[1,128], index: 2, kind: input, shape index: {}]
  %s3 = inlined_call_operand.vmem [shape: f32[1,128], index: 3, kind: input, shape index: {}]
  %s4 = inlined_call_operand.vmem [shape: bf16[3,384,128], index: 4, kind: input, shape index: {}]
  %s5 = inlined_call_operand.vmem [shape: f32[1,128], index: 5, kind: input, shape index: {}]
  %s6 = inlined_call_operand.vmem [shape: f32[1,128], index: 6, kind: input, shape index: {}]
  %s7 = inlined_call_operand.hbm [shape: f32[2,2,8,16,128], index: 7, kind: output, shape index: {}]
  %s8 = sld [smem:[#allocation0]]
  $region61: #{tpu_custom_call.1} parent=0
    _
  %s10 = ssub.s32 1, %s8
  %s11 = scalar_select 0, %s10, %s8
  $region1: #{tpu_custom_call.1} parent=0
    #allocation6 [shape = 'u8[131072]{0}', space=vmem, size = 0x20000, scoped, tag = 'output window, operand 0']
    #allocation7 [shape = 's32[2]{0}', space=sflag, size = 0x8, scoped, tag = 'scoped memory for tpu_custom_call.1']
    %12 = vsyncpa [#allocation7], 0
    %s13 = scalar_lea.sflag [#allocation7], 1
    %14 = vsyncpa %s13, 0
    loop: start=0, step=1, limit=6
    $region2: #{tpu_custom_call.1} parent=1 // loop_pre_header
      _
    $region3: #{tpu_custom_call.1} parent=1 // loop_header
      %s16 = sphi 0, %s20
      %p17 = scmp.ge.s32.totalorder %s16, 6
      %s23 = sphi 0, %s35
      %s24 = sphi 0, %s31
      %s25 = sphi 0, %s23
      %s26 = sphi 0, %s24
      %s27 = sphi 0, %s25
      %s28 = sphi 0, %s26
      %s40 = sphi 0, %s42
      %s43 = sphi 0, %s40
      %s44 = sphi 0, %s43
      %s60 = sphi 0, %s44
      %s64 = sphi 0, %s64
      %s66 = sphi 0, %s64
      %s67 = sphi 0, %s66
      %s81 = sphi 0, %s67
      %s85 = sphi 0, %s85
      %s87 = sphi 0, %s85
      %s88 = sphi 0, %s87
      %s102 = sphi 0, %s88
      %s106 = sphi 0, %s106
      %s108 = sphi 0, %s106
      %s109 = sphi 0, %s108
      %s123 = sphi 0, %s109
      %s127 = sphi 0, %s127
      %s129 = sphi 0, %s127
      %s130 = sphi 0, %s129
      %s144 = sphi 0, %s130
      %s148 = sphi 0, %s148
      %s150 = sphi 0, %s148
      %s151 = sphi 0, %s150
      %s165 = sphi 0, %s151
      %s169 = sphi 0, %s169
      %s171 = sphi 0, %s169
      %s172 = sphi 0, %s171
      %s186 = sphi 0, %s172
      %s194 = sphi 0, %s196
      %s197 = sphi 0, %s194
      %s198 = sphi 0, %s197
      %s214 = sphi 0, %s198
    $region4: #{tpu_custom_call.1} parent=1 // loop_header_branch
      %19 = sbr.rel (%p17) target = $region8
    $region5: #{tpu_custom_call.1} parent=1 // loop_body
      %s21 = ssub.s32 %s16, 1
      %s22 = ssub.s32 %s16, 2
      %s29 = sadd.s32 1, %s24
      %p30 = scmp.ge.s32.totalorder %s29, 2
      %s31 = scalar_select %p30, 0, %s29
      %s32 = sadd.s32 1, %s23
      %s33 = scalar_select %p30, %s32, %s23
      %p34 = scmp.ge.s32.totalorder %s33, 2
      %s35 = scalar_select %p34, 0, %s33
      %s36 = ssub.s32 %s23, %s35
      %s37 = ssub.s32 %s24, %s31
      %s38 = sor.u32 %s36, %s37
      %p39 = scmp.eq.s32.totalorder %s38, 0
      %s41 = sadd.s32 %s40, 1
      %s42 = scalar_select %p39, %s40, %s41
      %p45 = pneg %p39
      %p46 = scmp.eq.s32.totalorder %s16, 3
      %p47 = por %p45, %p46
      %p48 = scmp.ne.s32.totalorder %s40, %s43
      %p49 = scmp.eq.s32.totalorder %s16, 0
      %p50 = por %p48, %p49
      %p51 = scmp.ne.s32.totalorder %s40, %s43
      %p52 = scmp.eq.s32.totalorder %s21, 3
      %p53 = por %p51, %p52
      %p54 = scmp.ne.s32.totalorder %s43, %s44
      %p55 = scmp.eq.s32.totalorder %s21, 0
      %p56 = por %p54, %p55
      %p57 = scmp.ne.s32.totalorder %s43, %s44
      %p58 = scmp.eq.s32.totalorder %s22, 3
      %p59 = por %p57, %p58
      %p61 = scmp.ne.s32.totalorder %s44, %s60
      %p62 = scmp.eq.s32.totalorder %s22, 0
      %p63 = por %p61, %p62
      %s65 = sadd.s32 %s64, 1
      %p68 = scmp.eq.s32.totalorder %s16, 3
      %p69 = scmp.ne.s32.totalorder %s64, %s66
      %p70 = scmp.eq.s32.totalorder %s16, 0
      %p71 = por %p69, %p70
      %p72 = scmp.ne.s32.totalorder %s64, %s66
      %p73 = scmp.eq.s32.totalorder %s21, 3
      %p74 = por %p72, %p73
      %p75 = scmp.ne.s32.totalorder %s66, %s67
      %p76 = scmp.eq.s32.totalorder %s21, 0
      %p77 = por %p75, %p76
      %p78 = scmp.ne.s32.totalorder %s66, %s67
      %p79 = scmp.eq.s32.totalorder %s22, 3
      %p80 = por %p78, %p79
      %p82 = scmp.ne.s32.totalorder %s67, %s81
      %p83 = scmp.eq.s32.totalorder %s22, 0
      %p84 = por %p82, %p83
      %s86 = sadd.s32 %s85, 1
      %p89 = scmp.eq.s32.totalorder %s16, 3
      %p90 = scmp.ne.s32.totalorder %s85, %s87
      %p91 = scmp.eq.s32.totalorder %s16, 0
      %p92 = por %p90, %p91
      %p93 = scmp.ne.s32.totalorder %s85, %s87
      %p94 = scmp.eq.s32.totalorder %s21, 3
      %p95 = por %p93, %p94
      %p96 = scmp.ne.s32.totalorder %s87, %s88
      %p97 = scmp.eq.s32.totalorder %s21, 0
      %p98 = por %p96, %p97
      %p99 = scmp.ne.s32.totalorder %s87, %s88
      %p100 = scmp.eq.s32.totalorder %s22, 3
      %p101 = por %p99, %p100
      %p103 = scmp.ne.s32.totalorder %s88, %s102
      %p104 = scmp.eq.s32.totalorder %s22, 0
      %p105 = por %p103, %p104
      %s107 = sadd.s32 %s106, 1
      %p110 = scmp.eq.s32.totalorder %s16, 3
      %p111 = scmp.ne.s32.totalorder %s106, %s108
      %p112 = scmp.eq.s32.totalorder %s16, 0
      %p113 = por %p111, %p112
      %p114 = scmp.ne.s32.totalorder %s106, %s108
      %p115 = scmp.eq.s32.totalorder %s21, 3
      %p116 = por %p114, %p115
      %p117 = scmp.ne.s32.totalorder %s108, %s109
      %p118 = scmp.eq.s32.totalorder %s21, 0
      %p119 = por %p117, %p118
      %p120 = scmp.ne.s32.totalorder %s108, %s109
      %p121 = scmp.eq.s32.totalorder %s22, 3
      %p122 = por %p120, %p121
      %p124 = scmp.ne.s32.totalorder %s109, %s123
      %p125 = scmp.eq.s32.totalorder %s22, 0
      %p126 = por %p124, %p125
      %s128 = sadd.s32 %s127, 1
      %p131 = scmp.eq.s32.totalorder %s16, 3
      %p132 = scmp.ne.s32.totalorder %s127, %s129
      %p133 = scmp.eq.s32.totalorder %s16, 0
      %p134 = por %p132, %p133
      %p135 = scmp.ne.s32.totalorder %s127, %s129
      %p136 = scmp.eq.s32.totalorder %s21, 3
      %p137 = por %p135, %p136
      %p138 = scmp.ne.s32.totalorder %s129, %s130
      %p139 = scmp.eq.s32.totalorder %s21, 0
      %p140 = por %p138, %p139
      %p141 = scmp.ne.s32.totalorder %s129, %s130
      %p142 = scmp.eq.s32.totalorder %s22, 3
      %p143 = por %p141, %p142
      %p145 = scmp.ne.s32.totalorder %s130, %s144
      %p146 = scmp.eq.s32.totalorder %s22, 0
      %p147 = por %p145, %p146
      %s149 = sadd.s32 %s148, 1
      %p152 = scmp.eq.s32.totalorder %s16, 3
      %p153 = scmp.ne.s32.totalorder %s148, %s150
      %p154 = scmp.eq.s32.totalorder %s16, 0
      %p155 = por %p153, %p154
      %p156 = scmp.ne.s32.totalorder %s148, %s150
      %p157 = scmp.eq.s32.totalorder %s21, 3
      %p158 = por %p156, %p157
      %p159 = scmp.ne.s32.totalorder %s150, %s151
      %p160 = scmp.eq.s32.totalorder %s21, 0
      %p161 = por %p159, %p160
      %p162 = scmp.ne.s32.totalorder %s150, %s151
      %p163 = scmp.eq.s32.totalorder %s22, 3
      %p164 = por %p162, %p163
      %p166 = scmp.ne.s32.totalorder %s151, %s165
      %p167 = scmp.eq.s32.totalorder %s22, 0
      %p168 = por %p166, %p167
      %s170 = sadd.s32 %s169, 1
      %p173 = scmp.eq.s32.totalorder %s16, 3
      %p174 = scmp.ne.s32.totalorder %s169, %s171
      %p175 = scmp.eq.s32.totalorder %s16, 0
      %p176 = por %p174, %p175
      %p177 = scmp.ne.s32.totalorder %s169, %s171
      %p178 = scmp.eq.s32.totalorder %s21, 3
      %p179 = por %p177, %p178
      %p180 = scmp.ne.s32.totalorder %s171, %s172
      %p181 = scmp.eq.s32.totalorder %s21, 0
      %p182 = por %p180, %p181
      %p183 = scmp.ne.s32.totalorder %s171, %s172
      %p184 = scmp.eq.s32.totalorder %s22, 3
      %p185 = por %p183, %p184
      %p187 = scmp.ne.s32.totalorder %s172, %s186
      %p188 = scmp.eq.s32.totalorder %s22, 0
      %p189 = por %p187, %p188
      %s190 = ssub.s32 %s23, %s35
      %s191 = ssub.s32 %s24, %s31
      %s192 = sor.u32 %s190, %s191
      %p193 = scmp.eq.s32.totalorder %s192, 0
      %s195 = sadd.s32 %s194, 1
      %s196 = scalar_select %p193, %s194, %s195
      %p199 = pneg %p193
      %p200 = scmp.eq.s32.totalorder %s16, 3
      %p201 = por %p199, %p200
      %p202 = scmp.ne.s32.totalorder %s194, %s197
      %p203 = scmp.eq.s32.totalorder %s16, 0
      %p204 = por %p202, %p203
      %p205 = scmp.ne.s32.totalorder %s194, %s197
      %p206 = scmp.eq.s32.totalorder %s21, 3
      %p207 = por %p205, %p206
      %p208 = scmp.ne.s32.totalorder %s197, %s198
      %p209 = scmp.eq.s32.totalorder %s21, 0
      %p210 = por %p208, %p209
      %p211 = scmp.ne.s32.totalorder %s197, %s198
      %p212 = scmp.eq.s32.totalorder %s22, 3
      %p213 = por %p211, %p212
      %p215 = scmp.ne.s32.totalorder %s198, %s214
      %p216 = scmp.eq.s32.totalorder %s22, 0
      %p217 = por %p215, %p216
      %p218 = scmp.le.s32.totalorder 1, %s16
      %p219 = scmp.lt.s32.totalorder %s16, 5
      %p220 = pnand %p218, %p219
      %p221 = pneg %p220
      // Predicated region
      $region9: #{tpu_custom_call.1} parent=5 // pred_check
        _
      $region10: #{tpu_custom_call.1} parent=5 // pred_check_branch
        %223 = sbr.rel (%p220) target = $region12
      $region11: #{tpu_custom_call.1} parent=5 // pred_region
        %s224 = ssub.s32 %s16, 1
        // Predicated region
        $region13: #{tpu_custom_call.1} parent=11 // pred_check
          %p225 = pneg %p77
        $region14: #{tpu_custom_call.1} parent=11 // pred_check_branch
          %227 = sbr.rel (%p225) target = $region16
        $region15: #{tpu_custom_call.1} parent=11 // pred_region
          _
        $region16: #{tpu_custom_call.1} parent=11 // pred_fallthru
          _
        // Predicated region
        $region17: #{tpu_custom_call.1} parent=11 // pred_check
          %p228 = pneg %p98
        $region18: #{tpu_custom_call.1} parent=11 // pred_check_branch
          %230 = sbr.rel (%p228) target = $region20
        $region19: #{tpu_custom_call.1} parent=11 // pred_region
          _
        $region20: #{tpu_custom_call.1} parent=11 // pred_fallthru
          _
        // Predicated region
        $region21: #{tpu_custom_call.1} parent=11 // pred_check
          %p231 = pneg %p119
        $region22: #{tpu_custom_call.1} parent=11 // pred_check_branch
          %233 = sbr.rel (%p231) target = $region24
        $region23: #{tpu_custom_call.1} parent=11 // pred_region
          _
        $region24: #{tpu_custom_call.1} parent=11 // pred_fallthru
          _
        // Predicated region
        $region25: #{tpu_custom_call.1} parent=11 // pred_check
          %p234 = pneg %p140
        $region26: #{tpu_custom_call.1} parent=11 // pred_check_branch
          %236 = sbr.rel (%p234) target = $region28
        $region27: #{tpu_custom_call.1} parent=11 // pred_region
          _
        $region28: #{tpu_custom_call.1} parent=11 // pred_fallthru
          _
        // Predicated region
        $region29: #{tpu_custom_call.1} parent=11 // pred_check
          %p237 = pneg %p161
        $region30: #{tpu_custom_call.1} parent=11 // pred_check_branch
          %239 = sbr.rel (%p237) target = $region32
        $region31: #{tpu_custom_call.1} parent=11 // pred_region
          _
        $region32: #{tpu_custom_call.1} parent=11 // pred_fallthru
          _
        // Predicated region
        $region33: #{tpu_custom_call.1} parent=11 // pred_check
          %p240 = pneg %p182
        $region34: #{tpu_custom_call.1} parent=11 // pred_check_branch
          %242 = sbr.rel (%p240) target = $region36
        $region35: #{tpu_custom_call.1} parent=11 // pred_region
          _
        $region36: #{tpu_custom_call.1} parent=11 // pred_fallthru
          _
      $region12: #{tpu_custom_call.1} parent=5 // pred_fallthru
        _
      %p243 = scmp.lt.s32.totalorder %s16, 4
      // Predicated region
      $region37: #{tpu_custom_call.1} parent=5 // pred_check
        %p244 = pneg %p243
      $region38: #{tpu_custom_call.1} parent=5 // pred_check_branch
        %246 = sbr.rel (%p244) target = $region40
      $region39: #{tpu_custom_call.1} parent=5 // pred_region
        // Predicated region
        $region41: #{tpu_custom_call.1} parent=39 // pred_check
          %p247 = pneg %p50
        $region42: #{tpu_custom_call.1} parent=39 // pred_check_branch
          %249 = sbr.rel (%p247) target = $region44
        $region43: #{tpu_custom_call.1} parent=39 // pred_region
          %p250 = scmp.lt.s32.totalorder %s23, 1
          %s251 = scalar_select %p250, %s23, 1
          %p252 = scmp.lt.s32.totalorder %s24, 1
          %s253 = scalar_select %p252, %s24, 1
          %s254 = smul.addr %s253, 36
          %s255 = smul.addr %s251, 72
          %s256 = sadd.s32 %s254, %s255
          %s257 = smul.addr %s256, 8
          %s258 = scalar_lea.vmem %s0, %s257
        $region44: #{tpu_custom_call.1} parent=39 // pred_fallthru
          _
      $region40: #{tpu_custom_call.1} parent=5 // pred_fallthru
        _
      %p259 = scmp.le.s32.totalorder 1, %s16
      %p260 = scmp.lt.s32.totalorder %s16, 5
      %p261 = pnand %p259, %p260
      %p262 = pneg %p261
      // Predicated region
      $region45: #{tpu_custom_call.1} parent=5 // pred_check
        _
      $region46: #{tpu_custom_call.1} parent=5 // pred_check_branch
        %264 = sbr.rel (%p261) target = $region48
      $region47: #{tpu_custom_call.1} parent=5 // pred_region
        %s265 = ssub.s32 %s16, 1
        %p266 = scmp.lt.s32.totalorder %s25, 1
        %s267 = scalar_select %p266, %s25, 1
        %p268 = scmp.lt.s32.totalorder %s26, 1
        %s269 = scalar_select %p268, %s26, 1
        %s270 = smul.addr %s269, 36
        %s271 = smul.addr %s267, 72
        %s272 = sadd.s32 %s270, %s271
        %s273 = smul.addr %s272, 8
        %s274 = scalar_lea.vmem %s0, %s273
        %p275 = pneg %p56
        %p276 = pneg %p53
        %p277 = pneg %p77
        %p278 = pneg %p74
        %p279 = pneg %p98
        %p280 = pneg %p95
        %p281 = pneg %p119
        %p282 = pneg %p116
        %p283 = pneg %p140
        %p284 = pneg %p137
        %p285 = pneg %p161
        %p286 = pneg %p158
        %p287 = pneg %p182
        %p288 = pneg %p179
        %p289 = pneg %p210
        %p290 = pneg %p207
        %s291 = sand.u32 %s197, 1
        %s292 = scalar_lea.sflag [#allocation7], %s291
        %s293 = sand.u32 %s197, 1
        %s294 = smul.addr %s293, 128
        %s295 = scalar_lea.vmem [#allocation6], %s294
        %p296 = scmp.lt.s32.totalorder %s25, 1
        %s297 = scalar_select %p296, %s25, 1
        %p298 = scmp.lt.s32.totalorder %s26, 1
        %s299 = scalar_select %p298, %s26, 1
        %s300 = smul.addr %s299, 36
        %s301 = smul.addr %s297, 72
        %s302 = sadd.s32 %s300, %s301
        %s303 = smul.addr %s302, 8
        %s304 = scalar_lea.vmem %s0, %s303
        %v306 = vld [vmem:[%s304] sm:$0xff]
        %v307 = vld [vmem:[%s304 + $0x8] sm:$0xff]
        %v308 = vld [vmem:[%s304 + $0x18] sm:$0xff]
        %v309 = vld [vmem:[%s304 + $0x20] sm:$0xff]
        %v310 = vld [vmem:[%s304 + $0x30] sm:$0xff]
        %v311 = vld [vmem:[%s304 + $0x38] sm:$0xff]
        %v312 = vld [vmem:[%s304 + $0x48] sm:$0xff]
        %v313 = vld [vmem:[%s304 + $0x50] sm:$0xff]
        %v314 = vld [vmem:[%s304 + $0x60] sm:$0xff]
        %v315 = vld [vmem:[%s304 + $0x68] sm:$0xff]
        %v316 = vld [vmem:[%s304 + $0x78] sm:$0xff]
        %v317 = vld [vmem:[%s304 + $0x80] sm:$0xff]
        %v318 = vld [vmem:[%s304 + $0x90] sm:$0xff]
        %v319 = vld [vmem:[%s304 + $0x98] sm:$0xff]
        %v320 = vld [vmem:[%s304 + $0xa8] sm:$0xff]
        %v321 = vld [vmem:[%s304 + $0xb0] sm:$0xff]
        %v322 = vld [vmem:[%s304 + $0xc0] sm:$0xff]
        %v323 = vld [vmem:[%s304 + $0xc8] sm:$0xff]
        %v324 = vld [vmem:[%s304 + $0xd8] sm:$0xff]
        %v325 = vld [vmem:[%s304 + $0xe0] sm:$0xff]
        %v326 = vld [vmem:[%s304 + $0xf0] sm:$0xff]
        %v327 = vld [vmem:[%s304 + $0xf8] sm:$0xff]
        %v328 = vld [vmem:[%s304 + $0x108] sm:$0xff]
        %v329 = vld [vmem:[%s304 + $0x110] sm:$0xff]
        %v330 = vpack.c.bf16 %v307, %v306
        %v331 = vpack.c.bf16 %v309, %v308
        %v332 = vpack.c.bf16 %v311, %v310
        %v333 = vpack.c.bf16 %v313, %v312
        %v334 = vpack.c.bf16 %v315, %v314
        %v335 = vpack.c.bf16 %v317, %v316
        %v336 = vpack.c.bf16 %v319, %v318
        %v337 = vpack.c.bf16 %v321, %v320
        %v338 = vpack.c.bf16 %v323, %v322
        %v339 = vpack.c.bf16 %v325, %v324
        %v340 = vpack.c.bf16 %v327, %v326
        %v341 = vpack.c.bf16 %v329, %v328
        %342 = vst [vmem:[#allocation2] sm:$0xff] %v330
        %343 = vst [vmem:[#allocation2 + $0x18] sm:$0xff] %v331
        %344 = vst [vmem:[#allocation2 + $0x30] sm:$0xff] %v332
        %345 = vst [vmem:[#allocation2 + $0x48] sm:$0xff] %v333
        %346 = vst [vmem:[#allocation2 + $0x60] sm:$0xff] %v334
        %347 = vst [vmem:[#allocation2 + $0x78] sm:$0xff] %v335
        %348 = vst [vmem:[#allocation2 + $0x90] sm:$0xff] %v336
        %349 = vst [vmem:[#allocation2 + $0xa8] sm:$0xff] %v337
        %350 = vst [vmem:[#allocation2 + $0xc0] sm:$0xff] %v338
        %351 = vst [vmem:[#allocation2 + $0xd8] sm:$0xff] %v339
        %352 = vst [vmem:[#allocation2 + $0xf0] sm:$0xff] %v340
        %353 = vst [vmem:[#allocation2 + $0x108] sm:$0xff] %v341
        %v354 = vld [vmem:[%s304 + $0x1] sm:$0xff]
        %v355 = vld [vmem:[%s304 + $0x9] sm:$0xff]
        %v356 = vld [vmem:[%s304 + $0x19] sm:$0xff]
        %v357 = vld [vmem:[%s304 + $0x21] sm:$0xff]
        %v358 = vld [vmem:[%s304 + $0x31] sm:$0xff]
        %v359 = vld [vmem:[%s304 + $0x39] sm:$0xff]
        %v360 = vld [vmem:[%s304 + $0x49] sm:$0xff]
        %v361 = vld [vmem:[%s304 + $0x51] sm:$0xff]
        %v362 = vld [vmem:[%s304 + $0x61] sm:$0xff]
        %v363 = vld [vmem:[%s304 + $0x69] sm:$0xff]
        %v364 = vld [vmem:[%s304 + $0x79] sm:$0xff]
        %v365 = vld [vmem:[%s304 + $0x81] sm:$0xff]
        %v366 = vld [vmem:[%s304 + $0x91] sm:$0xff]
        %v367 = vld [vmem:[%s304 + $0x99] sm:$0xff]
        %v368 = vld [vmem:[%s304 + $0xa9] sm:$0xff]
        %v369 = vld [vmem:[%s304 + $0xb1] sm:$0xff]
        %v370 = vld [vmem:[%s304 + $0xc1] sm:$0xff]
        %v371 = vld [vmem:[%s304 + $0xc9] sm:$0xff]
        %v372 = vld [vmem:[%s304 + $0xd9] sm:$0xff]
        %v373 = vld [vmem:[%s304 + $0xe1] sm:$0xff]
        %v374 = vld [vmem:[%s304 + $0xf1] sm:$0xff]
        %v375 = vld [vmem:[%s304 + $0xf9] sm:$0xff]
        %v376 = vld [vmem:[%s304 + $0x109] sm:$0xff]
        %v377 = vld [vmem:[%s304 + $0x111] sm:$0xff]
        %v378 = vpack.c.bf16 %v355, %v354
        %v379 = vpack.c.bf16 %v357, %v356
        %v380 = vpack.c.bf16 %v359, %v358
        %v381 = vpack.c.bf16 %v361, %v360
        %v382 = vpack.c.bf16 %v363, %v362
        %v383 = vpack.c.bf16 %v365, %v364
        %v384 = vpack.c.bf16 %v367, %v366
        %v385 = vpack.c.bf16 %v369, %v368
        %v386 = vpack.c.bf16 %v371, %v370
        %v387 = vpack.c.bf16 %v373, %v372
        %v388 = vpack.c.bf16 %v375, %v374
        %v389 = vpack.c.bf16 %v377, %v376
        %390 = vst [vmem:[#allocation2 + $0x8] sm:$0xff] %v378
        %391 = vst [vmem:[#allocation2 + $0x20] sm:$0xff] %v379
        %392 = vst [vmem:[#allocation2 + $0x38] sm:$0xff] %v380
        %393 = vst [vmem:[#allocation2 + $0x50] sm:$0xff] %v381
        %394 = vst [vmem:[#allocation2 + $0x68] sm:$0xff] %v382
        %395 = vst [vmem:[#allocation2 + $0x80] sm:$0xff] %v383
        %396 = vst [vmem:[#allocation2 + $0x98] sm:$0xff] %v384
        %397 = vst [vmem:[#allocation2 + $0xb0] sm:$0xff] %v385
        %398 = vst [vmem:[#allocation2 + $0xc8] sm:$0xff] %v386
        %399 = vst [vmem:[#allocation2 + $0xe0] sm:$0xff] %v387
        %400 = vst [vmem:[#allocation2 + $0xf8] sm:$0xff] %v388
        %401 = vst [vmem:[#allocation2 + $0x110] sm:$0xff] %v389
        %v402 = vld [vmem:[%s304 + $0x2] sm:$0xff]
        %v403 = vld [vmem:[%s304 + $0xa] sm:$0xff]
        %v404 = vld [vmem:[%s304 + $0x1a] sm:$0xff]
        %v405 = vld [vmem:[%s304 + $0x22] sm:$0xff]
        %v406 = vld [vmem:[%s304 + $0x32] sm:$0xff]
        %v407 = vld [vmem:[%s304 + $0x3a] sm:$0xff]
        %v408 = vld [vmem:[%s304 + $0x4a] sm:$0xff]
        %v409 = vld [vmem:[%s304 + $0x52] sm:$0xff]
        %v410 = vld [vmem:[%s304 + $0x62] sm:$0xff]
        %v411 = vld [vmem:[%s304 + $0x6a] sm:$0xff]
        %v412 = vld [vmem:[%s304 + $0x7a] sm:$0xff]
        %v413 = vld [vmem:[%s304 + $0x82] sm:$0xff]
        %v414 = vld [vmem:[%s304 + $0x92] sm:$0xff]
        %v415 = vld [vmem:[%s304 + $0x9a] sm:$0xff]
        %v416 = vld [vmem:[%s304 + $0xaa] sm:$0xff]
        %v417 = vld [vmem:[%s304 + $0xb2] sm:$0xff]
        %v418 = vld [vmem:[%s304 + $0xc2] sm:$0xff]
        %v419 = vld [vmem:[%s304 + $0xca] sm:$0xff]
        %v420 = vld [vmem:[%s304 + $0xda] sm:$0xff]
        %v421 = vld [vmem:[%s304 + $0xe2] sm:$0xff]
        %v422 = vld [vmem:[%s304 + $0xf2] sm:$0xff]
        %v423 = vld [vmem:[%s304 + $0xfa] sm:$0xff]
        %v424 = vld [vmem:[%s304 + $0x10a] sm:$0xff]
        %v425 = vld [vmem:[%s304 + $0x112] sm:$0xff]
        %v426 = vpack.c.bf16 %v403, %v402
        %v427 = vpack.c.bf16 %v405, %v404
        %v428 = vpack.c.bf16 %v407, %v406
        %v429 = vpack.c.bf16 %v409, %v408
        %v430 = vpack.c.bf16 %v411, %v410
        %v431 = vpack.c.bf16 %v413, %v412
        %v432 = vpack.c.bf16 %v415, %v414
        %v433 = vpack.c.bf16 %v417, %v416
        %v434 = vpack.c.bf16 %v419, %v418
        %v435 = vpack.c.bf16 %v421, %v420
        %v436 = vpack.c.bf16 %v423, %v422
        %v437 = vpack.c.bf16 %v425, %v424
        %438 = vst [vmem:[#allocation2 + $0x10] sm:$0xff] %v426
        %439 = vst [vmem:[#allocation2 + $0x28] sm:$0xff] %v427
        %440 = vst [vmem:[#allocation2 + $0x40] sm:$0xff] %v428
        %441 = vst [vmem:[#allocation2 + $0x58] sm:$0xff] %v429
        %442 = vst [vmem:[#allocation2 + $0x70] sm:$0xff] %v430
        %443 = vst [vmem:[#allocation2 + $0x88] sm:$0xff] %v431
        %444 = vst [vmem:[#allocation2 + $0xa0] sm:$0xff] %v432
        %445 = vst [vmem:[#allocation2 + $0xb8] sm:$0xff] %v433
        %446 = vst [vmem:[#allocation2 + $0xd0] sm:$0xff] %v434
        %447 = vst [vmem:[#allocation2 + $0xe8] sm:$0xff] %v435
        %448 = vst [vmem:[#allocation2 + $0x100] sm:$0xff] %v436
        %449 = vst [vmem:[#allocation2 + $0x118] sm:$0xff] %v437
        %v450 = vld [vmem:[#allocation2] sm:$0xff]
        %v451 = vld [vmem:[#allocation2 + $0x8] sm:$0xff]
        %v452 = vld [vmem:[#allocation2 + $0x10] sm:$0xff]
        %v453 = vld [vmem:[#allocation2 + $0x18] sm:$0xff]
        %v454 = vld [vmem:[#allocation2 + $0x20] sm:$0xff]
        %v455 = vld [vmem:[#allocation2 + $0x28] sm:$0xff]
        %v456 = vld [vmem:[#allocation2 + $0x30] sm:$0xff]
        %v457 = vld [vmem:[#allocation2 + $0x38] sm:$0xff]
        %v458 = vld [vmem:[#allocation2 + $0x40] sm:$0xff]
        %v459 = vld [vmem:[#allocation2 + $0x48] sm:$0xff]
        %v460 = vld [vmem:[#allocation2 + $0x50] sm:$0xff]
        %v461 = vld [vmem:[#allocation2 + $0x58] sm:$0xff]
        %v462 = vld [vmem:[#allocation2 + $0x60] sm:$0xff]
        %v463 = vld [vmem:[#allocation2 + $0x68] sm:$0xff]
        %v464 = vld [vmem:[#allocation2 + $0x70] sm:$0xff]
        %v465 = vld [vmem:[#allocation2 + $0x78] sm:$0xff]
        %v466 = vld [vmem:[#allocation2 + $0x80] sm:$0xff]
        %v467 = vld [vmem:[#allocation2 + $0x88] sm:$0xff]
        %v468 = vld [vmem:[#allocation2 + $0x90] sm:$0xff]
        %v469 = vld [vmem:[#allocation2 + $0x98] sm:$0xff]
        %v470 = vld [vmem:[#allocation2 + $0xa0] sm:$0xff]
        %v471 = vld [vmem:[#allocation2 + $0xa8] sm:$0xff]
        %v472 = vld [vmem:[#allocation2 + $0xb0] sm:$0xff]
        %v473 = vld [vmem:[#allocation2 + $0xb8] sm:$0xff]
        %v474 = vld [vmem:[#allocation2 + $0xc0] sm:$0xff]
        %v475 = vld [vmem:[#allocation2 + $0xc8] sm:$0xff]
        %v476 = vld [vmem:[#allocation2 + $0xd0] sm:$0xff]
        %v477 = vld [vmem:[#allocation2 + $0xd8] sm:$0xff]
        %v478 = vld [vmem:[#allocation2 + $0xe0] sm:$0xff]
        %v479 = vld [vmem:[#allocation2 + $0xe8] sm:$0xff]
        %v480 = vld [vmem:[%s1] sm:$0xf]
        %v481 = vld [vmem:[%s1 + $0x4] sm:$0xf]
        %v482 = vld [vmem:[%s1 + $0x8] sm:$0xf]
        %v483 = vld [vmem:[%s1 + $0xc] sm:$0xf]
        %v484 = vld [vmem:[%s1 + $0x10] sm:$0xf]
        %v485 = vld [vmem:[%s1 + $0x14] sm:$0xf]
        %v486 = vld [vmem:[%s1 + $0x18] sm:$0xf]
        %v487 = vld [vmem:[%s1 + $0x1c] sm:$0xf]
        %v488 = vld [vmem:[%s1 + $0x20] sm:$0xf]
        %v489 = vld [vmem:[%s1 + $0x24] sm:$0xf]
        %v490 = vld [vmem:[%s1 + $0x28] sm:$0xf]
        %v491 = vld [vmem:[%s1 + $0x2c] sm:$0xf]
        %v492 = vld [vmem:[%s1 + $0x30] sm:$0xf]
        %v493 = vld [vmem:[%s1 + $0x34] sm:$0xf]
        %v494 = vld [vmem:[%s1 + $0x38] sm:$0xf]
        %v495 = vld [vmem:[%s1 + $0x3c] sm:$0xf]
        %v496 = vld [vmem:[%s1 + $0x40] sm:$0xf]
        %v497 = vld [vmem:[%s1 + $0x44] sm:$0xf]
        %v498 = vld [vmem:[%s1 + $0x48] sm:$0xf]
        %v499 = vld [vmem:[%s1 + $0x4c] sm:$0xf]
        %v500 = vld [vmem:[%s1 + $0x50] sm:$0xf]
        %v501 = vld [vmem:[%s1 + $0x54] sm:$0xf]
        %v502 = vld [vmem:[%s1 + $0x58] sm:$0xf]
        %v503 = vld [vmem:[%s1 + $0x5c] sm:$0xf]
        %v504 = vld [vmem:[%s1 + $0x60] sm:$0xf]
        %v505 = vld [vmem:[%s1 + $0x64] sm:$0xf]
        %v506 = vld [vmem:[%s1 + $0x68] sm:$0xf]
        %v507 = vld [vmem:[%s1 + $0x6c] sm:$0xf]
        %v508 = vld [vmem:[%s1 + $0x70] sm:$0xf]
        %v509 = vld [vmem:[%s1 + $0x74] sm:$0xf]
        %v510 = vld [vmem:[%s1 + $0x78] sm:$0xf]
        %v511 = vld [vmem:[%s1 + $0x7c] sm:$0xf]
        %v512 = vld [vmem:[%s1 + $0x80] sm:$0xf]
        %v513 = vld [vmem:[%s1 + $0x84] sm:$0xf]
        %v514 = vld [vmem:[%s1 + $0x88] sm:$0xf]
        %v515 = vld [vmem:[%s1 + $0x8c] sm:$0xf]
        %v516 = vld [vmem:[%s1 + $0x90] sm:$0xf]
        %v517 = vld [vmem:[%s1 + $0x94] sm:$0xf]
        %v518 = vld [vmem:[%s1 + $0x98] sm:$0xf]
        %v519 = vld [vmem:[%s1 + $0x9c] sm:$0xf]
        %v520 = vld [vmem:[%s1 + $0xa0] sm:$0xf]
        %v521 = vld [vmem:[%s1 + $0xa4] sm:$0xf]
        %v522 = vld [vmem:[%s1 + $0xa8] sm:$0xf]
        %v523 = vld [vmem:[%s1 + $0xac] sm:$0xf]
        %v524 = vld [vmem:[%s1 + $0xb0] sm:$0xf]
        %v525 = vld [vmem:[%s1 + $0xb4] sm:$0xf]
        %v526 = vld [vmem:[%s1 + $0xb8] sm:$0xf]
        %v527 = vld [vmem:[%s1 + $0xbc] sm:$0xf]
        %v576 = vunpack.c.l.b16 %v480
        %v577 = vunpack.c.l.b16 %v481
        %v578 = vunpack.c.l.b16 %v482
        %v579 = vunpack.c.l.b16 %v483
        %v580 = vunpack.c.l.b16 %v484
        %v581 = vunpack.c.l.b16 %v485
        %v582 = vunpack.c.l.b16 %v486
        %v583 = vunpack.c.l.b16 %v487
        %v584 = vunpack.c.l.b16 %v488
        %v585 = vunpack.c.l.b16 %v489
        %v586 = vunpack.c.l.b16 %v490
        %v587 = vunpack.c.l.b16 %v491
        %v588 = vunpack.c.l.b16 %v492
        %v589 = vunpack.c.l.b16 %v493
        %v590 = vunpack.c.l.b16 %v494
        %v591 = vunpack.c.l.b16 %v495
        %v592 = vunpack.c.l.b16 %v496
        %v593 = vunpack.c.l.b16 %v497
        %v594 = vunpack.c.l.b16 %v498
        %v595 = vunpack.c.l.b16 %v499
        %v596 = vunpack.c.l.b16 %v500
        %v597 = vunpack.c.l.b16 %v501
        %v598 = vunpack.c.l.b16 %v502
        %v599 = vunpack.c.l.b16 %v503
        %v600 = vunpack.c.l.b16 %v504
        %v601 = vunpack.c.l.b16 %v505
        %v602 = vunpack.c.l.b16 %v506
        %v603 = vunpack.c.l.b16 %v507
        %v604 = vunpack.c.l.b16 %v508
        %v605 = vunpack.c.l.b16 %v509
        %v606 = vunpack.c.l.b16 %v510
        %v607 = vunpack.c.l.b16 %v511
        %v608 = vunpack.c.l.b16 %v512
        %v609 = vunpack.c.l.b16 %v513
        %v610 = vunpack.c.l.b16 %v514
        %v611 = vunpack.c.l.b16 %v515
        %v612 = vunpack.c.l.b16 %v516
        %v613 = vunpack.c.l.b16 %v517
        %v614 = vunpack.c.l.b16 %v518
        %v615 = vunpack.c.l.b16 %v519
        %v616 = vunpack.c.l.b16 %v520
        %v617 = vunpack.c.l.b16 %v521
        %v618 = vunpack.c.l.b16 %v522
        %v619 = vunpack.c.l.b16 %v523
        %v620 = vunpack.c.l.b16 %v524
        %v621 = vunpack.c.l.b16 %v525
        %v622 = vunpack.c.l.b16 %v526
        %v623 = vunpack.c.l.b16 %v527
        %v624 = vpack.c.b16 %v577, %v576
        %v625 = vpack.c.b16 %v579, %v578
        %v626 = vpack.c.b16 %v581, %v580
        %v627 = vpack.c.b16 %v583, %v582
        %v628 = vpack.c.b16 %v585, %v584
        %v629 = vpack.c.b16 %v587, %v586
        %v630 = vpack.c.b16 %v589, %v588
        %v631 = vpack.c.b16 %v591, %v590
        %v632 = vpack.c.b16 %v593, %v592
        %v633 = vpack.c.b16 %v595, %v594
        %v634 = vpack.c.b16 %v597, %v596
        %v635 = vpack.c.b16 %v599, %v598
        %v636 = vpack.c.b16 %v601, %v600
        %v637 = vpack.c.b16 %v603, %v602
        %v638 = vpack.c.b16 %v605, %v604
        %v639 = vpack.c.b16 %v607, %v606
        %v640 = vpack.c.b16 %v609, %v608
        %v641 = vpack.c.b16 %v611, %v610
        %v642 = vpack.c.b16 %v613, %v612
        %v643 = vpack.c.b16 %v615, %v614
        %v644 = vpack.c.b16 %v617, %v616
        %v645 = vpack.c.b16 %v619, %v618
        %v646 = vpack.c.b16 %v621, %v620
        %v647 = vpack.c.b16 %v623, %v622
        %672 = vmatprep.subr.bf16.mxu0 0
        %673 = vmatpush1.bf16.msra.mxu0 %v624
        %674 = vmatprep.subr.bf16.mxu0 0
        %675 = vmatpush1.bf16.msra.mxu0 %v625
        %676 = vmatprep.subr.bf16.mxu0 0
        %677 = vmatpush1.bf16.msra.mxu0 %v626
        %678 = vmatprep.subr.bf16.mxu0 0
        %679 = vmatpush1.bf16.msra.mxu0 %v627
        %680 = vmatprep.subr.bf16.mxu0 0
        %681 = vmatpush1.bf16.msra.mxu0 %v628
        %682 = vmatprep.subr.bf16.mxu0 0
        %683 = vmatpush1.bf16.msra.mxu0 %v629
        %684 = vmatprep.subr.bf16.mxu0 0
        %685 = vmatpush1.bf16.msra.mxu0 %v630
        %686 = vmatprep.subr.bf16.mxu0 0
        %687 = vmatpush1.bf16.msra.mxu0 %v631
        %688 = vmatprep.subr.bf16.mxu0 0
        %689 = vmatpush1.bf16.msra.mxu0 %v632
        %690 = vmatprep.subr.bf16.mxu0 0
        %691 = vmatpush1.bf16.msra.mxu0 %v633
        %692 = vmatprep.subr.bf16.mxu0 0
        %693 = vmatpush1.bf16.msra.mxu0 %v634
        %694 = vmatprep.subr.bf16.mxu0 0
        %695 = vmatpush1.bf16.msra.mxu0 %v635
        %696 = vmatprep.subr.bf16.mxu0 0
        %697 = vmatpush1.bf16.msra.mxu0 %v636
        %698 = vmatprep.subr.bf16.mxu0 0
        %699 = vmatpush1.bf16.msra.mxu0 %v637
        %700 = vmatprep.subr.bf16.mxu0 0
        %701 = vmatpush1.bf16.msra.mxu0 %v638
        %702 = vmatprep.subr.bf16.mxu0 0
        %703 = vmatpush1.bf16.msra.mxu0 %v639
        %704 = vmatprep.mubr.bf16.mxu0 %v451
        %705 = vmatmul.mubr.bf16.gmra.mrb[0].mxu0 %v450
        %v706 = vpop.f32.mrb[0].mxu0
        %v707 = vadd.f32 0.0, %v706
        %v708 = vpop.f32.mrb[0].mxu0
        %v709 = vpop.f32.mrb[0].mxu0
        %v710 = vadd.f32 0.0, %v709
        %v711 = vpop.f32.mrb[0].mxu0
        %712 = vmatprep.mubr.bf16.mxu0 %v454
        %713 = vmatmul.mubr.bf16.gmra.mrb[0].mxu0 %v453
        %v714 = vpop.f32.mrb[0].mxu0
        %v715 = vadd.f32 0.0, %v714
        %v716 = vpop.f32.mrb[0].mxu0
        %v717 = vpop.f32.mrb[0].mxu0
        %v718 = vadd.f32 0.0, %v717
        %v719 = vpop.f32.mrb[0].mxu0
        %720 = vmatprep.mubr.bf16.mxu0 %v457
        %721 = vmatmul.mubr.bf16.gmra.mrb[0].mxu0 %v456
        %v722 = vpop.f32.mrb[0].mxu0
        %v723 = vadd.f32 0.0, %v722
        %v724 = vpop.f32.mrb[0].mxu0
        %v725 = vpop.f32.mrb[0].mxu0
        %v726 = vadd.f32 0.0, %v725
        %v727 = vpop.f32.mrb[0].mxu0
        %728 = vmatprep.mubr.bf16.mxu0 %v460
        %729 = vmatmul.mubr.bf16.gmra.mrb[0].mxu0 %v459
        %v730 = vpop.f32.mrb[0].mxu0
        %v731 = vadd.f32 0.0, %v730
        %v732 = vpop.f32.mrb[0].mxu0
        %v733 = vpop.f32.mrb[0].mxu0
        %v734 = vadd.f32 0.0, %v733
        %v735 = vpop.f32.mrb[0].mxu0
        %736 = vmatprep.mubr.bf16.mxu0 %v463
        %737 = vmatmul.mubr.bf16.gmra.mrb[0].mxu0 %v462
        %v738 = vpop.f32.mrb[0].mxu0
        %v739 = vadd.f32 0.0, %v738
        %v740 = vpop.f32.mrb[0].mxu0
        %v741 = vpop.f32.mrb[0].mxu0
        %v742 = vadd.f32 0.0, %v741
        %v743 = vpop.f32.mrb[0].mxu0
        %744 = vmatprep.mubr.bf16.mxu0 %v466
        %745 = vmatmul.mubr.bf16.gmra.mrb[0].mxu0 %v465
        %v746 = vpop.f32.mrb[0].mxu0
        %v747 = vadd.f32 0.0, %v746
        %v748 = vpop.f32.mrb[0].mxu0
        %v749 = vpop.f32.mrb[0].mxu0
        %v750 = vadd.f32 0.0, %v749
        %v751 = vpop.f32.mrb[0].mxu0
        %752 = vmatprep.mubr.bf16.mxu0 %v469
        %753 = vmatmul.mubr.bf16.gmra.mrb[0].mxu0 %v468
        %v754 = vpop.f32.mrb[0].mxu0
        %v755 = vadd.f32 0.0, %v754
        %v756 = vpop.f32.mrb[0].mxu0
        %v757 = vpop.f32.mrb[0].mxu0
        %v758 = vadd.f32 0.0, %v757
        %v759 = vpop.f32.mrb[0].mxu0
        %760 = vmatprep.mubr.bf16.mxu0 %v472
        %761 = vmatmul.mubr.bf16.gmra.mrb[0].mxu0 %v471
        %v762 = vpop.f32.mrb[0].mxu0
        %v763 = vadd.f32 0.0, %v762
        %v764 = vpop.f32.mrb[0].mxu0
        %v765 = vpop.f32.mrb[0].mxu0
        %v766 = vadd.f32 0.0, %v765
        %v767 = vpop.f32.mrb[0].mxu0
        %768 = vmatprep.mubr.bf16.mxu0 %v475
        %769 = vmatmul.mubr.bf16.gmra.mrb[0].mxu0 %v474
        %v770 = vpop.f32.mrb[0].mxu0
        %v771 = vadd.f32 0.0, %v770
        %v772 = vpop.f32.mrb[0].mxu0
        %v773 = vpop.f32.mrb[0].mxu0
        %v774 = vadd.f32 0.0, %v773
        %v775 = vpop.f32.mrb[0].mxu0
        %776 = vmatprep.mubr.bf16.mxu0 %v478
        %777 = vmatmul.mubr.bf16.gmra.mrb[0].mxu0 %v477
        %v778 = vpop.f32.mrb[0].mxu0
        %v779 = vadd.f32 0.0, %v778
        %v780 = vpop.f32.mrb[0].mxu0
        %v781 = vpop.f32.mrb[0].mxu0
        %v782 = vadd.f32 0.0, %v781
        %v783 = vpop.f32.mrb[0].mxu0
        %784 = vdwg.mxu0
        %785 = vmatprep.subr.bf16.mxu0 0
        %786 = vmatpush1.bf16.msra.mxu0 %v640
        %787 = vmatprep.subr.bf16.mxu0 0
        %788 = vmatpush1.bf16.msra.mxu0 %v641
        %789 = vmatprep.subr.bf16.mxu0 0
        %790 = vmatpush1.bf16.msra.mxu0 %v642
        %791 = vmatprep.subr.bf16.mxu0 0
        %792 = vmatpush1.bf16.msra.mxu0 %v643
        %793 = vmatprep.subr.bf16.mxu0 0
        %794 = vmatpush1.bf16.msra.mxu0 %v644
        %795 = vmatprep.subr.bf16.mxu0 0
        %796 = vmatpush1.bf16.msra.mxu0 %v645
        %797 = vmatprep.subr.bf16.mxu0 0
        %798 = vmatpush1.bf16.msra.mxu0 %v646
        %799 = vmatprep.subr.bf16.mxu0 0
        %800 = vmatpush1.bf16.msra.mxu0 %v647
        %801 = vmatprep.subr.bf16.mxu0 0
        %802 = vmatpush1.bf16.msra.mxu0 0
        %803 = vmatprep.subr.bf16.mxu0 0
        %804 = vmatpush1.bf16.msra.mxu0 0
        %805 = vmatprep.subr.bf16.mxu0 0
        %806 = vmatpush1.bf16.msra.mxu0 0
        %807 = vmatprep.subr.bf16.mxu0 0
        %808 = vmatpush1.bf16.msra.mxu0 0
        %809 = vmatprep.subr.bf16.mxu0 0
        %810 = vmatpush1.bf16.msra.mxu0 0
        %811 = vmatprep.subr.bf16.mxu0 0
        %812 = vmatpush1.bf16.msra.mxu0 0
        %813 = vmatprep.subr.bf16.mxu0 0
        %814 = vmatpush1.bf16.msra.mxu0 0
        %815 = vmatprep.subr.bf16.mxu0 0
        %816 = vmatpush1.bf16.msra.mxu0 0
        %817 = vmatprep.mubr.bf16.mxu0 0
        %818 = vmatmul.mubr.bf16.gmra.mrb[0].mxu0 %v452
        %v819 = vpop.f32.mrb[0].mxu0
        %v820 = vadd.f32 %v707, %v819
        %v821 = vpop.f32.mrb[0].mxu0
        %v822 = vpop.f32.mrb[0].mxu0
        %v823 = vadd.f32 %v710, %v822
        %v824 = vpop.f32.mrb[0].mxu0
        %825 = vmatprep.mubr.bf16.mxu0 0
        %826 = vmatmul.mubr.bf16.gmra.mrb[0].mxu0 %v455
        %v827 = vpop.f32.mrb[0].mxu0
        %v828 = vadd.f32 %v715, %v827
        %v829 = vpop.f32.mrb[0].mxu0
        %v830 = vpop.f32.mrb[0].mxu0
        %v831 = vadd.f32 %v718, %v830
        %v832 = vpop.f32.mrb[0].mxu0
        %833 = vmatprep.mubr.bf16.mxu0 0
        %834 = vmatmul.mubr.bf16.gmra.mrb[0].mxu0 %v458
        %v835 = vpop.f32.mrb[0].mxu0
        %v836 = vadd.f32 %v723, %v835
        %v837 = vpop.f32.mrb[0].mxu0
        %v838 = vpop.f32.mrb[0].mxu0
        %v839 = vadd.f32 %v726, %v838
        %v840 = vpop.f32.mrb[0].mxu0
        %841 = vmatprep.mubr.bf16.mxu0 0
        %842 = vmatmul.mubr.bf16.gmra.mrb[0].mxu0 %v461
        %v843 = vpop.f32.mrb[0].mxu0
        %v844 = vadd.f32 %v731, %v843
        %v845 = vpop.f32.mrb[0].mxu0
        %v846 = vpop.f32.mrb[0].mxu0
        %v847 = vadd.f32 %v734, %v846
        %v848 = vpop.f32.mrb[0].mxu0
        %849 = vmatprep.mubr.bf16.mxu0 0
        %850 = vmatmul.mubr.bf16.gmra.mrb[0].mxu0 %v464
        %v851 = vpop.f32.mrb[0].mxu0
        %v852 = vadd.f32 %v739, %v851
        %v853 = vpop.f32.mrb[0].mxu0
        %v854 = vpop.f32.mrb[0].mxu0
        %v855 = vadd.f32 %v742, %v854
        %v856 = vpop.f32.mrb[0].mxu0
        %857 = vmatprep.mubr.bf16.mxu0 0
        %858 = vmatmul.mubr.bf16.gmra.mrb[0].mxu0 %v467
        %v859 = vpop.f32.mrb[0].mxu0
        %v860 = vadd.f32 %v747, %v859
        %v861 = vpop.f32.mrb[0].mxu0
        %v862 = vpop.f32.mrb[0].mxu0
        %v863 = vadd.f32 %v750, %v862
        %v864 = vpop.f32.mrb[0].mxu0
        %865 = vmatprep.mubr.bf16.mxu0 0
        %866 = vmatmul.mubr.bf16.gmra.mrb[0].mxu0 %v470
        %v867 = vpop.f32.mrb[0].mxu0
        %v868 = vadd.f32 %v755, %v867
        %v869 = vpop.f32.mrb[0].mxu0
        %v870 = vpop.f32.mrb[0].mxu0
        %v871 = vadd.f32 %v758, %v870
        %v872 = vpop.f32.mrb[0].mxu0
        %873 = vmatprep.mubr.bf16.mxu0 0
        %874 = vmatmul.mubr.bf16.gmra.mrb[0].mxu0 %v473
        %v875 = vpop.f32.mrb[0].mxu0
        %v876 = vadd.f32 %v763, %v875
        %v877 = vpop.f32.mrb[0].mxu0
        %v878 = vpop.f32.mrb[0].mxu0
        %v879 = vadd.f32 %v766, %v878
        %v880 = vpop.f32.mrb[0].mxu0
        %881 = vmatprep.mubr.bf16.mxu0 0
        %882 = vmatmul.mubr.bf16.gmra.mrb[0].mxu0 %v476
        %v883 = vpop.f32.mrb[0].mxu0
        %v884 = vadd.f32 %v771, %v883
        %v885 = vpop.f32.mrb[0].mxu0
        %v886 = vpop.f32.mrb[0].mxu0
        %v887 = vadd.f32 %v774, %v886
        %v888 = vpop.f32.mrb[0].mxu0
        %889 = vmatprep.mubr.bf16.mxu0 0
        %890 = vmatmul.mubr.bf16.gmra.mrb[0].mxu0 %v479
        %v891 = vpop.f32.mrb[0].mxu0
        %v892 = vadd.f32 %v779, %v891
        %v893 = vpop.f32.mrb[0].mxu0
        %v894 = vpop.f32.mrb[0].mxu0
        %v895 = vadd.f32 %v782, %v894
        %v896 = vpop.f32.mrb[0].mxu0
        %897 = vdwg.mxu0
        %898 = vst [vmem:[#allocation5] sm:$0xff] %v820
        %899 = vst [vmem:[#allocation5 + $0x8] sm:$0xff] %v823
        %900 = vst [vmem:[#allocation5 + $0x10] sm:$0xff] %v828
        %901 = vst [vmem:[#allocation5 + $0x18] sm:$0xff] %v831
        %902 = vst [vmem:[#allocation5 + $0x20] sm:$0xff] %v836
        %903 = vst [vmem:[#allocation5 + $0x28] sm:$0xff] %v839
        %904 = vst [vmem:[#allocation5 + $0x30] sm:$0xff] %v844
        %905 = vst [vmem:[#allocation5 + $0x38] sm:$0xff] %v847
        %906 = vst [vmem:[#allocation5 + $0x40] sm:$0xff] %v852
        %907 = vst [vmem:[#allocation5 + $0x48] sm:$0xff] %v855
        %908 = vst [vmem:[#allocation5 + $0x50] sm:$0xff] %v860
        %909 = vst [vmem:[#allocation5 + $0x58] sm:$0xff] %v863
        %910 = vst [vmem:[#allocation5 + $0x60] sm:$0xff] %v868
        %911 = vst [vmem:[#allocation5 + $0x68] sm:$0xff] %v871
        %912 = vst [vmem:[#allocation5 + $0x70] sm:$0xff] %v876
        %913 = vst [vmem:[#allocation5 + $0x78] sm:$0xff] %v879
        %914 = vst [vmem:[#allocation5 + $0x80] sm:$0xff] %v884
        %915 = vst [vmem:[#allocation5 + $0x88] sm:$0xff] %v887
        %916 = vst [vmem:[#allocation5 + $0x90] sm:$0xff] %v892
        %917 = vst [vmem:[#allocation5 + $0x98] sm:$0xff] %v895
        %s918 = scalar_lea.vmem [#allocation2], 24
        %v919 = vld [vmem:[%s918] sm:$0xff]
        %v920 = vld [vmem:[%s918 + $0x8] sm:$0xff]
        %v921 = vld [vmem:[%s918 + $0x10] sm:$0xff]
        %v922 = vld [vmem:[%s918 + $0x18] sm:$0xff]
        %v923 = vld [vmem:[%s918 + $0x20] sm:$0xff]
        %v924 = vld [vmem:[%s918 + $0x28] sm:$0xff]
        %v925 = vld [vmem:[%s918 + $0x30] sm:$0xff]
        %v926 = vld [vmem:[%s918 + $0x38] sm:$0xff]
        %v927 = vld [vmem:[%s918 + $0x40] sm:$0xff]
        %v928 = vld [vmem:[%s918 + $0x48] sm:$0xff]
        %v929 = vld [vmem:[%s918 + $0x50] sm:$0xff]
        %v930 = vld [vmem:[%s918 + $0x58] sm:$0xff]
        %v931 = vld [vmem:[%s918 + $0x60] sm:$0xff]
        %v932 = vld [vmem:[%s918 + $0x68] sm:$0xff]
        %v933 = vld [vmem:[%s918 + $0x70] sm:$0xff]
        %v934 = vld [vmem:[%s918 + $0x78] sm:$0xff]
        %v935 = vld [vmem:[%s918 + $0x80] sm:$0xff]
        %v936 = vld [vmem:[%s918 + $0x88] sm:$0xff]
        %v937 = vld [vmem:[%s918 + $0x90] sm:$0xff]
        %v938 = vld [vmem:[%s918 + $0x98] sm:$0xff]
        %v939 = vld [vmem:[%s918 + $0xa0] sm:$0xff]
        %v940 = vld [vmem:[%s918 + $0xa8] sm:$0xff]
        %v941 = vld [vmem:[%s918 + $0xb0] sm:$0xff]
        %v942 = vld [vmem:[%s918 + $0xb8] sm:$0xff]
        %v943 = vld [vmem:[%s918 + $0xc0] sm:$0xff]
        %v944 = vld [vmem:[%s918 + $0xc8] sm:$0xff]
        %v945 = vld [vmem:[%s918 + $0xd0] sm:$0xff]
        %v946 = vld [vmem:[%s918 + $0xd8] sm:$0xff]
        %v947 = vld [vmem:[%s918 + $0xe0] sm:$0xff]
        %v948 = vld [vmem:[%s918 + $0xe8] sm:$0xff]
        %s949 = scalar_lea.vmem %s1, 192
        %v950 = vld [vmem:[%s949] sm:$0xf]
        %v951 = vld [vmem:[%s949 + $0x4] sm:$0xf]
        %v952 = vld [vmem:[%s949 + $0x8] sm:$0xf]
        %v953 = vld [vmem:[%s949 + $0xc] sm:$0xf]
        %v954 = vld [vmem:[%s949 + $0x10] sm:$0xf]
        %v955 = vld [vmem:[%s949 + $0x14] sm:$0xf]
        %v956 = vld [vmem:[%s949 + $0x18] sm:$0xf]
        %v957 = vld [vmem:[%s949 + $0x1c] sm:$0xf]
        %v958 = vld [vmem:[%s949 + $0x20] sm:$0xf]
        %v959 = vld [vmem:[%s949 + $0x24] sm:$0xf]
        %v960 = vld [vmem:[%s949 + $0x28] sm:$0xf]
        %v961 = vld [vmem:[%s949 + $0x2c] sm:$0xf]
        %v962 = vld [vmem:[%s949 + $0x30] sm:$0xf]
        %v963 = vld [vmem:[%s949 + $0x34] sm:$0xf]
        %v964 = vld [vmem:[%s949 + $0x38] sm:$0xf]
        %v965 = vld [vmem:[%s949 + $0x3c] sm:$0xf]
        %v966 = vld [vmem:[%s949 + $0x40] sm:$0xf]
        %v967 = vld [vmem:[%s949 + $0x44] sm:$0xf]
        %v968 = vld [vmem:[%s949 + $0x48] sm:$0xf]
        %v969 = vld [vmem:[%s949 + $0x4c] sm:$0xf]
        %v970 = vld [vmem:[%s949 + $0x50] sm:$0xf]
        %v971 = vld [vmem:[%s949 + $0x54] sm:$0xf]
        %v972 = vld [vmem:[%s949 + $0x58] sm:$0xf]
        %v973 = vld [vmem:[%s949 + $0x5c] sm:$0xf]
        %v974 = vld [vmem:[%s949 + $0x60] sm:$0xf]
        %v975 = vld [vmem:[%s949 + $0x64] sm:$0xf]
        %v976 = vld [vmem:[%s949 + $0x68] sm:$0xf]
        %v977 = vld [vmem:[%s949 + $0x6c] sm:$0xf]
        %v978 = vld [vmem:[%s949 + $0x70] sm:$0xf]
        %v979 = vld [vmem:[%s949 + $0x74] sm:$0xf]
        %v980 = vld [vmem:[%s949 + $0x78] sm:$0xf]
        %v981 = vld [vmem:[%s949 + $0x7c] sm:$0xf]
        %v982 = vld [vmem:[%s949 + $0x80] sm:$0xf]
        %v983 = vld [vmem:[%s949 + $0x84] sm:$0xf]
        %v984 = vld [vmem:[%s949 + $0x88] sm:$0xf]
        %v985 = vld [vmem:[%s949 + $0x8c] sm:$0xf]
        %v986 = vld [vmem:[%s949 + $0x90] sm:$0xf]
        %v987 = vld [vmem:[%s949 + $0x94] sm:$0xf]
        %v988 = vld [vmem:[%s949 + $0x98] sm:$0xf]
        %v989 = vld [vmem:[%s949 + $0x9c] sm:$0xf]
        %v990 = vld [vmem:[%s949 + $0xa0] sm:$0xf]
        %v991 = vld [vmem:[%s949 + $0xa4] sm:$0xf]
        %v992 = vld [vmem:[%s949 + $0xa8] sm:$0xf]
        %v993 = vld [vmem:[%s949 + $0xac] sm:$0xf]
        %v994 = vld [vmem:[%s949 + $0xb0] sm:$0xf]
        %v995 = vld [vmem:[%s949 + $0xb4] sm:$0xf]
        %v996 = vld [vmem:[%s949 + $0xb8] sm:$0xf]
        %v997 = vld [vmem:[%s949 + $0xbc] sm:$0xf]
        %v1046 = vunpack.c.l.b16 %v950
        %v1047 = vunpack.c.l.b16 %v951
        %v1048 = vunpack.c.l.b16 %v952
        %v1049 = vunpack.c.l.b16 %v953
        %v1050 = vunpack.c.l.b16 %v954
        %v1051 = vunpack.c.l.b16 %v955
        %v1052 = vunpack.c.l.b16 %v956
        %v1053 = vunpack.c.l.b16 %v957
        %v1054 = vunpack.c.l.b16 %v958
        %v1055 = vunpack.c.l.b16 %v959
        %v1056 = vunpack.c.l.b16 %v960
        %v1057 = vunpack.c.l.b16 %v961
        %v1058 = vunpack.c.l.b16 %v962
        %v1059 = vunpack.c.l.b16 %v963
        %v1060 = vunpack.c.l.b16 %v964
        %v1061 = vunpack.c.l.b16 %v965
        %v1062 = vunpack.c.l.b16 %v966
        %v1063 = vunpack.c.l.b16 %v967
        %v1064 = vunpack.c.l.b16 %v968
        %v1065 = vunpack.c.l.b16 %v969
        %v1066 = vunpack.c.l.b16 %v970
        %v1067 = vunpack.c.l.b16 %v971
        %v1068 = vunpack.c.l.b16 %v972
        %v1069 = vunpack.c.l.b16 %v973
        %v1070 = vunpack.c.l.b16 %v974
        %v1071 = vunpack.c.l.b16 %v975
        %v1072 = vunpack.c.l.b16 %v976
        %v1073 = vunpack.c.l.b16 %v977
        %v1074 = vunpack.c.l.b16 %v978
        %v1075 = vunpack.c.l.b16 %v979
        %v1076 = vunpack.c.l.b16 %v980
        %v1077 = vunpack.c.l.b16 %v981
        %v1078 = vunpack.c.l.b16 %v982
        %v1079 = vunpack.c.l.b16 %v983
        %v1080 = vunpack.c.l.b16 %v984
        %v1081 = vunpack.c.l.b16 %v985
        %v1082 = vunpack.c.l.b16 %v986
        %v1083 = vunpack.c.l.b16 %v987
        %v1084 = vunpack.c.l.b16 %v988
        %v1085 = vunpack.c.l.b16 %v989
        %v1086 = vunpack.c.l.b16 %v990
        %v1087 = vunpack.c.l.b16 %v991
        %v1088 = vunpack.c.l.b16 %v992
        %v1089 = vunpack.c.l.b16 %v993
        %v1090 = vunpack.c.l.b16 %v994
        %v1091 = vunpack.c.l.b16 %v995
        %v1092 = vunpack.c.l.b16 %v996
        %v1093 = vunpack.c.l.b16 %v997
        %v1094 = vpack.c.b16 %v1047, %v1046
        %v1095 = vpack.c.b16 %v1049, %v1048
        %v1096 = vpack.c.b16 %v1051, %v1050
        %v1097 = vpack.c.b16 %v1053, %v1052
        %v1098 = vpack.c.b16 %v1055, %v1054
        %v1099 = vpack.c.b16 %v1057, %v1056
        %v1100 = vpack.c.b16 %v1059, %v1058
        %v1101 = vpack.c.b16 %v1061, %v1060
        %v1102 = vpack.c.b16 %v1063, %v1062
        %v1103 = vpack.c.b16 %v1065, %v1064
        %v1104 = vpack.c.b16 %v1067, %v1066
        %v1105 = vpack.c.b16 %v1069, %v1068
        %v1106 = vpack.c.b16 %v1071, %v1070
        %v1107 = vpack.c.b16 %v1073, %v1072
        %v1108 = vpack.c.b16 %v1075, %v1074
        %v1109 = vpack.c.b16 %v1077, %v1076
        %v1110 = vpack.c.b16 %v1079, %v1078
        %v1111 = vpack.c.b16 %v1081, %v1080
        %v1112 = vpack.c.b16 %v1083, %v1082
        %v1113 = vpack.c.b16 %v1085, %v1084
        %v1114 = vpack.c.b16 %v1087, %v1086
        %v1115 = vpack.c.b16 %v1089, %v1088
        %v1116 = vpack.c.b16 %v1091, %v1090
        %v1117 = vpack.c.b16 %v1093, %v1092
        %1142 = vmatprep.subr.bf16.mxu0 0
        %1143 = vmatpush1.bf16.msra.mxu0 %v1094
        %1144 = vmatprep.subr.bf16.mxu0 0
        %1145 = vmatpush1.bf16.msra.mxu0 %v1095
        %1146 = vmatprep.subr.bf16.mxu0 0
        %1147 = vmatpush1.bf16.msra.mxu0 %v1096
        %1148 = vmatprep.subr.bf16.mxu0 0
        %1149 = vmatpush1.bf16.msra.mxu0 %v1097
        %1150 = vmatprep.subr.bf16.mxu0 0
        %1151 = vmatpush1.bf16.msra.mxu0 %v1098
        %1152 = vmatprep.subr.bf16.mxu0 0
        %1153 = vmatpush1.bf16.msra.mxu0 %v1099
        %1154 = vmatprep.subr.bf16.mxu0 0
        %1155 = vmatpush1.bf16.msra.mxu0 %v1100
        %1156 = vmatprep.subr.bf16.mxu0 0
        %1157 = vmatpush1.bf16.msra.mxu0 %v1101
        %1158 = vmatprep.subr.bf16.mxu0 0
        %1159 = vmatpush1.bf16.msra.mxu0 %v1102
        %1160 = vmatprep.subr.bf16.mxu0 0
        %1161 = vmatpush1.bf16.msra.mxu0 %v1103
        %1162 = vmatprep.subr.bf16.mxu0 0
        %1163 = vmatpush1.bf16.msra.mxu0 %v1104
        %1164 = vmatprep.subr.bf16.mxu0 0
        %1165 = vmatpush1.bf16.msra.mxu0 %v1105
        %1166 = vmatprep.subr.bf16.mxu0 0
        %1167 = vmatpush1.bf16.msra.mxu0 %v1106
        %1168 = vmatprep.subr.bf16.mxu0 0
        %1169 = vmatpush1.bf16.msra.mxu0 %v1107
        %1170 = vmatprep.subr.bf16.mxu0 0
        %1171 = vmatpush1.bf16.msra.mxu0 %v1108
        %1172 = vmatprep.subr.bf16.mxu0 0
        %1173 = vmatpush1.bf16.msra.mxu0 %v1109
        %1174 = vmatprep.mubr.bf16.mxu0 %v920
        %1175 = vmatmul.mubr.bf16.gmra.mrb[0].mxu0 %v919
        %v1176 = vpop.f32.mrb[0].mxu0
        %v1177 = vadd.f32 0.0, %v1176
        %v1178 = vpop.f32.mrb[0].mxu0
        %v1179 = vpop.f32.mrb[0].mxu0
        %v1180 = vadd.f32 0.0, %v1179
        %v1181 = vpop.f32.mrb[0].mxu0
        %1182 = vmatprep.mubr.bf16.mxu0 %v923
        %1183 = vmatmul.mubr.bf16.gmra.mrb[0].mxu0 %v922
        %v1184 = vpop.f32.mrb[0].mxu0
        %v1185 = vadd.f32 0.0, %v1184
        %v1186 = vpop.f32.mrb[0].mxu0
        %v1187 = vpop.f32.mrb[0].mxu0
        %v1188 = vadd.f32 0.0, %v1187
        %v1189 = vpop.f32.mrb[0].mxu0
        %1190 = vmatprep.mubr.bf16.mxu0 %v926
        %1191 = vmatmul.mubr.bf16.gmra.mrb[0].mxu0 %v925
        %v1192 = vpop.f32.mrb[0].mxu0
        %v1193 = vadd.f32 0.0, %v1192
        %v1194 = vpop.f32.mrb[0].mxu0
        %v1195 = vpop.f32.mrb[0].mxu0
        %v1196 = vadd.f32 0.0, %v1195
        %v1197 = vpop.f32.mrb[0].mxu0
        %1198 = vmatprep.mubr.bf16.mxu0 %v929
        %1199 = vmatmul.mubr.bf16.gmra.mrb[0].mxu0 %v928
        %v1200 = vpop.f32.mrb[0].mxu0
        %v1201 = vadd.f32 0.0, %v1200
        %v1202 = vpop.f32.mrb[0].mxu0
        %v1203 = vpop.f32.mrb[0].mxu0
        %v1204 = vadd.f32 0.0, %v1203
        %v1205 = vpop.f32.mrb[0].mxu0
        %1206 = vmatprep.mubr.bf16.mxu0 %v932
        %1207 = vmatmul.mubr.bf16.gmra.mrb[0].mxu0 %v931
        %v1208 = vpop.f32.mrb[0].mxu0
        %v1209 = vadd.f32 0.0, %v1208
        %v1210 = vpop.f32.mrb[0].mxu0
        %v1211 = vpop.f32.mrb[0].mxu0
        %v1212 = vadd.f32 0.0, %v1211
        %v1213 = vpop.f32.mrb[0].mxu0
        %1214 = vmatprep.mubr.bf16.mxu0 %v935
        %1215 = vmatmul.mubr.bf16.gmra.mrb[0].mxu0 %v934
        %v1216 = vpop.f32.mrb[0].mxu0
        %v1217 = vadd.f32 0.0, %v1216
        %v1218 = vpop.f32.mrb[0].mxu0
        %v1219 = vpop.f32.mrb[0].mxu0
        %v1220 = vadd.f32 0.0, %v1219
        %v1221 = vpop.f32.mrb[0].mxu0
        %1222 = vmatprep.mubr.bf16.mxu0 %v938
        %1223 = vmatmul.mubr.bf16.gmra.mrb[0].mxu0 %v937
        %v1224 = vpop.f32.mrb[0].mxu0
        %v1225 = vadd.f32 0.0, %v1224
        %v1226 = vpop.f32.mrb[0].mxu0
        %v1227 = vpop.f32.mrb[0].mxu0
        %v1228 = vadd.f32 0.0, %v1227
        %v1229 = vpop.f32.mrb[0].mxu0
        %1230 = vmatprep.mubr.bf16.mxu0 %v941
        %1231 = vmatmul.mubr.bf16.gmra.mrb[0].mxu0 %v940
        %v1232 = vpop.f32.mrb[0].mxu0
        %v1233 = vadd.f32 0.0, %v1232
        %v1234 = vpop.f32.mrb[0].mxu0
        %v1235 = vpop.f32.mrb[0].mxu0
        %v1236 = vadd.f32 0.0, %v1235
        %v1237 = vpop.f32.mrb[0].mxu0
        %1238 = vmatprep.mubr.bf16.mxu0 %v944
        %1239 = vmatmul.mubr.bf16.gmra.mrb[0].mxu0 %v943
        %v1240 = vpop.f32.mrb[0].mxu0
        %v1241 = vadd.f32 0.0, %v1240
        %v1242 = vpop.f32.mrb[0].mxu0
        %v1243 = vpop.f32.mrb[0].mxu0
        %v1244 = vadd.f32 0.0, %v1243
        %v1245 = vpop.f32.mrb[0].mxu0
        %1246 = vmatprep.mubr.bf16.mxu0 %v947
        %1247 = vmatmul.mubr.bf16.gmra.mrb[0].mxu0 %v946
        %v1248 = vpop.f32.mrb[0].mxu0
        %v1249 = vadd.f32 0.0, %v1248
        %v1250 = vpop.f32.mrb[0].mxu0
        %v1251 = vpop.f32.mrb[0].mxu0
        %v1252 = vadd.f32 0.0, %v1251
        %v1253 = vpop.f32.mrb[0].mxu0
        %1254 = vdwg.mxu0
        %1255 = vmatprep.subr.bf16.mxu0 0
        %1256 = vmatpush1.bf16.msra.mxu0 %v1110
        %1257 = vmatprep.subr.bf16.mxu0 0
        %1258 = vmatpush1.bf16.msra.mxu0 %v1111
        %1259 = vmatprep.subr.bf16.mxu0 0
        %1260 = vmatpush1.bf16.msra.mxu0 %v1112
        %1261 = vmatprep.subr.bf16.mxu0 0
        %1262 = vmatpush1.bf16.msra.mxu0 %v1113
        %1263 = vmatprep.subr.bf16.mxu0 0
        %1264 = vmatpush1.bf16.msra.mxu0 %v1114
        %1265 = vmatprep.subr.bf16.mxu0 0
        %1266 = vmatpush1.bf16.msra.mxu0 %v1115
        %1267 = vmatprep.subr.bf16.mxu0 0
        %1268 = vmatpush1.bf16.msra.mxu0 %v1116
        %1269 = vmatprep.subr.bf16.mxu0 0
        %1270 = vmatpush1.bf16.msra.mxu0 %v1117
        %1271 = vmatprep.subr.bf16.mxu0 0
        %1272 = vmatpush1.bf16.msra.mxu0 0
        %1273 = vmatprep.subr.bf16.mxu0 0
        %1274 = vmatpush1.bf16.msra.mxu0 0
        %1275 = vmatprep.subr.bf16.mxu0 0
        %1276 = vmatpush1.bf16.msra.mxu0 0
        %1277 = vmatprep.subr.bf16.mxu0 0
        %1278 = vmatpush1.bf16.msra.mxu0 0
        %1279 = vmatprep.subr.bf16.mxu0 0
        %1280 = vmatpush1.bf16.msra.mxu0 0
        %1281 = vmatprep.subr.bf16.mxu0 0
        %1282 = vmatpush1.bf16.msra.mxu0 0
        %1283 = vmatprep.subr.bf16.mxu0 0
        %1284 = vmatpush1.bf16.msra.mxu0 0
        %1285 = vmatprep.subr.bf16.mxu0 0
        %1286 = vmatpush1.bf16.msra.mxu0 0
        %1287 = vmatprep.mubr.bf16.mxu0 0
        %1288 = vmatmul.mubr.bf16.gmra.mrb[0].mxu0 %v921
        %v1289 = vpop.f32.mrb[0].mxu0
        %v1290 = vadd.f32 %v1177, %v1289
        %v1291 = vpop.f32.mrb[0].mxu0
        %v1292 = vpop.f32.mrb[0].mxu0
        %v1293 = vadd.f32 %v1180, %v1292
        %v1294 = vpop.f32.mrb[0].mxu0
        %1295 = vmatprep.mubr.bf16.mxu0 0
        %1296 = vmatmul.mubr.bf16.gmra.mrb[0].mxu0 %v924
        %v1297 = vpop.f32.mrb[0].mxu0
        %v1298 = vadd.f32 %v1185, %v1297
        %v1299 = vpop.f32.mrb[0].mxu0
        %v1300 = vpop.f32.mrb[0].mxu0
        %v1301 = vadd.f32 %v1188, %v1300
        %v1302 = vpop.f32.mrb[0].mxu0
        %1303 = vmatprep.mubr.bf16.mxu0 0
        %1304 = vmatmul.mubr.bf16.gmra.mrb[0].mxu0 %v927
        %v1305 = vpop.f32.mrb[0].mxu0
        %v1306 = vadd.f32 %v1193, %v1305
        %v1307 = vpop.f32.mrb[0].mxu0
        %v1308 = vpop.f32.mrb[0].mxu0
        %v1309 = vadd.f32 %v1196, %v1308
        %v1310 = vpop.f32.mrb[0].mxu0
        %1311 = vmatprep.mubr.bf16.mxu0 0
        %1312 = vmatmul.mubr.bf16.gmra.mrb[0].mxu0 %v930
        %v1313 = vpop.f32.mrb[0].mxu0
        %v1314 = vadd.f32 %v1201, %v1313
        %v1315 = vpop.f32.mrb[0].mxu0
        %v1316 = vpop.f32.mrb[0].mxu0
        %v1317 = vadd.f32 %v1204, %v1316
        %v1318 = vpop.f32.mrb[0].mxu0
        %1319 = vmatprep.mubr.bf16.mxu0 0
        %1320 = vmatmul.mubr.bf16.gmra.mrb[0].mxu0 %v933
        %v1321 = vpop.f32.mrb[0].mxu0
        %v1322 = vadd.f32 %v1209, %v1321
        %v1323 = vpop.f32.mrb[0].mxu0
        %v1324 = vpop.f32.mrb[0].mxu0
        %v1325 = vadd.f32 %v1212, %v1324
        %v1326 = vpop.f32.mrb[0].mxu0
        %1327 = vmatprep.mubr.bf16.mxu0 0
        %1328 = vmatmul.mubr.bf16.gmra.mrb[0].mxu0 %v936
        %v1329 = vpop.f32.mrb[0].mxu0
        %v1330 = vadd.f32 %v1217, %v1329
        %v1331 = vpop.f32.mrb[0].mxu0
        %v1332 = vpop.f32.mrb[0].mxu0
        %v1333 = vadd.f32 %v1220, %v1332
        %v1334 = vpop.f32.mrb[0].mxu0
        %1335 = vmatprep.mubr.bf16.mxu0 0
        %1336 = vmatmul.mubr.bf16.gmra.mrb[0].mxu0 %v939
        %v1337 = vpop.f32.mrb[0].mxu0
        %v1338 = vadd.f32 %v1225, %v1337
        %v1339 = vpop.f32.mrb[0].mxu0
        %v1340 = vpop.f32.mrb[0].mxu0
        %v1341 = vadd.f32 %v1228, %v1340
        %v1342 = vpop.f32.mrb[0].mxu0
        %1343 = vmatprep.mubr.bf16.mxu0 0
        %1344 = vmatmul.mubr.bf16.gmra.mrb[0].mxu0 %v942
        %v1345 = vpop.f32.mrb[0].mxu0
        %v1346 = vadd.f32 %v1233, %v1345
        %v1347 = vpop.f32.mrb[0].mxu0
        %v1348 = vpop.f32.mrb[0].mxu0
        %v1349 = vadd.f32 %v1236, %v1348
        %v1350 = vpop.f32.mrb[0].mxu0
        %1351 = vmatprep.mubr.bf16.mxu0 0
        %1352 = vmatmul.mubr.bf16.gmra.mrb[0].mxu0 %v945
        %v1353 = vpop.f32.mrb[0].mxu0
        %v1354 = vadd.f32 %v1241, %v1353
        %v1355 = vpop.f32.mrb[0].mxu0
        %v1356 = vpop.f32.mrb[0].mxu0
        %v1357 = vadd.f32 %v1244, %v1356
        %v1358 = vpop.f32.mrb[0].mxu0
        %1359 = vmatprep.mubr.bf16.mxu0 0
        %1360 = vmatmul.mubr.bf16.gmra.mrb[0].mxu0 %v948
        %v1361 = vpop.f32.mrb[0].mxu0
        %v1362 = vadd.f32 %v1249, %v1361
        %v1363 = vpop.f32.mrb[0].mxu0
        %v1364 = vpop.f32.mrb[0].mxu0
        %v1365 = vadd.f32 %v1252, %v1364
        %v1366 = vpop.f32.mrb[0].mxu0
        %1367 = vdwg.mxu0
        %v1368 = vld [vmem:[#allocation5] sm:$0xff]
        %v1369 = vld [vmem:[#allocation5 + $0x8] sm:$0xff]
        %v1370 = vld [vmem:[#allocation5 + $0x10] sm:$0xff]
        %v1371 = vld [vmem:[#allocation5 + $0x18] sm:$0xff]
        %v1372 = vld [vmem:[#allocation5 + $0x20] sm:$0xff]
        %v1373 = vld [vmem:[#allocation5 + $0x28] sm:$0xff]
        %v1374 = vld [vmem:[#allocation5 + $0x30] sm:$0xff]
        %v1375 = vld [vmem:[#allocation5 + $0x38] sm:$0xff]
        %v1376 = vld [vmem:[#allocation5 + $0x40] sm:$0xff]
        %v1377 = vld [vmem:[#allocation5 + $0x48] sm:$0xff]
        %v1378 = vld [vmem:[#allocation5 + $0x50] sm:$0xff]
        %v1379 = vld [vmem:[#allocation5 + $0x58] sm:$0xff]
        %v1380 = vld [vmem:[#allocation5 + $0x60] sm:$0xff]
        %v1381 = vld [vmem:[#allocation5 + $0x68] sm:$0xff]
        %v1382 = vld [vmem:[#allocation5 + $0x70] sm:$0xff]
        %v1383 = vld [vmem:[#allocation5 + $0x78] sm:$0xff]
        %v1384 = vld [vmem:[#allocation5 + $0x80] sm:$0xff]
        %v1385 = vld [vmem:[#allocation5 + $0x88] sm:$0xff]
        %v1386 = vld [vmem:[#allocation5 + $0x90] sm:$0xff]
        %v1387 = vld [vmem:[#allocation5 + $0x98] sm:$0xff]
        %v1388 = vadd.f32 %v1368, %v1290
        %v1389 = vadd.f32 %v1369, %v1293
        %v1390 = vadd.f32 %v1370, %v1298
        %v1391 = vadd.f32 %v1371, %v1301
        %v1392 = vadd.f32 %v1372, %v1306
        %v1393 = vadd.f32 %v1373, %v1309
        %v1394 = vadd.f32 %v1374, %v1314
        %v1395 = vadd.f32 %v1375, %v1317
        %v1396 = vadd.f32 %v1376, %v1322
        %v1397 = vadd.f32 %v1377, %v1325
        %v1398 = vadd.f32 %v1378, %v1330
        %v1399 = vadd.f32 %v1379, %v1333
        %v1400 = vadd.f32 %v1380, %v1338
        %v1401 = vadd.f32 %v1381, %v1341
        %v1402 = vadd.f32 %v1382, %v1346
        %v1403 = vadd.f32 %v1383, %v1349
        %v1404 = vadd.f32 %v1384, %v1354
        %v1405 = vadd.f32 %v1385, %v1357
        %v1406 = vadd.f32 %v1386, %v1362
        %v1407 = vadd.f32 %v1387, %v1365
        %1408 = vst [vmem:[#allocation5] sm:$0xff] %v1388
        %1409 = vst [vmem:[#allocation5 + $0x8] sm:$0xff] %v1389
        %1410 = vst [vmem:[#allocation5 + $0x10] sm:$0xff] %v1390
        %1411 = vst [vmem:[#allocation5 + $0x18] sm:$0xff] %v1391
        %1412 = vst [vmem:[#allocation5 + $0x20] sm:$0xff] %v1392
        %1413 = vst [vmem:[#allocation5 + $0x28] sm:$0xff] %v1393
        %1414 = vst [vmem:[#allocation5 + $0x30] sm:$0xff] %v1394
        %1415 = vst [vmem:[#allocation5 + $0x38] sm:$0xff] %v1395
        %1416 = vst [vmem:[#allocation5 + $0x40] sm:$0xff] %v1396
        %1417 = vst [vmem:[#allocation5 + $0x48] sm:$0xff] %v1397
        %1418 = vst [vmem:[#allocation5 + $0x50] sm:$0xff] %v1398
        %1419 = vst [vmem:[#allocation5 + $0x58] sm:$0xff] %v1399
        %1420 = vst [vmem:[#allocation5 + $0x60] sm:$0xff] %v1400
        %1421 = vst [vmem:[#allocation5 + $0x68] sm:$0xff] %v1401
        %1422 = vst [vmem:[#allocation5 + $0x70] sm:$0xff] %v1402
        %1423 = vst [vmem:[#allocation5 + $0x78] sm:$0xff] %v1403
        %1424 = vst [vmem:[#allocation5 + $0x80] sm:$0xff] %v1404
        %1425 = vst [vmem:[#allocation5 + $0x88] sm:$0xff] %v1405
        %1426 = vst [vmem:[#allocation5 + $0x90] sm:$0xff] %v1406
        %1427 = vst [vmem:[#allocation5 + $0x98] sm:$0xff] %v1407
        %s1428 = scalar_lea.vmem [#allocation2], 48
        %v1429 = vld [vmem:[%s1428] sm:$0xff]
        %v1430 = vld [vmem:[%s1428 + $0x8] sm:$0xff]
        %v1431 = vld [vmem:[%s1428 + $0x10] sm:$0xff]
        %v1432 = vld [vmem:[%s1428 + $0x18] sm:$0xff]
        %v1433 = vld [vmem:[%s1428 + $0x20] sm:$0xff]
        %v1434 = vld [vmem:[%s1428 + $0x28] sm:$0xff]
        %v1435 = vld [vmem:[%s1428 + $0x30] sm:$0xff]
        %v1436 = vld [vmem:[%s1428 + $0x38] sm:$0xff]
        %v1437 = vld [vmem:[%s1428 + $0x40] sm:$0xff]
        %v1438 = vld [vmem:[%s1428 + $0x48] sm:$0xff]
        %v1439 = vld [vmem:[%s1428 + $0x50] sm:$0xff]
        %v1440 = vld [vmem:[%s1428 + $0x58] sm:$0xff]
        %v1441 = vld [vmem:[%s1428 + $0x60] sm:$0xff]
        %v1442 = vld [vmem:[%s1428 + $0x68] sm:$0xff]
        %v1443 = vld [vmem:[%s1428 + $0x70] sm:$0xff]
        %v1444 = vld [vmem:[%s1428 + $0x78] sm:$0xff]
        %v1445 = vld [vmem:[%s1428 + $0x80] sm:$0xff]
        %v1446 = vld [vmem:[%s1428 + $0x88] sm:$0xff]
        %v1447 = vld [vmem:[%s1428 + $0x90] sm:$0xff]
        %v1448 = vld [vmem:[%s1428 + $0x98] sm:$0xff]
        %v1449 = vld [vmem:[%s1428 + $0xa0] sm:$0xff]
        %v1450 = vld [vmem:[%s1428 + $0xa8] sm:$0xff]
        %v1451 = vld [vmem:[%s1428 + $0xb0] sm:$0xff]
        %v1452 = vld [vmem:[%s1428 + $0xb8] sm:$0xff]
        %v1453 = vld [vmem:[%s1428 + $0xc0] sm:$0xff]
        %v1454 = vld [vmem:[%s1428 + $0xc8] sm:$0xff]
        %v1455 = vld [vmem:[%s1428 + $0xd0] sm:$0xff]
        %v1456 = vld [vmem:[%s1428 + $0xd8] sm:$0xff]
        %v1457 = vld [vmem:[%s1428 + $0xe0] sm:$0xff]
        %v1458 = vld [vmem:[%s1428 + $0xe8] sm:$0xff]
        %s1459 = scalar_lea.vmem %s1, 384
        %v1460 = vld [vmem:[%s1459] sm:$0xf]
        %v1461 = vld [vmem:[%s1459 + $0x4] sm:$0xf]
        %v1462 = vld [vmem:[%s1459 + $0x8] sm:$0xf]
        %v1463 = vld [vmem:[%s1459 + $0xc] sm:$0xf]
        %v1464 = vld [vmem:[%s1459 + $0x10] sm:$0xf]
        %v1465 = vld [vmem:[%s1459 + $0x14] sm:$0xf]
        %v1466 = vld [vmem:[%s1459 + $0x18] sm:$0xf]
        %v1467 = vld [vmem:[%s1459 + $0x1c] sm:$0xf]
        %v1468 = vld [vmem:[%s1459 + $0x20] sm:$0xf]
        %v1469 = vld [vmem:[%s1459 + $0x24] sm:$0xf]
        %v1470 = vld [vmem:[%s1459 + $0x28] sm:$0xf]
        %v1471 = vld [vmem:[%s1459 + $0x2c] sm:$0xf]
        %v1472 = vld [vmem:[%s1459 + $0x30] sm:$0xf]
        %v1473 = vld [vmem:[%s1459 + $0x34] sm:$0xf]
        %v1474 = vld [vmem:[%s1459 + $0x38] sm:$0xf]
        %v1475 = vld [vmem:[%s1459 + $0x3c] sm:$0xf]
        %v1476 = vld [vmem:[%s1459 + $0x40] sm:$0xf]
        %v1477 = vld [vmem:[%s1459 + $0x44] sm:$0xf]
        %v1478 = vld [vmem:[%s1459 + $0x48] sm:$0xf]
        %v1479 = vld [vmem:[%s1459 + $0x4c] sm:$0xf]
        %v1480 = vld [vmem:[%s1459 + $0x50] sm:$0xf]
        %v1481 = vld [vmem:[%s1459 + $0x54] sm:$0xf]
        %v1482 = vld [vmem:[%s1459 + $0x58] sm:$0xf]
        %v1483 = vld [vmem:[%s1459 + $0x5c] sm:$0xf]
        %v1484 = vld [vmem:[%s1459 + $0x60] sm:$0xf]
        %v1485 = vld [vmem:[%s1459 + $0x64] sm:$0xf]
        %v1486 = vld [vmem:[%s1459 + $0x68] sm:$0xf]
        %v1487 = vld [vmem:[%s1459 + $0x6c] sm:$0xf]
        %v1488 = vld [vmem:[%s1459 + $0x70] sm:$0xf]
        %v1489 = vld [vmem:[%s1459 + $0x74] sm:$0xf]
        %v1490 = vld [vmem:[%s1459 + $0x78] sm:$0xf]
        %v1491 = vld [vmem:[%s1459 + $0x7c] sm:$0xf]
        %v1492 = vld [vmem:[%s1459 + $0x80] sm:$0xf]
        %v1493 = vld [vmem:[%s1459 + $0x84] sm:$0xf]
        %v1494 = vld [vmem:[%s1459 + $0x88] sm:$0xf]
        %v1495 = vld [vmem:[%s1459 + $0x8c] sm:$0xf]
        %v1496 = vld [vmem:[%s1459 + $0x90] sm:$0xf]
        %v1497 = vld [vmem:[%s1459 + $0x94] sm:$0xf]
        %v1498 = vld [vmem:[%s1459 + $0x98] sm:$0xf]
        %v1499 = vld [vmem:[%s1459 + $0x9c] sm:$0xf]
        %v1500 = vld [vmem:[%s1459 + $0xa0] sm:$0xf]
        %v1501 = vld [vmem:[%s1459 + $0xa4] sm:$0xf]
        %v1502 = vld [vmem:[%s1459 + $0xa8] sm:$0xf]
        %v1503 = vld [vmem:[%s1459 + $0xac] sm:$0xf]
        %v1504 = vld [vmem:[%s1459 + $0xb0] sm:$0xf]
        %v1505 = vld [vmem:[%s1459 + $0xb4] sm:$0xf]
        %v1506 = vld [vmem:[%s1459 + $0xb8] sm:$0xf]
        %v1507 = vld [vmem:[%s1459 + $0xbc] sm:$0xf]
        %v1556 = vunpack.c.l.b16 %v1460
        %v1557 = vunpack.c.l.b16 %v1461
        %v1558 = vunpack.c.l.b16 %v1462
        %v1559 = vunpack.c.l.b16 %v1463
        %v1560 = vunpack.c.l.b16 %v1464
        %v1561 = vunpack.c.l.b16 %v1465
        %v1562 = vunpack.c.l.b16 %v1466
        %v1563 = vunpack.c.l.b16 %v1467
        %v1564 = vunpack.c.l.b16 %v1468
        %v1565 = vunpack.c.l.b16 %v1469
        %v1566 = vunpack.c.l.b16 %v1470
        %v1567 = vunpack.c.l.b16 %v1471
        %v1568 = vunpack.c.l.b16 %v1472
        %v1569 = vunpack.c.l.b16 %v1473
        %v1570 = vunpack.c.l.b16 %v1474
        %v1571 = vunpack.c.l.b16 %v1475
        %v1572 = vunpack.c.l.b16 %v1476
        %v1573 = vunpack.c.l.b16 %v1477
        %v1574 = vunpack.c.l.b16 %v1478
        %v1575 = vunpack.c.l.b16 %v1479
        %v1576 = vunpack.c.l.b16 %v1480
        %v1577 = vunpack.c.l.b16 %v1481
        %v1578 = vunpack.c.l.b16 %v1482
        %v1579 = vunpack.c.l.b16 %v1483
        %v1580 = vunpack.c.l.b16 %v1484
        %v1581 = vunpack.c.l.b16 %v1485
        %v1582 = vunpack.c.l.b16 %v1486
        %v1583 = vunpack.c.l.b16 %v1487
        %v1584 = vunpack.c.l.b16 %v1488
        %v1585 = vunpack.c.l.b16 %v1489
        %v1586 = vunpack.c.l.b16 %v1490
        %v1587 = vunpack.c.l.b16 %v1491
        %v1588 = vunpack.c.l.b16 %v1492
        %v1589 = vunpack.c.l.b16 %v1493
        %v1590 = vunpack.c.l.b16 %v1494
        %v1591 = vunpack.c.l.b16 %v1495
        %v1592 = vunpack.c.l.b16 %v1496
        %v1593 = vunpack.c.l.b16 %v1497
        %v1594 = vunpack.c.l.b16 %v1498
        %v1595 = vunpack.c.l.b16 %v1499
        %v1596 = vunpack.c.l.b16 %v1500
        %v1597 = vunpack.c.l.b16 %v1501
        %v1598 = vunpack.c.l.b16 %v1502
        %v1599 = vunpack.c.l.b16 %v1503
        %v1600 = vunpack.c.l.b16 %v1504
        %v1601 = vunpack.c.l.b16 %v1505
        %v1602 = vunpack.c.l.b16 %v1506
        %v1603 = vunpack.c.l.b16 %v1507
        %v1604 = vpack.c.b16 %v1557, %v1556
        %v1605 = vpack.c.b16 %v1559, %v1558
        %v1606 = vpack.c.b16 %v1561, %v1560
        %v1607 = vpack.c.b16 %v1563, %v1562
        %v1608 = vpack.c.b16 %v1565, %v1564
        %v1609 = vpack.c.b16 %v1567, %v1566
        %v1610 = vpack.c.b16 %v1569, %v1568
        %v1611 = vpack.c.b16 %v1571, %v1570
        %v1612 = vpack.c.b16 %v1573, %v1572
        %v1613 = vpack.c.b16 %v1575, %v1574
        %v1614 = vpack.c.b16 %v1577, %v1576
        %v1615 = vpack.c.b16 %v1579, %v1578
        %v1616 = vpack.c.b16 %v1581, %v1580
        %v1617 = vpack.c.b16 %v1583, %v1582
        %v1618 = vpack.c.b16 %v1585, %v1584
        %v1619 = vpack.c.b16 %v1587, %v1586
        %v1620 = vpack.c.b16 %v1589, %v1588
        %v1621 = vpack.c.b16 %v1591, %v1590
        %v1622 = vpack.c.b16 %v1593, %v1592
        %v1623 = vpack.c.b16 %v1595, %v1594
        %v1624 = vpack.c.b16 %v1597, %v1596
        %v1625 = vpack.c.b16 %v1599, %v1598
        %v1626 = vpack.c.b16 %v1601, %v1600
        %v1627 = vpack.c.b16 %v1603, %v1602
        %1652 = vmatprep.subr.bf16.mxu0 0
        %1653 = vmatpush1.bf16.msra.mxu0 %v1604
        %1654 = vmatprep.subr.bf16.mxu0 0
        %1655 = vmatpush1.bf16.msra.mxu0 %v1605
        %1656 = vmatprep.subr.bf16.mxu0 0
        %1657 = vmatpush1.bf16.msra.mxu0 %v1606
        %1658 = vmatprep.subr.bf16.mxu0 0
        %1659 = vmatpush1.bf16.msra.mxu0 %v1607
        %1660 = vmatprep.subr.bf16.mxu0 0
        %1661 = vmatpush1.bf16.msra.mxu0 %v1608
        %1662 = vmatprep.subr.bf16.mxu0 0
        %1663 = vmatpush1.bf16.msra.mxu0 %v1609
        %1664 = vmatprep.subr.bf16.mxu0 0
        %1665 = vmatpush1.bf16.msra.mxu0 %v1610
        %1666 = vmatprep.subr.bf16.mxu0 0
        %1667 = vmatpush1.bf16.msra.mxu0 %v1611
        %1668 = vmatprep.subr.bf16.mxu0 0
        %1669 = vmatpush1.bf16.msra.mxu0 %v1612
        %1670 = vmatprep.subr.bf16.mxu0 0
        %1671 = vmatpush1.bf16.msra.mxu0 %v1613
        %1672 = vmatprep.subr.bf16.mxu0 0
        %1673 = vmatpush1.bf16.msra.mxu0 %v1614
        %1674 = vmatprep.subr.bf16.mxu0 0
        %1675 = vmatpush1.bf16.msra.mxu0 %v1615
        %1676 = vmatprep.subr.bf16.mxu0 0
        %1677 = vmatpush1.bf16.msra.mxu0 %v1616
        %1678 = vmatprep.subr.bf16.mxu0 0
        %1679 = vmatpush1.bf16.msra.mxu0 %v1617
        %1680 = vmatprep.subr.bf16.mxu0 0
        %1681 = vmatpush1.bf16.msra.mxu0 %v1618
        %1682 = vmatprep.subr.bf16.mxu0 0
        %1683 = vmatpush1.bf16.msra.mxu0 %v1619
        %1684 = vmatprep.mubr.bf16.mxu0 %v1430
        %1685 = vmatmul.mubr.bf16.gmra.mrb[0].mxu0 %v1429
        %v1686 = vpop.f32.mrb[0].mxu0
        %v1687 = vadd.f32 0.0, %v1686
        %v1688 = vpop.f32.mrb[0].mxu0
        %v1689 = vpop.f32.mrb[0].mxu0
        %v1690 = vadd.f32 0.0, %v1689
        %v1691 = vpop.f32.mrb[0].mxu0
        %1692 = vmatprep.mubr.bf16.mxu0 %v1433
        %1693 = vmatmul.mubr.bf16.gmra.mrb[0].mxu0 %v1432
        %v1694 = vpop.f32.mrb[0].mxu0
        %v1695 = vadd.f32 0.0, %v1694
        %v1696 = vpop.f32.mrb[0].mxu0
        %v1697 = vpop.f32.mrb[0].mxu0
        %v1698 = vadd.f32 0.0, %v1697
        %v1699 = vpop.f32.mrb[0].mxu0
        %1700 = vmatprep.mubr.bf16.mxu0 %v1436
        %1701 = vmatmul.mubr.bf16.gmra.mrb[0].mxu0 %v1435
        %v1702 = vpop.f32.mrb[0].mxu0
        %v1703 = vadd.f32 0.0, %v1702
        %v1704 = vpop.f32.mrb[0].mxu0
        %v1705 = vpop.f32.mrb[0].mxu0
        %v1706 = vadd.f32 0.0, %v1705
        %v1707 = vpop.f32.mrb[0].mxu0
        %1708 = vmatprep.mubr.bf16.mxu0 %v1439
        %1709 = vmatmul.mubr.bf16.gmra.mrb[0].mxu0 %v1438
        %v1710 = vpop.f32.mrb[0].mxu0
        %v1711 = vadd.f32 0.0, %v1710
        %v1712 = vpop.f32.mrb[0].mxu0
        %v1713 = vpop.f32.mrb[0].mxu0
        %v1714 = vadd.f32 0.0, %v1713
        %v1715 = vpop.f32.mrb[0].mxu0
        %1716 = vmatprep.mubr.bf16.mxu0 %v1442
        %1717 = vmatmul.mubr.bf16.gmra.mrb[0].mxu0 %v1441
        %v1718 = vpop.f32.mrb[0].mxu0
        %v1719 = vadd.f32 0.0, %v1718
        %v1720 = vpop.f32.mrb[0].mxu0
        %v1721 = vpop.f32.mrb[0].mxu0
        %v1722 = vadd.f32 0.0, %v1721
        %v1723 = vpop.f32.mrb[0].mxu0
        %1724 = vmatprep.mubr.bf16.mxu0 %v1445
        %1725 = vmatmul.mubr.bf16.gmra.mrb[0].mxu0 %v1444
        %v1726 = vpop.f32.mrb[0].mxu0
        %v1727 = vadd.f32 0.0, %v1726
        %v1728 = vpop.f32.mrb[0].mxu0
        %v1729 = vpop.f32.mrb[0].mxu0
        %v1730 = vadd.f32 0.0, %v1729
        %v1731 = vpop.f32.mrb[0].mxu0
        %1732 = vmatprep.mubr.bf16.mxu0 %v1448
        %1733 = vmatmul.mubr.bf16.gmra.mrb[0].mxu0 %v1447
        %v1734 = vpop.f32.mrb[0].mxu0
        %v1735 = vadd.f32 0.0, %v1734
        %v1736 = vpop.f32.mrb[0].mxu0
        %v1737 = vpop.f32.mrb[0].mxu0
        %v1738 = vadd.f32 0.0, %v1737
        %v1739 = vpop.f32.mrb[0].mxu0
        %1740 = vmatprep.mubr.bf16.mxu0 %v1451
        %1741 = vmatmul.mubr.bf16.gmra.mrb[0].mxu0 %v1450
        %v1742 = vpop.f32.mrb[0].mxu0
        %v1743 = vadd.f32 0.0, %v1742
        %v1744 = vpop.f32.mrb[0].mxu0
        %v1745 = vpop.f32.mrb[0].mxu0
        %v1746 = vadd.f32 0.0, %v1745
        %v1747 = vpop.f32.mrb[0].mxu0
        %1748 = vmatprep.mubr.bf16.mxu0 %v1454
        %1749 = vmatmul.mubr.bf16.gmra.mrb[0].mxu0 %v1453
        %v1750 = vpop.f32.mrb[0].mxu0
        %v1751 = vadd.f32 0.0, %v1750
        %v1752 = vpop.f32.mrb[0].mxu0
        %v1753 = vpop.f32.mrb[0].mxu0
        %v1754 = vadd.f32 0.0, %v1753
        %v1755 = vpop.f32.mrb[0].mxu0
        %1756 = vmatprep.mubr.bf16.mxu0 %v1457
        %1757 = vmatmul.mubr.bf16.gmra.mrb[0].mxu0 %v1456
        %v1758 = vpop.f32.mrb[0].mxu0
        %v1759 = vadd.f32 0.0, %v1758
        %v1760 = vpop.f32.mrb[0].mxu0
        %v1761 = vpop.f32.mrb[0].mxu0
        %v1762 = vadd.f32 0.0, %v1761
        %v1763 = vpop.f32.mrb[0].mxu0
        %1764 = vdwg.mxu0
        %1765 = vmatprep.subr.bf16.mxu0 0
        %1766 = vmatpush1.bf16.msra.mxu0 %v1620
        %1767 = vmatprep.subr.bf16.mxu0 0
        %1768 = vmatpush1.bf16.msra.mxu0 %v1621
        %1769 = vmatprep.subr.bf16.mxu0 0
        %1770 = vmatpush1.bf16.msra.mxu0 %v1622
        %1771 = vmatprep.subr.bf16.mxu0 0
        %1772 = vmatpush1.bf16.msra.mxu0 %v1623
        %1773 = vmatprep.subr.bf16.mxu0 0
        %1774 = vmatpush1.bf16.msra.mxu0 %v1624
        %1775 = vmatprep.subr.bf16.mxu0 0
        %1776 = vmatpush1.bf16.msra.mxu0 %v1625
        %1777 = vmatprep.subr.bf16.mxu0 0
        %1778 = vmatpush1.bf16.msra.mxu0 %v1626
        %1779 = vmatprep.subr.bf16.mxu0 0
        %1780 = vmatpush1.bf16.msra.mxu0 %v1627
        %1781 = vmatprep.subr.bf16.mxu0 0
        %1782 = vmatpush1.bf16.msra.mxu0 0
        %1783 = vmatprep.subr.bf16.mxu0 0
        %1784 = vmatpush1.bf16.msra.mxu0 0
        %1785 = vmatprep.subr.bf16.mxu0 0
        %1786 = vmatpush1.bf16.msra.mxu0 0
        %1787 = vmatprep.subr.bf16.mxu0 0
        %1788 = vmatpush1.bf16.msra.mxu0 0
        %1789 = vmatprep.subr.bf16.mxu0 0
        %1790 = vmatpush1.bf16.msra.mxu0 0
        %1791 = vmatprep.subr.bf16.mxu0 0
        %1792 = vmatpush1.bf16.msra.mxu0 0
        %1793 = vmatprep.subr.bf16.mxu0 0
        %1794 = vmatpush1.bf16.msra.mxu0 0
        %1795 = vmatprep.subr.bf16.mxu0 0
        %1796 = vmatpush1.bf16.msra.mxu0 0
        %1797 = vmatprep.mubr.bf16.mxu0 0
        %1798 = vmatmul.mubr.bf16.gmra.mrb[0].mxu0 %v1431
        %v1799 = vpop.f32.mrb[0].mxu0
        %v1800 = vadd.f32 %v1687, %v1799
        %v1801 = vpop.f32.mrb[0].mxu0
        %v1802 = vpop.f32.mrb[0].mxu0
        %v1803 = vadd.f32 %v1690, %v1802
        %v1804 = vpop.f32.mrb[0].mxu0
        %1805 = vmatprep.mubr.bf16.mxu0 0
        %1806 = vmatmul.mubr.bf16.gmra.mrb[0].mxu0 %v1434
        %v1807 = vpop.f32.mrb[0].mxu0
        %v1808 = vadd.f32 %v1695, %v1807
        %v1809 = vpop.f32.mrb[0].mxu0
        %v1810 = vpop.f32.mrb[0].mxu0
        %v1811 = vadd.f32 %v1698, %v1810
        %v1812 = vpop.f32.mrb[0].mxu0
        %1813 = vmatprep.mubr.bf16.mxu0 0
        %1814 = vmatmul.mubr.bf16.gmra.mrb[0].mxu0 %v1437
        %v1815 = vpop.f32.mrb[0].mxu0
        %v1816 = vadd.f32 %v1703, %v1815
        %v1817 = vpop.f32.mrb[0].mxu0
        %v1818 = vpop.f32.mrb[0].mxu0
        %v1819 = vadd.f32 %v1706, %v1818
        %v1820 = vpop.f32.mrb[0].mxu0
        %1821 = vmatprep.mubr.bf16.mxu0 0
        %1822 = vmatmul.mubr.bf16.gmra.mrb[0].mxu0 %v1440
        %v1823 = vpop.f32.mrb[0].mxu0
        %v1824 = vadd.f32 %v1711, %v1823
        %v1825 = vpop.f32.mrb[0].mxu0
        %v1826 = vpop.f32.mrb[0].mxu0
        %v1827 = vadd.f32 %v1714, %v1826
        %v1828 = vpop.f32.mrb[0].mxu0
        %1829 = vmatprep.mubr.bf16.mxu0 0
        %1830 = vmatmul.mubr.bf16.gmra.mrb[0].mxu0 %v1443
        %v1831 = vpop.f32.mrb[0].mxu0
        %v1832 = vadd.f32 %v1719, %v1831
        %v1833 = vpop.f32.mrb[0].mxu0
        %v1834 = vpop.f32.mrb[0].mxu0
        %v1835 = vadd.f32 %v1722, %v1834
        %v1836 = vpop.f32.mrb[0].mxu0
        %1837 = vmatprep.mubr.bf16.mxu0 0
        %1838 = vmatmul.mubr.bf16.gmra.mrb[0].mxu0 %v1446
        %v1839 = vpop.f32.mrb[0].mxu0
        %v1840 = vadd.f32 %v1727, %v1839
        %v1841 = vpop.f32.mrb[0].mxu0
        %v1842 = vpop.f32.mrb[0].mxu0
        %v1843 = vadd.f32 %v1730, %v1842
        %v1844 = vpop.f32.mrb[0].mxu0
        %1845 = vmatprep.mubr.bf16.mxu0 0
        %1846 = vmatmul.mubr.bf16.gmra.mrb[0].mxu0 %v1449
        %v1847 = vpop.f32.mrb[0].mxu0
        %v1848 = vadd.f32 %v1735, %v1847
        %v1849 = vpop.f32.mrb[0].mxu0
        %v1850 = vpop.f32.mrb[0].mxu0
        %v1851 = vadd.f32 %v1738, %v1850
        %v1852 = vpop.f32.mrb[0].mxu0
        %1853 = vmatprep.mubr.bf16.mxu0 0
        %1854 = vmatmul.mubr.bf16.gmra.mrb[0].mxu0 %v1452
        %v1855 = vpop.f32.mrb[0].mxu0
        %v1856 = vadd.f32 %v1743, %v1855
        %v1857 = vpop.f32.mrb[0].mxu0
        %v1858 = vpop.f32.mrb[0].mxu0
        %v1859 = vadd.f32 %v1746, %v1858
        %v1860 = vpop.f32.mrb[0].mxu0
        %1861 = vmatprep.mubr.bf16.mxu0 0
        %1862 = vmatmul.mubr.bf16.gmra.mrb[0].mxu0 %v1455
        %v1863 = vpop.f32.mrb[0].mxu0
        %v1864 = vadd.f32 %v1751, %v1863
        %v1865 = vpop.f32.mrb[0].mxu0
        %v1866 = vpop.f32.mrb[0].mxu0
        %v1867 = vadd.f32 %v1754, %v1866
        %v1868 = vpop.f32.mrb[0].mxu0
        %1869 = vmatprep.mubr.bf16.mxu0 0
        %1870 = vmatmul.mubr.bf16.gmra.mrb[0].mxu0 %v1458
        %v1871 = vpop.f32.mrb[0].mxu0
        %v1872 = vadd.f32 %v1759, %v1871
        %v1873 = vpop.f32.mrb[0].mxu0
        %v1874 = vpop.f32.mrb[0].mxu0
        %v1875 = vadd.f32 %v1762, %v1874
        %v1876 = vpop.f32.mrb[0].mxu0
        %1877 = vdwg.mxu0
        %v1878 = vld [vmem:[#allocation5] sm:$0xff]
        %v1879 = vld [vmem:[#allocation5 + $0x8] sm:$0xff]
        %v1880 = vld [vmem:[#allocation5 + $0x10] sm:$0xff]
        %v1881 = vld [vmem:[#allocation5 + $0x18] sm:$0xff]
        %v1882 = vld [vmem:[#allocation5 + $0x20] sm:$0xff]
        %v1883 = vld [vmem:[#allocation5 + $0x28] sm:$0xff]
        %v1884 = vld [vmem:[#allocation5 + $0x30] sm:$0xff]
        %v1885 = vld [vmem:[#allocation5 + $0x38] sm:$0xff]
        %v1886 = vld [vmem:[#allocation5 + $0x40] sm:$0xff]
        %v1887 = vld [vmem:[#allocation5 + $0x48] sm:$0xff]
        %v1888 = vld [vmem:[#allocation5 + $0x50] sm:$0xff]
        %v1889 = vld [vmem:[#allocation5 + $0x58] sm:$0xff]
        %v1890 = vld [vmem:[#allocation5 + $0x60] sm:$0xff]
        %v1891 = vld [vmem:[#allocation5 + $0x68] sm:$0xff]
        %v1892 = vld [vmem:[#allocation5 + $0x70] sm:$0xff]
        %v1893 = vld [vmem:[#allocation5 + $0x78] sm:$0xff]
        %v1894 = vld [vmem:[#allocation5 + $0x80] sm:$0xff]
        %v1895 = vld [vmem:[#allocation5 + $0x88] sm:$0xff]
        %v1896 = vld [vmem:[#allocation5 + $0x90] sm:$0xff]
        %v1897 = vld [vmem:[#allocation5 + $0x98] sm:$0xff]
        %v1898 = vadd.f32 %v1878, %v1800
        %v1899 = vadd.f32 %v1879, %v1803
        %v1900 = vadd.f32 %v1880, %v1808
        %v1901 = vadd.f32 %v1881, %v1811
        %v1902 = vadd.f32 %v1882, %v1816
        %v1903 = vadd.f32 %v1883, %v1819
        %v1904 = vadd.f32 %v1884, %v1824
        %v1905 = vadd.f32 %v1885, %v1827
        %v1906 = vadd.f32 %v1886, %v1832
        %v1907 = vadd.f32 %v1887, %v1835
        %v1908 = vadd.f32 %v1888, %v1840
        %v1909 = vadd.f32 %v1889, %v1843
        %v1910 = vadd.f32 %v1890, %v1848
        %v1911 = vadd.f32 %v1891, %v1851
        %v1912 = vadd.f32 %v1892, %v1856
        %v1913 = vadd.f32 %v1893, %v1859
        %v1914 = vadd.f32 %v1894, %v1864
        %v1915 = vadd.f32 %v1895, %v1867
        %v1916 = vadd.f32 %v1896, %v1872
        %v1917 = vadd.f32 %v1897, %v1875
        %1918 = vst [vmem:[#allocation5] sm:$0xff] %v1898
        %1919 = vst [vmem:[#allocation5 + $0x8] sm:$0xff] %v1899
        %1920 = vst [vmem:[#allocation5 + $0x10] sm:$0xff] %v1900
        %1921 = vst [vmem:[#allocation5 + $0x18] sm:$0xff] %v1901
        %1922 = vst [vmem:[#allocation5 + $0x20] sm:$0xff] %v1902
        %1923 = vst [vmem:[#allocation5 + $0x28] sm:$0xff] %v1903
        %1924 = vst [vmem:[#allocation5 + $0x30] sm:$0xff] %v1904
        %1925 = vst [vmem:[#allocation5 + $0x38] sm:$0xff] %v1905
        %1926 = vst [vmem:[#allocation5 + $0x40] sm:$0xff] %v1906
        %1927 = vst [vmem:[#allocation5 + $0x48] sm:$0xff] %v1907
        %1928 = vst [vmem:[#allocation5 + $0x50] sm:$0xff] %v1908
        %1929 = vst [vmem:[#allocation5 + $0x58] sm:$0xff] %v1909
        %1930 = vst [vmem:[#allocation5 + $0x60] sm:$0xff] %v1910
        %1931 = vst [vmem:[#allocation5 + $0x68] sm:$0xff] %v1911
        %1932 = vst [vmem:[#allocation5 + $0x70] sm:$0xff] %v1912
        %1933 = vst [vmem:[#allocation5 + $0x78] sm:$0xff] %v1913
        %1934 = vst [vmem:[#allocation5 + $0x80] sm:$0xff] %v1914
        %1935 = vst [vmem:[#allocation5 + $0x88] sm:$0xff] %v1915
        %1936 = vst [vmem:[#allocation5 + $0x90] sm:$0xff] %v1916
        %1937 = vst [vmem:[#allocation5 + $0x98] sm:$0xff] %v1917
        %v1938 = vld [vmem:[#allocation5] sm:$0xff]
        %v1939 = vld [vmem:[#allocation5 + $0x8] sm:$0xff]
        %v1940 = vld [vmem:[#allocation5 + $0x10] sm:$0xff]
        %v1941 = vld [vmem:[#allocation5 + $0x18] sm:$0xff]
        %v1942 = vld [vmem:[#allocation5 + $0x20] sm:$0xff]
        %v1943 = vld [vmem:[#allocation5 + $0x28] sm:$0xff]
        %v1944 = vld [vmem:[#allocation5 + $0x30] sm:$0xff]
        %v1945 = vld [vmem:[#allocation5 + $0x38] sm:$0xff]
        %v1946 = vld [vmem:[#allocation5 + $0x40] sm:$0xff]
        %v1947 = vld [vmem:[#allocation5 + $0x48] sm:$0xff]
        %v1948 = vld [vmem:[#allocation5 + $0x50] sm:$0xff]
        %v1949 = vld [vmem:[#allocation5 + $0x58] sm:$0xff]
        %v1950 = vld [vmem:[#allocation5 + $0x60] sm:$0xff]
        %v1951 = vld [vmem:[#allocation5 + $0x68] sm:$0xff]
        %v1952 = vld [vmem:[#allocation5 + $0x70] sm:$0xff]
        %v1953 = vld [vmem:[#allocation5 + $0x78] sm:$0xff]
        %v1954 = vld [vmem:[#allocation5 + $0x80] sm:$0xff]
        %v1955 = vld [vmem:[#allocation5 + $0x88] sm:$0xff]
        %v1956 = vld [vmem:[#allocation5 + $0x90] sm:$0xff]
        %v1957 = vld [vmem:[#allocation5 + $0x98] sm:$0xff]
        %v1958 = vld [vmem:[%s2] sm:$0x1]
        %v1960 = vlaneseq
        %v1961 = vshrl.u32 %v1960, 7
        %v1962 = vsub.s32 0, %v1961
        %v1963 = vrot.slane %v1958, %v1962
        %v1965 = vmul.f32 %v1938, %v1963
        %v1966 = vmul.f32 %v1939, %v1963
        %v1967 = vmul.f32 %v1940, %v1963
        %v1968 = vmul.f32 %v1941, %v1963
        %v1969 = vmul.f32 %v1942, %v1963
        %v1970 = vmul.f32 %v1943, %v1963
        %v1971 = vmul.f32 %v1944, %v1963
        %v1972 = vmul.f32 %v1945, %v1963
        %v1973 = vmul.f32 %v1946, %v1963
        %v1974 = vmul.f32 %v1947, %v1963
        %v1975 = vmul.f32 %v1948, %v1963
        %v1976 = vmul.f32 %v1949, %v1963
        %v1977 = vmul.f32 %v1950, %v1963
        %v1978 = vmul.f32 %v1951, %v1963
        %v1979 = vmul.f32 %v1952, %v1963
        %v1980 = vmul.f32 %v1953, %v1963
        %v1981 = vmul.f32 %v1954, %v1963
        %v1982 = vmul.f32 %v1955, %v1963
        %v1983 = vmul.f32 %v1956, %v1963
        %v1984 = vmul.f32 %v1957, %v1963
        %v1985 = vld [vmem:[%s3] sm:$0x1]
        %v1987 = vlaneseq
        %v1988 = vshrl.u32 %v1987, 7
        %v1989 = vsub.s32 0, %v1988
        %v1990 = vrot.slane %v1985, %v1989
        %v1992 = vadd.f32 %v1965, %v1990
        %v1993 = vadd.f32 %v1966, %v1990
        %v1994 = vadd.f32 %v1967, %v1990
        %v1995 = vadd.f32 %v1968, %v1990
        %v1996 = vadd.f32 %v1969, %v1990
        %v1997 = vadd.f32 %v1970, %v1990
        %v1998 = vadd.f32 %v1971, %v1990
        %v1999 = vadd.f32 %v1972, %v1990
        %v2000 = vadd.f32 %v1973, %v1990
        %v2001 = vadd.f32 %v1974, %v1990
        %v2002 = vadd.f32 %v1975, %v1990
        %v2003 = vadd.f32 %v1976, %v1990
        %v2004 = vadd.f32 %v1977, %v1990
        %v2005 = vadd.f32 %v1978, %v1990
        %v2006 = vadd.f32 %v1979, %v1990
        %v2007 = vadd.f32 %v1980, %v1990
        %v2008 = vadd.f32 %v1981, %v1990
        %v2009 = vadd.f32 %v1982, %v1990
        %v2010 = vadd.f32 %v1983, %v1990
        %v2011 = vadd.f32 %v1984, %v1990
        %v2012 = vmax.f32 %v1992, 0.0
        %v2013 = vmax.f32 %v1993, 0.0
        %v2014 = vmax.f32 %v1994, 0.0
        %v2015 = vmax.f32 %v1995, 0.0
        %v2016 = vmax.f32 %v1996, 0.0
        %v2017 = vmax.f32 %v1997, 0.0
        %v2018 = vmax.f32 %v1998, 0.0
        %v2019 = vmax.f32 %v1999, 0.0
        %v2020 = vmax.f32 %v2000, 0.0
        %v2021 = vmax.f32 %v2001, 0.0
        %v2022 = vmax.f32 %v2002, 0.0
        %v2023 = vmax.f32 %v2003, 0.0
        %v2024 = vmax.f32 %v2004, 0.0
        %v2025 = vmax.f32 %v2005, 0.0
        %v2026 = vmax.f32 %v2006, 0.0
        %v2027 = vmax.f32 %v2007, 0.0
        %v2028 = vmax.f32 %v2008, 0.0
        %v2029 = vmax.f32 %v2009, 0.0
        %v2030 = vmax.f32 %v2010, 0.0
        %v2031 = vmax.f32 %v2011, 0.0
        %s2032 = smul.u32 %s26, 8
        %s2033 = ssub.s32 %s2032, 1
        %v2034 = vstv %s2033
        %v2035 = vadd.s32 %v2034, 1
        %v2036 = vadd.s32 %v2034, 2
        %v2037 = vadd.s32 %v2034, 3
        %v2038 = vadd.s32 %v2034, 4
        %v2039 = vadd.s32 %v2034, 5
        %v2040 = vadd.s32 %v2034, 6
        %v2041 = vadd.s32 %v2034, 7
        %v2042 = vadd.s32 %v2034, 8
        %v2043 = vadd.s32 %v2034, 9
        %vm2044 = vcmp.ge.s32.totalorder %v2034, 0
        %vm2045 = vcmp.ge.s32.totalorder %v2035, 0
        %vm2046 = vcmp.ge.s32.totalorder %v2036, 0
        %vm2047 = vcmp.ge.s32.totalorder %v2037, 0
        %vm2048 = vcmp.ge.s32.totalorder %v2038, 0
        %vm2049 = vcmp.ge.s32.totalorder %v2039, 0
        %vm2050 = vcmp.ge.s32.totalorder %v2040, 0
        %vm2051 = vcmp.ge.s32.totalorder %v2041, 0
        %vm2052 = vcmp.ge.s32.totalorder %v2042, 0
        %vm2053 = vcmp.ge.s32.totalorder %v2043, 0
        %vm2054 = vcmp.lt.s32.totalorder %v2034, 16
        %vm2055 = vcmp.lt.s32.totalorder %v2035, 16
        %vm2056 = vcmp.lt.s32.totalorder %v2036, 16
        %vm2057 = vcmp.lt.s32.totalorder %v2037, 16
        %vm2058 = vcmp.lt.s32.totalorder %v2038, 16
        %vm2059 = vcmp.lt.s32.totalorder %v2039, 16
        %vm2060 = vcmp.lt.s32.totalorder %v2040, 16
        %vm2061 = vcmp.lt.s32.totalorder %v2041, 16
        %vm2062 = vcmp.lt.s32.totalorder %v2042, 16
        %vm2063 = vcmp.lt.s32.totalorder %v2043, 16
        %vm2064 = vmand %vm2044, %vm2054
        %vm2065 = vmand %vm2045, %vm2055
        %vm2066 = vmand %vm2046, %vm2056
        %vm2067 = vmand %vm2047, %vm2057
        %vm2068 = vmand %vm2048, %vm2058
        %vm2069 = vmand %vm2049, %vm2059
        %vm2070 = vmand %vm2050, %vm2060
        %vm2071 = vmand %vm2051, %vm2061
        %vm2072 = vmand %vm2052, %vm2062
        %vm2073 = vmand %vm2053, %vm2063
        %v2074 = vsel %vm2064, 1, 0
        %v2075 = vsel %vm2065, 1, 0
        %v2076 = vsel %vm2066, 1, 0
        %v2077 = vsel %vm2067, 1, 0
        %v2078 = vsel %vm2068, 1, 0
        %v2079 = vsel %vm2069, 1, 0
        %v2080 = vsel %vm2070, 1, 0
        %v2081 = vsel %vm2071, 1, 0
        %v2082 = vsel %vm2072, 1, 0
        %v2083 = vsel %vm2073, 1, 0
        %vm2084 = vcmp.eq.s32.totalorder %v2074, 1
        %vm2085 = vcmp.eq.s32.totalorder %v2075, 1
        %vm2086 = vcmp.eq.s32.totalorder %v2076, 1
        %vm2087 = vcmp.eq.s32.totalorder %v2077, 1
        %vm2088 = vcmp.eq.s32.totalorder %v2078, 1
        %vm2089 = vcmp.eq.s32.totalorder %v2079, 1
        %vm2090 = vcmp.eq.s32.totalorder %v2080, 1
        %vm2091 = vcmp.eq.s32.totalorder %v2081, 1
        %vm2092 = vcmp.eq.s32.totalorder %v2082, 1
        %vm2093 = vcmp.eq.s32.totalorder %v2083, 1
        %v2094 = vsel %vm2084, %v2012, 0.0
        %v2095 = vsel %vm2084, %v2013, 0.0
        %v2096 = vsel %vm2085, %v2014, 0.0
        %v2097 = vsel %vm2085, %v2015, 0.0
        %v2098 = vsel %vm2086, %v2016, 0.0
        %v2099 = vsel %vm2086, %v2017, 0.0
        %v2100 = vsel %vm2087, %v2018, 0.0
        %v2101 = vsel %vm2087, %v2019, 0.0
        %v2102 = vsel %vm2088, %v2020, 0.0
        %v2103 = vsel %vm2088, %v2021, 0.0
        %v2104 = vsel %vm2089, %v2022, 0.0
        %v2105 = vsel %vm2089, %v2023, 0.0
        %v2106 = vsel %vm2090, %v2024, 0.0
        %v2107 = vsel %vm2090, %v2025, 0.0
        %v2108 = vsel %vm2091, %v2026, 0.0
        %v2109 = vsel %vm2091, %v2027, 0.0
        %v2110 = vsel %vm2092, %v2028, 0.0
        %v2111 = vsel %vm2092, %v2029, 0.0
        %v2112 = vsel %vm2093, %v2030, 0.0
        %v2113 = vsel %vm2093, %v2031, 0.0
        %2114 = vst [vmem:[#allocation3] sm:$0x1] 0.0
        %2115 = vst [vmem:[#allocation3 + $0x18] sm:$0x1] 0.0
        %2116 = vst [vmem:[#allocation3 + $0x30] sm:$0x1] 0.0
        %2117 = vst [vmem:[#allocation3 + $0x48] sm:$0x1] 0.0
        %2118 = vst [vmem:[#allocation3 + $0x60] sm:$0x1] 0.0
        %2119 = vst [vmem:[#allocation3 + $0x78] sm:$0x1] 0.0
        %2120 = vst [vmem:[#allocation3 + $0x90] sm:$0x1] 0.0
        %2121 = vst [vmem:[#allocation3 + $0xa8] sm:$0x1] 0.0
        %2122 = vst [vmem:[#allocation3 + $0xc0] sm:$0x1] 0.0
        %2123 = vst [vmem:[#allocation3 + $0xd8] sm:$0x1] 0.0
        %2124 = vst [vmem:[#allocation3 + $0x11] sm:$0x1] 0.0
        %2125 = vst [vmem:[#allocation3 + $0x29] sm:$0x1] 0.0
        %2126 = vst [vmem:[#allocation3 + $0x41] sm:$0x1] 0.0
        %2127 = vst [vmem:[#allocation3 + $0x59] sm:$0x1] 0.0
        %2128 = vst [vmem:[#allocation3 + $0x71] sm:$0x1] 0.0
        %2129 = vst [vmem:[#allocation3 + $0x89] sm:$0x1] 0.0
        %2130 = vst [vmem:[#allocation3 + $0xa1] sm:$0x1] 0.0
        %2131 = vst [vmem:[#allocation3 + $0xb9] sm:$0x1] 0.0
        %2132 = vst [vmem:[#allocation3 + $0xd1] sm:$0x1] 0.0
        %2133 = vst [vmem:[#allocation3 + $0xe9] sm:$0x1] 0.0
        %2134 = vst [vmem:[#allocation3 + $0x1] sm:$0xff] %v2094
        %2135 = vst [vmem:[#allocation3 + $0x9] sm:$0xff] %v2095
        %2136 = vst [vmem:[#allocation3 + $0x19] sm:$0xff] %v2096
        %2137 = vst [vmem:[#allocation3 + $0x21] sm:$0xff] %v2097
        %2138 = vst [vmem:[#allocation3 + $0x31] sm:$0xff] %v2098
        %2139 = vst [vmem:[#allocation3 + $0x39] sm:$0xff] %v2099
        %2140 = vst [vmem:[#allocation3 + $0x49] sm:$0xff] %v2100
        %2141 = vst [vmem:[#allocation3 + $0x51] sm:$0xff] %v2101
        %2142 = vst [vmem:[#allocation3 + $0x61] sm:$0xff] %v2102
        %2143 = vst [vmem:[#allocation3 + $0x69] sm:$0xff] %v2103
        %2144 = vst [vmem:[#allocation3 + $0x79] sm:$0xff] %v2104
        %2145 = vst [vmem:[#allocation3 + $0x81] sm:$0xff] %v2105
        %2146 = vst [vmem:[#allocation3 + $0x91] sm:$0xff] %v2106
        %2147 = vst [vmem:[#allocation3 + $0x99] sm:$0xff] %v2107
        %2148 = vst [vmem:[#allocation3 + $0xa9] sm:$0xff] %v2108
        %2149 = vst [vmem:[#allocation3 + $0xb1] sm:$0xff] %v2109
        %2150 = vst [vmem:[#allocation3 + $0xc1] sm:$0xff] %v2110
        %2151 = vst [vmem:[#allocation3 + $0xc9] sm:$0xff] %v2111
        %2152 = vst [vmem:[#allocation3 + $0xd9] sm:$0xff] %v2112
        %2153 = vst [vmem:[#allocation3 + $0xe1] sm:$0xff] %v2113
        %v2154 = vld [vmem:[#allocation3] sm:$0xff]
        %v2155 = vld [vmem:[#allocation3 + $0x8] sm:$0xff]
        %v2156 = vld [vmem:[#allocation3 + $0x18] sm:$0xff]
        %v2157 = vld [vmem:[#allocation3 + $0x20] sm:$0xff]
        %v2158 = vld [vmem:[#allocation3 + $0x30] sm:$0xff]
        %v2159 = vld [vmem:[#allocation3 + $0x38] sm:$0xff]
        %v2160 = vld [vmem:[#allocation3 + $0x48] sm:$0xff]
        %v2161 = vld [vmem:[#allocation3 + $0x50] sm:$0xff]
        %v2162 = vld [vmem:[#allocation3 + $0x60] sm:$0xff]
        %v2163 = vld [vmem:[#allocation3 + $0x68] sm:$0xff]
        %v2164 = vld [vmem:[#allocation3 + $0x78] sm:$0xff]
        %v2165 = vld [vmem:[#allocation3 + $0x80] sm:$0xff]
        %v2166 = vld [vmem:[#allocation3 + $0x90] sm:$0xff]
        %v2167 = vld [vmem:[#allocation3 + $0x98] sm:$0xff]
        %v2168 = vld [vmem:[#allocation3 + $0xa8] sm:$0xff]
        %v2169 = vld [vmem:[#allocation3 + $0xb0] sm:$0xff]
        %v2170 = vld [vmem:[#allocation3 + $0xc0] sm:$0xff]
        %v2171 = vld [vmem:[#allocation3 + $0xc8] sm:$0xff]
        %v2172 = vld [vmem:[#allocation3 + $0xd8] sm:$0xff]
        %v2173 = vld [vmem:[#allocation3 + $0xe0] sm:$0xff]
        %v2174 = vpack.c.bf16 %v2155, %v2154
        %v2175 = vpack.c.bf16 %v2157, %v2156
        %v2176 = vpack.c.bf16 %v2159, %v2158
        %v2177 = vpack.c.bf16 %v2161, %v2160
        %v2178 = vpack.c.bf16 %v2163, %v2162
        %v2179 = vpack.c.bf16 %v2165, %v2164
        %v2180 = vpack.c.bf16 %v2167, %v2166
        %v2181 = vpack.c.bf16 %v2169, %v2168
        %v2182 = vpack.c.bf16 %v2171, %v2170
        %v2183 = vpack.c.bf16 %v2173, %v2172
        %2184 = vst [vmem:[#allocation4] sm:$0xff] %v2174
        %2185 = vst [vmem:[#allocation4 + $0x18] sm:$0xff] %v2175
        %2186 = vst [vmem:[#allocation4 + $0x30] sm:$0xff] %v2176
        %2187 = vst [vmem:[#allocation4 + $0x48] sm:$0xff] %v2177
        %2188 = vst [vmem:[#allocation4 + $0x60] sm:$0xff] %v2178
        %2189 = vst [vmem:[#allocation4 + $0x78] sm:$0xff] %v2179
        %2190 = vst [vmem:[#allocation4 + $0x90] sm:$0xff] %v2180
        %2191 = vst [vmem:[#allocation4 + $0xa8] sm:$0xff] %v2181
        %2192 = vst [vmem:[#allocation4 + $0xc0] sm:$0xff] %v2182
        %2193 = vst [vmem:[#allocation4 + $0xd8] sm:$0xff] %v2183
        %v2194 = vld [vmem:[#allocation3 + $0x1] sm:$0xff]
        %v2195 = vld [vmem:[#allocation3 + $0x9] sm:$0xff]
        %v2196 = vld [vmem:[#allocation3 + $0x19] sm:$0xff]
        %v2197 = vld [vmem:[#allocation3 + $0x21] sm:$0xff]
        %v2198 = vld [vmem:[#allocation3 + $0x31] sm:$0xff]
        %v2199 = vld [vmem:[#allocation3 + $0x39] sm:$0xff]
        %v2200 = vld [vmem:[#allocation3 + $0x49] sm:$0xff]
        %v2201 = vld [vmem:[#allocation3 + $0x51] sm:$0xff]
        %v2202 = vld [vmem:[#allocation3 + $0x61] sm:$0xff]
        %v2203 = vld [vmem:[#allocation3 + $0x69] sm:$0xff]
        %v2204 = vld [vmem:[#allocation3 + $0x79] sm:$0xff]
        %v2205 = vld [vmem:[#allocation3 + $0x81] sm:$0xff]
        %v2206 = vld [vmem:[#allocation3 + $0x91] sm:$0xff]
        %v2207 = vld [vmem:[#allocation3 + $0x99] sm:$0xff]
        %v2208 = vld [vmem:[#allocation3 + $0xa9] sm:$0xff]
        %v2209 = vld [vmem:[#allocation3 + $0xb1] sm:$0xff]
        %v2210 = vld [vmem:[#allocation3 + $0xc1] sm:$0xff]
        %v2211 = vld [vmem:[#allocation3 + $0xc9] sm:$0xff]
        %v2212 = vld [vmem:[#allocation3 + $0xd9] sm:$0xff]
        %v2213 = vld [vmem:[#allocation3 + $0xe1] sm:$0xff]
        %v2214 = vpack.c.bf16 %v2195, %v2194
        %v2215 = vpack.c.bf16 %v2197, %v2196
        %v2216 = vpack.c.bf16 %v2199, %v2198
        %v2217 = vpack.c.bf16 %v2201, %v2200
        %v2218 = vpack.c.bf16 %v2203, %v2202
        %v2219 = vpack.c.bf16 %v2205, %v2204
        %v2220 = vpack.c.bf16 %v2207, %v2206
        %v2221 = vpack.c.bf16 %v2209, %v2208
        %v2222 = vpack.c.bf16 %v2211, %v2210
        %v2223 = vpack.c.bf16 %v2213, %v2212
        %2224 = vst [vmem:[#allocation4 + $0x8] sm:$0xff] %v2214
        %2225 = vst [vmem:[#allocation4 + $0x20] sm:$0xff] %v2215
        %2226 = vst [vmem:[#allocation4 + $0x38] sm:$0xff] %v2216
        %2227 = vst [vmem:[#allocation4 + $0x50] sm:$0xff] %v2217
        %2228 = vst [vmem:[#allocation4 + $0x68] sm:$0xff] %v2218
        %2229 = vst [vmem:[#allocation4 + $0x80] sm:$0xff] %v2219
        %2230 = vst [vmem:[#allocation4 + $0x98] sm:$0xff] %v2220
        %2231 = vst [vmem:[#allocation4 + $0xb0] sm:$0xff] %v2221
        %2232 = vst [vmem:[#allocation4 + $0xc8] sm:$0xff] %v2222
        %2233 = vst [vmem:[#allocation4 + $0xe0] sm:$0xff] %v2223
        %v2234 = vld [vmem:[#allocation3 + $0x2] sm:$0xff]
        %v2235 = vld [vmem:[#allocation3 + $0xa] sm:$0xff]
        %v2236 = vld [vmem:[#allocation3 + $0x1a] sm:$0xff]
        %v2237 = vld [vmem:[#allocation3 + $0x22] sm:$0xff]
        %v2238 = vld [vmem:[#allocation3 + $0x32] sm:$0xff]
        %v2239 = vld [vmem:[#allocation3 + $0x3a] sm:$0xff]
        %v2240 = vld [vmem:[#allocation3 + $0x4a] sm:$0xff]
        %v2241 = vld [vmem:[#allocation3 + $0x52] sm:$0xff]
        %v2242 = vld [vmem:[#allocation3 + $0x62] sm:$0xff]
        %v2243 = vld [vmem:[#allocation3 + $0x6a] sm:$0xff]
        %v2244 = vld [vmem:[#allocation3 + $0x7a] sm:$0xff]
        %v2245 = vld [vmem:[#allocation3 + $0x82] sm:$0xff]
        %v2246 = vld [vmem:[#allocation3 + $0x92] sm:$0xff]
        %v2247 = vld [vmem:[#allocation3 + $0x9a] sm:$0xff]
        %v2248 = vld [vmem:[#allocation3 + $0xaa] sm:$0xff]
        %v2249 = vld [vmem:[#allocation3 + $0xb2] sm:$0xff]
        %v2250 = vld [vmem:[#allocation3 + $0xc2] sm:$0xff]
        %v2251 = vld [vmem:[#allocation3 + $0xca] sm:$0xff]
        %v2252 = vld [vmem:[#allocation3 + $0xda] sm:$0xff]
        %v2253 = vld [vmem:[#allocation3 + $0xe2] sm:$0xff]
        %v2254 = vpack.c.bf16 %v2235, %v2234
        %v2255 = vpack.c.bf16 %v2237, %v2236
        %v2256 = vpack.c.bf16 %v2239, %v2238
        %v2257 = vpack.c.bf16 %v2241, %v2240
        %v2258 = vpack.c.bf16 %v2243, %v2242
        %v2259 = vpack.c.bf16 %v2245, %v2244
        %v2260 = vpack.c.bf16 %v2247, %v2246
        %v2261 = vpack.c.bf16 %v2249, %v2248
        %v2262 = vpack.c.bf16 %v2251, %v2250
        %v2263 = vpack.c.bf16 %v2253, %v2252
        %2264 = vst [vmem:[#allocation4 + $0x10] sm:$0xff] %v2254
        %2265 = vst [vmem:[#allocation4 + $0x28] sm:$0xff] %v2255
        %2266 = vst [vmem:[#allocation4 + $0x40] sm:$0xff] %v2256
        %2267 = vst [vmem:[#allocation4 + $0x58] sm:$0xff] %v2257
        %2268 = vst [vmem:[#allocation4 + $0x70] sm:$0xff] %v2258
        %2269 = vst [vmem:[#allocation4 + $0x88] sm:$0xff] %v2259
        %2270 = vst [vmem:[#allocation4 + $0xa0] sm:$0xff] %v2260
        %2271 = vst [vmem:[#allocation4 + $0xb8] sm:$0xff] %v2261
        %2272 = vst [vmem:[#allocation4 + $0xd0] sm:$0xff] %v2262
        %2273 = vst [vmem:[#allocation4 + $0xe8] sm:$0xff] %v2263
        %v2274 = vld [vmem:[#allocation4] sm:$0xff]
        %v2275 = vld [vmem:[#allocation4 + $0x8] sm:$0xff]
        %v2276 = vld [vmem:[#allocation4 + $0x10] sm:$0xff]
        %v2277 = vld [vmem:[#allocation4 + $0x18] sm:$0xff]
        %v2278 = vld [vmem:[#allocation4 + $0x20] sm:$0xff]
        %v2279 = vld [vmem:[#allocation4 + $0x28] sm:$0xff]
        %v2280 = vld [vmem:[#allocation4 + $0x30] sm:$0xff]
        %v2281 = vld [vmem:[#allocation4 + $0x38] sm:$0xff]
        %v2282 = vld [vmem:[#allocation4 + $0x40] sm:$0xff]
        %v2283 = vld [vmem:[#allocation4 + $0x48] sm:$0xff]
        %v2284 = vld [vmem:[#allocation4 + $0x50] sm:$0xff]
        %v2285 = vld [vmem:[#allocation4 + $0x58] sm:$0xff]
        %v2286 = vld [vmem:[#allocation4 + $0x60] sm:$0xff]
        %v2287 = vld [vmem:[#allocation4 + $0x68] sm:$0xff]
        %v2288 = vld [vmem:[#allocation4 + $0x70] sm:$0xff]
        %v2289 = vld [vmem:[#allocation4 + $0x78] sm:$0xff]
        %v2290 = vld [vmem:[#allocation4 + $0x80] sm:$0xff]
        %v2291 = vld [vmem:[#allocation4 + $0x88] sm:$0xff]
        %v2292 = vld [vmem:[#allocation4 + $0x90] sm:$0xff]
        %v2293 = vld [vmem:[#allocation4 + $0x98] sm:$0xff]
        %v2294 = vld [vmem:[#allocation4 + $0xa0] sm:$0xff]
        %v2295 = vld [vmem:[#allocation4 + $0xa8] sm:$0xff]
        %v2296 = vld [vmem:[#allocation4 + $0xb0] sm:$0xff]
        %v2297 = vld [vmem:[#allocation4 + $0xb8] sm:$0xff]
        %v2298 = vld [vmem:[%s4] sm:$0xf]
        %v2299 = vld [vmem:[%s4 + $0x4] sm:$0xf]
        %v2300 = vld [vmem:[%s4 + $0x8] sm:$0xf]
        %v2301 = vld [vmem:[%s4 + $0xc] sm:$0xf]
        %v2302 = vld [vmem:[%s4 + $0x10] sm:$0xf]
        %v2303 = vld [vmem:[%s4 + $0x14] sm:$0xf]
        %v2304 = vld [vmem:[%s4 + $0x18] sm:$0xf]
        %v2305 = vld [vmem:[%s4 + $0x1c] sm:$0xf]
        %v2306 = vld [vmem:[%s4 + $0x20] sm:$0xf]
        %v2307 = vld [vmem:[%s4 + $0x24] sm:$0xf]
        %v2308 = vld [vmem:[%s4 + $0x28] sm:$0xf]
        %v2309 = vld [vmem:[%s4 + $0x2c] sm:$0xf]
        %v2310 = vld [vmem:[%s4 + $0x30] sm:$0xf]
        %v2311 = vld [vmem:[%s4 + $0x34] sm:$0xf]
        %v2312 = vld [vmem:[%s4 + $0x38] sm:$0xf]
        %v2313 = vld [vmem:[%s4 + $0x3c] sm:$0xf]
        %v2314 = vld [vmem:[%s4 + $0x40] sm:$0xf]
        %v2315 = vld [vmem:[%s4 + $0x44] sm:$0xf]
        %v2316 = vld [vmem:[%s4 + $0x48] sm:$0xf]
        %v2317 = vld [vmem:[%s4 + $0x4c] sm:$0xf]
        %v2318 = vld [vmem:[%s4 + $0x50] sm:$0xf]
        %v2319 = vld [vmem:[%s4 + $0x54] sm:$0xf]
        %v2320 = vld [vmem:[%s4 + $0x58] sm:$0xf]
        %v2321 = vld [vmem:[%s4 + $0x5c] sm:$0xf]
        %v2322 = vld [vmem:[%s4 + $0x60] sm:$0xf]
        %v2323 = vld [vmem:[%s4 + $0x64] sm:$0xf]
        %v2324 = vld [vmem:[%s4 + $0x68] sm:$0xf]
        %v2325 = vld [vmem:[%s4 + $0x6c] sm:$0xf]
        %v2326 = vld [vmem:[%s4 + $0x70] sm:$0xf]
        %v2327 = vld [vmem:[%s4 + $0x74] sm:$0xf]
        %v2328 = vld [vmem:[%s4 + $0x78] sm:$0xf]
        %v2329 = vld [vmem:[%s4 + $0x7c] sm:$0xf]
        %v2330 = vld [vmem:[%s4 + $0x80] sm:$0xf]
        %v2331 = vld [vmem:[%s4 + $0x84] sm:$0xf]
        %v2332 = vld [vmem:[%s4 + $0x88] sm:$0xf]
        %v2333 = vld [vmem:[%s4 + $0x8c] sm:$0xf]
        %v2334 = vld [vmem:[%s4 + $0x90] sm:$0xf]
        %v2335 = vld [vmem:[%s4 + $0x94] sm:$0xf]
        %v2336 = vld [vmem:[%s4 + $0x98] sm:$0xf]
        %v2337 = vld [vmem:[%s4 + $0x9c] sm:$0xf]
        %v2338 = vld [vmem:[%s4 + $0xa0] sm:$0xf]
        %v2339 = vld [vmem:[%s4 + $0xa4] sm:$0xf]
        %v2340 = vld [vmem:[%s4 + $0xa8] sm:$0xf]
        %v2341 = vld [vmem:[%s4 + $0xac] sm:$0xf]
        %v2342 = vld [vmem:[%s4 + $0xb0] sm:$0xf]
        %v2343 = vld [vmem:[%s4 + $0xb4] sm:$0xf]
        %v2344 = vld [vmem:[%s4 + $0xb8] sm:$0xf]
        %v2345 = vld [vmem:[%s4 + $0xbc] sm:$0xf]
        %v2394 = vunpack.c.l.b16 %v2298
        %v2395 = vunpack.c.l.b16 %v2299
        %v2396 = vunpack.c.l.b16 %v2300
        %v2397 = vunpack.c.l.b16 %v2301
        %v2398 = vunpack.c.l.b16 %v2302
        %v2399 = vunpack.c.l.b16 %v2303
        %v2400 = vunpack.c.l.b16 %v2304
        %v2401 = vunpack.c.l.b16 %v2305
        %v2402 = vunpack.c.l.b16 %v2306
        %v2403 = vunpack.c.l.b16 %v2307
        %v2404 = vunpack.c.l.b16 %v2308
        %v2405 = vunpack.c.l.b16 %v2309
        %v2406 = vunpack.c.l.b16 %v2310
        %v2407 = vunpack.c.l.b16 %v2311
        %v2408 = vunpack.c.l.b16 %v2312
        %v2409 = vunpack.c.l.b16 %v2313
        %v2410 = vunpack.c.l.b16 %v2314
        %v2411 = vunpack.c.l.b16 %v2315
        %v2412 = vunpack.c.l.b16 %v2316
        %v2413 = vunpack.c.l.b16 %v2317
        %v2414 = vunpack.c.l.b16 %v2318
        %v2415 = vunpack.c.l.b16 %v2319
        %v2416 = vunpack.c.l.b16 %v2320
        %v2417 = vunpack.c.l.b16 %v2321
        %v2418 = vunpack.c.l.b16 %v2322
        %v2419 = vunpack.c.l.b16 %v2323
        %v2420 = vunpack.c.l.b16 %v2324
        %v2421 = vunpack.c.l.b16 %v2325
        %v2422 = vunpack.c.l.b16 %v2326
        %v2423 = vunpack.c.l.b16 %v2327
        %v2424 = vunpack.c.l.b16 %v2328
        %v2425 = vunpack.c.l.b16 %v2329
        %v2426 = vunpack.c.l.b16 %v2330
        %v2427 = vunpack.c.l.b16 %v2331
        %v2428 = vunpack.c.l.b16 %v2332
        %v2429 = vunpack.c.l.b16 %v2333
        %v2430 = vunpack.c.l.b16 %v2334
        %v2431 = vunpack.c.l.b16 %v2335
        %v2432 = vunpack.c.l.b16 %v2336
        %v2433 = vunpack.c.l.b16 %v2337
        %v2434 = vunpack.c.l.b16 %v2338
        %v2435 = vunpack.c.l.b16 %v2339
        %v2436 = vunpack.c.l.b16 %v2340
        %v2437 = vunpack.c.l.b16 %v2341
        %v2438 = vunpack.c.l.b16 %v2342
        %v2439 = vunpack.c.l.b16 %v2343
        %v2440 = vunpack.c.l.b16 %v2344
        %v2441 = vunpack.c.l.b16 %v2345
        %v2442 = vpack.c.b16 %v2395, %v2394
        %v2443 = vpack.c.b16 %v2397, %v2396
        %v2444 = vpack.c.b16 %v2399, %v2398
        %v2445 = vpack.c.b16 %v2401, %v2400
        %v2446 = vpack.c.b16 %v2403, %v2402
        %v2447 = vpack.c.b16 %v2405, %v2404
        %v2448 = vpack.c.b16 %v2407, %v2406
        %v2449 = vpack.c.b16 %v2409, %v2408
        %v2450 = vpack.c.b16 %v2411, %v2410
        %v2451 = vpack.c.b16 %v2413, %v2412
        %v2452 = vpack.c.b16 %v2415, %v2414
        %v2453 = vpack.c.b16 %v2417, %v2416
        %v2454 = vpack.c.b16 %v2419, %v2418
        %v2455 = vpack.c.b16 %v2421, %v2420
        %v2456 = vpack.c.b16 %v2423, %v2422
        %v2457 = vpack.c.b16 %v2425, %v2424
        %v2458 = vpack.c.b16 %v2427, %v2426
        %v2459 = vpack.c.b16 %v2429, %v2428
        %v2460 = vpack.c.b16 %v2431, %v2430
        %v2461 = vpack.c.b16 %v2433, %v2432
        %v2462 = vpack.c.b16 %v2435, %v2434
        %v2463 = vpack.c.b16 %v2437, %v2436
        %v2464 = vpack.c.b16 %v2439, %v2438
        %v2465 = vpack.c.b16 %v2441, %v2440
        %2490 = vmatprep.subr.bf16.mxu0 0
        %2491 = vmatpush1.bf16.msra.mxu0 %v2442
        %2492 = vmatprep.subr.bf16.mxu0 0
        %2493 = vmatpush1.bf16.msra.mxu0 %v2443
        %2494 = vmatprep.subr.bf16.mxu0 0
        %2495 = vmatpush1.bf16.msra.mxu0 %v2444
        %2496 = vmatprep.subr.bf16.mxu0 0
        %2497 = vmatpush1.bf16.msra.mxu0 %v2445
        %2498 = vmatprep.subr.bf16.mxu0 0
        %2499 = vmatpush1.bf16.msra.mxu0 %v2446
        %2500 = vmatprep.subr.bf16.mxu0 0
        %2501 = vmatpush1.bf16.msra.mxu0 %v2447
        %2502 = vmatprep.subr.bf16.mxu0 0
        %2503 = vmatpush1.bf16.msra.mxu0 %v2448
        %2504 = vmatprep.subr.bf16.mxu0 0
        %2505 = vmatpush1.bf16.msra.mxu0 %v2449
        %2506 = vmatprep.subr.bf16.mxu0 0
        %2507 = vmatpush1.bf16.msra.mxu0 %v2450
        %2508 = vmatprep.subr.bf16.mxu0 0
        %2509 = vmatpush1.bf16.msra.mxu0 %v2451
        %2510 = vmatprep.subr.bf16.mxu0 0
        %2511 = vmatpush1.bf16.msra.mxu0 %v2452
        %2512 = vmatprep.subr.bf16.mxu0 0
        %2513 = vmatpush1.bf16.msra.mxu0 %v2453
        %2514 = vmatprep.subr.bf16.mxu0 0
        %2515 = vmatpush1.bf16.msra.mxu0 %v2454
        %2516 = vmatprep.subr.bf16.mxu0 0
        %2517 = vmatpush1.bf16.msra.mxu0 %v2455
        %2518 = vmatprep.subr.bf16.mxu0 0
        %2519 = vmatpush1.bf16.msra.mxu0 %v2456
        %2520 = vmatprep.subr.bf16.mxu0 0
        %2521 = vmatpush1.bf16.msra.mxu0 %v2457
        %2522 = vmatprep.mubr.bf16.mxu0 %v2275
        %2523 = vmatmul.mubr.bf16.gmra.mrb[0].mxu0 %v2274
        %v2524 = vpop.f32.mrb[0].mxu0
        %v2525 = vadd.f32 0.0, %v2524
        %v2526 = vpop.f32.mrb[0].mxu0
        %v2527 = vpop.f32.mrb[0].mxu0
        %v2528 = vadd.f32 0.0, %v2527
        %v2529 = vpop.f32.mrb[0].mxu0
        %2530 = vmatprep.mubr.bf16.mxu0 %v2278
        %2531 = vmatmul.mubr.bf16.gmra.mrb[0].mxu0 %v2277
        %v2532 = vpop.f32.mrb[0].mxu0
        %v2533 = vadd.f32 0.0, %v2532
        %v2534 = vpop.f32.mrb[0].mxu0
        %v2535 = vpop.f32.mrb[0].mxu0
        %v2536 = vadd.f32 0.0, %v2535
        %v2537 = vpop.f32.mrb[0].mxu0
        %2538 = vmatprep.mubr.bf16.mxu0 %v2281
        %2539 = vmatmul.mubr.bf16.gmra.mrb[0].mxu0 %v2280
        %v2540 = vpop.f32.mrb[0].mxu0
        %v2541 = vadd.f32 0.0, %v2540
        %v2542 = vpop.f32.mrb[0].mxu0
        %v2543 = vpop.f32.mrb[0].mxu0
        %v2544 = vadd.f32 0.0, %v2543
        %v2545 = vpop.f32.mrb[0].mxu0
        %2546 = vmatprep.mubr.bf16.mxu0 %v2284
        %2547 = vmatmul.mubr.bf16.gmra.mrb[0].mxu0 %v2283
        %v2548 = vpop.f32.mrb[0].mxu0
        %v2549 = vadd.f32 0.0, %v2548
        %v2550 = vpop.f32.mrb[0].mxu0
        %v2551 = vpop.f32.mrb[0].mxu0
        %v2552 = vadd.f32 0.0, %v2551
        %v2553 = vpop.f32.mrb[0].mxu0
        %2554 = vmatprep.mubr.bf16.mxu0 %v2287
        %2555 = vmatmul.mubr.bf16.gmra.mrb[0].mxu0 %v2286
        %v2556 = vpop.f32.mrb[0].mxu0
        %v2557 = vadd.f32 0.0, %v2556
        %v2558 = vpop.f32.mrb[0].mxu0
        %v2559 = vpop.f32.mrb[0].mxu0
        %v2560 = vadd.f32 0.0, %v2559
        %v2561 = vpop.f32.mrb[0].mxu0
        %2562 = vmatprep.mubr.bf16.mxu0 %v2290
        %2563 = vmatmul.mubr.bf16.gmra.mrb[0].mxu0 %v2289
        %v2564 = vpop.f32.mrb[0].mxu0
        %v2565 = vadd.f32 0.0, %v2564
        %v2566 = vpop.f32.mrb[0].mxu0
        %v2567 = vpop.f32.mrb[0].mxu0
        %v2568 = vadd.f32 0.0, %v2567
        %v2569 = vpop.f32.mrb[0].mxu0
        %2570 = vmatprep.mubr.bf16.mxu0 %v2293
        %2571 = vmatmul.mubr.bf16.gmra.mrb[0].mxu0 %v2292
        %v2572 = vpop.f32.mrb[0].mxu0
        %v2573 = vadd.f32 0.0, %v2572
        %v2574 = vpop.f32.mrb[0].mxu0
        %v2575 = vpop.f32.mrb[0].mxu0
        %v2576 = vadd.f32 0.0, %v2575
        %v2577 = vpop.f32.mrb[0].mxu0
        %2578 = vmatprep.mubr.bf16.mxu0 %v2296
        %2579 = vmatmul.mubr.bf16.gmra.mrb[0].mxu0 %v2295
        %v2580 = vpop.f32.mrb[0].mxu0
        %v2581 = vadd.f32 0.0, %v2580
        %v2582 = vpop.f32.mrb[0].mxu0
        %v2583 = vpop.f32.mrb[0].mxu0
        %v2584 = vadd.f32 0.0, %v2583
        %v2585 = vpop.f32.mrb[0].mxu0
        %2586 = vdwg.mxu0
        %2587 = vmatprep.subr.bf16.mxu0 0
        %2588 = vmatpush1.bf16.msra.mxu0 %v2458
        %2589 = vmatprep.subr.bf16.mxu0 0
        %2590 = vmatpush1.bf16.msra.mxu0 %v2459
        %2591 = vmatprep.subr.bf16.mxu0 0
        %2592 = vmatpush1.bf16.msra.mxu0 %v2460
        %2593 = vmatprep.subr.bf16.mxu0 0
        %2594 = vmatpush1.bf16.msra.mxu0 %v2461
        %2595 = vmatprep.subr.bf16.mxu0 0
        %2596 = vmatpush1.bf16.msra.mxu0 %v2462
        %2597 = vmatprep.subr.bf16.mxu0 0
        %2598 = vmatpush1.bf16.msra.mxu0 %v2463
        %2599 = vmatprep.subr.bf16.mxu0 0
        %2600 = vmatpush1.bf16.msra.mxu0 %v2464
        %2601 = vmatprep.subr.bf16.mxu0 0
        %2602 = vmatpush1.bf16.msra.mxu0 %v2465
        %2603 = vmatprep.subr.bf16.mxu0 0
        %2604 = vmatpush1.bf16.msra.mxu0 0
        %2605 = vmatprep.subr.bf16.mxu0 0
        %2606 = vmatpush1.bf16.msra.mxu0 0
        %2607 = vmatprep.subr.bf16.mxu0 0
        %2608 = vmatpush1.bf16.msra.mxu0 0
        %2609 = vmatprep.subr.bf16.mxu0 0
        %2610 = vmatpush1.bf16.msra.mxu0 0
        %2611 = vmatprep.subr.bf16.mxu0 0
        %2612 = vmatpush1.bf16.msra.mxu0 0
        %2613 = vmatprep.subr.bf16.mxu0 0
        %2614 = vmatpush1.bf16.msra.mxu0 0
        %2615 = vmatprep.subr.bf16.mxu0 0
        %2616 = vmatpush1.bf16.msra.mxu0 0
        %2617 = vmatprep.subr.bf16.mxu0 0
        %2618 = vmatpush1.bf16.msra.mxu0 0
        %2619 = vmatprep.mubr.bf16.mxu0 0
        %2620 = vmatmul.mubr.bf16.gmra.mrb[0].mxu0 %v2276
        %v2621 = vpop.f32.mrb[0].mxu0
        %v2622 = vadd.f32 %v2525, %v2621
        %v2623 = vpop.f32.mrb[0].mxu0
        %v2624 = vpop.f32.mrb[0].mxu0
        %v2625 = vadd.f32 %v2528, %v2624
        %v2626 = vpop.f32.mrb[0].mxu0
        %2627 = vmatprep.mubr.bf16.mxu0 0
        %2628 = vmatmul.mubr.bf16.gmra.mrb[0].mxu0 %v2279
        %v2629 = vpop.f32.mrb[0].mxu0
        %v2630 = vadd.f32 %v2533, %v2629
        %v2631 = vpop.f32.mrb[0].mxu0
        %v2632 = vpop.f32.mrb[0].mxu0
        %v2633 = vadd.f32 %v2536, %v2632
        %v2634 = vpop.f32.mrb[0].mxu0
        %2635 = vmatprep.mubr.bf16.mxu0 0
        %2636 = vmatmul.mubr.bf16.gmra.mrb[0].mxu0 %v2282
        %v2637 = vpop.f32.mrb[0].mxu0
        %v2638 = vadd.f32 %v2541, %v2637
        %v2639 = vpop.f32.mrb[0].mxu0
        %v2640 = vpop.f32.mrb[0].mxu0
        %v2641 = vadd.f32 %v2544, %v2640
        %v2642 = vpop.f32.mrb[0].mxu0
        %2643 = vmatprep.mubr.bf16.mxu0 0
        %2644 = vmatmul.mubr.bf16.gmra.mrb[0].mxu0 %v2285
        %v2645 = vpop.f32.mrb[0].mxu0
        %v2646 = vadd.f32 %v2549, %v2645
        %v2647 = vpop.f32.mrb[0].mxu0
        %v2648 = vpop.f32.mrb[0].mxu0
        %v2649 = vadd.f32 %v2552, %v2648
        %v2650 = vpop.f32.mrb[0].mxu0
        %2651 = vmatprep.mubr.bf16.mxu0 0
        %2652 = vmatmul.mubr.bf16.gmra.mrb[0].mxu0 %v2288
        %v2653 = vpop.f32.mrb[0].mxu0
        %v2654 = vadd.f32 %v2557, %v2653
        %v2655 = vpop.f32.mrb[0].mxu0
        %v2656 = vpop.f32.mrb[0].mxu0
        %v2657 = vadd.f32 %v2560, %v2656
        %v2658 = vpop.f32.mrb[0].mxu0
        %2659 = vmatprep.mubr.bf16.mxu0 0
        %2660 = vmatmul.mubr.bf16.gmra.mrb[0].mxu0 %v2291
        %v2661 = vpop.f32.mrb[0].mxu0
        %v2662 = vadd.f32 %v2565, %v2661
        %v2663 = vpop.f32.mrb[0].mxu0
        %v2664 = vpop.f32.mrb[0].mxu0
        %v2665 = vadd.f32 %v2568, %v2664
        %v2666 = vpop.f32.mrb[0].mxu0
        %2667 = vmatprep.mubr.bf16.mxu0 0
        %2668 = vmatmul.mubr.bf16.gmra.mrb[0].mxu0 %v2294
        %v2669 = vpop.f32.mrb[0].mxu0
        %v2670 = vadd.f32 %v2573, %v2669
        %v2671 = vpop.f32.mrb[0].mxu0
        %v2672 = vpop.f32.mrb[0].mxu0
        %v2673 = vadd.f32 %v2576, %v2672
        %v2674 = vpop.f32.mrb[0].mxu0
        %2675 = vmatprep.mubr.bf16.mxu0 0
        %2676 = vmatmul.mubr.bf16.gmra.mrb[0].mxu0 %v2297
        %v2677 = vpop.f32.mrb[0].mxu0
        %v2678 = vadd.f32 %v2581, %v2677
        %v2679 = vpop.f32.mrb[0].mxu0
        %v2680 = vpop.f32.mrb[0].mxu0
        %v2681 = vadd.f32 %v2584, %v2680
        %v2682 = vpop.f32.mrb[0].mxu0
        %2683 = vdwg.mxu0
        %2684 = vst [vmem:[%s295] sm:$0xff] %v2622
        %2685 = vst [vmem:[%s295 + $0x8] sm:$0xff] %v2625
        %2686 = vst [vmem:[%s295 + $0x10] sm:$0xff] %v2630
        %2687 = vst [vmem:[%s295 + $0x18] sm:$0xff] %v2633
        %2688 = vst [vmem:[%s295 + $0x20] sm:$0xff] %v2638
        %2689 = vst [vmem:[%s295 + $0x28] sm:$0xff] %v2641
        %2690 = vst [vmem:[%s295 + $0x30] sm:$0xff] %v2646
        %2691 = vst [vmem:[%s295 + $0x38] sm:$0xff] %v2649
        %2692 = vst [vmem:[%s295 + $0x40] sm:$0xff] %v2654
        %2693 = vst [vmem:[%s295 + $0x48] sm:$0xff] %v2657
        %2694 = vst [vmem:[%s295 + $0x50] sm:$0xff] %v2662
        %2695 = vst [vmem:[%s295 + $0x58] sm:$0xff] %v2665
        %2696 = vst [vmem:[%s295 + $0x60] sm:$0xff] %v2670
        %2697 = vst [vmem:[%s295 + $0x68] sm:$0xff] %v2673
        %2698 = vst [vmem:[%s295 + $0x70] sm:$0xff] %v2678
        %2699 = vst [vmem:[%s295 + $0x78] sm:$0xff] %v2681
        %s2700 = scalar_lea.vmem [#allocation4], 24
        %v2701 = vld [vmem:[%s2700] sm:$0xff]
        %v2702 = vld [vmem:[%s2700 + $0x8] sm:$0xff]
        %v2703 = vld [vmem:[%s2700 + $0x10] sm:$0xff]
        %v2704 = vld [vmem:[%s2700 + $0x18] sm:$0xff]
        %v2705 = vld [vmem:[%s2700 + $0x20] sm:$0xff]
        %v2706 = vld [vmem:[%s2700 + $0x28] sm:$0xff]
        %v2707 = vld [vmem:[%s2700 + $0x30] sm:$0xff]
        %v2708 = vld [vmem:[%s2700 + $0x38] sm:$0xff]
        %v2709 = vld [vmem:[%s2700 + $0x40] sm:$0xff]
        %v2710 = vld [vmem:[%s2700 + $0x48] sm:$0xff]
        %v2711 = vld [vmem:[%s2700 + $0x50] sm:$0xff]
        %v2712 = vld [vmem:[%s2700 + $0x58] sm:$0xff]
        %v2713 = vld [vmem:[%s2700 + $0x60] sm:$0xff]
        %v2714 = vld [vmem:[%s2700 + $0x68] sm:$0xff]
        %v2715 = vld [vmem:[%s2700 + $0x70] sm:$0xff]
        %v2716 = vld [vmem:[%s2700 + $0x78] sm:$0xff]
        %v2717 = vld [vmem:[%s2700 + $0x80] sm:$0xff]
        %v2718 = vld [vmem:[%s2700 + $0x88] sm:$0xff]
        %v2719 = vld [vmem:[%s2700 + $0x90] sm:$0xff]
        %v2720 = vld [vmem:[%s2700 + $0x98] sm:$0xff]
        %v2721 = vld [vmem:[%s2700 + $0xa0] sm:$0xff]
        %v2722 = vld [vmem:[%s2700 + $0xa8] sm:$0xff]
        %v2723 = vld [vmem:[%s2700 + $0xb0] sm:$0xff]
        %v2724 = vld [vmem:[%s2700 + $0xb8] sm:$0xff]
        %s2725 = scalar_lea.vmem %s4, 192
        %v2726 = vld [vmem:[%s2725] sm:$0xf]
        %v2727 = vld [vmem:[%s2725 + $0x4] sm:$0xf]
        %v2728 = vld [vmem:[%s2725 + $0x8] sm:$0xf]
        %v2729 = vld [vmem:[%s2725 + $0xc] sm:$0xf]
        %v2730 = vld [vmem:[%s2725 + $0x10] sm:$0xf]
        %v2731 = vld [vmem:[%s2725 + $0x14] sm:$0xf]
        %v2732 = vld [vmem:[%s2725 + $0x18] sm:$0xf]
        %v2733 = vld [vmem:[%s2725 + $0x1c] sm:$0xf]
        %v2734 = vld [vmem:[%s2725 + $0x20] sm:$0xf]
        %v2735 = vld [vmem:[%s2725 + $0x24] sm:$0xf]
        %v2736 = vld [vmem:[%s2725 + $0x28] sm:$0xf]
        %v2737 = vld [vmem:[%s2725 + $0x2c] sm:$0xf]
        %v2738 = vld [vmem:[%s2725 + $0x30] sm:$0xf]
        %v2739 = vld [vmem:[%s2725 + $0x34] sm:$0xf]
        %v2740 = vld [vmem:[%s2725 + $0x38] sm:$0xf]
        %v2741 = vld [vmem:[%s2725 + $0x3c] sm:$0xf]
        %v2742 = vld [vmem:[%s2725 + $0x40] sm:$0xf]
        %v2743 = vld [vmem:[%s2725 + $0x44] sm:$0xf]
        %v2744 = vld [vmem:[%s2725 + $0x48] sm:$0xf]
        %v2745 = vld [vmem:[%s2725 + $0x4c] sm:$0xf]
        %v2746 = vld [vmem:[%s2725 + $0x50] sm:$0xf]
        %v2747 = vld [vmem:[%s2725 + $0x54] sm:$0xf]
        %v2748 = vld [vmem:[%s2725 + $0x58] sm:$0xf]
        %v2749 = vld [vmem:[%s2725 + $0x5c] sm:$0xf]
        %v2750 = vld [vmem:[%s2725 + $0x60] sm:$0xf]
        %v2751 = vld [vmem:[%s2725 + $0x64] sm:$0xf]
        %v2752 = vld [vmem:[%s2725 + $0x68] sm:$0xf]
        %v2753 = vld [vmem:[%s2725 + $0x6c] sm:$0xf]
        %v2754 = vld [vmem:[%s2725 + $0x70] sm:$0xf]
        %v2755 = vld [vmem:[%s2725 + $0x74] sm:$0xf]
        %v2756 = vld [vmem:[%s2725 + $0x78] sm:$0xf]
        %v2757 = vld [vmem:[%s2725 + $0x7c] sm:$0xf]
        %v2758 = vld [vmem:[%s2725 + $0x80] sm:$0xf]
        %v2759 = vld [vmem:[%s2725 + $0x84] sm:$0xf]
        %v2760 = vld [vmem:[%s2725 + $0x88] sm:$0xf]
        %v2761 = vld [vmem:[%s2725 + $0x8c] sm:$0xf]
        %v2762 = vld [vmem:[%s2725 + $0x90] sm:$0xf]
        %v2763 = vld [vmem:[%s2725 + $0x94] sm:$0xf]
        %v2764 = vld [vmem:[%s2725 + $0x98] sm:$0xf]
        %v2765 = vld [vmem:[%s2725 + $0x9c] sm:$0xf]
        %v2766 = vld [vmem:[%s2725 + $0xa0] sm:$0xf]
        %v2767 = vld [vmem:[%s2725 + $0xa4] sm:$0xf]
        %v2768 = vld [vmem:[%s2725 + $0xa8] sm:$0xf]
        %v2769 = vld [vmem:[%s2725 + $0xac] sm:$0xf]
        %v2770 = vld [vmem:[%s2725 + $0xb0] sm:$0xf]
        %v2771 = vld [vmem:[%s2725 + $0xb4] sm:$0xf]
        %v2772 = vld [vmem:[%s2725 + $0xb8] sm:$0xf]
        %v2773 = vld [vmem:[%s2725 + $0xbc] sm:$0xf]
        %v2822 = vunpack.c.l.b16 %v2726
        %v2823 = vunpack.c.l.b16 %v2727
        %v2824 = vunpack.c.l.b16 %v2728
        %v2825 = vunpack.c.l.b16 %v2729
        %v2826 = vunpack.c.l.b16 %v2730
        %v2827 = vunpack.c.l.b16 %v2731
        %v2828 = vunpack.c.l.b16 %v2732
        %v2829 = vunpack.c.l.b16 %v2733
        %v2830 = vunpack.c.l.b16 %v2734
        %v2831 = vunpack.c.l.b16 %v2735
        %v2832 = vunpack.c.l.b16 %v2736
        %v2833 = vunpack.c.l.b16 %v2737
        %v2834 = vunpack.c.l.b16 %v2738
        %v2835 = vunpack.c.l.b16 %v2739
        %v2836 = vunpack.c.l.b16 %v2740
        %v2837 = vunpack.c.l.b16 %v2741
        %v2838 = vunpack.c.l.b16 %v2742
        %v2839 = vunpack.c.l.b16 %v2743
        %v2840 = vunpack.c.l.b16 %v2744
        %v2841 = vunpack.c.l.b16 %v2745
        %v2842 = vunpack.c.l.b16 %v2746
        %v2843 = vunpack.c.l.b16 %v2747
        %v2844 = vunpack.c.l.b16 %v2748
        %v2845 = vunpack.c.l.b16 %v2749
        %v2846 = vunpack.c.l.b16 %v2750
        %v2847 = vunpack.c.l.b16 %v2751
        %v2848 = vunpack.c.l.b16 %v2752
        %v2849 = vunpack.c.l.b16 %v2753
        %v2850 = vunpack.c.l.b16 %v2754
        %v2851 = vunpack.c.l.b16 %v2755
        %v2852 = vunpack.c.l.b16 %v2756
        %v2853 = vunpack.c.l.b16 %v2757
        %v2854 = vunpack.c.l.b16 %v2758
        %v2855 = vunpack.c.l.b16 %v2759
        %v2856 = vunpack.c.l.b16 %v2760
        %v2857 = vunpack.c.l.b16 %v2761
        %v2858 = vunpack.c.l.b16 %v2762
        %v2859 = vunpack.c.l.b16 %v2763
        %v2860 = vunpack.c.l.b16 %v2764
        %v2861 = vunpack.c.l.b16 %v2765
        %v2862 = vunpack.c.l.b16 %v2766
        %v2863 = vunpack.c.l.b16 %v2767
        %v2864 = vunpack.c.l.b16 %v2768
        %v2865 = vunpack.c.l.b16 %v2769
        %v2866 = vunpack.c.l.b16 %v2770
        %v2867 = vunpack.c.l.b16 %v2771
        %v2868 = vunpack.c.l.b16 %v2772
        %v2869 = vunpack.c.l.b16 %v2773
        %v2870 = vpack.c.b16 %v2823, %v2822
        %v2871 = vpack.c.b16 %v2825, %v2824
        %v2872 = vpack.c.b16 %v2827, %v2826
        %v2873 = vpack.c.b16 %v2829, %v2828
        %v2874 = vpack.c.b16 %v2831, %v2830
        %v2875 = vpack.c.b16 %v2833, %v2832
        %v2876 = vpack.c.b16 %v2835, %v2834
        %v2877 = vpack.c.b16 %v2837, %v2836
        %v2878 = vpack.c.b16 %v2839, %v2838
        %v2879 = vpack.c.b16 %v2841, %v2840
        %v2880 = vpack.c.b16 %v2843, %v2842
        %v2881 = vpack.c.b16 %v2845, %v2844
        %v2882 = vpack.c.b16 %v2847, %v2846
        %v2883 = vpack.c.b16 %v2849, %v2848
        %v2884 = vpack.c.b16 %v2851, %v2850
        %v2885 = vpack.c.b16 %v2853, %v2852
        %v2886 = vpack.c.b16 %v2855, %v2854
        %v2887 = vpack.c.b16 %v2857, %v2856
        %v2888 = vpack.c.b16 %v2859, %v2858
        %v2889 = vpack.c.b16 %v2861, %v2860
        %v2890 = vpack.c.b16 %v2863, %v2862
        %v2891 = vpack.c.b16 %v2865, %v2864
        %v2892 = vpack.c.b16 %v2867, %v2866
        %v2893 = vpack.c.b16 %v2869, %v2868
        %2918 = vmatprep.subr.bf16.mxu0 0
        %2919 = vmatpush1.bf16.msra.mxu0 %v2870
        %2920 = vmatprep.subr.bf16.mxu0 0
        %2921 = vmatpush1.bf16.msra.mxu0 %v2871
        %2922 = vmatprep.subr.bf16.mxu0 0
        %2923 = vmatpush1.bf16.msra.mxu0 %v2872
        %2924 = vmatprep.subr.bf16.mxu0 0
        %2925 = vmatpush1.bf16.msra.mxu0 %v2873
        %2926 = vmatprep.subr.bf16.mxu0 0
        %2927 = vmatpush1.bf16.msra.mxu0 %v2874
        %2928 = vmatprep.subr.bf16.mxu0 0
        %2929 = vmatpush1.bf16.msra.mxu0 %v2875
        %2930 = vmatprep.subr.bf16.mxu0 0
        %2931 = vmatpush1.bf16.msra.mxu0 %v2876
        %2932 = vmatprep.subr.bf16.mxu0 0
        %2933 = vmatpush1.bf16.msra.mxu0 %v2877
        %2934 = vmatprep.subr.bf16.mxu0 0
        %2935 = vmatpush1.bf16.msra.mxu0 %v2878
        %2936 = vmatprep.subr.bf16.mxu0 0
        %2937 = vmatpush1.bf16.msra.mxu0 %v2879
        %2938 = vmatprep.subr.bf16.mxu0 0
        %2939 = vmatpush1.bf16.msra.mxu0 %v2880
        %2940 = vmatprep.subr.bf16.mxu0 0
        %2941 = vmatpush1.bf16.msra.mxu0 %v2881
        %2942 = vmatprep.subr.bf16.mxu0 0
        %2943 = vmatpush1.bf16.msra.mxu0 %v2882
        %2944 = vmatprep.subr.bf16.mxu0 0
        %2945 = vmatpush1.bf16.msra.mxu0 %v2883
        %2946 = vmatprep.subr.bf16.mxu0 0
        %2947 = vmatpush1.bf16.msra.mxu0 %v2884
        %2948 = vmatprep.subr.bf16.mxu0 0
        %2949 = vmatpush1.bf16.msra.mxu0 %v2885
        %2950 = vmatprep.mubr.bf16.mxu0 %v2702
        %2951 = vmatmul.mubr.bf16.gmra.mrb[0].mxu0 %v2701
        %v2952 = vpop.f32.mrb[0].mxu0
        %v2953 = vadd.f32 0.0, %v2952
        %v2954 = vpop.f32.mrb[0].mxu0
        %v2955 = vpop.f32.mrb[0].mxu0
        %v2956 = vadd.f32 0.0, %v2955
        %v2957 = vpop.f32.mrb[0].mxu0
        %2958 = vmatprep.mubr.bf16.mxu0 %v2705
        %2959 = vmatmul.mubr.bf16.gmra.mrb[0].mxu0 %v2704
        %v2960 = vpop.f32.mrb[0].mxu0
        %v2961 = vadd.f32 0.0, %v2960
        %v2962 = vpop.f32.mrb[0].mxu0
        %v2963 = vpop.f32.mrb[0].mxu0
        %v2964 = vadd.f32 0.0, %v2963
        %v2965 = vpop.f32.mrb[0].mxu0
        %2966 = vmatprep.mubr.bf16.mxu0 %v2708
        %2967 = vmatmul.mubr.bf16.gmra.mrb[0].mxu0 %v2707
        %v2968 = vpop.f32.mrb[0].mxu0
        %v2969 = vadd.f32 0.0, %v2968
        %v2970 = vpop.f32.mrb[0].mxu0
        %v2971 = vpop.f32.mrb[0].mxu0
        %v2972 = vadd.f32 0.0, %v2971
        %v2973 = vpop.f32.mrb[0].mxu0
        %2974 = vmatprep.mubr.bf16.mxu0 %v2711
        %2975 = vmatmul.mubr.bf16.gmra.mrb[0].mxu0 %v2710
        %v2976 = vpop.f32.mrb[0].mxu0
        %v2977 = vadd.f32 0.0, %v2976
        %v2978 = vpop.f32.mrb[0].mxu0
        %v2979 = vpop.f32.mrb[0].mxu0
        %v2980 = vadd.f32 0.0, %v2979
        %v2981 = vpop.f32.mrb[0].mxu0
        %2982 = vmatprep.mubr.bf16.mxu0 %v2714
        %2983 = vmatmul.mubr.bf16.gmra.mrb[0].mxu0 %v2713
        %v2984 = vpop.f32.mrb[0].mxu0
        %v2985 = vadd.f32 0.0, %v2984
        %v2986 = vpop.f32.mrb[0].mxu0
        %v2987 = vpop.f32.mrb[0].mxu0
        %v2988 = vadd.f32 0.0, %v2987
        %v2989 = vpop.f32.mrb[0].mxu0
        %2990 = vmatprep.mubr.bf16.mxu0 %v2717
        %2991 = vmatmul.mubr.bf16.gmra.mrb[0].mxu0 %v2716
        %v2992 = vpop.f32.mrb[0].mxu0
        %v2993 = vadd.f32 0.0, %v2992
        %v2994 = vpop.f32.mrb[0].mxu0
        %v2995 = vpop.f32.mrb[0].mxu0
        %v2996 = vadd.f32 0.0, %v2995
        %v2997 = vpop.f32.mrb[0].mxu0
        %2998 = vmatprep.mubr.bf16.mxu0 %v2720
        %2999 = vmatmul.mubr.bf16.gmra.mrb[0].mxu0 %v2719
        %v3000 = vpop.f32.mrb[0].mxu0
        %v3001 = vadd.f32 0.0, %v3000
        %v3002 = vpop.f32.mrb[0].mxu0
        %v3003 = vpop.f32.mrb[0].mxu0
        %v3004 = vadd.f32 0.0, %v3003
        %v3005 = vpop.f32.mrb[0].mxu0
        %3006 = vmatprep.mubr.bf16.mxu0 %v2723
        %3007 = vmatmul.mubr.bf16.gmra.mrb[0].mxu0 %v2722
        %v3008 = vpop.f32.mrb[0].mxu0
        %v3009 = vadd.f32 0.0, %v3008
        %v3010 = vpop.f32.mrb[0].mxu0
        %v3011 = vpop.f32.mrb[0].mxu0
        %v3012 = vadd.f32 0.0, %v3011
        %v3013 = vpop.f32.mrb[0].mxu0
        %3014 = vdwg.mxu0
        %3015 = vmatprep.subr.bf16.mxu0 0
        %3016 = vmatpush1.bf16.msra.mxu0 %v2886
        %3017 = vmatprep.subr.bf16.mxu0 0
        %3018 = vmatpush1.bf16.msra.mxu0 %v2887
        %3019 = vmatprep.subr.bf16.mxu0 0
        %3020 = vmatpush1.bf16.msra.mxu0 %v2888
        %3021 = vmatprep.subr.bf16.mxu0 0
        %3022 = vmatpush1.bf16.msra.mxu0 %v2889
        %3023 = vmatprep.subr.bf16.mxu0 0
        %3024 = vmatpush1.bf16.msra.mxu0 %v2890
        %3025 = vmatprep.subr.bf16.mxu0 0
        %3026 = vmatpush1.bf16.msra.mxu0 %v2891
        %3027 = vmatprep.subr.bf16.mxu0 0
        %3028 = vmatpush1.bf16.msra.mxu0 %v2892
        %3029 = vmatprep.subr.bf16.mxu0 0
        %3030 = vmatpush1.bf16.msra.mxu0 %v2893
        %3031 = vmatprep.subr.bf16.mxu0 0
        %3032 = vmatpush1.bf16.msra.mxu0 0
        %3033 = vmatprep.subr.bf16.mxu0 0
        %3034 = vmatpush1.bf16.msra.mxu0 0
        %3035 = vmatprep.subr.bf16.mxu0 0
        %3036 = vmatpush1.bf16.msra.mxu0 0
        %3037 = vmatprep.subr.bf16.mxu0 0
        %3038 = vmatpush1.bf16.msra.mxu0 0
        %3039 = vmatprep.subr.bf16.mxu0 0
        %3040 = vmatpush1.bf16.msra.mxu0 0
        %3041 = vmatprep.subr.bf16.mxu0 0
        %3042 = vmatpush1.bf16.msra.mxu0 0
        %3043 = vmatprep.subr.bf16.mxu0 0
        %3044 = vmatpush1.bf16.msra.mxu0 0
        %3045 = vmatprep.subr.bf16.mxu0 0
        %3046 = vmatpush1.bf16.msra.mxu0 0
        %3047 = vmatprep.mubr.bf16.mxu0 0
        %3048 = vmatmul.mubr.bf16.gmra.mrb[0].mxu0 %v2703
        %v3049 = vpop.f32.mrb[0].mxu0
        %v3050 = vadd.f32 %v2953, %v3049
        %v3051 = vpop.f32.mrb[0].mxu0
        %v3052 = vpop.f32.mrb[0].mxu0
        %v3053 = vadd.f32 %v2956, %v3052
        %v3054 = vpop.f32.mrb[0].mxu0
        %3055 = vmatprep.mubr.bf16.mxu0 0
        %3056 = vmatmul.mubr.bf16.gmra.mrb[0].mxu0 %v2706
        %v3057 = vpop.f32.mrb[0].mxu0
        %v3058 = vadd.f32 %v2961, %v3057
        %v3059 = vpop.f32.mrb[0].mxu0
        %v3060 = vpop.f32.mrb[0].mxu0
        %v3061 = vadd.f32 %v2964, %v3060
        %v3062 = vpop.f32.mrb[0].mxu0
        %3063 = vmatprep.mubr.bf16.mxu0 0
        %3064 = vmatmul.mubr.bf16.gmra.mrb[0].mxu0 %v2709
        %v3065 = vpop.f32.mrb[0].mxu0
        %v3066 = vadd.f32 %v2969, %v3065
        %v3067 = vpop.f32.mrb[0].mxu0
        %v3068 = vpop.f32.mrb[0].mxu0
        %v3069 = vadd.f32 %v2972, %v3068
        %v3070 = vpop.f32.mrb[0].mxu0
        %3071 = vmatprep.mubr.bf16.mxu0 0
        %3072 = vmatmul.mubr.bf16.gmra.mrb[0].mxu0 %v2712
        %v3073 = vpop.f32.mrb[0].mxu0
        %v3074 = vadd.f32 %v2977, %v3073
        %v3075 = vpop.f32.mrb[0].mxu0
        %v3076 = vpop.f32.mrb[0].mxu0
        %v3077 = vadd.f32 %v2980, %v3076
        %v3078 = vpop.f32.mrb[0].mxu0
        %3079 = vmatprep.mubr.bf16.mxu0 0
        %3080 = vmatmul.mubr.bf16.gmra.mrb[0].mxu0 %v2715
        %v3081 = vpop.f32.mrb[0].mxu0
        %v3082 = vadd.f32 %v2985, %v3081
        %v3083 = vpop.f32.mrb[0].mxu0
        %v3084 = vpop.f32.mrb[0].mxu0
        %v3085 = vadd.f32 %v2988, %v3084
        %v3086 = vpop.f32.mrb[0].mxu0
        %3087 = vmatprep.mubr.bf16.mxu0 0
        %3088 = vmatmul.mubr.bf16.gmra.mrb[0].mxu0 %v2718
        %v3089 = vpop.f32.mrb[0].mxu0
        %v3090 = vadd.f32 %v2993, %v3089
        %v3091 = vpop.f32.mrb[0].mxu0
        %v3092 = vpop.f32.mrb[0].mxu0
        %v3093 = vadd.f32 %v2996, %v3092
        %v3094 = vpop.f32.mrb[0].mxu0
        %3095 = vmatprep.mubr.bf16.mxu0 0
        %3096 = vmatmul.mubr.bf16.gmra.mrb[0].mxu0 %v2721
        %v3097 = vpop.f32.mrb[0].mxu0
        %v3098 = vadd.f32 %v3001, %v3097
        %v3099 = vpop.f32.mrb[0].mxu0
        %v3100 = vpop.f32.mrb[0].mxu0
        %v3101 = vadd.f32 %v3004, %v3100
        %v3102 = vpop.f32.mrb[0].mxu0
        %3103 = vmatprep.mubr.bf16.mxu0 0
        %3104 = vmatmul.mubr.bf16.gmra.mrb[0].mxu0 %v2724
        %v3105 = vpop.f32.mrb[0].mxu0
        %v3106 = vadd.f32 %v3009, %v3105
        %v3107 = vpop.f32.mrb[0].mxu0
        %v3108 = vpop.f32.mrb[0].mxu0
        %v3109 = vadd.f32 %v3012, %v3108
        %v3110 = vpop.f32.mrb[0].mxu0
        %3111 = vdwg.mxu0
        %v3112 = vld [vmem:[%s295] sm:$0xff]
        %v3113 = vld [vmem:[%s295 + $0x8] sm:$0xff]
        %v3114 = vld [vmem:[%s295 + $0x10] sm:$0xff]
        %v3115 = vld [vmem:[%s295 + $0x18] sm:$0xff]
        %v3116 = vld [vmem:[%s295 + $0x20] sm:$0xff]
        %v3117 = vld [vmem:[%s295 + $0x28] sm:$0xff]
        %v3118 = vld [vmem:[%s295 + $0x30] sm:$0xff]
        %v3119 = vld [vmem:[%s295 + $0x38] sm:$0xff]
        %v3120 = vld [vmem:[%s295 + $0x40] sm:$0xff]
        %v3121 = vld [vmem:[%s295 + $0x48] sm:$0xff]
        %v3122 = vld [vmem:[%s295 + $0x50] sm:$0xff]
        %v3123 = vld [vmem:[%s295 + $0x58] sm:$0xff]
        %v3124 = vld [vmem:[%s295 + $0x60] sm:$0xff]
        %v3125 = vld [vmem:[%s295 + $0x68] sm:$0xff]
        %v3126 = vld [vmem:[%s295 + $0x70] sm:$0xff]
        %v3127 = vld [vmem:[%s295 + $0x78] sm:$0xff]
        %v3128 = vadd.f32 %v3112, %v3050
        %v3129 = vadd.f32 %v3113, %v3053
        %v3130 = vadd.f32 %v3114, %v3058
        %v3131 = vadd.f32 %v3115, %v3061
        %v3132 = vadd.f32 %v3116, %v3066
        %v3133 = vadd.f32 %v3117, %v3069
        %v3134 = vadd.f32 %v3118, %v3074
        %v3135 = vadd.f32 %v3119, %v3077
        %v3136 = vadd.f32 %v3120, %v3082
        %v3137 = vadd.f32 %v3121, %v3085
        %v3138 = vadd.f32 %v3122, %v3090
        %v3139 = vadd.f32 %v3123, %v3093
        %v3140 = vadd.f32 %v3124, %v3098
        %v3141 = vadd.f32 %v3125, %v3101
        %v3142 = vadd.f32 %v3126, %v3106
        %v3143 = vadd.f32 %v3127, %v3109
        %3144 = vst [vmem:[%s295] sm:$0xff] %v3128
        %3145 = vst [vmem:[%s295 + $0x8] sm:$0xff] %v3129
        %3146 = vst [vmem:[%s295 + $0x10] sm:$0xff] %v3130
        %3147 = vst [vmem:[%s295 + $0x18] sm:$0xff] %v3131
        %3148 = vst [vmem:[%s295 + $0x20] sm:$0xff] %v3132
        %3149 = vst [vmem:[%s295 + $0x28] sm:$0xff] %v3133
        %3150 = vst [vmem:[%s295 + $0x30] sm:$0xff] %v3134
        %3151 = vst [vmem:[%s295 + $0x38] sm:$0xff] %v3135
        %3152 = vst [vmem:[%s295 + $0x40] sm:$0xff] %v3136
        %3153 = vst [vmem:[%s295 + $0x48] sm:$0xff] %v3137
        %3154 = vst [vmem:[%s295 + $0x50] sm:$0xff] %v3138
        %3155 = vst [vmem:[%s295 + $0x58] sm:$0xff] %v3139
        %3156 = vst [vmem:[%s295 + $0x60] sm:$0xff] %v3140
        %3157 = vst [vmem:[%s295 + $0x68] sm:$0xff] %v3141
        %3158 = vst [vmem:[%s295 + $0x70] sm:$0xff] %v3142
        %3159 = vst [vmem:[%s295 + $0x78] sm:$0xff] %v3143
        %s3160 = scalar_lea.vmem [#allocation4], 48
        %v3161 = vld [vmem:[%s3160] sm:$0xff]
        %v3162 = vld [vmem:[%s3160 + $0x8] sm:$0xff]
        %v3163 = vld [vmem:[%s3160 + $0x10] sm:$0xff]
        %v3164 = vld [vmem:[%s3160 + $0x18] sm:$0xff]
        %v3165 = vld [vmem:[%s3160 + $0x20] sm:$0xff]
        %v3166 = vld [vmem:[%s3160 + $0x28] sm:$0xff]
        %v3167 = vld [vmem:[%s3160 + $0x30] sm:$0xff]
        %v3168 = vld [vmem:[%s3160 + $0x38] sm:$0xff]
        %v3169 = vld [vmem:[%s3160 + $0x40] sm:$0xff]
        %v3170 = vld [vmem:[%s3160 + $0x48] sm:$0xff]
        %v3171 = vld [vmem:[%s3160 + $0x50] sm:$0xff]
        %v3172 = vld [vmem:[%s3160 + $0x58] sm:$0xff]
        %v3173 = vld [vmem:[%s3160 + $0x60] sm:$0xff]
        %v3174 = vld [vmem:[%s3160 + $0x68] sm:$0xff]
        %v3175 = vld [vmem:[%s3160 + $0x70] sm:$0xff]
        %v3176 = vld [vmem:[%s3160 + $0x78] sm:$0xff]
        %v3177 = vld [vmem:[%s3160 + $0x80] sm:$0xff]
        %v3178 = vld [vmem:[%s3160 + $0x88] sm:$0xff]
        %v3179 = vld [vmem:[%s3160 + $0x90] sm:$0xff]
        %v3180 = vld [vmem:[%s3160 + $0x98] sm:$0xff]
        %v3181 = vld [vmem:[%s3160 + $0xa0] sm:$0xff]
        %v3182 = vld [vmem:[%s3160 + $0xa8] sm:$0xff]
        %v3183 = vld [vmem:[%s3160 + $0xb0] sm:$0xff]
        %v3184 = vld [vmem:[%s3160 + $0xb8] sm:$0xff]
        %s3185 = scalar_lea.vmem %s4, 384
        %v3186 = vld [vmem:[%s3185] sm:$0xf]
        %v3187 = vld [vmem:[%s3185 + $0x4] sm:$0xf]
        %v3188 = vld [vmem:[%s3185 + $0x8] sm:$0xf]
        %v3189 = vld [vmem:[%s3185 + $0xc] sm:$0xf]
        %v3190 = vld [vmem:[%s3185 + $0x10] sm:$0xf]
        %v3191 = vld [vmem:[%s3185 + $0x14] sm:$0xf]
        %v3192 = vld [vmem:[%s3185 + $0x18] sm:$0xf]
        %v3193 = vld [vmem:[%s3185 + $0x1c] sm:$0xf]
        %v3194 = vld [vmem:[%s3185 + $0x20] sm:$0xf]
        %v3195 = vld [vmem:[%s3185 + $0x24] sm:$0xf]
        %v3196 = vld [vmem:[%s3185 + $0x28] sm:$0xf]
        %v3197 = vld [vmem:[%s3185 + $0x2c] sm:$0xf]
        %v3198 = vld [vmem:[%s3185 + $0x30] sm:$0xf]
        %v3199 = vld [vmem:[%s3185 + $0x34] sm:$0xf]
        %v3200 = vld [vmem:[%s3185 + $0x38] sm:$0xf]
        %v3201 = vld [vmem:[%s3185 + $0x3c] sm:$0xf]
        %v3202 = vld [vmem:[%s3185 + $0x40] sm:$0xf]
        %v3203 = vld [vmem:[%s3185 + $0x44] sm:$0xf]
        %v3204 = vld [vmem:[%s3185 + $0x48] sm:$0xf]
        %v3205 = vld [vmem:[%s3185 + $0x4c] sm:$0xf]
        %v3206 = vld [vmem:[%s3185 + $0x50] sm:$0xf]
        %v3207 = vld [vmem:[%s3185 + $0x54] sm:$0xf]
        %v3208 = vld [vmem:[%s3185 + $0x58] sm:$0xf]
        %v3209 = vld [vmem:[%s3185 + $0x5c] sm:$0xf]
        %v3210 = vld [vmem:[%s3185 + $0x60] sm:$0xf]
        %v3211 = vld [vmem:[%s3185 + $0x64] sm:$0xf]
        %v3212 = vld [vmem:[%s3185 + $0x68] sm:$0xf]
        %v3213 = vld [vmem:[%s3185 + $0x6c] sm:$0xf]
        %v3214 = vld [vmem:[%s3185 + $0x70] sm:$0xf]
        %v3215 = vld [vmem:[%s3185 + $0x74] sm:$0xf]
        %v3216 = vld [vmem:[%s3185 + $0x78] sm:$0xf]
        %v3217 = vld [vmem:[%s3185 + $0x7c] sm:$0xf]
        %v3218 = vld [vmem:[%s3185 + $0x80] sm:$0xf]
        %v3219 = vld [vmem:[%s3185 + $0x84] sm:$0xf]
        %v3220 = vld [vmem:[%s3185 + $0x88] sm:$0xf]
        %v3221 = vld [vmem:[%s3185 + $0x8c] sm:$0xf]
        %v3222 = vld [vmem:[%s3185 + $0x90] sm:$0xf]
        %v3223 = vld [vmem:[%s3185 + $0x94] sm:$0xf]
        %v3224 = vld [vmem:[%s3185 + $0x98] sm:$0xf]
        %v3225 = vld [vmem:[%s3185 + $0x9c] sm:$0xf]
        %v3226 = vld [vmem:[%s3185 + $0xa0] sm:$0xf]
        %v3227 = vld [vmem:[%s3185 + $0xa4] sm:$0xf]
        %v3228 = vld [vmem:[%s3185 + $0xa8] sm:$0xf]
        %v3229 = vld [vmem:[%s3185 + $0xac] sm:$0xf]
        %v3230 = vld [vmem:[%s3185 + $0xb0] sm:$0xf]
        %v3231 = vld [vmem:[%s3185 + $0xb4] sm:$0xf]
        %v3232 = vld [vmem:[%s3185 + $0xb8] sm:$0xf]
        %v3233 = vld [vmem:[%s3185 + $0xbc] sm:$0xf]
        %v3282 = vunpack.c.l.b16 %v3186
        %v3283 = vunpack.c.l.b16 %v3187
        %v3284 = vunpack.c.l.b16 %v3188
        %v3285 = vunpack.c.l.b16 %v3189
        %v3286 = vunpack.c.l.b16 %v3190
        %v3287 = vunpack.c.l.b16 %v3191
        %v3288 = vunpack.c.l.b16 %v3192
        %v3289 = vunpack.c.l.b16 %v3193
        %v3290 = vunpack.c.l.b16 %v3194
        %v3291 = vunpack.c.l.b16 %v3195
        %v3292 = vunpack.c.l.b16 %v3196
        %v3293 = vunpack.c.l.b16 %v3197
        %v3294 = vunpack.c.l.b16 %v3198
        %v3295 = vunpack.c.l.b16 %v3199
        %v3296 = vunpack.c.l.b16 %v3200
        %v3297 = vunpack.c.l.b16 %v3201
        %v3298 = vunpack.c.l.b16 %v3202
        %v3299 = vunpack.c.l.b16 %v3203
        %v3300 = vunpack.c.l.b16 %v3204
        %v3301 = vunpack.c.l.b16 %v3205
        %v3302 = vunpack.c.l.b16 %v3206
        %v3303 = vunpack.c.l.b16 %v3207
        %v3304 = vunpack.c.l.b16 %v3208
        %v3305 = vunpack.c.l.b16 %v3209
        %v3306 = vunpack.c.l.b16 %v3210
        %v3307 = vunpack.c.l.b16 %v3211
        %v3308 = vunpack.c.l.b16 %v3212
        %v3309 = vunpack.c.l.b16 %v3213
        %v3310 = vunpack.c.l.b16 %v3214
        %v3311 = vunpack.c.l.b16 %v3215
        %v3312 = vunpack.c.l.b16 %v3216
        %v3313 = vunpack.c.l.b16 %v3217
        %v3314 = vunpack.c.l.b16 %v3218
        %v3315 = vunpack.c.l.b16 %v3219
        %v3316 = vunpack.c.l.b16 %v3220
        %v3317 = vunpack.c.l.b16 %v3221
        %v3318 = vunpack.c.l.b16 %v3222
        %v3319 = vunpack.c.l.b16 %v3223
        %v3320 = vunpack.c.l.b16 %v3224
        %v3321 = vunpack.c.l.b16 %v3225
        %v3322 = vunpack.c.l.b16 %v3226
        %v3323 = vunpack.c.l.b16 %v3227
        %v3324 = vunpack.c.l.b16 %v3228
        %v3325 = vunpack.c.l.b16 %v3229
        %v3326 = vunpack.c.l.b16 %v3230
        %v3327 = vunpack.c.l.b16 %v3231
        %v3328 = vunpack.c.l.b16 %v3232
        %v3329 = vunpack.c.l.b16 %v3233
        %v3330 = vpack.c.b16 %v3283, %v3282
        %v3331 = vpack.c.b16 %v3285, %v3284
        %v3332 = vpack.c.b16 %v3287, %v3286
        %v3333 = vpack.c.b16 %v3289, %v3288
        %v3334 = vpack.c.b16 %v3291, %v3290
        %v3335 = vpack.c.b16 %v3293, %v3292
        %v3336 = vpack.c.b16 %v3295, %v3294
        %v3337 = vpack.c.b16 %v3297, %v3296
        %v3338 = vpack.c.b16 %v3299, %v3298
        %v3339 = vpack.c.b16 %v3301, %v3300
        %v3340 = vpack.c.b16 %v3303, %v3302
        %v3341 = vpack.c.b16 %v3305, %v3304
        %v3342 = vpack.c.b16 %v3307, %v3306
        %v3343 = vpack.c.b16 %v3309, %v3308
        %v3344 = vpack.c.b16 %v3311, %v3310
        %v3345 = vpack.c.b16 %v3313, %v3312
        %v3346 = vpack.c.b16 %v3315, %v3314
        %v3347 = vpack.c.b16 %v3317, %v3316
        %v3348 = vpack.c.b16 %v3319, %v3318
        %v3349 = vpack.c.b16 %v3321, %v3320
        %v3350 = vpack.c.b16 %v3323, %v3322
        %v3351 = vpack.c.b16 %v3325, %v3324
        %v3352 = vpack.c.b16 %v3327, %v3326
        %v3353 = vpack.c.b16 %v3329, %v3328
        %3378 = vmatprep.subr.bf16.mxu0 0
        %3379 = vmatpush1.bf16.msra.mxu0 %v3330
        %3380 = vmatprep.subr.bf16.mxu0 0
        %3381 = vmatpush1.bf16.msra.mxu0 %v3331
        %3382 = vmatprep.subr.bf16.mxu0 0
        %3383 = vmatpush1.bf16.msra.mxu0 %v3332
        %3384 = vmatprep.subr.bf16.mxu0 0
        %3385 = vmatpush1.bf16.msra.mxu0 %v3333
        %3386 = vmatprep.subr.bf16.mxu0 0
        %3387 = vmatpush1.bf16.msra.mxu0 %v3334
        %3388 = vmatprep.subr.bf16.mxu0 0
        %3389 = vmatpush1.bf16.msra.mxu0 %v3335
        %3390 = vmatprep.subr.bf16.mxu0 0
        %3391 = vmatpush1.bf16.msra.mxu0 %v3336
        %3392 = vmatprep.subr.bf16.mxu0 0
        %3393 = vmatpush1.bf16.msra.mxu0 %v3337
        %3394 = vmatprep.subr.bf16.mxu0 0
        %3395 = vmatpush1.bf16.msra.mxu0 %v3338
        %3396 = vmatprep.subr.bf16.mxu0 0
        %3397 = vmatpush1.bf16.msra.mxu0 %v3339
        %3398 = vmatprep.subr.bf16.mxu0 0
        %3399 = vmatpush1.bf16.msra.mxu0 %v3340
        %3400 = vmatprep.subr.bf16.mxu0 0
        %3401 = vmatpush1.bf16.msra.mxu0 %v3341
        %3402 = vmatprep.subr.bf16.mxu0 0
        %3403 = vmatpush1.bf16.msra.mxu0 %v3342
        %3404 = vmatprep.subr.bf16.mxu0 0
        %3405 = vmatpush1.bf16.msra.mxu0 %v3343
        %3406 = vmatprep.subr.bf16.mxu0 0
        %3407 = vmatpush1.bf16.msra.mxu0 %v3344
        %3408 = vmatprep.subr.bf16.mxu0 0
        %3409 = vmatpush1.bf16.msra.mxu0 %v3345
        %3410 = vmatprep.mubr.bf16.mxu0 %v3162
        %3411 = vmatmul.mubr.bf16.gmra.mrb[0].mxu0 %v3161
        %v3412 = vpop.f32.mrb[0].mxu0
        %v3413 = vadd.f32 0.0, %v3412
        %v3414 = vpop.f32.mrb[0].mxu0
        %v3415 = vpop.f32.mrb[0].mxu0
        %v3416 = vadd.f32 0.0, %v3415
        %v3417 = vpop.f32.mrb[0].mxu0
        %3418 = vmatprep.mubr.bf16.mxu0 %v3165
        %3419 = vmatmul.mubr.bf16.gmra.mrb[0].mxu0 %v3164
        %v3420 = vpop.f32.mrb[0].mxu0
        %v3421 = vadd.f32 0.0, %v3420
        %v3422 = vpop.f32.mrb[0].mxu0
        %v3423 = vpop.f32.mrb[0].mxu0
        %v3424 = vadd.f32 0.0, %v3423
        %v3425 = vpop.f32.mrb[0].mxu0
        %3426 = vmatprep.mubr.bf16.mxu0 %v3168
        %3427 = vmatmul.mubr.bf16.gmra.mrb[0].mxu0 %v3167
        %v3428 = vpop.f32.mrb[0].mxu0
        %v3429 = vadd.f32 0.0, %v3428
        %v3430 = vpop.f32.mrb[0].mxu0
        %v3431 = vpop.f32.mrb[0].mxu0
        %v3432 = vadd.f32 0.0, %v3431
        %v3433 = vpop.f32.mrb[0].mxu0
        %3434 = vmatprep.mubr.bf16.mxu0 %v3171
        %3435 = vmatmul.mubr.bf16.gmra.mrb[0].mxu0 %v3170
        %v3436 = vpop.f32.mrb[0].mxu0
        %v3437 = vadd.f32 0.0, %v3436
        %v3438 = vpop.f32.mrb[0].mxu0
        %v3439 = vpop.f32.mrb[0].mxu0
        %v3440 = vadd.f32 0.0, %v3439
        %v3441 = vpop.f32.mrb[0].mxu0
        %3442 = vmatprep.mubr.bf16.mxu0 %v3174
        %3443 = vmatmul.mubr.bf16.gmra.mrb[0].mxu0 %v3173
        %v3444 = vpop.f32.mrb[0].mxu0
        %v3445 = vadd.f32 0.0, %v3444
        %v3446 = vpop.f32.mrb[0].mxu0
        %v3447 = vpop.f32.mrb[0].mxu0
        %v3448 = vadd.f32 0.0, %v3447
        %v3449 = vpop.f32.mrb[0].mxu0
        %3450 = vmatprep.mubr.bf16.mxu0 %v3177
        %3451 = vmatmul.mubr.bf16.gmra.mrb[0].mxu0 %v3176
        %v3452 = vpop.f32.mrb[0].mxu0
        %v3453 = vadd.f32 0.0, %v3452
        %v3454 = vpop.f32.mrb[0].mxu0
        %v3455 = vpop.f32.mrb[0].mxu0
        %v3456 = vadd.f32 0.0, %v3455
        %v3457 = vpop.f32.mrb[0].mxu0
        %3458 = vmatprep.mubr.bf16.mxu0 %v3180
        %3459 = vmatmul.mubr.bf16.gmra.mrb[0].mxu0 %v3179
        %v3460 = vpop.f32.mrb[0].mxu0
        %v3461 = vadd.f32 0.0, %v3460
        %v3462 = vpop.f32.mrb[0].mxu0
        %v3463 = vpop.f32.mrb[0].mxu0
        %v3464 = vadd.f32 0.0, %v3463
        %v3465 = vpop.f32.mrb[0].mxu0
        %3466 = vmatprep.mubr.bf16.mxu0 %v3183
        %3467 = vmatmul.mubr.bf16.gmra.mrb[0].mxu0 %v3182
        %v3468 = vpop.f32.mrb[0].mxu0
        %v3469 = vadd.f32 0.0, %v3468
        %v3470 = vpop.f32.mrb[0].mxu0
        %v3471 = vpop.f32.mrb[0].mxu0
        %v3472 = vadd.f32 0.0, %v3471
        %v3473 = vpop.f32.mrb[0].mxu0
        %3474 = vdwg.mxu0
        %3475 = vmatprep.subr.bf16.mxu0 0
        %3476 = vmatpush1.bf16.msra.mxu0 %v3346
        %3477 = vmatprep.subr.bf16.mxu0 0
        %3478 = vmatpush1.bf16.msra.mxu0 %v3347
        %3479 = vmatprep.subr.bf16.mxu0 0
        %3480 = vmatpush1.bf16.msra.mxu0 %v3348
        %3481 = vmatprep.subr.bf16.mxu0 0
        %3482 = vmatpush1.bf16.msra.mxu0 %v3349
        %3483 = vmatprep.subr.bf16.mxu0 0
        %3484 = vmatpush1.bf16.msra.mxu0 %v3350
        %3485 = vmatprep.subr.bf16.mxu0 0
        %3486 = vmatpush1.bf16.msra.mxu0 %v3351
        %3487 = vmatprep.subr.bf16.mxu0 0
        %3488 = vmatpush1.bf16.msra.mxu0 %v3352
        %3489 = vmatprep.subr.bf16.mxu0 0
        %3490 = vmatpush1.bf16.msra.mxu0 %v3353
        %3491 = vmatprep.subr.bf16.mxu0 0
        %3492 = vmatpush1.bf16.msra.mxu0 0
        %3493 = vmatprep.subr.bf16.mxu0 0
        %3494 = vmatpush1.bf16.msra.mxu0 0
        %3495 = vmatprep.subr.bf16.mxu0 0
        %3496 = vmatpush1.bf16.msra.mxu0 0
        %3497 = vmatprep.subr.bf16.mxu0 0
        %3498 = vmatpush1.bf16.msra.mxu0 0
        %3499 = vmatprep.subr.bf16.mxu0 0
        %3500 = vmatpush1.bf16.msra.mxu0 0
        %3501 = vmatprep.subr.bf16.mxu0 0
        %3502 = vmatpush1.bf16.msra.mxu0 0
        %3503 = vmatprep.subr.bf16.mxu0 0
        %3504 = vmatpush1.bf16.msra.mxu0 0
        %3505 = vmatprep.subr.bf16.mxu0 0
        %3506 = vmatpush1.bf16.msra.mxu0 0
        %3507 = vmatprep.mubr.bf16.mxu0 0
        %3508 = vmatmul.mubr.bf16.gmra.mrb[0].mxu0 %v3163
        %v3509 = vpop.f32.mrb[0].mxu0
        %v3510 = vadd.f32 %v3413, %v3509
        %v3511 = vpop.f32.mrb[0].mxu0
        %v3512 = vpop.f32.mrb[0].mxu0
        %v3513 = vadd.f32 %v3416, %v3512
        %v3514 = vpop.f32.mrb[0].mxu0
        %3515 = vmatprep.mubr.bf16.mxu0 0
        %3516 = vmatmul.mubr.bf16.gmra.mrb[0].mxu0 %v3166
        %v3517 = vpop.f32.mrb[0].mxu0
        %v3518 = vadd.f32 %v3421, %v3517
        %v3519 = vpop.f32.mrb[0].mxu0
        %v3520 = vpop.f32.mrb[0].mxu0
        %v3521 = vadd.f32 %v3424, %v3520
        %v3522 = vpop.f32.mrb[0].mxu0
        %3523 = vmatprep.mubr.bf16.mxu0 0
        %3524 = vmatmul.mubr.bf16.gmra.mrb[0].mxu0 %v3169
        %v3525 = vpop.f32.mrb[0].mxu0
        %v3526 = vadd.f32 %v3429, %v3525
        %v3527 = vpop.f32.mrb[0].mxu0
        %v3528 = vpop.f32.mrb[0].mxu0
        %v3529 = vadd.f32 %v3432, %v3528
        %v3530 = vpop.f32.mrb[0].mxu0
        %3531 = vmatprep.mubr.bf16.mxu0 0
        %3532 = vmatmul.mubr.bf16.gmra.mrb[0].mxu0 %v3172
        %v3533 = vpop.f32.mrb[0].mxu0
        %v3534 = vadd.f32 %v3437, %v3533
        %v3535 = vpop.f32.mrb[0].mxu0
        %v3536 = vpop.f32.mrb[0].mxu0
        %v3537 = vadd.f32 %v3440, %v3536
        %v3538 = vpop.f32.mrb[0].mxu0
        %3539 = vmatprep.mubr.bf16.mxu0 0
        %3540 = vmatmul.mubr.bf16.gmra.mrb[0].mxu0 %v3175
        %v3541 = vpop.f32.mrb[0].mxu0
        %v3542 = vadd.f32 %v3445, %v3541
        %v3543 = vpop.f32.mrb[0].mxu0
        %v3544 = vpop.f32.mrb[0].mxu0
        %v3545 = vadd.f32 %v3448, %v3544
        %v3546 = vpop.f32.mrb[0].mxu0
        %3547 = vmatprep.mubr.bf16.mxu0 0
        %3548 = vmatmul.mubr.bf16.gmra.mrb[0].mxu0 %v3178
        %v3549 = vpop.f32.mrb[0].mxu0
        %v3550 = vadd.f32 %v3453, %v3549
        %v3551 = vpop.f32.mrb[0].mxu0
        %v3552 = vpop.f32.mrb[0].mxu0
        %v3553 = vadd.f32 %v3456, %v3552
        %v3554 = vpop.f32.mrb[0].mxu0
        %3555 = vmatprep.mubr.bf16.mxu0 0
        %3556 = vmatmul.mubr.bf16.gmra.mrb[0].mxu0 %v3181
        %v3557 = vpop.f32.mrb[0].mxu0
        %v3558 = vadd.f32 %v3461, %v3557
        %v3559 = vpop.f32.mrb[0].mxu0
        %v3560 = vpop.f32.mrb[0].mxu0
        %v3561 = vadd.f32 %v3464, %v3560
        %v3562 = vpop.f32.mrb[0].mxu0
        %3563 = vmatprep.mubr.bf16.mxu0 0
        %3564 = vmatmul.mubr.bf16.gmra.mrb[0].mxu0 %v3184
        %v3565 = vpop.f32.mrb[0].mxu0
        %v3566 = vadd.f32 %v3469, %v3565
        %v3567 = vpop.f32.mrb[0].mxu0
        %v3568 = vpop.f32.mrb[0].mxu0
        %v3569 = vadd.f32 %v3472, %v3568
        %v3570 = vpop.f32.mrb[0].mxu0
        %3571 = vdwg.mxu0
        %v3572 = vld [vmem:[%s295] sm:$0xff]
        %v3573 = vld [vmem:[%s295 + $0x8] sm:$0xff]
        %v3574 = vld [vmem:[%s295 + $0x10] sm:$0xff]
        %v3575 = vld [vmem:[%s295 + $0x18] sm:$0xff]
        %v3576 = vld [vmem:[%s295 + $0x20] sm:$0xff]
        %v3577 = vld [vmem:[%s295 + $0x28] sm:$0xff]
        %v3578 = vld [vmem:[%s295 + $0x30] sm:$0xff]
        %v3579 = vld [vmem:[%s295 + $0x38] sm:$0xff]
        %v3580 = vld [vmem:[%s295 + $0x40] sm:$0xff]
        %v3581 = vld [vmem:[%s295 + $0x48] sm:$0xff]
        %v3582 = vld [vmem:[%s295 + $0x50] sm:$0xff]
        %v3583 = vld [vmem:[%s295 + $0x58] sm:$0xff]
        %v3584 = vld [vmem:[%s295 + $0x60] sm:$0xff]
        %v3585 = vld [vmem:[%s295 + $0x68] sm:$0xff]
        %v3586 = vld [vmem:[%s295 + $0x70] sm:$0xff]
        %v3587 = vld [vmem:[%s295 + $0x78] sm:$0xff]
        %v3588 = vadd.f32 %v3572, %v3510
        %v3589 = vadd.f32 %v3573, %v3513
        %v3590 = vadd.f32 %v3574, %v3518
        %v3591 = vadd.f32 %v3575, %v3521
        %v3592 = vadd.f32 %v3576, %v3526
        %v3593 = vadd.f32 %v3577, %v3529
        %v3594 = vadd.f32 %v3578, %v3534
        %v3595 = vadd.f32 %v3579, %v3537
        %v3596 = vadd.f32 %v3580, %v3542
        %v3597 = vadd.f32 %v3581, %v3545
        %v3598 = vadd.f32 %v3582, %v3550
        %v3599 = vadd.f32 %v3583, %v3553
        %v3600 = vadd.f32 %v3584, %v3558
        %v3601 = vadd.f32 %v3585, %v3561
        %v3602 = vadd.f32 %v3586, %v3566
        %v3603 = vadd.f32 %v3587, %v3569
        %3604 = vst [vmem:[%s295] sm:$0xff] %v3588
        %3605 = vst [vmem:[%s295 + $0x8] sm:$0xff] %v3589
        %3606 = vst [vmem:[%s295 + $0x10] sm:$0xff] %v3590
        %3607 = vst [vmem:[%s295 + $0x18] sm:$0xff] %v3591
        %3608 = vst [vmem:[%s295 + $0x20] sm:$0xff] %v3592
        %3609 = vst [vmem:[%s295 + $0x28] sm:$0xff] %v3593
        %3610 = vst [vmem:[%s295 + $0x30] sm:$0xff] %v3594
        %3611 = vst [vmem:[%s295 + $0x38] sm:$0xff] %v3595
        %3612 = vst [vmem:[%s295 + $0x40] sm:$0xff] %v3596
        %3613 = vst [vmem:[%s295 + $0x48] sm:$0xff] %v3597
        %3614 = vst [vmem:[%s295 + $0x50] sm:$0xff] %v3598
        %3615 = vst [vmem:[%s295 + $0x58] sm:$0xff] %v3599
        %3616 = vst [vmem:[%s295 + $0x60] sm:$0xff] %v3600
        %3617 = vst [vmem:[%s295 + $0x68] sm:$0xff] %v3601
        %3618 = vst [vmem:[%s295 + $0x70] sm:$0xff] %v3602
        %3619 = vst [vmem:[%s295 + $0x78] sm:$0xff] %v3603
        %s3620 = scalar_lea.vmem %s304, 48
        %v3621 = vld [vmem:[%s3620 + $0x1] sm:$0xff]
        %v3622 = vld [vmem:[%s3620 + $0x9] sm:$0xff]
        %v3623 = vld [vmem:[%s3620 + $0x19] sm:$0xff]
        %v3624 = vld [vmem:[%s3620 + $0x21] sm:$0xff]
        %v3625 = vld [vmem:[%s3620 + $0x31] sm:$0xff]
        %v3626 = vld [vmem:[%s3620 + $0x39] sm:$0xff]
        %v3627 = vld [vmem:[%s3620 + $0x49] sm:$0xff]
        %v3628 = vld [vmem:[%s3620 + $0x51] sm:$0xff]
        %v3629 = vld [vmem:[%s3620 + $0x61] sm:$0xff]
        %v3630 = vld [vmem:[%s3620 + $0x69] sm:$0xff]
        %v3631 = vld [vmem:[%s3620 + $0x79] sm:$0xff]
        %v3632 = vld [vmem:[%s3620 + $0x81] sm:$0xff]
        %v3633 = vld [vmem:[%s3620 + $0x91] sm:$0xff]
        %v3634 = vld [vmem:[%s3620 + $0x99] sm:$0xff]
        %v3635 = vld [vmem:[%s3620 + $0xa9] sm:$0xff]
        %v3636 = vld [vmem:[%s3620 + $0xb1] sm:$0xff]
        %v3637 = vld [vmem:[%s295] sm:$0xff]
        %v3638 = vld [vmem:[%s295 + $0x8] sm:$0xff]
        %v3639 = vld [vmem:[%s295 + $0x10] sm:$0xff]
        %v3640 = vld [vmem:[%s295 + $0x18] sm:$0xff]
        %v3641 = vld [vmem:[%s295 + $0x20] sm:$0xff]
        %v3642 = vld [vmem:[%s295 + $0x28] sm:$0xff]
        %v3643 = vld [vmem:[%s295 + $0x30] sm:$0xff]
        %v3644 = vld [vmem:[%s295 + $0x38] sm:$0xff]
        %v3645 = vld [vmem:[%s295 + $0x40] sm:$0xff]
        %v3646 = vld [vmem:[%s295 + $0x48] sm:$0xff]
        %v3647 = vld [vmem:[%s295 + $0x50] sm:$0xff]
        %v3648 = vld [vmem:[%s295 + $0x58] sm:$0xff]
        %v3649 = vld [vmem:[%s295 + $0x60] sm:$0xff]
        %v3650 = vld [vmem:[%s295 + $0x68] sm:$0xff]
        %v3651 = vld [vmem:[%s295 + $0x70] sm:$0xff]
        %v3652 = vld [vmem:[%s295 + $0x78] sm:$0xff]
        %v3653 = vld [vmem:[%s5] sm:$0x1]
        %v3655 = vlaneseq
        %v3656 = vshrl.u32 %v3655, 7
        %v3657 = vsub.s32 0, %v3656
        %v3658 = vrot.slane %v3653, %v3657
        %v3660 = vmul.f32 %v3637, %v3658
        %v3661 = vmul.f32 %v3638, %v3658
        %v3662 = vmul.f32 %v3639, %v3658
        %v3663 = vmul.f32 %v3640, %v3658
        %v3664 = vmul.f32 %v3641, %v3658
        %v3665 = vmul.f32 %v3642, %v3658
        %v3666 = vmul.f32 %v3643, %v3658
        %v3667 = vmul.f32 %v3644, %v3658
        %v3668 = vmul.f32 %v3645, %v3658
        %v3669 = vmul.f32 %v3646, %v3658
        %v3670 = vmul.f32 %v3647, %v3658
        %v3671 = vmul.f32 %v3648, %v3658
        %v3672 = vmul.f32 %v3649, %v3658
        %v3673 = vmul.f32 %v3650, %v3658
        %v3674 = vmul.f32 %v3651, %v3658
        %v3675 = vmul.f32 %v3652, %v3658
        %v3676 = vld [vmem:[%s6] sm:$0x1]
        %v3678 = vlaneseq
        %v3679 = vshrl.u32 %v3678, 7
        %v3680 = vsub.s32 0, %v3679
        %v3681 = vrot.slane %v3676, %v3680
        %v3683 = vadd.f32 %v3660, %v3681
        %v3684 = vadd.f32 %v3661, %v3681
        %v3685 = vadd.f32 %v3662, %v3681
        %v3686 = vadd.f32 %v3663, %v3681
        %v3687 = vadd.f32 %v3664, %v3681
        %v3688 = vadd.f32 %v3665, %v3681
        %v3689 = vadd.f32 %v3666, %v3681
        %v3690 = vadd.f32 %v3667, %v3681
        %v3691 = vadd.f32 %v3668, %v3681
        %v3692 = vadd.f32 %v3669, %v3681
        %v3693 = vadd.f32 %v3670, %v3681
        %v3694 = vadd.f32 %v3671, %v3681
        %v3695 = vadd.f32 %v3672, %v3681
        %v3696 = vadd.f32 %v3673, %v3681
        %v3697 = vadd.f32 %v3674, %v3681
        %v3698 = vadd.f32 %v3675, %v3681
        %v3699 = vadd.f32 %v3683, %v3621
        %v3700 = vadd.f32 %v3684, %v3622
        %v3701 = vadd.f32 %v3685, %v3623
        %v3702 = vadd.f32 %v3686, %v3624
        %v3703 = vadd.f32 %v3687, %v3625
        %v3704 = vadd.f32 %v3688, %v3626
        %v3705 = vadd.f32 %v3689, %v3627
        %v3706 = vadd.f32 %v3690, %v3628
        %v3707 = vadd.f32 %v3691, %v3629
        %v3708 = vadd.f32 %v3692, %v3630
        %v3709 = vadd.f32 %v3693, %v3631
        %v3710 = vadd.f32 %v3694, %v3632
        %v3711 = vadd.f32 %v3695, %v3633
        %v3712 = vadd.f32 %v3696, %v3634
        %v3713 = vadd.f32 %v3697, %v3635
        %v3714 = vadd.f32 %v3698, %v3636
        %v3715 = vmax.f32 %v3699, 0.0
        %v3716 = vmax.f32 %v3700, 0.0
        %v3717 = vmax.f32 %v3701, 0.0
        %v3718 = vmax.f32 %v3702, 0.0
        %v3719 = vmax.f32 %v3703, 0.0
        %v3720 = vmax.f32 %v3704, 0.0
        %v3721 = vmax.f32 %v3705, 0.0
        %v3722 = vmax.f32 %v3706, 0.0
        %v3723 = vmax.f32 %v3707, 0.0
        %v3724 = vmax.f32 %v3708, 0.0
        %v3725 = vmax.f32 %v3709, 0.0
        %v3726 = vmax.f32 %v3710, 0.0
        %v3727 = vmax.f32 %v3711, 0.0
        %v3728 = vmax.f32 %v3712, 0.0
        %v3729 = vmax.f32 %v3713, 0.0
        %v3730 = vmax.f32 %v3714, 0.0
        %3731 = vst [vmem:[%s295] sm:$0xff] %v3715
        %3732 = vst [vmem:[%s295 + $0x8] sm:$0xff] %v3716
        %3733 = vst [vmem:[%s295 + $0x10] sm:$0xff] %v3717
        %3734 = vst [vmem:[%s295 + $0x18] sm:$0xff] %v3718
        %3735 = vst [vmem:[%s295 + $0x20] sm:$0xff] %v3719
        %3736 = vst [vmem:[%s295 + $0x28] sm:$0xff] %v3720
        %3737 = vst [vmem:[%s295 + $0x30] sm:$0xff] %v3721
        %3738 = vst [vmem:[%s295 + $0x38] sm:$0xff] %v3722
        %3739 = vst [vmem:[%s295 + $0x40] sm:$0xff] %v3723
        %3740 = vst [vmem:[%s295 + $0x48] sm:$0xff] %v3724
        %3741 = vst [vmem:[%s295 + $0x50] sm:$0xff] %v3725
        %3742 = vst [vmem:[%s295 + $0x58] sm:$0xff] %v3726
        %3743 = vst [vmem:[%s295 + $0x60] sm:$0xff] %v3727
        %3744 = vst [vmem:[%s295 + $0x68] sm:$0xff] %v3728
        %3745 = vst [vmem:[%s295 + $0x70] sm:$0xff] %v3729
        %3746 = vst [vmem:[%s295 + $0x78] sm:$0xff] %v3730
        %s3747 = sand.u32 %s197, 1
        %s3748 = scalar_lea.sflag [#allocation7], %s3747
        %s3749 = sand.u32 %s197, 1
        %s3750 = smul.addr %s3749, 128
        %s3751 = scalar_lea.vmem [#allocation6], %s3750
        // Predicated region
        $region49: #{tpu_custom_call.1} parent=47 // pred_check
          %p3752 = pneg %p207
        $region50: #{tpu_custom_call.1} parent=47 // pred_check_branch
          %3754 = sbr.rel (%p3752) target = $region52
        $region51: #{tpu_custom_call.1} parent=47 // pred_region
          %s3756 = ssub.s32 2048, 2048
          %3757 = vsyncadd %s3748, %s3756
          %s3758 = smul.addr %s26, 16
          %s3759 = smul.addr %s25, 32
          %s3760 = sadd.s32 %s3758, %s3759
          %s3761 = smul.addr %s3760, 128
          %s3762 = scalar_lea.hbm %s7, %s3761
          %s3763 = sshll.u32 %s3751, 4
          %s3764 = int_to_ptr.vmem [resolvable:$true] %s3763
          %3769 = dma.vmem_to_hbm [thread:$0]  %s3764, 2048, %s3762, %s3748, 128, 128, 8
        $region52: #{tpu_custom_call.1} parent=47 // pred_fallthru
          _
      $region48: #{tpu_custom_call.1} parent=5 // pred_fallthru
        _
      %p3770 = scmp.le.s32.totalorder 2, %s16
      // Predicated region
      $region53: #{tpu_custom_call.1} parent=5 // pred_check
        %p3771 = pneg %p3770
      $region54: #{tpu_custom_call.1} parent=5 // pred_check_branch
        %3773 = sbr.rel (%p3771) target = $region56
      $region55: #{tpu_custom_call.1} parent=5 // pred_region
        %s3774 = ssub.s32 %s16, 2
        // Predicated region
        $region57: #{tpu_custom_call.1} parent=55 // pred_check
          %p3775 = pneg %p213
        $region58: #{tpu_custom_call.1} parent=55 // pred_check_branch
          %3777 = sbr.rel (%p3775) target = $region60
        $region59: #{tpu_custom_call.1} parent=55 // pred_region
          %s3778 = sand.u32 %s198, 1
          %s3779 = scalar_lea.sflag [#allocation7], %s3778
          %s3780 = sand.u32 %s198, 1
          %s3781 = smul.addr %s3780, 128
          %s3782 = scalar_lea.vmem [#allocation6], %s3781
          %3783 = dma.done %s3779, 2048
        $region60: #{tpu_custom_call.1} parent=55 // pred_fallthru
          _
      $region56: #{tpu_custom_call.1} parent=5 // pred_fallthru
        _
    $region6: #{tpu_custom_call.1} parent=1 // loop_footer
      %s20 = sadd.s32 1, %s16
    $region7: #{tpu_custom_call.1} parent=1 // loop_footer_branch
      %15 = sbr.rel target = $region3
    $region8: #{tpu_custom_call.1} parent=1 // loop_exit
      _
    %3784 = vsyncpa [#allocation7], 1
    %s3785 = scalar_lea.sflag [#allocation7], 1
    %3786 = vsyncpa %s3785, 1

</llo_original>
